<compile_context>
chip_gen: v7x
topology: tpu7x:2x2x1
jax: 0.10.0
libtpu: 0.0.40
codegen_flags: <defaults>
</compile_context>

<pallas_src>
import math
import numpy as np
import jax
import jax.numpy as jnp
from jax.experimental import pallas as pl
from jax.experimental.pallas import tpu as pltpu


# ---------------------------------------------------------------------------
# Kernel
# ---------------------------------------------------------------------------
def _spectral_kernel(x_ref, wr_ref, wi_ref, cos_ref, sin_ref, o_ref):
    """One grid step: TB batch elements, all C channels, the full 32x32 grid.

    x_ref  : (TB, C, A, A)  real token grid, dims (c, m, n)
    wr/wi  : (C, A, A)      Hermitian-extended spectral weight, dims (c, q, p),
                            already scaled by 1/(A*A) (both 'ortho' norms)
    cos/sin: (A, A)         cos/sin(2*pi*j*k/A)  (symmetric DFT matrices)
    o_ref  : (TB, C, A, A)  output, dims (c, m, n), float32
    """
    tb, c, a, _ = x_ref.shape
    bc = tb * c

    # Native-dtype load, f32 compute (mirrors torch's .to(float32) before the FFT).
    g = x_ref[...].astype(jnp.float32).reshape(bc * a, a)   # rows=(b,c,m), lanes=n
    cosm = cos_ref[...]
    sinm = sin_ref[...]

    def mm(lhs, rhs):
        return jnp.dot(lhs, rhs, preferred_element_type=jnp.float32)

    def swap_minor(v):   # per-(b,c) 32x32 transpose of the minor two dims
        return jnp.swapaxes(v.reshape(bc, a, a), 1, 2).reshape(bc * a, a)

    # ---- forward DFT over n (last spatial axis): A[b,c,m,q] ----
    ar = mm(g, cosm)
    ai = -mm(g, sinm)

    # ---- forward DFT over m: X[b,c,q,p] ----
    ar_t = swap_minor(ar)                       # rows=(b,c,q), lanes=m
    ai_t = swap_minor(ai)
    xr = mm(ar_t, cosm) + mm(ai_t, sinm)        # rows=(b,c,q), lanes=p
    xi = mm(ai_t, cosm) - mm(ar_t, sinm)

    # ---- multiply by the complex spectral weight (elementwise, VPU) ----
    wr = wr_ref[...].reshape(1, c * a, a)
    wi = wi_ref[...].reshape(1, c * a, a)
    xr = xr.reshape(tb, c * a, a)
    xi = xi.reshape(tb, c * a, a)
    yr = (xr * wr - xi * wi).reshape(bc * a, a)
    yi = (xr * wi + xi * wr).reshape(bc * a, a)

    # ---- inverse DFT over p: Z[b,c,q,m] ----
    zr = mm(yr, cosm) - mm(yi, sinm)
    zi = mm(yr, sinm) + mm(yi, cosm)

    # ---- inverse DFT over q (real part only): y[b,c,m,n] ----
    zr_t = swap_minor(zr)                       # rows=(b,c,m), lanes=q
    zi_t = swap_minor(zi)
    y = mm(zr_t, cosm) - mm(zi_t, sinm)

    o_ref[...] = y.reshape(tb, c, a, a)


# ---------------------------------------------------------------------------
# Host-side constants
# ---------------------------------------------------------------------------
def _dft_matrices(a):
    k = np.arange(a)
    ang = (2.0 * np.pi / a) * np.outer(k, k)
    return (jnp.asarray(np.cos(ang), dtype=jnp.float32),
            jnp.asarray(np.sin(ang), dtype=jnp.float32))


def _prepare_weight(complex_weight, a):
    """(a, a//2+1, C, 2) -> Hermitian-extended full-spectrum weight as two real
    (C, a, a) arrays in (c, q, p) layout, with both 'ortho' norms folded in."""
    cw = complex_weight.astype(jnp.float32)
    wr = cw[..., 0]                              # (a, a//2+1, C)  [p, q, c]
    wi = cw[..., 1]
    p_idx = (-jnp.arange(a)) % a                 # p -> (-p) mod a
    q_idx = a - jnp.arange(a // 2 + 1, a)        # q in (a//2, a)  ->  a - q
    wr_hi = wr[p_idx][:, q_idx, :]               # conj: real unchanged
    wi_hi = -wi[p_idx][:, q_idx, :]              #       imag negated
    wr_full = jnp.concatenate([wr, wr_hi], axis=1)   # (a, a, C)  [p, q, c]
    wi_full = jnp.concatenate([wi, wi_hi], axis=1)
    scale = 1.0 / float(a * a)                   # 1/sqrt(a*a) forward * 1/sqrt(a*a) inverse
    wr_k = jnp.transpose(wr_full, (2, 1, 0)) * scale  # (C, a, a)  [c, q, p]
    wi_k = jnp.transpose(wi_full, (2, 1, 0)) * scale
    return wr_k, wi_k


def _pick_batch_tile(batch, per_batch_vmem_bytes, vmem_budget=8 << 20):
    """Largest divisor of `batch` that fits the VMEM budget; keep >= 2 grid steps
    when batch >= 2 so the parallel grid axis can shard across TensorCores (v7x)."""
    best = 1
    for d in range(1, batch + 1):
        if batch % d:
            continue
        if d * per_batch_vmem_bytes > vmem_budget:
            break
        if batch >= 2 and batch // d < 2:
            continue
        best = d
    return best


# ---------------------------------------------------------------------------
# Wrapper
# ---------------------------------------------------------------------------
def fourier_spectral_layer(x, complex_weight, spatial_size=None, *, batch_tile=None):
    """Pallas TPU forward of FourierSpectralLayer.

    x              : (B, C, H, W), any float dtype (cast to f32 inside the kernel)
    complex_weight : (h, h//2+1, C, 2) float32 parameter (h == 32 for this module)
    returns        : (B, C, 32, 32) float32
    """
    B, C, H, W = x.shape
    N = H * W
    if spatial_size is None:
        a = b = int(math.isqrt(N))
    else:
        a, b = spatial_size
    h, w, dim, two = complex_weight.shape
    assert a * b == N, "spatial grid must cover all tokens"
    assert two == 2 and dim == C, "weight channel dim must match C"
    assert a == b == h and w == h // 2 + 1, "weight shape must match the token grid"
    assert N == 32 * 32, "module hardcodes the final reshape to (B, C, 32, 32)"
    # TODO(synk): non-square spatial_size would need separate row/col DFT matrices.

    # Token-grid reinterpretation (raw reshape == torch .view), then channels-first
    # so the kernel's matmul rows are the dense (c, m) axis and lanes hold a full
    # spatial row.  Layout plumbing stays in the wrapper.
    xg = x.reshape(B, N, C).reshape(B, a, a, C)
    xk = jnp.transpose(xg, (0, 3, 1, 2))              # (B, C, a, a)  dims (c, m, n)

    wr, wi = _prepare_weight(complex_weight, a)       # (C, a, a) each
    cosm, sinm = _dft_matrices(a)                     # (a, a) each

    itemsize = x.dtype.itemsize
    # rough per-batch VMEM footprint: in/out blocks plus ~14 f32 intermediates
    per_batch = C * a * a * (itemsize + 4 + 14 * 4)
    tb = batch_tile if batch_tile is not None else _pick_batch_tile(B, per_batch)
    assert B % tb == 0
    grid = (B // tb,)

    flops = 12 * 2 * (B * C * a) * a * a              # 12 (M,32)@(32,32) matmuls
    bytes_accessed = (B * C * a * a * (itemsize + 4)  # x in (native dtype), y out (f32)
                      + 2 * C * a * a * 4             # spectral weight
                      + 2 * a * a * 4)                # DFT matrices

    yk = pl.pallas_call(
        _spectral_kernel,
        out_shape=jax.ShapeDtypeStruct((B, C, a, a), jnp.float32),
        grid_spec=pltpu.PrefetchScalarGridSpec(
            num_scalar_prefetch=0,
            grid=grid,
            in_specs=[
                pl.BlockSpec((tb, C, a, a), lambda i: (i, 0, 0, 0)),
                pl.BlockSpec((C, a, a), lambda i: (0, 0, 0)),
                pl.BlockSpec((C, a, a), lambda i: (0, 0, 0)),
                pl.BlockSpec((a, a), lambda i: (0, 0)),
                pl.BlockSpec((a, a), lambda i: (0, 0)),
            ],
            out_specs=pl.BlockSpec((tb, C, a, a), lambda i: (i, 0, 0, 0)),
        ),
        compiler_params=pltpu.CompilerParams(
            dimension_semantics=("parallel",)),
        cost_estimate=pl.CostEstimate(
            flops=flops, transcendentals=0, bytes_accessed=bytes_accessed),
    )(xk, wr, wi, cosm, sinm)

    # Back to the module's output layout: (b,c,m,n) -> (b,m,n,c) -> (B,N,C) -> (B,C,32,32)
    yg = jnp.transpose(yk, (0, 2, 3, 1))
    return yg.reshape(B, N, C).reshape(B, C, 32, 32)


# ---------------------------------------------------------------------------
# Pure-JAX reference (identical semantics to the torch module)
# ---------------------------------------------------------------------------
def fourier_reference(x, complex_weight):
    B, C, H, W = x.shape
    N = H * W
    a = int(math.isqrt(N))
    xg = x.reshape(B, N, C).reshape(B, a, a, C).astype(jnp.float32)
    Xf = jnp.fft.rfft2(xg, axes=(1, 2), norm="ortho")
    wc = complex_weight[..., 0] + 1j * complex_weight[..., 1]     # (a, a//2+1, C)
    Xf = Xf * wc[None]
    y = jnp.fft.irfft2(Xf, s=(a, a), axes=(1, 2), norm="ortho")
    return y.reshape(B, N, C).reshape(B, C, 32, 32)


if __name__ == "__main__":
    key = jax.random.PRNGKey(0)
    kx, kw = jax.random.split(key)

    # The module only supports a 32x32 token grid (weight is (32, 17, dim) and the
    # final reshape is hardcoded to (B, C, 32, 32)); keep batch/dim small.
    B, dim, H, W = 2, 16, 32, 32
    x = jax.random.normal(kx, (B, dim, H, W), dtype=jnp.float32)
    complex_weight = 0.02 * jax.random.normal(kw, (32, 17, dim, 2), dtype=jnp.float32)

    out = jax.block_until_ready(fourier_spectral_layer(x, complex_weight))

    ref = fourier_reference(x, complex_weight)
    assert out.shape == (B, dim, 32, 32) and out.dtype == jnp.float32
    max_err = float(jnp.max(jnp.abs(out - ref)))
    assert jnp.allclose(out, ref, atol=5e-3, rtol=5e-2), (
        f"mismatch vs jnp.fft reference (max abs err={max_err})")

    print("KERNEL_OK")
</pallas_src>

<mosaic_0001>
module attributes {stable_mosaic.version = 11 : i64} {
  func.func @_spectral_kernel(%arg0: i32, %arg1: memref<1x16x32x32xf32, #tpu.memory_space<vmem>>, %arg2: memref<16x32x32xf32, #tpu.memory_space<vmem>>, %arg3: memref<16x32x32xf32, #tpu.memory_space<vmem>>, %arg4: memref<32x32xf32, #tpu.memory_space<vmem>>, %arg5: memref<32x32xf32, #tpu.memory_space<vmem>>, %arg6: memref<1x16x32x32xf32, #tpu.memory_space<vmem>>) attributes {dimension_semantics = [#tpu.dimension_semantics<parallel>], iteration_bounds = array<i64: 2>, scalar_prefetch = 0 : i64, scratch_operands = 0 : i64, tpu.core_type = #tpu.core_type<tc>, window_params = [{transform_indices = @transform_0, window_bounds = array<i64: 1, 16, 32, 32>}, {pipeline_mode = #tpu.pipeline_mode<synchronous>, transform_indices = @transform_1, window_bounds = array<i64: 16, 32, 32>}, {pipeline_mode = #tpu.pipeline_mode<synchronous>, transform_indices = @transform_2, window_bounds = array<i64: 16, 32, 32>}, {pipeline_mode = #tpu.pipeline_mode<synchronous>, transform_indices = @transform_3, window_bounds = array<i64: 32, 32>}, {pipeline_mode = #tpu.pipeline_mode<synchronous>, transform_indices = @transform_4, window_bounds = array<i64: 32, 32>}, {transform_indices = @transform_5, window_bounds = array<i64: 1, 16, 32, 32>}]} {
    %c0 = arith.constant 0 : index
    %c0_0 = arith.constant 0 : index
    %c0_1 = arith.constant 0 : index
    %c0_2 = arith.constant 0 : index
    %0 = vector.load %arg1[%c0, %c0_0, %c0_1, %c0_2] : memref<1x16x32x32xf32, #tpu.memory_space<vmem>>, vector<1x16x32x32xf32>
    %1 = vector.shape_cast %0 : vector<1x16x32x32xf32> to vector<512x32xf32>
    %c0_3 = arith.constant 0 : index
    %c0_4 = arith.constant 0 : index
    %2 = vector.load %arg4[%c0_3, %c0_4] : memref<32x32xf32, #tpu.memory_space<vmem>>, vector<32x32xf32>
    %c0_5 = arith.constant 0 : index
    %c0_6 = arith.constant 0 : index
    %3 = vector.load %arg5[%c0_5, %c0_6] : memref<32x32xf32, #tpu.memory_space<vmem>>, vector<32x32xf32>
    %cst = arith.constant dense<0.000000e+00> : vector<512x32xf32>
    %4 = tpu.matmul %1, %2, %cst {dimension_numbers = #tpu.dot_dimension_numbers<[1], [0], [0], [1], [0, 0, 1, 1], [], []>} : vector<512x32xf32>, vector<32x32xf32>, vector<512x32xf32> -> vector<512x32xf32>
    %cst_7 = arith.constant dense<0.000000e+00> : vector<512x32xf32>
    %5 = tpu.matmul %1, %3, %cst_7 {dimension_numbers = #tpu.dot_dimension_numbers<[1], [0], [0], [1], [0, 0, 1, 1], [], []>} : vector<512x32xf32>, vector<32x32xf32>, vector<512x32xf32> -> vector<512x32xf32>
    %cst_8 = arith.constant 0.000000e+00 : f32
    %6 = vector.broadcast %cst_8 : f32 to vector<512x32xf32>
    %7 = arith.subf %6, %5 : vector<512x32xf32>
    %8 = vector.shape_cast %4 : vector<512x32xf32> to vector<16x32x32xf32>
    %9 = tpu.transpose %8, [0, 2, 1] : vector<16x32x32xf32> -> vector<16x32x32xf32>
    %10 = vector.shape_cast %9 : vector<16x32x32xf32> to vector<512x32xf32>
    %11 = vector.shape_cast %7 : vector<512x32xf32> to vector<16x32x32xf32>
    %12 = tpu.transpose %11, [0, 2, 1] : vector<16x32x32xf32> -> vector<16x32x32xf32>
    %13 = vector.shape_cast %12 : vector<16x32x32xf32> to vector<512x32xf32>
    %cst_9 = arith.constant dense<0.000000e+00> : vector<512x32xf32>
    %14 = tpu.matmul %10, %2, %cst_9 {dimension_numbers = #tpu.dot_dimension_numbers<[1], [0], [0], [1], [0, 0, 1, 1], [], []>} : vector<512x32xf32>, vector<32x32xf32>, vector<512x32xf32> -> vector<512x32xf32>
    %cst_10 = arith.constant dense<0.000000e+00> : vector<512x32xf32>
    %15 = tpu.matmul %13, %3, %cst_10 {dimension_numbers = #tpu.dot_dimension_numbers<[1], [0], [0], [1], [0, 0, 1, 1], [], []>} : vector<512x32xf32>, vector<32x32xf32>, vector<512x32xf32> -> vector<512x32xf32>
    %16 = arith.addf %14, %15 : vector<512x32xf32>
    %cst_11 = arith.constant dense<0.000000e+00> : vector<512x32xf32>
    %17 = tpu.matmul %13, %2, %cst_11 {dimension_numbers = #tpu.dot_dimension_numbers<[1], [0], [0], [1], [0, 0, 1, 1], [], []>} : vector<512x32xf32>, vector<32x32xf32>, vector<512x32xf32> -> vector<512x32xf32>
    %cst_12 = arith.constant dense<0.000000e+00> : vector<512x32xf32>
    %18 = tpu.matmul %10, %3, %cst_12 {dimension_numbers = #tpu.dot_dimension_numbers<[1], [0], [0], [1], [0, 0, 1, 1], [], []>} : vector<512x32xf32>, vector<32x32xf32>, vector<512x32xf32> -> vector<512x32xf32>
    %19 = arith.subf %17, %18 : vector<512x32xf32>
    %c0_13 = arith.constant 0 : index
    %c0_14 = arith.constant 0 : index
    %c0_15 = arith.constant 0 : index
    %20 = vector.load %arg2[%c0_13, %c0_14, %c0_15] : memref<16x32x32xf32, #tpu.memory_space<vmem>>, vector<16x32x32xf32>
    %21 = vector.shape_cast %20 : vector<16x32x32xf32> to vector<1x512x32xf32>
    %c0_16 = arith.constant 0 : index
    %c0_17 = arith.constant 0 : index
    %c0_18 = arith.constant 0 : index
    %22 = vector.load %arg3[%c0_16, %c0_17, %c0_18] : memref<16x32x32xf32, #tpu.memory_space<vmem>>, vector<16x32x32xf32>
    %23 = vector.shape_cast %22 : vector<16x32x32xf32> to vector<1x512x32xf32>
    %24 = vector.shape_cast %16 : vector<512x32xf32> to vector<1x512x32xf32>
    %25 = vector.shape_cast %19 : vector<512x32xf32> to vector<1x512x32xf32>
    %26 = arith.mulf %24, %21 : vector<1x512x32xf32>
    %27 = arith.mulf %25, %23 : vector<1x512x32xf32>
    %28 = arith.subf %26, %27 : vector<1x512x32xf32>
    %29 = vector.shape_cast %28 : vector<1x512x32xf32> to vector<512x32xf32>
    %30 = arith.mulf %24, %23 : vector<1x512x32xf32>
    %31 = arith.mulf %25, %21 : vector<1x512x32xf32>
    %32 = arith.addf %30, %31 : vector<1x512x32xf32>
    %33 = vector.shape_cast %32 : vector<1x512x32xf32> to vector<512x32xf32>
    %cst_19 = arith.constant dense<0.000000e+00> : vector<512x32xf32>
    %34 = tpu.matmul %29, %2, %cst_19 {dimension_numbers = #tpu.dot_dimension_numbers<[1], [0], [0], [1], [0, 0, 1, 1], [], []>} : vector<512x32xf32>, vector<32x32xf32>, vector<512x32xf32> -> vector<512x32xf32>
    %cst_20 = arith.constant dense<0.000000e+00> : vector<512x32xf32>
    %35 = tpu.matmul %33, %3, %cst_20 {dimension_numbers = #tpu.dot_dimension_numbers<[1], [0], [0], [1], [0, 0, 1, 1], [], []>} : vector<512x32xf32>, vector<32x32xf32>, vector<512x32xf32> -> vector<512x32xf32>
    %36 = arith.subf %34, %35 : vector<512x32xf32>
    %cst_21 = arith.constant dense<0.000000e+00> : vector<512x32xf32>
    %37 = tpu.matmul %29, %3, %cst_21 {dimension_numbers = #tpu.dot_dimension_numbers<[1], [0], [0], [1], [0, 0, 1, 1], [], []>} : vector<512x32xf32>, vector<32x32xf32>, vector<512x32xf32> -> vector<512x32xf32>
    %cst_22 = arith.constant dense<0.000000e+00> : vector<512x32xf32>
    %38 = tpu.matmul %33, %2, %cst_22 {dimension_numbers = #tpu.dot_dimension_numbers<[1], [0], [0], [1], [0, 0, 1, 1], [], []>} : vector<512x32xf32>, vector<32x32xf32>, vector<512x32xf32> -> vector<512x32xf32>
    %39 = arith.addf %37, %38 : vector<512x32xf32>
    %40 = vector.shape_cast %36 : vector<512x32xf32> to vector<16x32x32xf32>
    %41 = tpu.transpose %40, [0, 2, 1] : vector<16x32x32xf32> -> vector<16x32x32xf32>
    %42 = vector.shape_cast %41 : vector<16x32x32xf32> to vector<512x32xf32>
    %43 = vector.shape_cast %39 : vector<512x32xf32> to vector<16x32x32xf32>
    %44 = tpu.transpose %43, [0, 2, 1] : vector<16x32x32xf32> -> vector<16x32x32xf32>
    %45 = vector.shape_cast %44 : vector<16x32x32xf32> to vector<512x32xf32>
    %cst_23 = arith.constant dense<0.000000e+00> : vector<512x32xf32>
    %46 = tpu.matmul %42, %2, %cst_23 {dimension_numbers = #tpu.dot_dimension_numbers<[1], [0], [0], [1], [0, 0, 1, 1], [], []>} : vector<512x32xf32>, vector<32x32xf32>, vector<512x32xf32> -> vector<512x32xf32>
    %cst_24 = arith.constant dense<0.000000e+00> : vector<512x32xf32>
    %47 = tpu.matmul %45, %3, %cst_24 {dimension_numbers = #tpu.dot_dimension_numbers<[1], [0], [0], [1], [0, 0, 1, 1], [], []>} : vector<512x32xf32>, vector<32x32xf32>, vector<512x32xf32> -> vector<512x32xf32>
    %48 = arith.subf %46, %47 : vector<512x32xf32>
    %49 = vector.shape_cast %48 : vector<512x32xf32> to vector<1x16x32x32xf32>
    %c0_25 = arith.constant 0 : index
    %c0_26 = arith.constant 0 : index
    %c0_27 = arith.constant 0 : index
    %c0_28 = arith.constant 0 : index
    %50 = vector.load %arg6[%c0_25, %c0_26, %c0_27, %c0_28] : memref<1x16x32x32xf32, #tpu.memory_space<vmem>>, vector<1x16x32x32xf32>
    tpu.vector_store %arg6[%c0_25, %c0_26, %c0_27, %c0_28], %49 {strides = array<i32>} : memref<1x16x32x32xf32, #tpu.memory_space<vmem>>, vector<1x16x32x32xf32>,
    return
  }
  func.func @transform_0(%arg0: i32) -> (i32, i32, i32, i32) {
    %c0_i32 = arith.constant 0 : i32
    %c0_i32_0 = arith.constant 0 : i32
    %c0_i32_1 = arith.constant 0 : i32
    %c0_i32_2 = arith.constant 0 : i32
    return %arg0, %c0_i32, %c0_i32_0, %c0_i32_1 : i32, i32, i32, i32
  }
  func.func @transform_1(%arg0: i32) -> (i32, i32, i32) {
    %c0_i32 = arith.constant 0 : i32
    %c0_i32_0 = arith.constant 0 : i32
    %c0_i32_1 = arith.constant 0 : i32
    %c0_i32_2 = arith.constant 0 : i32
    return %c0_i32, %c0_i32_0, %c0_i32_1 : i32, i32, i32
  }
  func.func @transform_2(%arg0: i32) -> (i32, i32, i32) {
    %c0_i32 = arith.constant 0 : i32
    %c0_i32_0 = arith.constant 0 : i32
    %c0_i32_1 = arith.constant 0 : i32
    %c0_i32_2 = arith.constant 0 : i32
    return %c0_i32, %c0_i32_0, %c0_i32_1 : i32, i32, i32
  }
  func.func @transform_3(%arg0: i32) -> (i32, i32) {
    %c0_i32 = arith.constant 0 : i32
    %c0_i32_0 = arith.constant 0 : i32
    %c0_i32_1 = arith.constant 0 : i32
    return %c0_i32, %c0_i32_0 : i32, i32
  }
  func.func @transform_4(%arg0: i32) -> (i32, i32) {
    %c0_i32 = arith.constant 0 : i32
    %c0_i32_0 = arith.constant 0 : i32
    %c0_i32_1 = arith.constant 0 : i32
    return %c0_i32, %c0_i32_0 : i32, i32
  }
  func.func @transform_5(%arg0: i32) -> (i32, i32, i32, i32) {
    %c0_i32 = arith.constant 0 : i32
    %c0_i32_0 = arith.constant 0 : i32
    %c0_i32_1 = arith.constant 0 : i32
    %c0_i32_2 = arith.constant 0 : i32
    return %arg0, %c0_i32, %c0_i32_0, %c0_i32_1 : i32, i32, i32, i32
  }
}

</mosaic_0001>

<llo_original>
// kernel: tpu_custom_call.1
$region0: #{tpu_custom_call.1}
  #allocation0 [shape = 'u32[]', space=smem, size = 0x4, offset = 0x4, fixed_abs, tag = 'smem constant byte address 0x4 - core index']
  #allocation1 [shape = 'u32[144,128]{1,0:T(1,128)}', space=vmem, size = 0x12000, scoped, tag = 'internal scratch']
  %s0 = inlined_call_operand.hbm [shape: f32[2,16,32,32], index: 0, kind: input, shape index: {}]
  %s1 = inlined_call_operand.hbm [shape: f32[16,32,32], index: 1, kind: input, shape index: {}]
  %s2 = inlined_call_operand.hbm [shape: f32[16,32,32], index: 2, kind: input, shape index: {}]
  %s3 = inlined_call_operand.hbm [shape: f32[32,32], index: 3, kind: input, shape index: {}]
  %s4 = inlined_call_operand.hbm [shape: f32[32,32], index: 4, kind: input, shape index: {}]
  %s5 = inlined_call_operand.hbm [shape: f32[2,16,32,32], index: 5, kind: output, shape index: {}]
  %s6 = sld [smem:[#allocation0]]
  $region73: #{tpu_custom_call.1} parent=0
    _
  %s8 = ssub.s32 1, %s6
  %s9 = scalar_select 0, %s8, %s6
  $region1: #{tpu_custom_call.1} parent=0
    #allocation2 [shape = 'u8[524288]{0}', space=vmem, size = 0x80000, scoped, tag = 'input window, operand 0']
    #allocation3 [shape = 's32[2]{0}', space=sflag, size = 0x8, scoped, tag = 'scoped memory for tpu_custom_call.1']
    #allocation4 [shape = 's32[2]{0}', space=sflag, size = 0x8, scoped, tag = 'scoped memory for tpu_custom_call.1']
    #allocation5 [shape = 'u8[262144]{0}', space=vmem, size = 0x40000, scoped, tag = 'input window, operand 1, single buffered']
    #allocation6 [shape = 's32[1]{0}', space=sflag, size = 0x4, scoped, tag = 'scoped memory for tpu_custom_call.1']
    #allocation7 [shape = 'u8[262144]{0}', space=vmem, size = 0x40000, scoped, tag = 'input window, operand 2, single buffered']
    #allocation8 [shape = 'u8[16384]{0}', space=vmem, size = 0x4000, scoped, tag = 'input window, operand 3, single buffered']
    #allocation9 [shape = 's32[1]{0}', space=sflag, size = 0x4, scoped, tag = 'scoped memory for tpu_custom_call.1']
    #allocation10 [shape = 'u8[16384]{0}', space=vmem, size = 0x4000, scoped, tag = 'input window, operand 4, single buffered']
    #allocation11 [shape = 'u8[524288]{0}', space=vmem, size = 0x80000, scoped, tag = 'output window, operand 0']
    %10 = vsyncpa [#allocation3], 0
    %s11 = scalar_lea.sflag [#allocation3], 1
    %12 = vsyncpa %s11, 0
    %13 = vsyncpa [#allocation6], 0
    %14 = vsyncpa [#allocation9], 0
    %15 = vsyncpa [#allocation4], 0
    %s16 = scalar_lea.sflag [#allocation4], 1
    %17 = vsyncpa %s16, 0
    loop: start=0, step=1, limit=4
    $region2: #{tpu_custom_call.1} parent=1 // loop_pre_header
      _
    $region3: #{tpu_custom_call.1} parent=1 // loop_header
      %s19 = sphi 0, %s23
      %p20 = scmp.ge.s32.totalorder %s19, 4
      %s29 = sphi 0, %s31
      %s32 = sphi 0, %s29
      %s33 = sphi 0, %s32
      %s49 = sphi 0, %s33
      %s53 = sphi 0, %s53
      %s55 = sphi 0, %s53
      %s56 = sphi 0, %s55
      %s70 = sphi 0, %s56
      %s74 = sphi 0, %s74
      %s76 = sphi 0, %s74
      %s77 = sphi 0, %s76
      %s91 = sphi 0, %s77
      %s95 = sphi 0, %s95
      %s97 = sphi 0, %s95
      %s98 = sphi 0, %s97
      %s112 = sphi 0, %s98
      %s116 = sphi 0, %s116
      %s118 = sphi 0, %s116
      %s119 = sphi 0, %s118
      %s133 = sphi 0, %s119
      %s139 = sphi 0, %s141
      %s142 = sphi 0, %s139
      %s143 = sphi 0, %s142
      %s159 = sphi 0, %s143
    $region4: #{tpu_custom_call.1} parent=1 // loop_header_branch
      %22 = sbr.rel (%p20) target = $region8
    $region5: #{tpu_custom_call.1} parent=1 // loop_body
      %s24 = ssub.s32 %s19, 1
      %s25 = ssub.s32 %s19, 2
      %s26 = sadd.s32 %s19, 1
      %s27 = ssub.s32 %s19, %s26
      %p28 = scmp.eq.s32.totalorder %s27, 0
      %s30 = sadd.s32 %s29, 1
      %s31 = scalar_select %p28, %s29, %s30
      %p34 = pneg %p28
      %p35 = scmp.eq.s32.totalorder %s19, 1
      %p36 = por %p34, %p35
      %p37 = scmp.ne.s32.totalorder %s29, %s32
      %p38 = scmp.eq.s32.totalorder %s19, 0
      %p39 = por %p37, %p38
      %p40 = scmp.ne.s32.totalorder %s29, %s32
      %p41 = scmp.eq.s32.totalorder %s24, 1
      %p42 = por %p40, %p41
      %p43 = scmp.ne.s32.totalorder %s32, %s33
      %p44 = scmp.eq.s32.totalorder %s24, 0
      %p45 = por %p43, %p44
      %p46 = scmp.ne.s32.totalorder %s32, %s33
      %p47 = scmp.eq.s32.totalorder %s25, 1
      %p48 = por %p46, %p47
      %p50 = scmp.ne.s32.totalorder %s33, %s49
      %p51 = scmp.eq.s32.totalorder %s25, 0
      %p52 = por %p50, %p51
      %s54 = sadd.s32 %s53, 1
      %p57 = scmp.eq.s32.totalorder %s19, 1
      %p58 = scmp.ne.s32.totalorder %s53, %s55
      %p59 = scmp.eq.s32.totalorder %s19, 0
      %p60 = por %p58, %p59
      %p61 = scmp.ne.s32.totalorder %s53, %s55
      %p62 = scmp.eq.s32.totalorder %s24, 1
      %p63 = por %p61, %p62
      %p64 = scmp.ne.s32.totalorder %s55, %s56
      %p65 = scmp.eq.s32.totalorder %s24, 0
      %p66 = por %p64, %p65
      %p67 = scmp.ne.s32.totalorder %s55, %s56
      %p68 = scmp.eq.s32.totalorder %s25, 1
      %p69 = por %p67, %p68
      %p71 = scmp.ne.s32.totalorder %s56, %s70
      %p72 = scmp.eq.s32.totalorder %s25, 0
      %p73 = por %p71, %p72
      %s75 = sadd.s32 %s74, 1
      %p78 = scmp.eq.s32.totalorder %s19, 1
      %p79 = scmp.ne.s32.totalorder %s74, %s76
      %p80 = scmp.eq.s32.totalorder %s19, 0
      %p81 = por %p79, %p80
      %p82 = scmp.ne.s32.totalorder %s74, %s76
      %p83 = scmp.eq.s32.totalorder %s24, 1
      %p84 = por %p82, %p83
      %p85 = scmp.ne.s32.totalorder %s76, %s77
      %p86 = scmp.eq.s32.totalorder %s24, 0
      %p87 = por %p85, %p86
      %p88 = scmp.ne.s32.totalorder %s76, %s77
      %p89 = scmp.eq.s32.totalorder %s25, 1
      %p90 = por %p88, %p89
      %p92 = scmp.ne.s32.totalorder %s77, %s91
      %p93 = scmp.eq.s32.totalorder %s25, 0
      %p94 = por %p92, %p93
      %s96 = sadd.s32 %s95, 1
      %p99 = scmp.eq.s32.totalorder %s19, 1
      %p100 = scmp.ne.s32.totalorder %s95, %s97
      %p101 = scmp.eq.s32.totalorder %s19, 0
      %p102 = por %p100, %p101
      %p103 = scmp.ne.s32.totalorder %s95, %s97
      %p104 = scmp.eq.s32.totalorder %s24, 1
      %p105 = por %p103, %p104
      %p106 = scmp.ne.s32.totalorder %s97, %s98
      %p107 = scmp.eq.s32.totalorder %s24, 0
      %p108 = por %p106, %p107
      %p109 = scmp.ne.s32.totalorder %s97, %s98
      %p110 = scmp.eq.s32.totalorder %s25, 1
      %p111 = por %p109, %p110
      %p113 = scmp.ne.s32.totalorder %s98, %s112
      %p114 = scmp.eq.s32.totalorder %s25, 0
      %p115 = por %p113, %p114
      %s117 = sadd.s32 %s116, 1
      %p120 = scmp.eq.s32.totalorder %s19, 1
      %p121 = scmp.ne.s32.totalorder %s116, %s118
      %p122 = scmp.eq.s32.totalorder %s19, 0
      %p123 = por %p121, %p122
      %p124 = scmp.ne.s32.totalorder %s116, %s118
      %p125 = scmp.eq.s32.totalorder %s24, 1
      %p126 = por %p124, %p125
      %p127 = scmp.ne.s32.totalorder %s118, %s119
      %p128 = scmp.eq.s32.totalorder %s24, 0
      %p129 = por %p127, %p128
      %p130 = scmp.ne.s32.totalorder %s118, %s119
      %p131 = scmp.eq.s32.totalorder %s25, 1
      %p132 = por %p130, %p131
      %p134 = scmp.ne.s32.totalorder %s119, %s133
      %p135 = scmp.eq.s32.totalorder %s25, 0
      %p136 = por %p134, %p135
      %s137 = ssub.s32 %s19, %s26
      %p138 = scmp.eq.s32.totalorder %s137, 0
      %s140 = sadd.s32 %s139, 1
      %s141 = scalar_select %p138, %s139, %s140
      %p144 = pneg %p138
      %p145 = scmp.eq.s32.totalorder %s19, 1
      %p146 = por %p144, %p145
      %p147 = scmp.ne.s32.totalorder %s139, %s142
      %p148 = scmp.eq.s32.totalorder %s19, 0
      %p149 = por %p147, %p148
      %p150 = scmp.ne.s32.totalorder %s139, %s142
      %p151 = scmp.eq.s32.totalorder %s24, 1
      %p152 = por %p150, %p151
      %p153 = scmp.ne.s32.totalorder %s142, %s143
      %p154 = scmp.eq.s32.totalorder %s24, 0
      %p155 = por %p153, %p154
      %p156 = scmp.ne.s32.totalorder %s142, %s143
      %p157 = scmp.eq.s32.totalorder %s25, 1
      %p158 = por %p156, %p157
      %p160 = scmp.ne.s32.totalorder %s143, %s159
      %p161 = scmp.eq.s32.totalorder %s25, 0
      %p162 = por %p160, %p161
      %p163 = scmp.le.s32.totalorder 1, %s19
      %p164 = scmp.lt.s32.totalorder %s19, 3
      %p165 = pnand %p163, %p164
      %p166 = pneg %p165
      // Predicated region
      $region9: #{tpu_custom_call.1} parent=5 // pred_check
        _
      $region10: #{tpu_custom_call.1} parent=5 // pred_check_branch
        %168 = sbr.rel (%p165) target = $region12
      $region11: #{tpu_custom_call.1} parent=5 // pred_region
        %s169 = ssub.s32 %s19, 1
        // Predicated region
        $region13: #{tpu_custom_call.1} parent=11 // pred_check
          %p170 = pneg %p66
        $region14: #{tpu_custom_call.1} parent=11 // pred_check_branch
          %172 = sbr.rel (%p170) target = $region16
        $region15: #{tpu_custom_call.1} parent=11 // pred_region
          %s174 = ssub.s32 8192, 8192
          %175 = vsyncadd [#allocation6], %s174
          %s176 = sshll.u32 [#allocation5], 4
          %s177 = int_to_ptr.vmem [resolvable:$true] %s176
          %182 = dma.hbm_to_vmem [thread:$0]  %s1, 8192, %s177, [#allocation6], 128, 128, 8
        $region16: #{tpu_custom_call.1} parent=11 // pred_fallthru
          _
        // Predicated region
        $region17: #{tpu_custom_call.1} parent=11 // pred_check
          %p183 = pneg %p87
        $region18: #{tpu_custom_call.1} parent=11 // pred_check_branch
          %185 = sbr.rel (%p183) target = $region20
        $region19: #{tpu_custom_call.1} parent=11 // pred_region
          %s187 = ssub.s32 8192, 8192
          %188 = vsyncadd [#allocation6], %s187
          %s189 = sshll.u32 [#allocation7], 4
          %s190 = int_to_ptr.vmem [resolvable:$true] %s189
          %195 = dma.hbm_to_vmem [thread:$0]  %s2, 8192, %s190, [#allocation6], 128, 128, 8
        $region20: #{tpu_custom_call.1} parent=11 // pred_fallthru
          _
        // Predicated region
        $region21: #{tpu_custom_call.1} parent=11 // pred_check
          %p196 = pneg %p108
        $region22: #{tpu_custom_call.1} parent=11 // pred_check_branch
          %198 = sbr.rel (%p196) target = $region24
        $region23: #{tpu_custom_call.1} parent=11 // pred_region
          %s200 = ssub.s32 512, 512
          %201 = vsyncadd [#allocation9], %s200
          %s202 = sshll.u32 [#allocation8], 4
          %s203 = int_to_ptr.vmem [resolvable:$true] %s202
          %208 = dma.hbm_to_vmem [thread:$0]  %s3, 512, %s203, [#allocation9], 128, 128, 8
        $region24: #{tpu_custom_call.1} parent=11 // pred_fallthru
          _
        // Predicated region
        $region25: #{tpu_custom_call.1} parent=11 // pred_check
          %p209 = pneg %p129
        $region26: #{tpu_custom_call.1} parent=11 // pred_check_branch
          %211 = sbr.rel (%p209) target = $region28
        $region27: #{tpu_custom_call.1} parent=11 // pred_region
          %s213 = ssub.s32 512, 512
          %214 = vsyncadd [#allocation9], %s213
          %s215 = sshll.u32 [#allocation10], 4
          %s216 = int_to_ptr.vmem [resolvable:$true] %s215
          %221 = dma.hbm_to_vmem [thread:$0]  %s4, 512, %s216, [#allocation9], 128, 128, 8
        $region28: #{tpu_custom_call.1} parent=11 // pred_fallthru
          _
      $region12: #{tpu_custom_call.1} parent=5 // pred_fallthru
        _
      %p222 = scmp.lt.s32.totalorder %s19, 2
      // Predicated region
      $region29: #{tpu_custom_call.1} parent=5 // pred_check
        %p223 = pneg %p222
      $region30: #{tpu_custom_call.1} parent=5 // pred_check_branch
        %225 = sbr.rel (%p223) target = $region32
      $region31: #{tpu_custom_call.1} parent=5 // pred_region
        // Predicated region
        $region33: #{tpu_custom_call.1} parent=31 // pred_check
          %p226 = pneg %p39
        $region34: #{tpu_custom_call.1} parent=31 // pred_check_branch
          %228 = sbr.rel (%p226) target = $region36
        $region35: #{tpu_custom_call.1} parent=31 // pred_region
          %s229 = sand.u32 %s29, 1
          %s230 = scalar_lea.sflag [#allocation3], %s229
          %s231 = sand.u32 %s29, 1
          %s232 = smul.addr %s231, 512
          %s233 = scalar_lea.vmem [#allocation2], %s232
          %s235 = ssub.s32 8192, 8192
          %236 = vsyncadd %s230, %s235
          %s237 = smul.addr %s19, 64
          %s238 = smul.addr %s237, 128
          %s239 = scalar_lea.hbm %s0, %s238
          %s240 = sshll.u32 %s233, 4
          %s241 = int_to_ptr.vmem [resolvable:$true] %s240
          %246 = dma.hbm_to_vmem [thread:$0]  %s239, 8192, %s241, %s230, 128, 128, 8
        $region36: #{tpu_custom_call.1} parent=31 // pred_fallthru
          _
      $region32: #{tpu_custom_call.1} parent=5 // pred_fallthru
        _
      %p247 = scmp.le.s32.totalorder 1, %s19
      %p248 = scmp.lt.s32.totalorder %s19, 3
      %p249 = pnand %p247, %p248
      %p250 = pneg %p249
      // Predicated region
      $region37: #{tpu_custom_call.1} parent=5 // pred_check
        _
      $region38: #{tpu_custom_call.1} parent=5 // pred_check_branch
        %252 = sbr.rel (%p249) target = $region40
      $region39: #{tpu_custom_call.1} parent=5 // pred_region
        %s253 = ssub.s32 %s19, 1
        %s254 = sand.u32 %s32, 1
        %s255 = scalar_lea.sflag [#allocation3], %s254
        %s256 = sand.u32 %s32, 1
        %s257 = smul.addr %s256, 512
        %s258 = scalar_lea.vmem [#allocation2], %s257
        // Predicated region
        $region41: #{tpu_custom_call.1} parent=39 // pred_check
          %p259 = pneg %p45
        $region42: #{tpu_custom_call.1} parent=39 // pred_check_branch
          %261 = sbr.rel (%p259) target = $region44
        $region43: #{tpu_custom_call.1} parent=39 // pred_region
          %262 = dma.done %s255, 8192
        $region44: #{tpu_custom_call.1} parent=39 // pred_fallthru
          _
        // Predicated region
        $region45: #{tpu_custom_call.1} parent=39 // pred_check
          %p263 = pneg %p66
        $region46: #{tpu_custom_call.1} parent=39 // pred_check_branch
          %265 = sbr.rel (%p263) target = $region48
        $region47: #{tpu_custom_call.1} parent=39 // pred_region
          %266 = dma.done [#allocation6], 8192
        $region48: #{tpu_custom_call.1} parent=39 // pred_fallthru
          _
        // Predicated region
        $region49: #{tpu_custom_call.1} parent=39 // pred_check
          %p267 = pneg %p87
        $region50: #{tpu_custom_call.1} parent=39 // pred_check_branch
          %269 = sbr.rel (%p267) target = $region52
        $region51: #{tpu_custom_call.1} parent=39 // pred_region
          %270 = dma.done [#allocation6], 8192
        $region52: #{tpu_custom_call.1} parent=39 // pred_fallthru
          _
        // Predicated region
        $region53: #{tpu_custom_call.1} parent=39 // pred_check
          %p271 = pneg %p108
        $region54: #{tpu_custom_call.1} parent=39 // pred_check_branch
          %273 = sbr.rel (%p271) target = $region56
        $region55: #{tpu_custom_call.1} parent=39 // pred_region
          %274 = dma.done [#allocation9], 512
        $region56: #{tpu_custom_call.1} parent=39 // pred_fallthru
          _
        // Predicated region
        $region57: #{tpu_custom_call.1} parent=39 // pred_check
          %p275 = pneg %p129
        $region58: #{tpu_custom_call.1} parent=39 // pred_check_branch
          %277 = sbr.rel (%p275) target = $region60
        $region59: #{tpu_custom_call.1} parent=39 // pred_region
          %278 = dma.done [#allocation9], 512
        $region60: #{tpu_custom_call.1} parent=39 // pred_fallthru
          _
        %s279 = sand.u32 %s32, 1
        %s280 = scalar_lea.sflag [#allocation3], %s279
        %s281 = sand.u32 %s32, 1
        %s282 = smul.addr %s281, 512
        %s283 = scalar_lea.vmem [#allocation2], %s282
        %p284 = pneg %p45
        %p285 = pneg %p42
        %p286 = pneg %p66
        %p287 = pneg %p63
        %p288 = pneg %p87
        %p289 = pneg %p84
        %p290 = pneg %p108
        %p291 = pneg %p105
        %p292 = pneg %p129
        %p293 = pneg %p126
        %p294 = pneg %p155
        %p295 = pneg %p152
        %s296 = sand.u32 %s142, 1
        %s297 = scalar_lea.sflag [#allocation4], %s296
        %s298 = sand.u32 %s142, 1
        %s299 = smul.addr %s298, 512
        %s300 = scalar_lea.vmem [#allocation11], %s299
        %v301 = vld [vmem:[%s258] sm:$0xff]
        %v302 = vld [vmem:[%s258 + $0x8] sm:$0xff]
        %v303 = vld [vmem:[%s258 + $0x10] sm:$0xff]
        %v304 = vld [vmem:[%s258 + $0x18] sm:$0xff]
        %v305 = vld [vmem:[%s258 + $0x20] sm:$0xff]
        %v306 = vld [vmem:[%s258 + $0x28] sm:$0xff]
        %v307 = vld [vmem:[%s258 + $0x30] sm:$0xff]
        %v308 = vld [vmem:[%s258 + $0x38] sm:$0xff]
        %v309 = vld [vmem:[%s258 + $0x40] sm:$0xff]
        %v310 = vld [vmem:[%s258 + $0x48] sm:$0xff]
        %v311 = vld [vmem:[%s258 + $0x50] sm:$0xff]
        %v312 = vld [vmem:[%s258 + $0x58] sm:$0xff]
        %v313 = vld [vmem:[%s258 + $0x60] sm:$0xff]
        %v314 = vld [vmem:[%s258 + $0x68] sm:$0xff]
        %v315 = vld [vmem:[%s258 + $0x70] sm:$0xff]
        %v316 = vld [vmem:[%s258 + $0x78] sm:$0xff]
        %v317 = vld [vmem:[%s258 + $0x80] sm:$0xff]
        %v318 = vld [vmem:[%s258 + $0x88] sm:$0xff]
        %v319 = vld [vmem:[%s258 + $0x90] sm:$0xff]
        %v320 = vld [vmem:[%s258 + $0x98] sm:$0xff]
        %v321 = vld [vmem:[%s258 + $0xa0] sm:$0xff]
        %v322 = vld [vmem:[%s258 + $0xa8] sm:$0xff]
        %v323 = vld [vmem:[%s258 + $0xb0] sm:$0xff]
        %v324 = vld [vmem:[%s258 + $0xb8] sm:$0xff]
        %v325 = vld [vmem:[%s258 + $0xc0] sm:$0xff]
        %v326 = vld [vmem:[%s258 + $0xc8] sm:$0xff]
        %v327 = vld [vmem:[%s258 + $0xd0] sm:$0xff]
        %v328 = vld [vmem:[%s258 + $0xd8] sm:$0xff]
        %v329 = vld [vmem:[%s258 + $0xe0] sm:$0xff]
        %v330 = vld [vmem:[%s258 + $0xe8] sm:$0xff]
        %v331 = vld [vmem:[%s258 + $0xf0] sm:$0xff]
        %v332 = vld [vmem:[%s258 + $0xf8] sm:$0xff]
        %v333 = vld [vmem:[%s258 + $0x100] sm:$0xff]
        %v334 = vld [vmem:[%s258 + $0x108] sm:$0xff]
        %v335 = vld [vmem:[%s258 + $0x110] sm:$0xff]
        %v336 = vld [vmem:[%s258 + $0x118] sm:$0xff]
        %v337 = vld [vmem:[%s258 + $0x120] sm:$0xff]
        %v338 = vld [vmem:[%s258 + $0x128] sm:$0xff]
        %v339 = vld [vmem:[%s258 + $0x130] sm:$0xff]
        %v340 = vld [vmem:[%s258 + $0x138] sm:$0xff]
        %v341 = vld [vmem:[%s258 + $0x140] sm:$0xff]
        %v342 = vld [vmem:[%s258 + $0x148] sm:$0xff]
        %v343 = vld [vmem:[%s258 + $0x150] sm:$0xff]
        %v344 = vld [vmem:[%s258 + $0x158] sm:$0xff]
        %v345 = vld [vmem:[%s258 + $0x160] sm:$0xff]
        %v346 = vld [vmem:[%s258 + $0x168] sm:$0xff]
        %v347 = vld [vmem:[%s258 + $0x170] sm:$0xff]
        %v348 = vld [vmem:[%s258 + $0x178] sm:$0xff]
        %v349 = vld [vmem:[%s258 + $0x180] sm:$0xff]
        %v350 = vld [vmem:[%s258 + $0x188] sm:$0xff]
        %v351 = vld [vmem:[%s258 + $0x190] sm:$0xff]
        %v352 = vld [vmem:[%s258 + $0x198] sm:$0xff]
        %v353 = vld [vmem:[%s258 + $0x1a0] sm:$0xff]
        %v354 = vld [vmem:[%s258 + $0x1a8] sm:$0xff]
        %v355 = vld [vmem:[%s258 + $0x1b0] sm:$0xff]
        %v356 = vld [vmem:[%s258 + $0x1b8] sm:$0xff]
        %v357 = vld [vmem:[%s258 + $0x1c0] sm:$0xff]
        %v358 = vld [vmem:[%s258 + $0x1c8] sm:$0xff]
        %v359 = vld [vmem:[%s258 + $0x1d0] sm:$0xff]
        %v360 = vld [vmem:[%s258 + $0x1d8] sm:$0xff]
        %v361 = vld [vmem:[%s258 + $0x1e0] sm:$0xff]
        %v362 = vld [vmem:[%s258 + $0x1e8] sm:$0xff]
        %v363 = vld [vmem:[%s258 + $0x1f0] sm:$0xff]
        %v364 = vld [vmem:[%s258 + $0x1f8] sm:$0xff]
        %v365 = vld [vmem:[#allocation8] sm:$0xff]
        %v366 = vld [vmem:[#allocation8 + $0x8] sm:$0xff]
        %v367 = vld [vmem:[#allocation8 + $0x10] sm:$0xff]
        %v368 = vld [vmem:[#allocation8 + $0x18] sm:$0xff]
        %v369 = vld [vmem:[#allocation10] sm:$0xff]
        %v370 = vld [vmem:[#allocation10 + $0x8] sm:$0xff]
        %v371 = vld [vmem:[#allocation10 + $0x10] sm:$0xff]
        %v372 = vld [vmem:[#allocation10 + $0x18] sm:$0xff]
        %vm373 = vcmask 261120
        %v375 = vsel %vm373, %v301, 0
        %v378 = vsel %vm373, %v302, 0
        %v381 = vsel %vm373, %v303, 0
        %v384 = vsel %vm373, %v304, 0
        %v387 = vsel %vm373, %v305, 0
        %v390 = vsel %vm373, %v306, 0
        %v393 = vsel %vm373, %v307, 0
        %v396 = vsel %vm373, %v308, 0
        %v399 = vsel %vm373, %v309, 0
        %v402 = vsel %vm373, %v310, 0
        %v405 = vsel %vm373, %v311, 0
        %v408 = vsel %vm373, %v312, 0
        %v411 = vsel %vm373, %v313, 0
        %v414 = vsel %vm373, %v314, 0
        %v417 = vsel %vm373, %v315, 0
        %v420 = vsel %vm373, %v316, 0
        %v423 = vsel %vm373, %v317, 0
        %v426 = vsel %vm373, %v318, 0
        %v429 = vsel %vm373, %v319, 0
        %v432 = vsel %vm373, %v320, 0
        %v435 = vsel %vm373, %v321, 0
        %v438 = vsel %vm373, %v322, 0
        %v441 = vsel %vm373, %v323, 0
        %v444 = vsel %vm373, %v324, 0
        %v447 = vsel %vm373, %v325, 0
        %v450 = vsel %vm373, %v326, 0
        %v453 = vsel %vm373, %v327, 0
        %v456 = vsel %vm373, %v328, 0
        %v459 = vsel %vm373, %v329, 0
        %v462 = vsel %vm373, %v330, 0
        %v465 = vsel %vm373, %v331, 0
        %v468 = vsel %vm373, %v332, 0
        %v471 = vsel %vm373, %v333, 0
        %v474 = vsel %vm373, %v334, 0
        %v477 = vsel %vm373, %v335, 0
        %v480 = vsel %vm373, %v336, 0
        %v483 = vsel %vm373, %v337, 0
        %v486 = vsel %vm373, %v338, 0
        %v489 = vsel %vm373, %v339, 0
        %v492 = vsel %vm373, %v340, 0
        %v495 = vsel %vm373, %v341, 0
        %v498 = vsel %vm373, %v342, 0
        %v501 = vsel %vm373, %v343, 0
        %v504 = vsel %vm373, %v344, 0
        %v507 = vsel %vm373, %v345, 0
        %v510 = vsel %vm373, %v346, 0
        %v513 = vsel %vm373, %v347, 0
        %v516 = vsel %vm373, %v348, 0
        %v519 = vsel %vm373, %v349, 0
        %v522 = vsel %vm373, %v350, 0
        %v525 = vsel %vm373, %v351, 0
        %v528 = vsel %vm373, %v352, 0
        %v531 = vsel %vm373, %v353, 0
        %v534 = vsel %vm373, %v354, 0
        %v537 = vsel %vm373, %v355, 0
        %v540 = vsel %vm373, %v356, 0
        %v543 = vsel %vm373, %v357, 0
        %v546 = vsel %vm373, %v358, 0
        %v549 = vsel %vm373, %v359, 0
        %v552 = vsel %vm373, %v360, 0
        %v555 = vsel %vm373, %v361, 0
        %v558 = vsel %vm373, %v362, 0
        %v561 = vsel %vm373, %v363, 0
        %v564 = vsel %vm373, %v364, 0
        %566 = vmatprep.subr.mxu0 0.0
        %567 = vmatpush1.msra.mxu0 %v365
        %568 = vmatprep.subr.mxu0 0.0
        %569 = vmatpush1.msra.mxu0 %v366
        %570 = vmatprep.subr.mxu0 0.0
        %571 = vmatpush1.msra.mxu0 %v367
        %572 = vmatprep.subr.mxu0 0.0
        %573 = vmatpush1.msra.mxu0 %v368
        %574 = vmatprep.subr.mxu0 0.0
        %575 = vmatpush1.msra.mxu0 0.0
        %576 = vmatprep.subr.mxu0 0.0
        %577 = vmatpush1.msra.mxu0 0.0
        %578 = vmatprep.subr.mxu0 0.0
        %579 = vmatpush1.msra.mxu0 0.0
        %580 = vmatprep.subr.mxu0 0.0
        %581 = vmatpush1.msra.mxu0 0.0
        %582 = vmatprep.subr.mxu0 0.0
        %583 = vmatpush1.msra.mxu0 0.0
        %584 = vmatprep.subr.mxu0 0.0
        %585 = vmatpush1.msra.mxu0 0.0
        %586 = vmatprep.subr.mxu0 0.0
        %587 = vmatpush1.msra.mxu0 0.0
        %588 = vmatprep.subr.mxu0 0.0
        %589 = vmatpush1.msra.mxu0 0.0
        %590 = vmatprep.subr.mxu0 0.0
        %591 = vmatpush1.msra.mxu0 0.0
        %592 = vmatprep.subr.mxu0 0.0
        %593 = vmatpush1.msra.mxu0 0.0
        %594 = vmatprep.subr.mxu0 0.0
        %595 = vmatpush1.msra.mxu0 0.0
        %596 = vmatprep.subr.mxu0 0.0
        %597 = vmatpush1.msra.mxu0 0.0
        %598 = vmatprep.subr.mxu0 0.0
        %599 = vmatpush1.msra.mxu0 0.0
        %600 = vmatprep.subr.mxu0 0.0
        %601 = vmatpush1.msra.mxu0 0.0
        %602 = vmatprep.subr.mxu0 0.0
        %603 = vmatpush1.msra.mxu0 0.0
        %604 = vmatprep.subr.mxu0 0.0
        %605 = vmatpush1.msra.mxu0 0.0
        %606 = vmatprep.subr.mxu0 0.0
        %607 = vmatpush1.msra.mxu0 0.0
        %608 = vmatprep.subr.mxu0 0.0
        %609 = vmatpush1.msra.mxu0 0.0
        %610 = vmatprep.subr.mxu0 0.0
        %611 = vmatpush1.msra.mxu0 0.0
        %612 = vmatprep.subr.mxu0 0.0
        %613 = vmatpush1.msra.mxu0 0.0
        %614 = vmatprep.subr.mxu0 0.0
        %615 = vmatpush1.msra.mxu0 0.0
        %616 = vmatprep.subr.mxu0 0.0
        %617 = vmatpush1.msra.mxu0 0.0
        %618 = vmatprep.subr.mxu0 0.0
        %619 = vmatpush1.msra.mxu0 0.0
        %620 = vmatprep.subr.mxu0 0.0
        %621 = vmatpush1.msra.mxu0 0.0
        %622 = vmatprep.subr.mxu0 0.0
        %623 = vmatpush1.msra.mxu0 0.0
        %624 = vmatprep.subr.mxu0 0.0
        %625 = vmatpush1.msra.mxu0 0.0
        %626 = vmatprep.subr.mxu0 0.0
        %627 = vmatpush1.msra.mxu0 0.0
        %628 = vmatprep.subr.mxu0 0.0
        %629 = vmatpush1.msra.mxu0 0.0
        %630 = vmatprep.mubr.f32.mxu0 0.0
        %631 = vmatmul.mubr.f32.gmra.mrb[0].mxu0 %v375
        %v632 = vpop.f32.mrb[0].mxu0
        %v633 = vadd.f32 0.0, %v632
        %v634 = vpop.f32.mrb[0].mxu0
        %635 = vmatprep.mubr.f32.mxu0 0.0
        %636 = vmatmul.mubr.f32.gmra.mrb[0].mxu0 %v378
        %v637 = vpop.f32.mrb[0].mxu0
        %v638 = vadd.f32 0.0, %v637
        %v639 = vpop.f32.mrb[0].mxu0
        %640 = vmatprep.mubr.f32.mxu0 0.0
        %641 = vmatmul.mubr.f32.gmra.mrb[0].mxu0 %v381
        %v642 = vpop.f32.mrb[0].mxu0
        %v643 = vadd.f32 0.0, %v642
        %v644 = vpop.f32.mrb[0].mxu0
        %645 = vmatprep.mubr.f32.mxu0 0.0
        %646 = vmatmul.mubr.f32.gmra.mrb[0].mxu0 %v384
        %v647 = vpop.f32.mrb[0].mxu0
        %v648 = vadd.f32 0.0, %v647
        %v649 = vpop.f32.mrb[0].mxu0
        %650 = vmatprep.mubr.f32.mxu0 0.0
        %651 = vmatmul.mubr.f32.gmra.mrb[0].mxu0 %v387
        %v652 = vpop.f32.mrb[0].mxu0
        %v653 = vadd.f32 0.0, %v652
        %v654 = vpop.f32.mrb[0].mxu0
        %655 = vmatprep.mubr.f32.mxu0 0.0
        %656 = vmatmul.mubr.f32.gmra.mrb[0].mxu0 %v390
        %v657 = vpop.f32.mrb[0].mxu0
        %v658 = vadd.f32 0.0, %v657
        %v659 = vpop.f32.mrb[0].mxu0
        %660 = vmatprep.mubr.f32.mxu0 0.0
        %661 = vmatmul.mubr.f32.gmra.mrb[0].mxu0 %v393
        %v662 = vpop.f32.mrb[0].mxu0
        %v663 = vadd.f32 0.0, %v662
        %v664 = vpop.f32.mrb[0].mxu0
        %665 = vmatprep.mubr.f32.mxu0 0.0
        %666 = vmatmul.mubr.f32.gmra.mrb[0].mxu0 %v396
        %v667 = vpop.f32.mrb[0].mxu0
        %v668 = vadd.f32 0.0, %v667
        %v669 = vpop.f32.mrb[0].mxu0
        %670 = vmatprep.mubr.f32.mxu0 0.0
        %671 = vmatmul.mubr.f32.gmra.mrb[0].mxu0 %v399
        %v672 = vpop.f32.mrb[0].mxu0
        %v673 = vadd.f32 0.0, %v672
        %v674 = vpop.f32.mrb[0].mxu0
        %675 = vmatprep.mubr.f32.mxu0 0.0
        %676 = vmatmul.mubr.f32.gmra.mrb[0].mxu0 %v402
        %v677 = vpop.f32.mrb[0].mxu0
        %v678 = vadd.f32 0.0, %v677
        %v679 = vpop.f32.mrb[0].mxu0
        %680 = vmatprep.mubr.f32.mxu0 0.0
        %681 = vmatmul.mubr.f32.gmra.mrb[0].mxu0 %v405
        %v682 = vpop.f32.mrb[0].mxu0
        %v683 = vadd.f32 0.0, %v682
        %v684 = vpop.f32.mrb[0].mxu0
        %685 = vmatprep.mubr.f32.mxu0 0.0
        %686 = vmatmul.mubr.f32.gmra.mrb[0].mxu0 %v408
        %v687 = vpop.f32.mrb[0].mxu0
        %v688 = vadd.f32 0.0, %v687
        %v689 = vpop.f32.mrb[0].mxu0
        %690 = vmatprep.mubr.f32.mxu0 0.0
        %691 = vmatmul.mubr.f32.gmra.mrb[0].mxu0 %v411
        %v692 = vpop.f32.mrb[0].mxu0
        %v693 = vadd.f32 0.0, %v692
        %v694 = vpop.f32.mrb[0].mxu0
        %695 = vmatprep.mubr.f32.mxu0 0.0
        %696 = vmatmul.mubr.f32.gmra.mrb[0].mxu0 %v414
        %v697 = vpop.f32.mrb[0].mxu0
        %v698 = vadd.f32 0.0, %v697
        %v699 = vpop.f32.mrb[0].mxu0
        %700 = vmatprep.mubr.f32.mxu0 0.0
        %701 = vmatmul.mubr.f32.gmra.mrb[0].mxu0 %v417
        %v702 = vpop.f32.mrb[0].mxu0
        %v703 = vadd.f32 0.0, %v702
        %v704 = vpop.f32.mrb[0].mxu0
        %705 = vmatprep.mubr.f32.mxu0 0.0
        %706 = vmatmul.mubr.f32.gmra.mrb[0].mxu0 %v420
        %v707 = vpop.f32.mrb[0].mxu0
        %v708 = vadd.f32 0.0, %v707
        %v709 = vpop.f32.mrb[0].mxu0
        %710 = vmatprep.mubr.f32.mxu0 0.0
        %711 = vmatmul.mubr.f32.gmra.mrb[0].mxu0 %v423
        %v712 = vpop.f32.mrb[0].mxu0
        %v713 = vadd.f32 0.0, %v712
        %v714 = vpop.f32.mrb[0].mxu0
        %715 = vmatprep.mubr.f32.mxu0 0.0
        %716 = vmatmul.mubr.f32.gmra.mrb[0].mxu0 %v426
        %v717 = vpop.f32.mrb[0].mxu0
        %v718 = vadd.f32 0.0, %v717
        %v719 = vpop.f32.mrb[0].mxu0
        %720 = vmatprep.mubr.f32.mxu0 0.0
        %721 = vmatmul.mubr.f32.gmra.mrb[0].mxu0 %v429
        %v722 = vpop.f32.mrb[0].mxu0
        %v723 = vadd.f32 0.0, %v722
        %v724 = vpop.f32.mrb[0].mxu0
        %725 = vmatprep.mubr.f32.mxu0 0.0
        %726 = vmatmul.mubr.f32.gmra.mrb[0].mxu0 %v432
        %v727 = vpop.f32.mrb[0].mxu0
        %v728 = vadd.f32 0.0, %v727
        %v729 = vpop.f32.mrb[0].mxu0
        %730 = vmatprep.mubr.f32.mxu0 0.0
        %731 = vmatmul.mubr.f32.gmra.mrb[0].mxu0 %v435
        %v732 = vpop.f32.mrb[0].mxu0
        %v733 = vadd.f32 0.0, %v732
        %v734 = vpop.f32.mrb[0].mxu0
        %735 = vmatprep.mubr.f32.mxu0 0.0
        %736 = vmatmul.mubr.f32.gmra.mrb[0].mxu0 %v438
        %v737 = vpop.f32.mrb[0].mxu0
        %v738 = vadd.f32 0.0, %v737
        %v739 = vpop.f32.mrb[0].mxu0
        %740 = vmatprep.mubr.f32.mxu0 0.0
        %741 = vmatmul.mubr.f32.gmra.mrb[0].mxu0 %v441
        %v742 = vpop.f32.mrb[0].mxu0
        %v743 = vadd.f32 0.0, %v742
        %v744 = vpop.f32.mrb[0].mxu0
        %745 = vmatprep.mubr.f32.mxu0 0.0
        %746 = vmatmul.mubr.f32.gmra.mrb[0].mxu0 %v444
        %v747 = vpop.f32.mrb[0].mxu0
        %v748 = vadd.f32 0.0, %v747
        %v749 = vpop.f32.mrb[0].mxu0
        %750 = vmatprep.mubr.f32.mxu0 0.0
        %751 = vmatmul.mubr.f32.gmra.mrb[0].mxu0 %v447
        %v752 = vpop.f32.mrb[0].mxu0
        %v753 = vadd.f32 0.0, %v752
        %v754 = vpop.f32.mrb[0].mxu0
        %755 = vmatprep.mubr.f32.mxu0 0.0
        %756 = vmatmul.mubr.f32.gmra.mrb[0].mxu0 %v450
        %v757 = vpop.f32.mrb[0].mxu0
        %v758 = vadd.f32 0.0, %v757
        %v759 = vpop.f32.mrb[0].mxu0
        %760 = vmatprep.mubr.f32.mxu0 0.0
        %761 = vmatmul.mubr.f32.gmra.mrb[0].mxu0 %v453
        %v762 = vpop.f32.mrb[0].mxu0
        %v763 = vadd.f32 0.0, %v762
        %v764 = vpop.f32.mrb[0].mxu0
        %765 = vmatprep.mubr.f32.mxu0 0.0
        %766 = vmatmul.mubr.f32.gmra.mrb[0].mxu0 %v456
        %v767 = vpop.f32.mrb[0].mxu0
        %v768 = vadd.f32 0.0, %v767
        %v769 = vpop.f32.mrb[0].mxu0
        %770 = vmatprep.mubr.f32.mxu0 0.0
        %771 = vmatmul.mubr.f32.gmra.mrb[0].mxu0 %v459
        %v772 = vpop.f32.mrb[0].mxu0
        %v773 = vadd.f32 0.0, %v772
        %v774 = vpop.f32.mrb[0].mxu0
        %775 = vmatprep.mubr.f32.mxu0 0.0
        %776 = vmatmul.mubr.f32.gmra.mrb[0].mxu0 %v462
        %v777 = vpop.f32.mrb[0].mxu0
        %v778 = vadd.f32 0.0, %v777
        %v779 = vpop.f32.mrb[0].mxu0
        %780 = vmatprep.mubr.f32.mxu0 0.0
        %781 = vmatmul.mubr.f32.gmra.mrb[0].mxu0 %v465
        %v782 = vpop.f32.mrb[0].mxu0
        %v783 = vadd.f32 0.0, %v782
        %v784 = vpop.f32.mrb[0].mxu0
        %785 = vmatprep.mubr.f32.mxu0 0.0
        %786 = vmatmul.mubr.f32.gmra.mrb[0].mxu0 %v468
        %v787 = vpop.f32.mrb[0].mxu0
        %v788 = vadd.f32 0.0, %v787
        %v789 = vpop.f32.mrb[0].mxu0
        %790 = vmatprep.mubr.f32.mxu0 0.0
        %791 = vmatmul.mubr.f32.gmra.mrb[0].mxu0 %v471
        %v792 = vpop.f32.mrb[0].mxu0
        %v793 = vadd.f32 0.0, %v792
        %v794 = vpop.f32.mrb[0].mxu0
        %795 = vmatprep.mubr.f32.mxu0 0.0
        %796 = vmatmul.mubr.f32.gmra.mrb[0].mxu0 %v474
        %v797 = vpop.f32.mrb[0].mxu0
        %v798 = vadd.f32 0.0, %v797
        %v799 = vpop.f32.mrb[0].mxu0
        %800 = vmatprep.mubr.f32.mxu0 0.0
        %801 = vmatmul.mubr.f32.gmra.mrb[0].mxu0 %v477
        %v802 = vpop.f32.mrb[0].mxu0
        %v803 = vadd.f32 0.0, %v802
        %v804 = vpop.f32.mrb[0].mxu0
        %805 = vmatprep.mubr.f32.mxu0 0.0
        %806 = vmatmul.mubr.f32.gmra.mrb[0].mxu0 %v480
        %v807 = vpop.f32.mrb[0].mxu0
        %v808 = vadd.f32 0.0, %v807
        %v809 = vpop.f32.mrb[0].mxu0
        %810 = vmatprep.mubr.f32.mxu0 0.0
        %811 = vmatmul.mubr.f32.gmra.mrb[0].mxu0 %v483
        %v812 = vpop.f32.mrb[0].mxu0
        %v813 = vadd.f32 0.0, %v812
        %v814 = vpop.f32.mrb[0].mxu0
        %815 = vmatprep.mubr.f32.mxu0 0.0
        %816 = vmatmul.mubr.f32.gmra.mrb[0].mxu0 %v486
        %v817 = vpop.f32.mrb[0].mxu0
        %v818 = vadd.f32 0.0, %v817
        %v819 = vpop.f32.mrb[0].mxu0
        %820 = vmatprep.mubr.f32.mxu0 0.0
        %821 = vmatmul.mubr.f32.gmra.mrb[0].mxu0 %v489
        %v822 = vpop.f32.mrb[0].mxu0
        %v823 = vadd.f32 0.0, %v822
        %v824 = vpop.f32.mrb[0].mxu0
        %825 = vmatprep.mubr.f32.mxu0 0.0
        %826 = vmatmul.mubr.f32.gmra.mrb[0].mxu0 %v492
        %v827 = vpop.f32.mrb[0].mxu0
        %v828 = vadd.f32 0.0, %v827
        %v829 = vpop.f32.mrb[0].mxu0
        %830 = vmatprep.mubr.f32.mxu0 0.0
        %831 = vmatmul.mubr.f32.gmra.mrb[0].mxu0 %v495
        %v832 = vpop.f32.mrb[0].mxu0
        %v833 = vadd.f32 0.0, %v832
        %v834 = vpop.f32.mrb[0].mxu0
        %835 = vmatprep.mubr.f32.mxu0 0.0
        %836 = vmatmul.mubr.f32.gmra.mrb[0].mxu0 %v498
        %v837 = vpop.f32.mrb[0].mxu0
        %v838 = vadd.f32 0.0, %v837
        %v839 = vpop.f32.mrb[0].mxu0
        %840 = vmatprep.mubr.f32.mxu0 0.0
        %841 = vmatmul.mubr.f32.gmra.mrb[0].mxu0 %v501
        %v842 = vpop.f32.mrb[0].mxu0
        %v843 = vadd.f32 0.0, %v842
        %v844 = vpop.f32.mrb[0].mxu0
        %845 = vmatprep.mubr.f32.mxu0 0.0
        %846 = vmatmul.mubr.f32.gmra.mrb[0].mxu0 %v504
        %v847 = vpop.f32.mrb[0].mxu0
        %v848 = vadd.f32 0.0, %v847
        %v849 = vpop.f32.mrb[0].mxu0
        %850 = vmatprep.mubr.f32.mxu0 0.0
        %851 = vmatmul.mubr.f32.gmra.mrb[0].mxu0 %v507
        %v852 = vpop.f32.mrb[0].mxu0
        %v853 = vadd.f32 0.0, %v852
        %v854 = vpop.f32.mrb[0].mxu0
        %855 = vmatprep.mubr.f32.mxu0 0.0
        %856 = vmatmul.mubr.f32.gmra.mrb[0].mxu0 %v510
        %v857 = vpop.f32.mrb[0].mxu0
        %v858 = vadd.f32 0.0, %v857
        %v859 = vpop.f32.mrb[0].mxu0
        %860 = vmatprep.mubr.f32.mxu0 0.0
        %861 = vmatmul.mubr.f32.gmra.mrb[0].mxu0 %v513
        %v862 = vpop.f32.mrb[0].mxu0
        %v863 = vadd.f32 0.0, %v862
        %v864 = vpop.f32.mrb[0].mxu0
        %865 = vmatprep.mubr.f32.mxu0 0.0
        %866 = vmatmul.mubr.f32.gmra.mrb[0].mxu0 %v516
        %v867 = vpop.f32.mrb[0].mxu0
        %v868 = vadd.f32 0.0, %v867
        %v869 = vpop.f32.mrb[0].mxu0
        %870 = vmatprep.mubr.f32.mxu0 0.0
        %871 = vmatmul.mubr.f32.gmra.mrb[0].mxu0 %v519
        %v872 = vpop.f32.mrb[0].mxu0
        %v873 = vadd.f32 0.0, %v872
        %v874 = vpop.f32.mrb[0].mxu0
        %875 = vmatprep.mubr.f32.mxu0 0.0
        %876 = vmatmul.mubr.f32.gmra.mrb[0].mxu0 %v522
        %v877 = vpop.f32.mrb[0].mxu0
        %v878 = vadd.f32 0.0, %v877
        %v879 = vpop.f32.mrb[0].mxu0
        %880 = vmatprep.mubr.f32.mxu0 0.0
        %881 = vmatmul.mubr.f32.gmra.mrb[0].mxu0 %v525
        %v882 = vpop.f32.mrb[0].mxu0
        %v883 = vadd.f32 0.0, %v882
        %v884 = vpop.f32.mrb[0].mxu0
        %885 = vmatprep.mubr.f32.mxu0 0.0
        %886 = vmatmul.mubr.f32.gmra.mrb[0].mxu0 %v528
        %v887 = vpop.f32.mrb[0].mxu0
        %v888 = vadd.f32 0.0, %v887
        %v889 = vpop.f32.mrb[0].mxu0
        %890 = vmatprep.mubr.f32.mxu0 0.0
        %891 = vmatmul.mubr.f32.gmra.mrb[0].mxu0 %v531
        %v892 = vpop.f32.mrb[0].mxu0
        %v893 = vadd.f32 0.0, %v892
        %v894 = vpop.f32.mrb[0].mxu0
        %895 = vmatprep.mubr.f32.mxu0 0.0
        %896 = vmatmul.mubr.f32.gmra.mrb[0].mxu0 %v534
        %v897 = vpop.f32.mrb[0].mxu0
        %v898 = vadd.f32 0.0, %v897
        %v899 = vpop.f32.mrb[0].mxu0
        %900 = vmatprep.mubr.f32.mxu0 0.0
        %901 = vmatmul.mubr.f32.gmra.mrb[0].mxu0 %v537
        %v902 = vpop.f32.mrb[0].mxu0
        %v903 = vadd.f32 0.0, %v902
        %v904 = vpop.f32.mrb[0].mxu0
        %905 = vmatprep.mubr.f32.mxu0 0.0
        %906 = vmatmul.mubr.f32.gmra.mrb[0].mxu0 %v540
        %v907 = vpop.f32.mrb[0].mxu0
        %v908 = vadd.f32 0.0, %v907
        %v909 = vpop.f32.mrb[0].mxu0
        %910 = vmatprep.mubr.f32.mxu0 0.0
        %911 = vmatmul.mubr.f32.gmra.mrb[0].mxu0 %v543
        %v912 = vpop.f32.mrb[0].mxu0
        %v913 = vadd.f32 0.0, %v912
        %v914 = vpop.f32.mrb[0].mxu0
        %915 = vmatprep.mubr.f32.mxu0 0.0
        %916 = vmatmul.mubr.f32.gmra.mrb[0].mxu0 %v546
        %v917 = vpop.f32.mrb[0].mxu0
        %v918 = vadd.f32 0.0, %v917
        %v919 = vpop.f32.mrb[0].mxu0
        %920 = vmatprep.mubr.f32.mxu0 0.0
        %921 = vmatmul.mubr.f32.gmra.mrb[0].mxu0 %v549
        %v922 = vpop.f32.mrb[0].mxu0
        %v923 = vadd.f32 0.0, %v922
        %v924 = vpop.f32.mrb[0].mxu0
        %925 = vmatprep.mubr.f32.mxu0 0.0
        %926 = vmatmul.mubr.f32.gmra.mrb[0].mxu0 %v552
        %v927 = vpop.f32.mrb[0].mxu0
        %v928 = vadd.f32 0.0, %v927
        %v929 = vpop.f32.mrb[0].mxu0
        %930 = vmatprep.mubr.f32.mxu0 0.0
        %931 = vmatmul.mubr.f32.gmra.mrb[0].mxu0 %v555
        %v932 = vpop.f32.mrb[0].mxu0
        %v933 = vadd.f32 0.0, %v932
        %v934 = vpop.f32.mrb[0].mxu0
        %935 = vmatprep.mubr.f32.mxu0 0.0
        %936 = vmatmul.mubr.f32.gmra.mrb[0].mxu0 %v558
        %v937 = vpop.f32.mrb[0].mxu0
        %v938 = vadd.f32 0.0, %v937
        %v939 = vpop.f32.mrb[0].mxu0
        %940 = vmatprep.mubr.f32.mxu0 0.0
        %941 = vmatmul.mubr.f32.gmra.mrb[0].mxu0 %v561
        %v942 = vpop.f32.mrb[0].mxu0
        %v943 = vadd.f32 0.0, %v942
        %v944 = vpop.f32.mrb[0].mxu0
        %945 = vmatprep.mubr.f32.mxu0 0.0
        %946 = vmatmul.mubr.f32.gmra.mrb[0].mxu0 %v564
        %v947 = vpop.f32.mrb[0].mxu0
        %v948 = vadd.f32 0.0, %v947
        %v949 = vpop.f32.mrb[0].mxu0
        %950 = vdwg.mxu0
        %951 = vmatprep.subr.mxu0 0.0
        %952 = vmatpush1.msra.mxu0 %v369
        %953 = vmatprep.subr.mxu0 0.0
        %954 = vmatpush1.msra.mxu0 %v370
        %955 = vmatprep.subr.mxu0 0.0
        %956 = vmatpush1.msra.mxu0 %v371
        %957 = vmatprep.subr.mxu0 0.0
        %958 = vmatpush1.msra.mxu0 %v372
        %959 = vmatprep.subr.mxu0 0.0
        %960 = vmatpush1.msra.mxu0 0.0
        %961 = vmatprep.subr.mxu0 0.0
        %962 = vmatpush1.msra.mxu0 0.0
        %963 = vmatprep.subr.mxu0 0.0
        %964 = vmatpush1.msra.mxu0 0.0
        %965 = vmatprep.subr.mxu0 0.0
        %966 = vmatpush1.msra.mxu0 0.0
        %967 = vmatprep.subr.mxu0 0.0
        %968 = vmatpush1.msra.mxu0 0.0
        %969 = vmatprep.subr.mxu0 0.0
        %970 = vmatpush1.msra.mxu0 0.0
        %971 = vmatprep.subr.mxu0 0.0
        %972 = vmatpush1.msra.mxu0 0.0
        %973 = vmatprep.subr.mxu0 0.0
        %974 = vmatpush1.msra.mxu0 0.0
        %975 = vmatprep.subr.mxu0 0.0
        %976 = vmatpush1.msra.mxu0 0.0
        %977 = vmatprep.subr.mxu0 0.0
        %978 = vmatpush1.msra.mxu0 0.0
        %979 = vmatprep.subr.mxu0 0.0
        %980 = vmatpush1.msra.mxu0 0.0
        %981 = vmatprep.subr.mxu0 0.0
        %982 = vmatpush1.msra.mxu0 0.0
        %983 = vmatprep.subr.mxu0 0.0
        %984 = vmatpush1.msra.mxu0 0.0
        %985 = vmatprep.subr.mxu0 0.0
        %986 = vmatpush1.msra.mxu0 0.0
        %987 = vmatprep.subr.mxu0 0.0
        %988 = vmatpush1.msra.mxu0 0.0
        %989 = vmatprep.subr.mxu0 0.0
        %990 = vmatpush1.msra.mxu0 0.0
        %991 = vmatprep.subr.mxu0 0.0
        %992 = vmatpush1.msra.mxu0 0.0
        %993 = vmatprep.subr.mxu0 0.0
        %994 = vmatpush1.msra.mxu0 0.0
        %995 = vmatprep.subr.mxu0 0.0
        %996 = vmatpush1.msra.mxu0 0.0
        %997 = vmatprep.subr.mxu0 0.0
        %998 = vmatpush1.msra.mxu0 0.0
        %999 = vmatprep.subr.mxu0 0.0
        %1000 = vmatpush1.msra.mxu0 0.0
        %1001 = vmatprep.subr.mxu0 0.0
        %1002 = vmatpush1.msra.mxu0 0.0
        %1003 = vmatprep.subr.mxu0 0.0
        %1004 = vmatpush1.msra.mxu0 0.0
        %1005 = vmatprep.subr.mxu0 0.0
        %1006 = vmatpush1.msra.mxu0 0.0
        %1007 = vmatprep.subr.mxu0 0.0
        %1008 = vmatpush1.msra.mxu0 0.0
        %1009 = vmatprep.subr.mxu0 0.0
        %1010 = vmatpush1.msra.mxu0 0.0
        %1011 = vmatprep.subr.mxu0 0.0
        %1012 = vmatpush1.msra.mxu0 0.0
        %1013 = vmatprep.subr.mxu0 0.0
        %1014 = vmatpush1.msra.mxu0 0.0
        %1015 = vmatprep.mubr.f32.mxu0 0.0
        %1016 = vmatmul.mubr.f32.gmra.mrb[0].mxu0 %v375
        %v1017 = vpop.f32.mrb[0].mxu0
        %v1018 = vadd.f32 0.0, %v1017
        %v1019 = vpop.f32.mrb[0].mxu0
        %1020 = vmatprep.mubr.f32.mxu0 0.0
        %1021 = vmatmul.mubr.f32.gmra.mrb[0].mxu0 %v378
        %v1022 = vpop.f32.mrb[0].mxu0
        %v1023 = vadd.f32 0.0, %v1022
        %v1024 = vpop.f32.mrb[0].mxu0
        %1025 = vmatprep.mubr.f32.mxu0 0.0
        %1026 = vmatmul.mubr.f32.gmra.mrb[0].mxu0 %v381
        %v1027 = vpop.f32.mrb[0].mxu0
        %v1028 = vadd.f32 0.0, %v1027
        %v1029 = vpop.f32.mrb[0].mxu0
        %1030 = vmatprep.mubr.f32.mxu0 0.0
        %1031 = vmatmul.mubr.f32.gmra.mrb[0].mxu0 %v384
        %v1032 = vpop.f32.mrb[0].mxu0
        %v1033 = vadd.f32 0.0, %v1032
        %v1034 = vpop.f32.mrb[0].mxu0
        %1035 = vmatprep.mubr.f32.mxu0 0.0
        %1036 = vmatmul.mubr.f32.gmra.mrb[0].mxu0 %v387
        %v1037 = vpop.f32.mrb[0].mxu0
        %v1038 = vadd.f32 0.0, %v1037
        %v1039 = vpop.f32.mrb[0].mxu0
        %1040 = vmatprep.mubr.f32.mxu0 0.0
        %1041 = vmatmul.mubr.f32.gmra.mrb[0].mxu0 %v390
        %v1042 = vpop.f32.mrb[0].mxu0
        %v1043 = vadd.f32 0.0, %v1042
        %v1044 = vpop.f32.mrb[0].mxu0
        %1045 = vmatprep.mubr.f32.mxu0 0.0
        %1046 = vmatmul.mubr.f32.gmra.mrb[0].mxu0 %v393
        %v1047 = vpop.f32.mrb[0].mxu0
        %v1048 = vadd.f32 0.0, %v1047
        %v1049 = vpop.f32.mrb[0].mxu0
        %1050 = vmatprep.mubr.f32.mxu0 0.0
        %1051 = vmatmul.mubr.f32.gmra.mrb[0].mxu0 %v396
        %v1052 = vpop.f32.mrb[0].mxu0
        %v1053 = vadd.f32 0.0, %v1052
        %v1054 = vpop.f32.mrb[0].mxu0
        %1055 = vmatprep.mubr.f32.mxu0 0.0
        %1056 = vmatmul.mubr.f32.gmra.mrb[0].mxu0 %v399
        %v1057 = vpop.f32.mrb[0].mxu0
        %v1058 = vadd.f32 0.0, %v1057
        %v1059 = vpop.f32.mrb[0].mxu0
        %1060 = vmatprep.mubr.f32.mxu0 0.0
        %1061 = vmatmul.mubr.f32.gmra.mrb[0].mxu0 %v402
        %v1062 = vpop.f32.mrb[0].mxu0
        %v1063 = vadd.f32 0.0, %v1062
        %v1064 = vpop.f32.mrb[0].mxu0
        %1065 = vmatprep.mubr.f32.mxu0 0.0
        %1066 = vmatmul.mubr.f32.gmra.mrb[0].mxu0 %v405
        %v1067 = vpop.f32.mrb[0].mxu0
        %v1068 = vadd.f32 0.0, %v1067
        %v1069 = vpop.f32.mrb[0].mxu0
        %1070 = vmatprep.mubr.f32.mxu0 0.0
        %1071 = vmatmul.mubr.f32.gmra.mrb[0].mxu0 %v408
        %v1072 = vpop.f32.mrb[0].mxu0
        %v1073 = vadd.f32 0.0, %v1072
        %v1074 = vpop.f32.mrb[0].mxu0
        %1075 = vmatprep.mubr.f32.mxu0 0.0
        %1076 = vmatmul.mubr.f32.gmra.mrb[0].mxu0 %v411
        %v1077 = vpop.f32.mrb[0].mxu0
        %v1078 = vadd.f32 0.0, %v1077
        %v1079 = vpop.f32.mrb[0].mxu0
        %1080 = vmatprep.mubr.f32.mxu0 0.0
        %1081 = vmatmul.mubr.f32.gmra.mrb[0].mxu0 %v414
        %v1082 = vpop.f32.mrb[0].mxu0
        %v1083 = vadd.f32 0.0, %v1082
        %v1084 = vpop.f32.mrb[0].mxu0
        %1085 = vmatprep.mubr.f32.mxu0 0.0
        %1086 = vmatmul.mubr.f32.gmra.mrb[0].mxu0 %v417
        %v1087 = vpop.f32.mrb[0].mxu0
        %v1088 = vadd.f32 0.0, %v1087
        %v1089 = vpop.f32.mrb[0].mxu0
        %1090 = vmatprep.mubr.f32.mxu0 0.0
        %1091 = vmatmul.mubr.f32.gmra.mrb[0].mxu0 %v420
        %v1092 = vpop.f32.mrb[0].mxu0
        %v1093 = vadd.f32 0.0, %v1092
        %v1094 = vpop.f32.mrb[0].mxu0
        %1095 = vmatprep.mubr.f32.mxu0 0.0
        %1096 = vmatmul.mubr.f32.gmra.mrb[0].mxu0 %v423
        %v1097 = vpop.f32.mrb[0].mxu0
        %v1098 = vadd.f32 0.0, %v1097
        %v1099 = vpop.f32.mrb[0].mxu0
        %1100 = vmatprep.mubr.f32.mxu0 0.0
        %1101 = vmatmul.mubr.f32.gmra.mrb[0].mxu0 %v426
        %v1102 = vpop.f32.mrb[0].mxu0
        %v1103 = vadd.f32 0.0, %v1102
        %v1104 = vpop.f32.mrb[0].mxu0
        %1105 = vmatprep.mubr.f32.mxu0 0.0
        %1106 = vmatmul.mubr.f32.gmra.mrb[0].mxu0 %v429
        %v1107 = vpop.f32.mrb[0].mxu0
        %v1108 = vadd.f32 0.0, %v1107
        %v1109 = vpop.f32.mrb[0].mxu0
        %1110 = vmatprep.mubr.f32.mxu0 0.0
        %1111 = vmatmul.mubr.f32.gmra.mrb[0].mxu0 %v432
        %v1112 = vpop.f32.mrb[0].mxu0
        %v1113 = vadd.f32 0.0, %v1112
        %v1114 = vpop.f32.mrb[0].mxu0
        %1115 = vmatprep.mubr.f32.mxu0 0.0
        %1116 = vmatmul.mubr.f32.gmra.mrb[0].mxu0 %v435
        %v1117 = vpop.f32.mrb[0].mxu0
        %v1118 = vadd.f32 0.0, %v1117
        %v1119 = vpop.f32.mrb[0].mxu0
        %1120 = vmatprep.mubr.f32.mxu0 0.0
        %1121 = vmatmul.mubr.f32.gmra.mrb[0].mxu0 %v438
        %v1122 = vpop.f32.mrb[0].mxu0
        %v1123 = vadd.f32 0.0, %v1122
        %v1124 = vpop.f32.mrb[0].mxu0
        %1125 = vmatprep.mubr.f32.mxu0 0.0
        %1126 = vmatmul.mubr.f32.gmra.mrb[0].mxu0 %v441
        %v1127 = vpop.f32.mrb[0].mxu0
        %v1128 = vadd.f32 0.0, %v1127
        %v1129 = vpop.f32.mrb[0].mxu0
        %1130 = vmatprep.mubr.f32.mxu0 0.0
        %1131 = vmatmul.mubr.f32.gmra.mrb[0].mxu0 %v444
        %v1132 = vpop.f32.mrb[0].mxu0
        %v1133 = vadd.f32 0.0, %v1132
        %v1134 = vpop.f32.mrb[0].mxu0
        %1135 = vmatprep.mubr.f32.mxu0 0.0
        %1136 = vmatmul.mubr.f32.gmra.mrb[0].mxu0 %v447
        %v1137 = vpop.f32.mrb[0].mxu0
        %v1138 = vadd.f32 0.0, %v1137
        %v1139 = vpop.f32.mrb[0].mxu0
        %1140 = vmatprep.mubr.f32.mxu0 0.0
        %1141 = vmatmul.mubr.f32.gmra.mrb[0].mxu0 %v450
        %v1142 = vpop.f32.mrb[0].mxu0
        %v1143 = vadd.f32 0.0, %v1142
        %v1144 = vpop.f32.mrb[0].mxu0
        %1145 = vmatprep.mubr.f32.mxu0 0.0
        %1146 = vmatmul.mubr.f32.gmra.mrb[0].mxu0 %v453
        %v1147 = vpop.f32.mrb[0].mxu0
        %v1148 = vadd.f32 0.0, %v1147
        %v1149 = vpop.f32.mrb[0].mxu0
        %1150 = vmatprep.mubr.f32.mxu0 0.0
        %1151 = vmatmul.mubr.f32.gmra.mrb[0].mxu0 %v456
        %v1152 = vpop.f32.mrb[0].mxu0
        %v1153 = vadd.f32 0.0, %v1152
        %v1154 = vpop.f32.mrb[0].mxu0
        %1155 = vmatprep.mubr.f32.mxu0 0.0
        %1156 = vmatmul.mubr.f32.gmra.mrb[0].mxu0 %v459
        %v1157 = vpop.f32.mrb[0].mxu0
        %v1158 = vadd.f32 0.0, %v1157
        %v1159 = vpop.f32.mrb[0].mxu0
        %1160 = vmatprep.mubr.f32.mxu0 0.0
        %1161 = vmatmul.mubr.f32.gmra.mrb[0].mxu0 %v462
        %v1162 = vpop.f32.mrb[0].mxu0
        %v1163 = vadd.f32 0.0, %v1162
        %v1164 = vpop.f32.mrb[0].mxu0
        %1165 = vmatprep.mubr.f32.mxu0 0.0
        %1166 = vmatmul.mubr.f32.gmra.mrb[0].mxu0 %v465
        %v1167 = vpop.f32.mrb[0].mxu0
        %v1168 = vadd.f32 0.0, %v1167
        %v1169 = vpop.f32.mrb[0].mxu0
        %1170 = vmatprep.mubr.f32.mxu0 0.0
        %1171 = vmatmul.mubr.f32.gmra.mrb[0].mxu0 %v468
        %v1172 = vpop.f32.mrb[0].mxu0
        %v1173 = vadd.f32 0.0, %v1172
        %v1174 = vpop.f32.mrb[0].mxu0
        %1175 = vmatprep.mubr.f32.mxu0 0.0
        %1176 = vmatmul.mubr.f32.gmra.mrb[0].mxu0 %v471
        %v1177 = vpop.f32.mrb[0].mxu0
        %v1178 = vadd.f32 0.0, %v1177
        %v1179 = vpop.f32.mrb[0].mxu0
        %1180 = vmatprep.mubr.f32.mxu0 0.0
        %1181 = vmatmul.mubr.f32.gmra.mrb[0].mxu0 %v474
        %v1182 = vpop.f32.mrb[0].mxu0
        %v1183 = vadd.f32 0.0, %v1182
        %v1184 = vpop.f32.mrb[0].mxu0
        %1185 = vmatprep.mubr.f32.mxu0 0.0
        %1186 = vmatmul.mubr.f32.gmra.mrb[0].mxu0 %v477
        %v1187 = vpop.f32.mrb[0].mxu0
        %v1188 = vadd.f32 0.0, %v1187
        %v1189 = vpop.f32.mrb[0].mxu0
        %1190 = vmatprep.mubr.f32.mxu0 0.0
        %1191 = vmatmul.mubr.f32.gmra.mrb[0].mxu0 %v480
        %v1192 = vpop.f32.mrb[0].mxu0
        %v1193 = vadd.f32 0.0, %v1192
        %v1194 = vpop.f32.mrb[0].mxu0
        %1195 = vmatprep.mubr.f32.mxu0 0.0
        %1196 = vmatmul.mubr.f32.gmra.mrb[0].mxu0 %v483
        %v1197 = vpop.f32.mrb[0].mxu0
        %v1198 = vadd.f32 0.0, %v1197
        %v1199 = vpop.f32.mrb[0].mxu0
        %1200 = vmatprep.mubr.f32.mxu0 0.0
        %1201 = vmatmul.mubr.f32.gmra.mrb[0].mxu0 %v486
        %v1202 = vpop.f32.mrb[0].mxu0
        %v1203 = vadd.f32 0.0, %v1202
        %v1204 = vpop.f32.mrb[0].mxu0
        %1205 = vmatprep.mubr.f32.mxu0 0.0
        %1206 = vmatmul.mubr.f32.gmra.mrb[0].mxu0 %v489
        %v1207 = vpop.f32.mrb[0].mxu0
        %v1208 = vadd.f32 0.0, %v1207
        %v1209 = vpop.f32.mrb[0].mxu0
        %1210 = vmatprep.mubr.f32.mxu0 0.0
        %1211 = vmatmul.mubr.f32.gmra.mrb[0].mxu0 %v492
        %v1212 = vpop.f32.mrb[0].mxu0
        %v1213 = vadd.f32 0.0, %v1212
        %v1214 = vpop.f32.mrb[0].mxu0
        %1215 = vmatprep.mubr.f32.mxu0 0.0
        %1216 = vmatmul.mubr.f32.gmra.mrb[0].mxu0 %v495
        %v1217 = vpop.f32.mrb[0].mxu0
        %v1218 = vadd.f32 0.0, %v1217
        %v1219 = vpop.f32.mrb[0].mxu0
        %1220 = vmatprep.mubr.f32.mxu0 0.0
        %1221 = vmatmul.mubr.f32.gmra.mrb[0].mxu0 %v498
        %v1222 = vpop.f32.mrb[0].mxu0
        %v1223 = vadd.f32 0.0, %v1222
        %v1224 = vpop.f32.mrb[0].mxu0
        %1225 = vmatprep.mubr.f32.mxu0 0.0
        %1226 = vmatmul.mubr.f32.gmra.mrb[0].mxu0 %v501
        %v1227 = vpop.f32.mrb[0].mxu0
        %v1228 = vadd.f32 0.0, %v1227
        %v1229 = vpop.f32.mrb[0].mxu0
        %1230 = vmatprep.mubr.f32.mxu0 0.0
        %1231 = vmatmul.mubr.f32.gmra.mrb[0].mxu0 %v504
        %v1232 = vpop.f32.mrb[0].mxu0
        %v1233 = vadd.f32 0.0, %v1232
        %v1234 = vpop.f32.mrb[0].mxu0
        %1235 = vmatprep.mubr.f32.mxu0 0.0
        %1236 = vmatmul.mubr.f32.gmra.mrb[0].mxu0 %v507
        %v1237 = vpop.f32.mrb[0].mxu0
        %v1238 = vadd.f32 0.0, %v1237
        %v1239 = vpop.f32.mrb[0].mxu0
        %1240 = vmatprep.mubr.f32.mxu0 0.0
        %1241 = vmatmul.mubr.f32.gmra.mrb[0].mxu0 %v510
        %v1242 = vpop.f32.mrb[0].mxu0
        %v1243 = vadd.f32 0.0, %v1242
        %v1244 = vpop.f32.mrb[0].mxu0
        %1245 = vmatprep.mubr.f32.mxu0 0.0
        %1246 = vmatmul.mubr.f32.gmra.mrb[0].mxu0 %v513
        %v1247 = vpop.f32.mrb[0].mxu0
        %v1248 = vadd.f32 0.0, %v1247
        %v1249 = vpop.f32.mrb[0].mxu0
        %1250 = vmatprep.mubr.f32.mxu0 0.0
        %1251 = vmatmul.mubr.f32.gmra.mrb[0].mxu0 %v516
        %v1252 = vpop.f32.mrb[0].mxu0
        %v1253 = vadd.f32 0.0, %v1252
        %v1254 = vpop.f32.mrb[0].mxu0
        %1255 = vmatprep.mubr.f32.mxu0 0.0
        %1256 = vmatmul.mubr.f32.gmra.mrb[0].mxu0 %v519
        %v1257 = vpop.f32.mrb[0].mxu0
        %v1258 = vadd.f32 0.0, %v1257
        %v1259 = vpop.f32.mrb[0].mxu0
        %1260 = vmatprep.mubr.f32.mxu0 0.0
        %1261 = vmatmul.mubr.f32.gmra.mrb[0].mxu0 %v522
        %v1262 = vpop.f32.mrb[0].mxu0
        %v1263 = vadd.f32 0.0, %v1262
        %v1264 = vpop.f32.mrb[0].mxu0
        %1265 = vmatprep.mubr.f32.mxu0 0.0
        %1266 = vmatmul.mubr.f32.gmra.mrb[0].mxu0 %v525
        %v1267 = vpop.f32.mrb[0].mxu0
        %v1268 = vadd.f32 0.0, %v1267
        %v1269 = vpop.f32.mrb[0].mxu0
        %1270 = vmatprep.mubr.f32.mxu0 0.0
        %1271 = vmatmul.mubr.f32.gmra.mrb[0].mxu0 %v528
        %v1272 = vpop.f32.mrb[0].mxu0
        %v1273 = vadd.f32 0.0, %v1272
        %v1274 = vpop.f32.mrb[0].mxu0
        %1275 = vmatprep.mubr.f32.mxu0 0.0
        %1276 = vmatmul.mubr.f32.gmra.mrb[0].mxu0 %v531
        %v1277 = vpop.f32.mrb[0].mxu0
        %v1278 = vadd.f32 0.0, %v1277
        %v1279 = vpop.f32.mrb[0].mxu0
        %1280 = vmatprep.mubr.f32.mxu0 0.0
        %1281 = vmatmul.mubr.f32.gmra.mrb[0].mxu0 %v534
        %v1282 = vpop.f32.mrb[0].mxu0
        %v1283 = vadd.f32 0.0, %v1282
        %v1284 = vpop.f32.mrb[0].mxu0
        %1285 = vmatprep.mubr.f32.mxu0 0.0
        %1286 = vmatmul.mubr.f32.gmra.mrb[0].mxu0 %v537
        %v1287 = vpop.f32.mrb[0].mxu0
        %v1288 = vadd.f32 0.0, %v1287
        %v1289 = vpop.f32.mrb[0].mxu0
        %1290 = vmatprep.mubr.f32.mxu0 0.0
        %1291 = vmatmul.mubr.f32.gmra.mrb[0].mxu0 %v540
        %v1292 = vpop.f32.mrb[0].mxu0
        %v1293 = vadd.f32 0.0, %v1292
        %v1294 = vpop.f32.mrb[0].mxu0
        %1295 = vmatprep.mubr.f32.mxu0 0.0
        %1296 = vmatmul.mubr.f32.gmra.mrb[0].mxu0 %v543
        %v1297 = vpop.f32.mrb[0].mxu0
        %v1298 = vadd.f32 0.0, %v1297
        %v1299 = vpop.f32.mrb[0].mxu0
        %1300 = vmatprep.mubr.f32.mxu0 0.0
        %1301 = vmatmul.mubr.f32.gmra.mrb[0].mxu0 %v546
        %v1302 = vpop.f32.mrb[0].mxu0
        %v1303 = vadd.f32 0.0, %v1302
        %v1304 = vpop.f32.mrb[0].mxu0
        %1305 = vmatprep.mubr.f32.mxu0 0.0
        %1306 = vmatmul.mubr.f32.gmra.mrb[0].mxu0 %v549
        %v1307 = vpop.f32.mrb[0].mxu0
        %v1308 = vadd.f32 0.0, %v1307
        %v1309 = vpop.f32.mrb[0].mxu0
        %1310 = vmatprep.mubr.f32.mxu0 0.0
        %1311 = vmatmul.mubr.f32.gmra.mrb[0].mxu0 %v552
        %v1312 = vpop.f32.mrb[0].mxu0
        %v1313 = vadd.f32 0.0, %v1312
        %v1314 = vpop.f32.mrb[0].mxu0
        %1315 = vmatprep.mubr.f32.mxu0 0.0
        %1316 = vmatmul.mubr.f32.gmra.mrb[0].mxu0 %v555
        %v1317 = vpop.f32.mrb[0].mxu0
        %v1318 = vadd.f32 0.0, %v1317
        %v1319 = vpop.f32.mrb[0].mxu0
        %1320 = vmatprep.mubr.f32.mxu0 0.0
        %1321 = vmatmul.mubr.f32.gmra.mrb[0].mxu0 %v558
        %v1322 = vpop.f32.mrb[0].mxu0
        %v1323 = vadd.f32 0.0, %v1322
        %v1324 = vpop.f32.mrb[0].mxu0
        %1325 = vmatprep.mubr.f32.mxu0 0.0
        %1326 = vmatmul.mubr.f32.gmra.mrb[0].mxu0 %v561
        %v1327 = vpop.f32.mrb[0].mxu0
        %v1328 = vadd.f32 0.0, %v1327
        %v1329 = vpop.f32.mrb[0].mxu0
        %1330 = vmatprep.mubr.f32.mxu0 0.0
        %1331 = vmatmul.mubr.f32.gmra.mrb[0].mxu0 %v564
        %v1332 = vpop.f32.mrb[0].mxu0
        %v1333 = vadd.f32 0.0, %v1332
        %v1334 = vpop.f32.mrb[0].mxu0
        %1335 = vdwg.mxu0
        %v1336 = vsub.f32 0.0, %v1018
        %v1337 = vsub.f32 0.0, %v1023
        %v1338 = vsub.f32 0.0, %v1028
        %v1339 = vsub.f32 0.0, %v1033
        %v1340 = vsub.f32 0.0, %v1038
        %v1341 = vsub.f32 0.0, %v1043
        %v1342 = vsub.f32 0.0, %v1048
        %v1343 = vsub.f32 0.0, %v1053
        %v1344 = vsub.f32 0.0, %v1058
        %v1345 = vsub.f32 0.0, %v1063
        %v1346 = vsub.f32 0.0, %v1068
        %v1347 = vsub.f32 0.0, %v1073
        %v1348 = vsub.f32 0.0, %v1078
        %v1349 = vsub.f32 0.0, %v1083
        %v1350 = vsub.f32 0.0, %v1088
        %v1351 = vsub.f32 0.0, %v1093
        %v1352 = vsub.f32 0.0, %v1098
        %v1353 = vsub.f32 0.0, %v1103
        %v1354 = vsub.f32 0.0, %v1108
        %v1355 = vsub.f32 0.0, %v1113
        %v1356 = vsub.f32 0.0, %v1118
        %v1357 = vsub.f32 0.0, %v1123
        %v1358 = vsub.f32 0.0, %v1128
        %v1359 = vsub.f32 0.0, %v1133
        %v1360 = vsub.f32 0.0, %v1138
        %v1361 = vsub.f32 0.0, %v1143
        %v1362 = vsub.f32 0.0, %v1148
        %v1363 = vsub.f32 0.0, %v1153
        %v1364 = vsub.f32 0.0, %v1158
        %v1365 = vsub.f32 0.0, %v1163
        %v1366 = vsub.f32 0.0, %v1168
        %v1367 = vsub.f32 0.0, %v1173
        %v1368 = vsub.f32 0.0, %v1178
        %v1369 = vsub.f32 0.0, %v1183
        %v1370 = vsub.f32 0.0, %v1188
        %v1371 = vsub.f32 0.0, %v1193
        %v1372 = vsub.f32 0.0, %v1198
        %v1373 = vsub.f32 0.0, %v1203
        %v1374 = vsub.f32 0.0, %v1208
        %v1375 = vsub.f32 0.0, %v1213
        %v1376 = vsub.f32 0.0, %v1218
        %v1377 = vsub.f32 0.0, %v1223
        %v1378 = vsub.f32 0.0, %v1228
        %v1379 = vsub.f32 0.0, %v1233
        %v1380 = vsub.f32 0.0, %v1238
        %v1381 = vsub.f32 0.0, %v1243
        %v1382 = vsub.f32 0.0, %v1248
        %v1383 = vsub.f32 0.0, %v1253
        %v1384 = vsub.f32 0.0, %v1258
        %v1385 = vsub.f32 0.0, %v1263
        %v1386 = vsub.f32 0.0, %v1268
        %v1387 = vsub.f32 0.0, %v1273
        %v1388 = vsub.f32 0.0, %v1278
        %v1389 = vsub.f32 0.0, %v1283
        %v1390 = vsub.f32 0.0, %v1288
        %v1391 = vsub.f32 0.0, %v1293
        %v1392 = vsub.f32 0.0, %v1298
        %v1393 = vsub.f32 0.0, %v1303
        %v1394 = vsub.f32 0.0, %v1308
        %v1395 = vsub.f32 0.0, %v1313
        %v1396 = vsub.f32 0.0, %v1318
        %v1397 = vsub.f32 0.0, %v1323
        %v1398 = vsub.f32 0.0, %v1328
        %v1399 = vsub.f32 0.0, %v1333
        %1400 = vxpose.xlu0.b32.start [1/16] %v633, 128
        %1401 = vxpose.xlu0.b32.cont [2/16] %v638, 128
        %1402 = vxpose.xlu0.b32.cont [3/16] %v643, 128
        %1403 = vxpose.xlu0.b32.cont [4/16] %v648, 128
        %1404 = vxpose.xlu0.b32.cont [5/16] 0.0, 128
        %1405 = vxpose.xlu0.b32.cont [6/16] 0.0, 128
        %1406 = vxpose.xlu0.b32.cont [7/16] 0.0, 128
        %1407 = vxpose.xlu0.b32.cont [8/16] 0.0, 128
        %1408 = vxpose.xlu0.b32.cont [9/16] 0.0, 128
        %1409 = vxpose.xlu0.b32.cont [10/16] 0.0, 128
        %1410 = vxpose.xlu0.b32.cont [11/16] 0.0, 128
        %1411 = vxpose.xlu0.b32.cont [12/16] 0.0, 128
        %1412 = vxpose.xlu0.b32.cont [13/16] 0.0, 128
        %1413 = vxpose.xlu0.b32.cont [14/16] 0.0, 128
        %1414 = vxpose.xlu0.b32.cont [15/16] 0.0, 128
        %1415 = vxpose.xlu0.b32.end [16/16] 0.0, 128
        %v1416 = vpop.trf.xlu0
        %v1417 = vpop.trf.xlu0
        %v1418 = vpop.trf.xlu0
        %v1419 = vpop.trf.xlu0
        %v1420 = vpop.trf.xlu0
        %v1421 = vpop.trf.xlu0
        %v1422 = vpop.trf.xlu0
        %v1423 = vpop.trf.xlu0
        %v1424 = vpop.trf.xlu0
        %v1425 = vpop.trf.xlu0
        %v1426 = vpop.trf.xlu0
        %v1427 = vpop.trf.xlu0
        %v1428 = vpop.trf.xlu0
        %v1429 = vpop.trf.xlu0
        %v1430 = vpop.trf.xlu0
        %v1431 = vpop.trf.xlu0
        %1432 = vxpose.xlu0.b32.start [1/16] %v653, 128
        %1433 = vxpose.xlu0.b32.cont [2/16] %v658, 128
        %1434 = vxpose.xlu0.b32.cont [3/16] %v663, 128
        %1435 = vxpose.xlu0.b32.cont [4/16] %v668, 128
        %1436 = vxpose.xlu0.b32.cont [5/16] 0.0, 128
        %1437 = vxpose.xlu0.b32.cont [6/16] 0.0, 128
        %1438 = vxpose.xlu0.b32.cont [7/16] 0.0, 128
        %1439 = vxpose.xlu0.b32.cont [8/16] 0.0, 128
        %1440 = vxpose.xlu0.b32.cont [9/16] 0.0, 128
        %1441 = vxpose.xlu0.b32.cont [10/16] 0.0, 128
        %1442 = vxpose.xlu0.b32.cont [11/16] 0.0, 128
        %1443 = vxpose.xlu0.b32.cont [12/16] 0.0, 128
        %1444 = vxpose.xlu0.b32.cont [13/16] 0.0, 128
        %1445 = vxpose.xlu0.b32.cont [14/16] 0.0, 128
        %1446 = vxpose.xlu0.b32.cont [15/16] 0.0, 128
        %1447 = vxpose.xlu0.b32.end [16/16] 0.0, 128
        %v1448 = vpop.trf.xlu0
        %v1449 = vpop.trf.xlu0
        %v1450 = vpop.trf.xlu0
        %v1451 = vpop.trf.xlu0
        %v1452 = vpop.trf.xlu0
        %v1453 = vpop.trf.xlu0
        %v1454 = vpop.trf.xlu0
        %v1455 = vpop.trf.xlu0
        %v1456 = vpop.trf.xlu0
        %v1457 = vpop.trf.xlu0
        %v1458 = vpop.trf.xlu0
        %v1459 = vpop.trf.xlu0
        %v1460 = vpop.trf.xlu0
        %v1461 = vpop.trf.xlu0
        %v1462 = vpop.trf.xlu0
        %v1463 = vpop.trf.xlu0
        %1464 = vxpose.xlu0.b32.start [1/16] %v673, 128
        %1465 = vxpose.xlu0.b32.cont [2/16] %v678, 128
        %1466 = vxpose.xlu0.b32.cont [3/16] %v683, 128
        %1467 = vxpose.xlu0.b32.cont [4/16] %v688, 128
        %1468 = vxpose.xlu0.b32.cont [5/16] 0.0, 128
        %1469 = vxpose.xlu0.b32.cont [6/16] 0.0, 128
        %1470 = vxpose.xlu0.b32.cont [7/16] 0.0, 128
        %1471 = vxpose.xlu0.b32.cont [8/16] 0.0, 128
        %1472 = vxpose.xlu0.b32.cont [9/16] 0.0, 128
        %1473 = vxpose.xlu0.b32.cont [10/16] 0.0, 128
        %1474 = vxpose.xlu0.b32.cont [11/16] 0.0, 128
        %1475 = vxpose.xlu0.b32.cont [12/16] 0.0, 128
        %1476 = vxpose.xlu0.b32.cont [13/16] 0.0, 128
        %1477 = vxpose.xlu0.b32.cont [14/16] 0.0, 128
        %1478 = vxpose.xlu0.b32.cont [15/16] 0.0, 128
        %1479 = vxpose.xlu0.b32.end [16/16] 0.0, 128
        %v1480 = vpop.trf.xlu0
        %v1481 = vpop.trf.xlu0
        %v1482 = vpop.trf.xlu0
        %v1483 = vpop.trf.xlu0
        %v1484 = vpop.trf.xlu0
        %v1485 = vpop.trf.xlu0
        %v1486 = vpop.trf.xlu0
        %v1487 = vpop.trf.xlu0
        %v1488 = vpop.trf.xlu0
        %v1489 = vpop.trf.xlu0
        %v1490 = vpop.trf.xlu0
        %v1491 = vpop.trf.xlu0
        %v1492 = vpop.trf.xlu0
        %v1493 = vpop.trf.xlu0
        %v1494 = vpop.trf.xlu0
        %v1495 = vpop.trf.xlu0
        %1496 = vxpose.xlu0.b32.start [1/16] %v693, 128
        %1497 = vxpose.xlu0.b32.cont [2/16] %v698, 128
        %1498 = vxpose.xlu0.b32.cont [3/16] %v703, 128
        %1499 = vxpose.xlu0.b32.cont [4/16] %v708, 128
        %1500 = vxpose.xlu0.b32.cont [5/16] 0.0, 128
        %1501 = vxpose.xlu0.b32.cont [6/16] 0.0, 128
        %1502 = vxpose.xlu0.b32.cont [7/16] 0.0, 128
        %1503 = vxpose.xlu0.b32.cont [8/16] 0.0, 128
        %1504 = vxpose.xlu0.b32.cont [9/16] 0.0, 128
        %1505 = vxpose.xlu0.b32.cont [10/16] 0.0, 128
        %1506 = vxpose.xlu0.b32.cont [11/16] 0.0, 128
        %1507 = vxpose.xlu0.b32.cont [12/16] 0.0, 128
        %1508 = vxpose.xlu0.b32.cont [13/16] 0.0, 128
        %1509 = vxpose.xlu0.b32.cont [14/16] 0.0, 128
        %1510 = vxpose.xlu0.b32.cont [15/16] 0.0, 128
        %1511 = vxpose.xlu0.b32.end [16/16] 0.0, 128
        %v1512 = vpop.trf.xlu0
        %v1513 = vpop.trf.xlu0
        %v1514 = vpop.trf.xlu0
        %v1515 = vpop.trf.xlu0
        %v1516 = vpop.trf.xlu0
        %v1517 = vpop.trf.xlu0
        %v1518 = vpop.trf.xlu0
        %v1519 = vpop.trf.xlu0
        %v1520 = vpop.trf.xlu0
        %v1521 = vpop.trf.xlu0
        %v1522 = vpop.trf.xlu0
        %v1523 = vpop.trf.xlu0
        %v1524 = vpop.trf.xlu0
        %v1525 = vpop.trf.xlu0
        %v1526 = vpop.trf.xlu0
        %v1527 = vpop.trf.xlu0
        %1528 = vxpose.xlu0.b32.start [1/16] %v713, 128
        %1529 = vxpose.xlu0.b32.cont [2/16] %v718, 128
        %1530 = vxpose.xlu0.b32.cont [3/16] %v723, 128
        %1531 = vxpose.xlu0.b32.cont [4/16] %v728, 128
        %1532 = vxpose.xlu0.b32.cont [5/16] 0.0, 128
        %1533 = vxpose.xlu0.b32.cont [6/16] 0.0, 128
        %1534 = vxpose.xlu0.b32.cont [7/16] 0.0, 128
        %1535 = vxpose.xlu0.b32.cont [8/16] 0.0, 128
        %1536 = vxpose.xlu0.b32.cont [9/16] 0.0, 128
        %1537 = vxpose.xlu0.b32.cont [10/16] 0.0, 128
        %1538 = vxpose.xlu0.b32.cont [11/16] 0.0, 128
        %1539 = vxpose.xlu0.b32.cont [12/16] 0.0, 128
        %1540 = vxpose.xlu0.b32.cont [13/16] 0.0, 128
        %1541 = vxpose.xlu0.b32.cont [14/16] 0.0, 128
        %1542 = vxpose.xlu0.b32.cont [15/16] 0.0, 128
        %1543 = vxpose.xlu0.b32.end [16/16] 0.0, 128
        %v1544 = vpop.trf.xlu0
        %v1545 = vpop.trf.xlu0
        %v1546 = vpop.trf.xlu0
        %v1547 = vpop.trf.xlu0
        %v1548 = vpop.trf.xlu0
        %v1549 = vpop.trf.xlu0
        %v1550 = vpop.trf.xlu0
        %v1551 = vpop.trf.xlu0
        %v1552 = vpop.trf.xlu0
        %v1553 = vpop.trf.xlu0
        %v1554 = vpop.trf.xlu0
        %v1555 = vpop.trf.xlu0
        %v1556 = vpop.trf.xlu0
        %v1557 = vpop.trf.xlu0
        %v1558 = vpop.trf.xlu0
        %v1559 = vpop.trf.xlu0
        %1560 = vxpose.xlu0.b32.start [1/16] %v733, 128
        %1561 = vxpose.xlu0.b32.cont [2/16] %v738, 128
        %1562 = vxpose.xlu0.b32.cont [3/16] %v743, 128
        %1563 = vxpose.xlu0.b32.cont [4/16] %v748, 128
        %1564 = vxpose.xlu0.b32.cont [5/16] 0.0, 128
        %1565 = vxpose.xlu0.b32.cont [6/16] 0.0, 128
        %1566 = vxpose.xlu0.b32.cont [7/16] 0.0, 128
        %1567 = vxpose.xlu0.b32.cont [8/16] 0.0, 128
        %1568 = vxpose.xlu0.b32.cont [9/16] 0.0, 128
        %1569 = vxpose.xlu0.b32.cont [10/16] 0.0, 128
        %1570 = vxpose.xlu0.b32.cont [11/16] 0.0, 128
        %1571 = vxpose.xlu0.b32.cont [12/16] 0.0, 128
        %1572 = vxpose.xlu0.b32.cont [13/16] 0.0, 128
        %1573 = vxpose.xlu0.b32.cont [14/16] 0.0, 128
        %1574 = vxpose.xlu0.b32.cont [15/16] 0.0, 128
        %1575 = vxpose.xlu0.b32.end [16/16] 0.0, 128
        %v1576 = vpop.trf.xlu0
        %v1577 = vpop.trf.xlu0
        %v1578 = vpop.trf.xlu0
        %v1579 = vpop.trf.xlu0
        %v1580 = vpop.trf.xlu0
        %v1581 = vpop.trf.xlu0
        %v1582 = vpop.trf.xlu0
        %v1583 = vpop.trf.xlu0
        %v1584 = vpop.trf.xlu0
        %v1585 = vpop.trf.xlu0
        %v1586 = vpop.trf.xlu0
        %v1587 = vpop.trf.xlu0
        %v1588 = vpop.trf.xlu0
        %v1589 = vpop.trf.xlu0
        %v1590 = vpop.trf.xlu0
        %v1591 = vpop.trf.xlu0
        %1592 = vxpose.xlu0.b32.start [1/16] %v753, 128
        %1593 = vxpose.xlu0.b32.cont [2/16] %v758, 128
        %1594 = vxpose.xlu0.b32.cont [3/16] %v763, 128
        %1595 = vxpose.xlu0.b32.cont [4/16] %v768, 128
        %1596 = vxpose.xlu0.b32.cont [5/16] 0.0, 128
        %1597 = vxpose.xlu0.b32.cont [6/16] 0.0, 128
        %1598 = vxpose.xlu0.b32.cont [7/16] 0.0, 128
        %1599 = vxpose.xlu0.b32.cont [8/16] 0.0, 128
        %1600 = vxpose.xlu0.b32.cont [9/16] 0.0, 128
        %1601 = vxpose.xlu0.b32.cont [10/16] 0.0, 128
        %1602 = vxpose.xlu0.b32.cont [11/16] 0.0, 128
        %1603 = vxpose.xlu0.b32.cont [12/16] 0.0, 128
        %1604 = vxpose.xlu0.b32.cont [13/16] 0.0, 128
        %1605 = vxpose.xlu0.b32.cont [14/16] 0.0, 128
        %1606 = vxpose.xlu0.b32.cont [15/16] 0.0, 128
        %1607 = vxpose.xlu0.b32.end [16/16] 0.0, 128
        %v1608 = vpop.trf.xlu0
        %v1609 = vpop.trf.xlu0
        %v1610 = vpop.trf.xlu0
        %v1611 = vpop.trf.xlu0
        %v1612 = vpop.trf.xlu0
        %v1613 = vpop.trf.xlu0
        %v1614 = vpop.trf.xlu0
        %v1615 = vpop.trf.xlu0
        %v1616 = vpop.trf.xlu0
        %v1617 = vpop.trf.xlu0
        %v1618 = vpop.trf.xlu0
        %v1619 = vpop.trf.xlu0
        %v1620 = vpop.trf.xlu0
        %v1621 = vpop.trf.xlu0
        %v1622 = vpop.trf.xlu0
        %v1623 = vpop.trf.xlu0
        %1624 = vxpose.xlu0.b32.start [1/16] %v773, 128
        %1625 = vxpose.xlu0.b32.cont [2/16] %v778, 128
        %1626 = vxpose.xlu0.b32.cont [3/16] %v783, 128
        %1627 = vxpose.xlu0.b32.cont [4/16] %v788, 128
        %1628 = vxpose.xlu0.b32.cont [5/16] 0.0, 128
        %1629 = vxpose.xlu0.b32.cont [6/16] 0.0, 128
        %1630 = vxpose.xlu0.b32.cont [7/16] 0.0, 128
        %1631 = vxpose.xlu0.b32.cont [8/16] 0.0, 128
        %1632 = vxpose.xlu0.b32.cont [9/16] 0.0, 128
        %1633 = vxpose.xlu0.b32.cont [10/16] 0.0, 128
        %1634 = vxpose.xlu0.b32.cont [11/16] 0.0, 128
        %1635 = vxpose.xlu0.b32.cont [12/16] 0.0, 128
        %1636 = vxpose.xlu0.b32.cont [13/16] 0.0, 128
        %1637 = vxpose.xlu0.b32.cont [14/16] 0.0, 128
        %1638 = vxpose.xlu0.b32.cont [15/16] 0.0, 128
        %1639 = vxpose.xlu0.b32.end [16/16] 0.0, 128
        %v1640 = vpop.trf.xlu0
        %v1641 = vpop.trf.xlu0
        %v1642 = vpop.trf.xlu0
        %v1643 = vpop.trf.xlu0
        %v1644 = vpop.trf.xlu0
        %v1645 = vpop.trf.xlu0
        %v1646 = vpop.trf.xlu0
        %v1647 = vpop.trf.xlu0
        %v1648 = vpop.trf.xlu0
        %v1649 = vpop.trf.xlu0
        %v1650 = vpop.trf.xlu0
        %v1651 = vpop.trf.xlu0
        %v1652 = vpop.trf.xlu0
        %v1653 = vpop.trf.xlu0
        %v1654 = vpop.trf.xlu0
        %v1655 = vpop.trf.xlu0
        %1656 = vxpose.xlu0.b32.start [1/16] %v793, 128
        %1657 = vxpose.xlu0.b32.cont [2/16] %v798, 128
        %1658 = vxpose.xlu0.b32.cont [3/16] %v803, 128
        %1659 = vxpose.xlu0.b32.cont [4/16] %v808, 128
        %1660 = vxpose.xlu0.b32.cont [5/16] 0.0, 128
        %1661 = vxpose.xlu0.b32.cont [6/16] 0.0, 128
        %1662 = vxpose.xlu0.b32.cont [7/16] 0.0, 128
        %1663 = vxpose.xlu0.b32.cont [8/16] 0.0, 128
        %1664 = vxpose.xlu0.b32.cont [9/16] 0.0, 128
        %1665 = vxpose.xlu0.b32.cont [10/16] 0.0, 128
        %1666 = vxpose.xlu0.b32.cont [11/16] 0.0, 128
        %1667 = vxpose.xlu0.b32.cont [12/16] 0.0, 128
        %1668 = vxpose.xlu0.b32.cont [13/16] 0.0, 128
        %1669 = vxpose.xlu0.b32.cont [14/16] 0.0, 128
        %1670 = vxpose.xlu0.b32.cont [15/16] 0.0, 128
        %1671 = vxpose.xlu0.b32.end [16/16] 0.0, 128
        %v1672 = vpop.trf.xlu0
        %v1673 = vpop.trf.xlu0
        %v1674 = vpop.trf.xlu0
        %v1675 = vpop.trf.xlu0
        %v1676 = vpop.trf.xlu0
        %v1677 = vpop.trf.xlu0
        %v1678 = vpop.trf.xlu0
        %v1679 = vpop.trf.xlu0
        %v1680 = vpop.trf.xlu0
        %v1681 = vpop.trf.xlu0
        %v1682 = vpop.trf.xlu0
        %v1683 = vpop.trf.xlu0
        %v1684 = vpop.trf.xlu0
        %v1685 = vpop.trf.xlu0
        %v1686 = vpop.trf.xlu0
        %v1687 = vpop.trf.xlu0
        %1688 = vxpose.xlu0.b32.start [1/16] %v813, 128
        %1689 = vxpose.xlu0.b32.cont [2/16] %v818, 128
        %1690 = vxpose.xlu0.b32.cont [3/16] %v823, 128
        %1691 = vxpose.xlu0.b32.cont [4/16] %v828, 128
        %1692 = vxpose.xlu0.b32.cont [5/16] 0.0, 128
        %1693 = vxpose.xlu0.b32.cont [6/16] 0.0, 128
        %1694 = vxpose.xlu0.b32.cont [7/16] 0.0, 128
        %1695 = vxpose.xlu0.b32.cont [8/16] 0.0, 128
        %1696 = vxpose.xlu0.b32.cont [9/16] 0.0, 128
        %1697 = vxpose.xlu0.b32.cont [10/16] 0.0, 128
        %1698 = vxpose.xlu0.b32.cont [11/16] 0.0, 128
        %1699 = vxpose.xlu0.b32.cont [12/16] 0.0, 128
        %1700 = vxpose.xlu0.b32.cont [13/16] 0.0, 128
        %1701 = vxpose.xlu0.b32.cont [14/16] 0.0, 128
        %1702 = vxpose.xlu0.b32.cont [15/16] 0.0, 128
        %1703 = vxpose.xlu0.b32.end [16/16] 0.0, 128
        %v1704 = vpop.trf.xlu0
        %v1705 = vpop.trf.xlu0
        %v1706 = vpop.trf.xlu0
        %v1707 = vpop.trf.xlu0
        %v1708 = vpop.trf.xlu0
        %v1709 = vpop.trf.xlu0
        %v1710 = vpop.trf.xlu0
        %v1711 = vpop.trf.xlu0
        %v1712 = vpop.trf.xlu0
        %v1713 = vpop.trf.xlu0
        %v1714 = vpop.trf.xlu0
        %v1715 = vpop.trf.xlu0
        %v1716 = vpop.trf.xlu0
        %v1717 = vpop.trf.xlu0
        %v1718 = vpop.trf.xlu0
        %v1719 = vpop.trf.xlu0
        %1720 = vxpose.xlu0.b32.start [1/16] %v833, 128
        %1721 = vxpose.xlu0.b32.cont [2/16] %v838, 128
        %1722 = vxpose.xlu0.b32.cont [3/16] %v843, 128
        %1723 = vxpose.xlu0.b32.cont [4/16] %v848, 128
        %1724 = vxpose.xlu0.b32.cont [5/16] 0.0, 128
        %1725 = vxpose.xlu0.b32.cont [6/16] 0.0, 128
        %1726 = vxpose.xlu0.b32.cont [7/16] 0.0, 128
        %1727 = vxpose.xlu0.b32.cont [8/16] 0.0, 128
        %1728 = vxpose.xlu0.b32.cont [9/16] 0.0, 128
        %1729 = vxpose.xlu0.b32.cont [10/16] 0.0, 128
        %1730 = vxpose.xlu0.b32.cont [11/16] 0.0, 128
        %1731 = vxpose.xlu0.b32.cont [12/16] 0.0, 128
        %1732 = vxpose.xlu0.b32.cont [13/16] 0.0, 128
        %1733 = vxpose.xlu0.b32.cont [14/16] 0.0, 128
        %1734 = vxpose.xlu0.b32.cont [15/16] 0.0, 128
        %1735 = vxpose.xlu0.b32.end [16/16] 0.0, 128
        %v1736 = vpop.trf.xlu0
        %v1737 = vpop.trf.xlu0
        %v1738 = vpop.trf.xlu0
        %v1739 = vpop.trf.xlu0
        %v1740 = vpop.trf.xlu0
        %v1741 = vpop.trf.xlu0
        %v1742 = vpop.trf.xlu0
        %v1743 = vpop.trf.xlu0
        %v1744 = vpop.trf.xlu0
        %v1745 = vpop.trf.xlu0
        %v1746 = vpop.trf.xlu0
        %v1747 = vpop.trf.xlu0
        %v1748 = vpop.trf.xlu0
        %v1749 = vpop.trf.xlu0
        %v1750 = vpop.trf.xlu0
        %v1751 = vpop.trf.xlu0
        %1752 = vxpose.xlu0.b32.start [1/16] %v853, 128
        %1753 = vxpose.xlu0.b32.cont [2/16] %v858, 128
        %1754 = vxpose.xlu0.b32.cont [3/16] %v863, 128
        %1755 = vxpose.xlu0.b32.cont [4/16] %v868, 128
        %1756 = vxpose.xlu0.b32.cont [5/16] 0.0, 128
        %1757 = vxpose.xlu0.b32.cont [6/16] 0.0, 128
        %1758 = vxpose.xlu0.b32.cont [7/16] 0.0, 128
        %1759 = vxpose.xlu0.b32.cont [8/16] 0.0, 128
        %1760 = vxpose.xlu0.b32.cont [9/16] 0.0, 128
        %1761 = vxpose.xlu0.b32.cont [10/16] 0.0, 128
        %1762 = vxpose.xlu0.b32.cont [11/16] 0.0, 128
        %1763 = vxpose.xlu0.b32.cont [12/16] 0.0, 128
        %1764 = vxpose.xlu0.b32.cont [13/16] 0.0, 128
        %1765 = vxpose.xlu0.b32.cont [14/16] 0.0, 128
        %1766 = vxpose.xlu0.b32.cont [15/16] 0.0, 128
        %1767 = vxpose.xlu0.b32.end [16/16] 0.0, 128
        %v1768 = vpop.trf.xlu0
        %v1769 = vpop.trf.xlu0
        %v1770 = vpop.trf.xlu0
        %v1771 = vpop.trf.xlu0
        %v1772 = vpop.trf.xlu0
        %v1773 = vpop.trf.xlu0
        %v1774 = vpop.trf.xlu0
        %v1775 = vpop.trf.xlu0
        %v1776 = vpop.trf.xlu0
        %v1777 = vpop.trf.xlu0
        %v1778 = vpop.trf.xlu0
        %v1779 = vpop.trf.xlu0
        %v1780 = vpop.trf.xlu0
        %v1781 = vpop.trf.xlu0
        %v1782 = vpop.trf.xlu0
        %v1783 = vpop.trf.xlu0
        %1784 = vxpose.xlu0.b32.start [1/16] %v873, 128
        %1785 = vxpose.xlu0.b32.cont [2/16] %v878, 128
        %1786 = vxpose.xlu0.b32.cont [3/16] %v883, 128
        %1787 = vxpose.xlu0.b32.cont [4/16] %v888, 128
        %1788 = vxpose.xlu0.b32.cont [5/16] 0.0, 128
        %1789 = vxpose.xlu0.b32.cont [6/16] 0.0, 128
        %1790 = vxpose.xlu0.b32.cont [7/16] 0.0, 128
        %1791 = vxpose.xlu0.b32.cont [8/16] 0.0, 128
        %1792 = vxpose.xlu0.b32.cont [9/16] 0.0, 128
        %1793 = vxpose.xlu0.b32.cont [10/16] 0.0, 128
        %1794 = vxpose.xlu0.b32.cont [11/16] 0.0, 128
        %1795 = vxpose.xlu0.b32.cont [12/16] 0.0, 128
        %1796 = vxpose.xlu0.b32.cont [13/16] 0.0, 128
        %1797 = vxpose.xlu0.b32.cont [14/16] 0.0, 128
        %1798 = vxpose.xlu0.b32.cont [15/16] 0.0, 128
        %1799 = vxpose.xlu0.b32.end [16/16] 0.0, 128
        %v1800 = vpop.trf.xlu0
        %v1801 = vpop.trf.xlu0
        %v1802 = vpop.trf.xlu0
        %v1803 = vpop.trf.xlu0
        %v1804 = vpop.trf.xlu0
        %v1805 = vpop.trf.xlu0
        %v1806 = vpop.trf.xlu0
        %v1807 = vpop.trf.xlu0
        %v1808 = vpop.trf.xlu0
        %v1809 = vpop.trf.xlu0
        %v1810 = vpop.trf.xlu0
        %v1811 = vpop.trf.xlu0
        %v1812 = vpop.trf.xlu0
        %v1813 = vpop.trf.xlu0
        %v1814 = vpop.trf.xlu0
        %v1815 = vpop.trf.xlu0
        %1816 = vxpose.xlu0.b32.start [1/16] %v893, 128
        %1817 = vxpose.xlu0.b32.cont [2/16] %v898, 128
        %1818 = vxpose.xlu0.b32.cont [3/16] %v903, 128
        %1819 = vxpose.xlu0.b32.cont [4/16] %v908, 128
        %1820 = vxpose.xlu0.b32.cont [5/16] 0.0, 128
        %1821 = vxpose.xlu0.b32.cont [6/16] 0.0, 128
        %1822 = vxpose.xlu0.b32.cont [7/16] 0.0, 128
        %1823 = vxpose.xlu0.b32.cont [8/16] 0.0, 128
        %1824 = vxpose.xlu0.b32.cont [9/16] 0.0, 128
        %1825 = vxpose.xlu0.b32.cont [10/16] 0.0, 128
        %1826 = vxpose.xlu0.b32.cont [11/16] 0.0, 128
        %1827 = vxpose.xlu0.b32.cont [12/16] 0.0, 128
        %1828 = vxpose.xlu0.b32.cont [13/16] 0.0, 128
        %1829 = vxpose.xlu0.b32.cont [14/16] 0.0, 128
        %1830 = vxpose.xlu0.b32.cont [15/16] 0.0, 128
        %1831 = vxpose.xlu0.b32.end [16/16] 0.0, 128
        %v1832 = vpop.trf.xlu0
        %v1833 = vpop.trf.xlu0
        %v1834 = vpop.trf.xlu0
        %v1835 = vpop.trf.xlu0
        %v1836 = vpop.trf.xlu0
        %v1837 = vpop.trf.xlu0
        %v1838 = vpop.trf.xlu0
        %v1839 = vpop.trf.xlu0
        %v1840 = vpop.trf.xlu0
        %v1841 = vpop.trf.xlu0
        %v1842 = vpop.trf.xlu0
        %v1843 = vpop.trf.xlu0
        %v1844 = vpop.trf.xlu0
        %v1845 = vpop.trf.xlu0
        %v1846 = vpop.trf.xlu0
        %v1847 = vpop.trf.xlu0
        %1848 = vxpose.xlu0.b32.start [1/16] %v913, 128
        %1849 = vxpose.xlu0.b32.cont [2/16] %v918, 128
        %1850 = vxpose.xlu0.b32.cont [3/16] %v923, 128
        %1851 = vxpose.xlu0.b32.cont [4/16] %v928, 128
        %1852 = vxpose.xlu0.b32.cont [5/16] 0.0, 128
        %1853 = vxpose.xlu0.b32.cont [6/16] 0.0, 128
        %1854 = vxpose.xlu0.b32.cont [7/16] 0.0, 128
        %1855 = vxpose.xlu0.b32.cont [8/16] 0.0, 128
        %1856 = vxpose.xlu0.b32.cont [9/16] 0.0, 128
        %1857 = vxpose.xlu0.b32.cont [10/16] 0.0, 128
        %1858 = vxpose.xlu0.b32.cont [11/16] 0.0, 128
        %1859 = vxpose.xlu0.b32.cont [12/16] 0.0, 128
        %1860 = vxpose.xlu0.b32.cont [13/16] 0.0, 128
        %1861 = vxpose.xlu0.b32.cont [14/16] 0.0, 128
        %1862 = vxpose.xlu0.b32.cont [15/16] 0.0, 128
        %1863 = vxpose.xlu0.b32.end [16/16] 0.0, 128
        %v1864 = vpop.trf.xlu0
        %v1865 = vpop.trf.xlu0
        %v1866 = vpop.trf.xlu0
        %v1867 = vpop.trf.xlu0
        %v1868 = vpop.trf.xlu0
        %v1869 = vpop.trf.xlu0
        %v1870 = vpop.trf.xlu0
        %v1871 = vpop.trf.xlu0
        %v1872 = vpop.trf.xlu0
        %v1873 = vpop.trf.xlu0
        %v1874 = vpop.trf.xlu0
        %v1875 = vpop.trf.xlu0
        %v1876 = vpop.trf.xlu0
        %v1877 = vpop.trf.xlu0
        %v1878 = vpop.trf.xlu0
        %v1879 = vpop.trf.xlu0
        %1880 = vxpose.xlu0.b32.start [1/16] %v933, 128
        %1881 = vxpose.xlu0.b32.cont [2/16] %v938, 128
        %1882 = vxpose.xlu0.b32.cont [3/16] %v943, 128
        %1883 = vxpose.xlu0.b32.cont [4/16] %v948, 128
        %1884 = vxpose.xlu0.b32.cont [5/16] 0.0, 128
        %1885 = vxpose.xlu0.b32.cont [6/16] 0.0, 128
        %1886 = vxpose.xlu0.b32.cont [7/16] 0.0, 128
        %1887 = vxpose.xlu0.b32.cont [8/16] 0.0, 128
        %1888 = vxpose.xlu0.b32.cont [9/16] 0.0, 128
        %1889 = vxpose.xlu0.b32.cont [10/16] 0.0, 128
        %1890 = vxpose.xlu0.b32.cont [11/16] 0.0, 128
        %1891 = vxpose.xlu0.b32.cont [12/16] 0.0, 128
        %1892 = vxpose.xlu0.b32.cont [13/16] 0.0, 128
        %1893 = vxpose.xlu0.b32.cont [14/16] 0.0, 128
        %1894 = vxpose.xlu0.b32.cont [15/16] 0.0, 128
        %1895 = vxpose.xlu0.b32.end [16/16] 0.0, 128
        %v1896 = vpop.trf.xlu0
        %v1897 = vpop.trf.xlu0
        %v1898 = vpop.trf.xlu0
        %v1899 = vpop.trf.xlu0
        %v1900 = vpop.trf.xlu0
        %v1901 = vpop.trf.xlu0
        %v1902 = vpop.trf.xlu0
        %v1903 = vpop.trf.xlu0
        %v1904 = vpop.trf.xlu0
        %v1905 = vpop.trf.xlu0
        %v1906 = vpop.trf.xlu0
        %v1907 = vpop.trf.xlu0
        %v1908 = vpop.trf.xlu0
        %v1909 = vpop.trf.xlu0
        %v1910 = vpop.trf.xlu0
        %v1911 = vpop.trf.xlu0
        %1912 = vxpose.xlu0.b32.start [1/16] %v1336, 128
        %1913 = vxpose.xlu0.b32.cont [2/16] %v1337, 128
        %1914 = vxpose.xlu0.b32.cont [3/16] %v1338, 128
        %1915 = vxpose.xlu0.b32.cont [4/16] %v1339, 128
        %1916 = vxpose.xlu0.b32.cont [5/16] 0.0, 128
        %1917 = vxpose.xlu0.b32.cont [6/16] 0.0, 128
        %1918 = vxpose.xlu0.b32.cont [7/16] 0.0, 128
        %1919 = vxpose.xlu0.b32.cont [8/16] 0.0, 128
        %1920 = vxpose.xlu0.b32.cont [9/16] 0.0, 128
        %1921 = vxpose.xlu0.b32.cont [10/16] 0.0, 128
        %1922 = vxpose.xlu0.b32.cont [11/16] 0.0, 128
        %1923 = vxpose.xlu0.b32.cont [12/16] 0.0, 128
        %1924 = vxpose.xlu0.b32.cont [13/16] 0.0, 128
        %1925 = vxpose.xlu0.b32.cont [14/16] 0.0, 128
        %1926 = vxpose.xlu0.b32.cont [15/16] 0.0, 128
        %1927 = vxpose.xlu0.b32.end [16/16] 0.0, 128
        %v1928 = vpop.trf.xlu0
        %v1929 = vpop.trf.xlu0
        %v1930 = vpop.trf.xlu0
        %v1931 = vpop.trf.xlu0
        %v1932 = vpop.trf.xlu0
        %v1933 = vpop.trf.xlu0
        %v1934 = vpop.trf.xlu0
        %v1935 = vpop.trf.xlu0
        %v1936 = vpop.trf.xlu0
        %v1937 = vpop.trf.xlu0
        %v1938 = vpop.trf.xlu0
        %v1939 = vpop.trf.xlu0
        %v1940 = vpop.trf.xlu0
        %v1941 = vpop.trf.xlu0
        %v1942 = vpop.trf.xlu0
        %v1943 = vpop.trf.xlu0
        %1944 = vxpose.xlu0.b32.start [1/16] %v1340, 128
        %1945 = vxpose.xlu0.b32.cont [2/16] %v1341, 128
        %1946 = vxpose.xlu0.b32.cont [3/16] %v1342, 128
        %1947 = vxpose.xlu0.b32.cont [4/16] %v1343, 128
        %1948 = vxpose.xlu0.b32.cont [5/16] 0.0, 128
        %1949 = vxpose.xlu0.b32.cont [6/16] 0.0, 128
        %1950 = vxpose.xlu0.b32.cont [7/16] 0.0, 128
        %1951 = vxpose.xlu0.b32.cont [8/16] 0.0, 128
        %1952 = vxpose.xlu0.b32.cont [9/16] 0.0, 128
        %1953 = vxpose.xlu0.b32.cont [10/16] 0.0, 128
        %1954 = vxpose.xlu0.b32.cont [11/16] 0.0, 128
        %1955 = vxpose.xlu0.b32.cont [12/16] 0.0, 128
        %1956 = vxpose.xlu0.b32.cont [13/16] 0.0, 128
        %1957 = vxpose.xlu0.b32.cont [14/16] 0.0, 128
        %1958 = vxpose.xlu0.b32.cont [15/16] 0.0, 128
        %1959 = vxpose.xlu0.b32.end [16/16] 0.0, 128
        %v1960 = vpop.trf.xlu0
        %v1961 = vpop.trf.xlu0
        %v1962 = vpop.trf.xlu0
        %v1963 = vpop.trf.xlu0
        %v1964 = vpop.trf.xlu0
        %v1965 = vpop.trf.xlu0
        %v1966 = vpop.trf.xlu0
        %v1967 = vpop.trf.xlu0
        %v1968 = vpop.trf.xlu0
        %v1969 = vpop.trf.xlu0
        %v1970 = vpop.trf.xlu0
        %v1971 = vpop.trf.xlu0
        %v1972 = vpop.trf.xlu0
        %v1973 = vpop.trf.xlu0
        %v1974 = vpop.trf.xlu0
        %v1975 = vpop.trf.xlu0
        %1976 = vxpose.xlu0.b32.start [1/16] %v1344, 128
        %1977 = vxpose.xlu0.b32.cont [2/16] %v1345, 128
        %1978 = vxpose.xlu0.b32.cont [3/16] %v1346, 128
        %1979 = vxpose.xlu0.b32.cont [4/16] %v1347, 128
        %1980 = vxpose.xlu0.b32.cont [5/16] 0.0, 128
        %1981 = vxpose.xlu0.b32.cont [6/16] 0.0, 128
        %1982 = vxpose.xlu0.b32.cont [7/16] 0.0, 128
        %1983 = vxpose.xlu0.b32.cont [8/16] 0.0, 128
        %1984 = vxpose.xlu0.b32.cont [9/16] 0.0, 128
        %1985 = vxpose.xlu0.b32.cont [10/16] 0.0, 128
        %1986 = vxpose.xlu0.b32.cont [11/16] 0.0, 128
        %1987 = vxpose.xlu0.b32.cont [12/16] 0.0, 128
        %1988 = vxpose.xlu0.b32.cont [13/16] 0.0, 128
        %1989 = vxpose.xlu0.b32.cont [14/16] 0.0, 128
        %1990 = vxpose.xlu0.b32.cont [15/16] 0.0, 128
        %1991 = vxpose.xlu0.b32.end [16/16] 0.0, 128
        %v1992 = vpop.trf.xlu0
        %v1993 = vpop.trf.xlu0
        %v1994 = vpop.trf.xlu0
        %v1995 = vpop.trf.xlu0
        %v1996 = vpop.trf.xlu0
        %v1997 = vpop.trf.xlu0
        %v1998 = vpop.trf.xlu0
        %v1999 = vpop.trf.xlu0
        %v2000 = vpop.trf.xlu0
        %v2001 = vpop.trf.xlu0
        %v2002 = vpop.trf.xlu0
        %v2003 = vpop.trf.xlu0
        %v2004 = vpop.trf.xlu0
        %v2005 = vpop.trf.xlu0
        %v2006 = vpop.trf.xlu0
        %v2007 = vpop.trf.xlu0
        %2008 = vxpose.xlu0.b32.start [1/16] %v1348, 128
        %2009 = vxpose.xlu0.b32.cont [2/16] %v1349, 128
        %2010 = vxpose.xlu0.b32.cont [3/16] %v1350, 128
        %2011 = vxpose.xlu0.b32.cont [4/16] %v1351, 128
        %2012 = vxpose.xlu0.b32.cont [5/16] 0.0, 128
        %2013 = vxpose.xlu0.b32.cont [6/16] 0.0, 128
        %2014 = vxpose.xlu0.b32.cont [7/16] 0.0, 128
        %2015 = vxpose.xlu0.b32.cont [8/16] 0.0, 128
        %2016 = vxpose.xlu0.b32.cont [9/16] 0.0, 128
        %2017 = vxpose.xlu0.b32.cont [10/16] 0.0, 128
        %2018 = vxpose.xlu0.b32.cont [11/16] 0.0, 128
        %2019 = vxpose.xlu0.b32.cont [12/16] 0.0, 128
        %2020 = vxpose.xlu0.b32.cont [13/16] 0.0, 128
        %2021 = vxpose.xlu0.b32.cont [14/16] 0.0, 128
        %2022 = vxpose.xlu0.b32.cont [15/16] 0.0, 128
        %2023 = vxpose.xlu0.b32.end [16/16] 0.0, 128
        %v2024 = vpop.trf.xlu0
        %v2025 = vpop.trf.xlu0
        %v2026 = vpop.trf.xlu0
        %v2027 = vpop.trf.xlu0
        %v2028 = vpop.trf.xlu0
        %v2029 = vpop.trf.xlu0
        %v2030 = vpop.trf.xlu0
        %v2031 = vpop.trf.xlu0
        %v2032 = vpop.trf.xlu0
        %v2033 = vpop.trf.xlu0
        %v2034 = vpop.trf.xlu0
        %v2035 = vpop.trf.xlu0
        %v2036 = vpop.trf.xlu0
        %v2037 = vpop.trf.xlu0
        %v2038 = vpop.trf.xlu0
        %v2039 = vpop.trf.xlu0
        %2040 = vxpose.xlu0.b32.start [1/16] %v1352, 128
        %2041 = vxpose.xlu0.b32.cont [2/16] %v1353, 128
        %2042 = vxpose.xlu0.b32.cont [3/16] %v1354, 128
        %2043 = vxpose.xlu0.b32.cont [4/16] %v1355, 128
        %2044 = vxpose.xlu0.b32.cont [5/16] 0.0, 128
        %2045 = vxpose.xlu0.b32.cont [6/16] 0.0, 128
        %2046 = vxpose.xlu0.b32.cont [7/16] 0.0, 128
        %2047 = vxpose.xlu0.b32.cont [8/16] 0.0, 128
        %2048 = vxpose.xlu0.b32.cont [9/16] 0.0, 128
        %2049 = vxpose.xlu0.b32.cont [10/16] 0.0, 128
        %2050 = vxpose.xlu0.b32.cont [11/16] 0.0, 128
        %2051 = vxpose.xlu0.b32.cont [12/16] 0.0, 128
        %2052 = vxpose.xlu0.b32.cont [13/16] 0.0, 128
        %2053 = vxpose.xlu0.b32.cont [14/16] 0.0, 128
        %2054 = vxpose.xlu0.b32.cont [15/16] 0.0, 128
        %2055 = vxpose.xlu0.b32.end [16/16] 0.0, 128
        %v2056 = vpop.trf.xlu0
        %v2057 = vpop.trf.xlu0
        %v2058 = vpop.trf.xlu0
        %v2059 = vpop.trf.xlu0
        %v2060 = vpop.trf.xlu0
        %v2061 = vpop.trf.xlu0
        %v2062 = vpop.trf.xlu0
        %v2063 = vpop.trf.xlu0
        %v2064 = vpop.trf.xlu0
        %v2065 = vpop.trf.xlu0
        %v2066 = vpop.trf.xlu0
        %v2067 = vpop.trf.xlu0
        %v2068 = vpop.trf.xlu0
        %v2069 = vpop.trf.xlu0
        %v2070 = vpop.trf.xlu0
        %v2071 = vpop.trf.xlu0
        %2072 = vxpose.xlu0.b32.start [1/16] %v1356, 128
        %2073 = vxpose.xlu0.b32.cont [2/16] %v1357, 128
        %2074 = vxpose.xlu0.b32.cont [3/16] %v1358, 128
        %2075 = vxpose.xlu0.b32.cont [4/16] %v1359, 128
        %2076 = vxpose.xlu0.b32.cont [5/16] 0.0, 128
        %2077 = vxpose.xlu0.b32.cont [6/16] 0.0, 128
        %2078 = vxpose.xlu0.b32.cont [7/16] 0.0, 128
        %2079 = vxpose.xlu0.b32.cont [8/16] 0.0, 128
        %2080 = vxpose.xlu0.b32.cont [9/16] 0.0, 128
        %2081 = vxpose.xlu0.b32.cont [10/16] 0.0, 128
        %2082 = vxpose.xlu0.b32.cont [11/16] 0.0, 128
        %2083 = vxpose.xlu0.b32.cont [12/16] 0.0, 128
        %2084 = vxpose.xlu0.b32.cont [13/16] 0.0, 128
        %2085 = vxpose.xlu0.b32.cont [14/16] 0.0, 128
        %2086 = vxpose.xlu0.b32.cont [15/16] 0.0, 128
        %2087 = vxpose.xlu0.b32.end [16/16] 0.0, 128
        %v2088 = vpop.trf.xlu0
        %v2089 = vpop.trf.xlu0
        %v2090 = vpop.trf.xlu0
        %v2091 = vpop.trf.xlu0
        %v2092 = vpop.trf.xlu0
        %v2093 = vpop.trf.xlu0
        %v2094 = vpop.trf.xlu0
        %v2095 = vpop.trf.xlu0
        %v2096 = vpop.trf.xlu0
        %v2097 = vpop.trf.xlu0
        %v2098 = vpop.trf.xlu0
        %v2099 = vpop.trf.xlu0
        %v2100 = vpop.trf.xlu0
        %v2101 = vpop.trf.xlu0
        %v2102 = vpop.trf.xlu0
        %v2103 = vpop.trf.xlu0
        %2104 = vxpose.xlu0.b32.start [1/16] %v1360, 128
        %2105 = vxpose.xlu0.b32.cont [2/16] %v1361, 128
        %2106 = vxpose.xlu0.b32.cont [3/16] %v1362, 128
        %2107 = vxpose.xlu0.b32.cont [4/16] %v1363, 128
        %2108 = vxpose.xlu0.b32.cont [5/16] 0.0, 128
        %2109 = vxpose.xlu0.b32.cont [6/16] 0.0, 128
        %2110 = vxpose.xlu0.b32.cont [7/16] 0.0, 128
        %2111 = vxpose.xlu0.b32.cont [8/16] 0.0, 128
        %2112 = vxpose.xlu0.b32.cont [9/16] 0.0, 128
        %2113 = vxpose.xlu0.b32.cont [10/16] 0.0, 128
        %2114 = vxpose.xlu0.b32.cont [11/16] 0.0, 128
        %2115 = vxpose.xlu0.b32.cont [12/16] 0.0, 128
        %2116 = vxpose.xlu0.b32.cont [13/16] 0.0, 128
        %2117 = vxpose.xlu0.b32.cont [14/16] 0.0, 128
        %2118 = vxpose.xlu0.b32.cont [15/16] 0.0, 128
        %2119 = vxpose.xlu0.b32.end [16/16] 0.0, 128
        %v2120 = vpop.trf.xlu0
        %v2121 = vpop.trf.xlu0
        %v2122 = vpop.trf.xlu0
        %v2123 = vpop.trf.xlu0
        %v2124 = vpop.trf.xlu0
        %v2125 = vpop.trf.xlu0
        %v2126 = vpop.trf.xlu0
        %v2127 = vpop.trf.xlu0
        %v2128 = vpop.trf.xlu0
        %v2129 = vpop.trf.xlu0
        %v2130 = vpop.trf.xlu0
        %v2131 = vpop.trf.xlu0
        %v2132 = vpop.trf.xlu0
        %v2133 = vpop.trf.xlu0
        %v2134 = vpop.trf.xlu0
        %v2135 = vpop.trf.xlu0
        %2136 = vxpose.xlu0.b32.start [1/16] %v1364, 128
        %2137 = vxpose.xlu0.b32.cont [2/16] %v1365, 128
        %2138 = vxpose.xlu0.b32.cont [3/16] %v1366, 128
        %2139 = vxpose.xlu0.b32.cont [4/16] %v1367, 128
        %2140 = vxpose.xlu0.b32.cont [5/16] 0.0, 128
        %2141 = vxpose.xlu0.b32.cont [6/16] 0.0, 128
        %2142 = vxpose.xlu0.b32.cont [7/16] 0.0, 128
        %2143 = vxpose.xlu0.b32.cont [8/16] 0.0, 128
        %2144 = vxpose.xlu0.b32.cont [9/16] 0.0, 128
        %2145 = vxpose.xlu0.b32.cont [10/16] 0.0, 128
        %2146 = vxpose.xlu0.b32.cont [11/16] 0.0, 128
        %2147 = vxpose.xlu0.b32.cont [12/16] 0.0, 128
        %2148 = vxpose.xlu0.b32.cont [13/16] 0.0, 128
        %2149 = vxpose.xlu0.b32.cont [14/16] 0.0, 128
        %2150 = vxpose.xlu0.b32.cont [15/16] 0.0, 128
        %2151 = vxpose.xlu0.b32.end [16/16] 0.0, 128
        %v2152 = vpop.trf.xlu0
        %v2153 = vpop.trf.xlu0
        %v2154 = vpop.trf.xlu0
        %v2155 = vpop.trf.xlu0
        %v2156 = vpop.trf.xlu0
        %v2157 = vpop.trf.xlu0
        %v2158 = vpop.trf.xlu0
        %v2159 = vpop.trf.xlu0
        %v2160 = vpop.trf.xlu0
        %v2161 = vpop.trf.xlu0
        %v2162 = vpop.trf.xlu0
        %v2163 = vpop.trf.xlu0
        %v2164 = vpop.trf.xlu0
        %v2165 = vpop.trf.xlu0
        %v2166 = vpop.trf.xlu0
        %v2167 = vpop.trf.xlu0
        %2168 = vxpose.xlu0.b32.start [1/16] %v1368, 128
        %2169 = vxpose.xlu0.b32.cont [2/16] %v1369, 128
        %2170 = vxpose.xlu0.b32.cont [3/16] %v1370, 128
        %2171 = vxpose.xlu0.b32.cont [4/16] %v1371, 128
        %2172 = vxpose.xlu0.b32.cont [5/16] 0.0, 128
        %2173 = vxpose.xlu0.b32.cont [6/16] 0.0, 128
        %2174 = vxpose.xlu0.b32.cont [7/16] 0.0, 128
        %2175 = vxpose.xlu0.b32.cont [8/16] 0.0, 128
        %2176 = vxpose.xlu0.b32.cont [9/16] 0.0, 128
        %2177 = vxpose.xlu0.b32.cont [10/16] 0.0, 128
        %2178 = vxpose.xlu0.b32.cont [11/16] 0.0, 128
        %2179 = vxpose.xlu0.b32.cont [12/16] 0.0, 128
        %2180 = vxpose.xlu0.b32.cont [13/16] 0.0, 128
        %2181 = vxpose.xlu0.b32.cont [14/16] 0.0, 128
        %2182 = vxpose.xlu0.b32.cont [15/16] 0.0, 128
        %2183 = vxpose.xlu0.b32.end [16/16] 0.0, 128
        %v2184 = vpop.trf.xlu0
        %v2185 = vpop.trf.xlu0
        %v2186 = vpop.trf.xlu0
        %v2187 = vpop.trf.xlu0
        %v2188 = vpop.trf.xlu0
        %v2189 = vpop.trf.xlu0
        %v2190 = vpop.trf.xlu0
        %v2191 = vpop.trf.xlu0
        %v2192 = vpop.trf.xlu0
        %v2193 = vpop.trf.xlu0
        %v2194 = vpop.trf.xlu0
        %v2195 = vpop.trf.xlu0
        %v2196 = vpop.trf.xlu0
        %v2197 = vpop.trf.xlu0
        %v2198 = vpop.trf.xlu0
        %v2199 = vpop.trf.xlu0
        %2200 = vxpose.xlu0.b32.start [1/16] %v1372, 128
        %2201 = vxpose.xlu0.b32.cont [2/16] %v1373, 128
        %2202 = vxpose.xlu0.b32.cont [3/16] %v1374, 128
        %2203 = vxpose.xlu0.b32.cont [4/16] %v1375, 128
        %2204 = vxpose.xlu0.b32.cont [5/16] 0.0, 128
        %2205 = vxpose.xlu0.b32.cont [6/16] 0.0, 128
        %2206 = vxpose.xlu0.b32.cont [7/16] 0.0, 128
        %2207 = vxpose.xlu0.b32.cont [8/16] 0.0, 128
        %2208 = vxpose.xlu0.b32.cont [9/16] 0.0, 128
        %2209 = vxpose.xlu0.b32.cont [10/16] 0.0, 128
        %2210 = vxpose.xlu0.b32.cont [11/16] 0.0, 128
        %2211 = vxpose.xlu0.b32.cont [12/16] 0.0, 128
        %2212 = vxpose.xlu0.b32.cont [13/16] 0.0, 128
        %2213 = vxpose.xlu0.b32.cont [14/16] 0.0, 128
        %2214 = vxpose.xlu0.b32.cont [15/16] 0.0, 128
        %2215 = vxpose.xlu0.b32.end [16/16] 0.0, 128
        %v2216 = vpop.trf.xlu0
        %v2217 = vpop.trf.xlu0
        %v2218 = vpop.trf.xlu0
        %v2219 = vpop.trf.xlu0
        %v2220 = vpop.trf.xlu0
        %v2221 = vpop.trf.xlu0
        %v2222 = vpop.trf.xlu0
        %v2223 = vpop.trf.xlu0
        %v2224 = vpop.trf.xlu0
        %v2225 = vpop.trf.xlu0
        %v2226 = vpop.trf.xlu0
        %v2227 = vpop.trf.xlu0
        %v2228 = vpop.trf.xlu0
        %v2229 = vpop.trf.xlu0
        %v2230 = vpop.trf.xlu0
        %v2231 = vpop.trf.xlu0
        %2232 = vxpose.xlu0.b32.start [1/16] %v1376, 128
        %2233 = vxpose.xlu0.b32.cont [2/16] %v1377, 128
        %2234 = vxpose.xlu0.b32.cont [3/16] %v1378, 128
        %2235 = vxpose.xlu0.b32.cont [4/16] %v1379, 128
        %2236 = vxpose.xlu0.b32.cont [5/16] 0.0, 128
        %2237 = vxpose.xlu0.b32.cont [6/16] 0.0, 128
        %2238 = vxpose.xlu0.b32.cont [7/16] 0.0, 128
        %2239 = vxpose.xlu0.b32.cont [8/16] 0.0, 128
        %2240 = vxpose.xlu0.b32.cont [9/16] 0.0, 128
        %2241 = vxpose.xlu0.b32.cont [10/16] 0.0, 128
        %2242 = vxpose.xlu0.b32.cont [11/16] 0.0, 128
        %2243 = vxpose.xlu0.b32.cont [12/16] 0.0, 128
        %2244 = vxpose.xlu0.b32.cont [13/16] 0.0, 128
        %2245 = vxpose.xlu0.b32.cont [14/16] 0.0, 128
        %2246 = vxpose.xlu0.b32.cont [15/16] 0.0, 128
        %2247 = vxpose.xlu0.b32.end [16/16] 0.0, 128
        %v2248 = vpop.trf.xlu0
        %v2249 = vpop.trf.xlu0
        %v2250 = vpop.trf.xlu0
        %v2251 = vpop.trf.xlu0
        %v2252 = vpop.trf.xlu0
        %v2253 = vpop.trf.xlu0
        %v2254 = vpop.trf.xlu0
        %v2255 = vpop.trf.xlu0
        %v2256 = vpop.trf.xlu0
        %v2257 = vpop.trf.xlu0
        %v2258 = vpop.trf.xlu0
        %v2259 = vpop.trf.xlu0
        %v2260 = vpop.trf.xlu0
        %v2261 = vpop.trf.xlu0
        %v2262 = vpop.trf.xlu0
        %v2263 = vpop.trf.xlu0
        %2264 = vxpose.xlu0.b32.start [1/16] %v1380, 128
        %2265 = vxpose.xlu0.b32.cont [2/16] %v1381, 128
        %2266 = vxpose.xlu0.b32.cont [3/16] %v1382, 128
        %2267 = vxpose.xlu0.b32.cont [4/16] %v1383, 128
        %2268 = vxpose.xlu0.b32.cont [5/16] 0.0, 128
        %2269 = vxpose.xlu0.b32.cont [6/16] 0.0, 128
        %2270 = vxpose.xlu0.b32.cont [7/16] 0.0, 128
        %2271 = vxpose.xlu0.b32.cont [8/16] 0.0, 128
        %2272 = vxpose.xlu0.b32.cont [9/16] 0.0, 128
        %2273 = vxpose.xlu0.b32.cont [10/16] 0.0, 128
        %2274 = vxpose.xlu0.b32.cont [11/16] 0.0, 128
        %2275 = vxpose.xlu0.b32.cont [12/16] 0.0, 128
        %2276 = vxpose.xlu0.b32.cont [13/16] 0.0, 128
        %2277 = vxpose.xlu0.b32.cont [14/16] 0.0, 128
        %2278 = vxpose.xlu0.b32.cont [15/16] 0.0, 128
        %2279 = vxpose.xlu0.b32.end [16/16] 0.0, 128
        %v2280 = vpop.trf.xlu0
        %v2281 = vpop.trf.xlu0
        %v2282 = vpop.trf.xlu0
        %v2283 = vpop.trf.xlu0
        %v2284 = vpop.trf.xlu0
        %v2285 = vpop.trf.xlu0
        %v2286 = vpop.trf.xlu0
        %v2287 = vpop.trf.xlu0
        %v2288 = vpop.trf.xlu0
        %v2289 = vpop.trf.xlu0
        %v2290 = vpop.trf.xlu0
        %v2291 = vpop.trf.xlu0
        %v2292 = vpop.trf.xlu0
        %v2293 = vpop.trf.xlu0
        %v2294 = vpop.trf.xlu0
        %v2295 = vpop.trf.xlu0
        %2296 = vxpose.xlu0.b32.start [1/16] %v1384, 128
        %2297 = vxpose.xlu0.b32.cont [2/16] %v1385, 128
        %2298 = vxpose.xlu0.b32.cont [3/16] %v1386, 128
        %2299 = vxpose.xlu0.b32.cont [4/16] %v1387, 128
        %2300 = vxpose.xlu0.b32.cont [5/16] 0.0, 128
        %2301 = vxpose.xlu0.b32.cont [6/16] 0.0, 128
        %2302 = vxpose.xlu0.b32.cont [7/16] 0.0, 128
        %2303 = vxpose.xlu0.b32.cont [8/16] 0.0, 128
        %2304 = vxpose.xlu0.b32.cont [9/16] 0.0, 128
        %2305 = vxpose.xlu0.b32.cont [10/16] 0.0, 128
        %2306 = vxpose.xlu0.b32.cont [11/16] 0.0, 128
        %2307 = vxpose.xlu0.b32.cont [12/16] 0.0, 128
        %2308 = vxpose.xlu0.b32.cont [13/16] 0.0, 128
        %2309 = vxpose.xlu0.b32.cont [14/16] 0.0, 128
        %2310 = vxpose.xlu0.b32.cont [15/16] 0.0, 128
        %2311 = vxpose.xlu0.b32.end [16/16] 0.0, 128
        %v2312 = vpop.trf.xlu0
        %v2313 = vpop.trf.xlu0
        %v2314 = vpop.trf.xlu0
        %v2315 = vpop.trf.xlu0
        %v2316 = vpop.trf.xlu0
        %v2317 = vpop.trf.xlu0
        %v2318 = vpop.trf.xlu0
        %v2319 = vpop.trf.xlu0
        %v2320 = vpop.trf.xlu0
        %v2321 = vpop.trf.xlu0
        %v2322 = vpop.trf.xlu0
        %v2323 = vpop.trf.xlu0
        %v2324 = vpop.trf.xlu0
        %v2325 = vpop.trf.xlu0
        %v2326 = vpop.trf.xlu0
        %v2327 = vpop.trf.xlu0
        %2328 = vxpose.xlu0.b32.start [1/16] %v1388, 128
        %2329 = vxpose.xlu0.b32.cont [2/16] %v1389, 128
        %2330 = vxpose.xlu0.b32.cont [3/16] %v1390, 128
        %2331 = vxpose.xlu0.b32.cont [4/16] %v1391, 128
        %2332 = vxpose.xlu0.b32.cont [5/16] 0.0, 128
        %2333 = vxpose.xlu0.b32.cont [6/16] 0.0, 128
        %2334 = vxpose.xlu0.b32.cont [7/16] 0.0, 128
        %2335 = vxpose.xlu0.b32.cont [8/16] 0.0, 128
        %2336 = vxpose.xlu0.b32.cont [9/16] 0.0, 128
        %2337 = vxpose.xlu0.b32.cont [10/16] 0.0, 128
        %2338 = vxpose.xlu0.b32.cont [11/16] 0.0, 128
        %2339 = vxpose.xlu0.b32.cont [12/16] 0.0, 128
        %2340 = vxpose.xlu0.b32.cont [13/16] 0.0, 128
        %2341 = vxpose.xlu0.b32.cont [14/16] 0.0, 128
        %2342 = vxpose.xlu0.b32.cont [15/16] 0.0, 128
        %2343 = vxpose.xlu0.b32.end [16/16] 0.0, 128
        %v2344 = vpop.trf.xlu0
        %v2345 = vpop.trf.xlu0
        %v2346 = vpop.trf.xlu0
        %v2347 = vpop.trf.xlu0
        %v2348 = vpop.trf.xlu0
        %v2349 = vpop.trf.xlu0
        %v2350 = vpop.trf.xlu0
        %v2351 = vpop.trf.xlu0
        %v2352 = vpop.trf.xlu0
        %v2353 = vpop.trf.xlu0
        %v2354 = vpop.trf.xlu0
        %v2355 = vpop.trf.xlu0
        %v2356 = vpop.trf.xlu0
        %v2357 = vpop.trf.xlu0
        %v2358 = vpop.trf.xlu0
        %v2359 = vpop.trf.xlu0
        %2360 = vxpose.xlu0.b32.start [1/16] %v1392, 128
        %2361 = vxpose.xlu0.b32.cont [2/16] %v1393, 128
        %2362 = vxpose.xlu0.b32.cont [3/16] %v1394, 128
        %2363 = vxpose.xlu0.b32.cont [4/16] %v1395, 128
        %2364 = vxpose.xlu0.b32.cont [5/16] 0.0, 128
        %2365 = vxpose.xlu0.b32.cont [6/16] 0.0, 128
        %2366 = vxpose.xlu0.b32.cont [7/16] 0.0, 128
        %2367 = vxpose.xlu0.b32.cont [8/16] 0.0, 128
        %2368 = vxpose.xlu0.b32.cont [9/16] 0.0, 128
        %2369 = vxpose.xlu0.b32.cont [10/16] 0.0, 128
        %2370 = vxpose.xlu0.b32.cont [11/16] 0.0, 128
        %2371 = vxpose.xlu0.b32.cont [12/16] 0.0, 128
        %2372 = vxpose.xlu0.b32.cont [13/16] 0.0, 128
        %2373 = vxpose.xlu0.b32.cont [14/16] 0.0, 128
        %2374 = vxpose.xlu0.b32.cont [15/16] 0.0, 128
        %2375 = vxpose.xlu0.b32.end [16/16] 0.0, 128
        %v2376 = vpop.trf.xlu0
        %v2377 = vpop.trf.xlu0
        %v2378 = vpop.trf.xlu0
        %v2379 = vpop.trf.xlu0
        %v2380 = vpop.trf.xlu0
        %v2381 = vpop.trf.xlu0
        %v2382 = vpop.trf.xlu0
        %v2383 = vpop.trf.xlu0
        %v2384 = vpop.trf.xlu0
        %v2385 = vpop.trf.xlu0
        %v2386 = vpop.trf.xlu0
        %v2387 = vpop.trf.xlu0
        %v2388 = vpop.trf.xlu0
        %v2389 = vpop.trf.xlu0
        %v2390 = vpop.trf.xlu0
        %v2391 = vpop.trf.xlu0
        %2392 = vxpose.xlu0.b32.start [1/16] %v1396, 128
        %2393 = vxpose.xlu0.b32.cont [2/16] %v1397, 128
        %2394 = vxpose.xlu0.b32.cont [3/16] %v1398, 128
        %2395 = vxpose.xlu0.b32.cont [4/16] %v1399, 128
        %2396 = vxpose.xlu0.b32.cont [5/16] 0.0, 128
        %2397 = vxpose.xlu0.b32.cont [6/16] 0.0, 128
        %2398 = vxpose.xlu0.b32.cont [7/16] 0.0, 128
        %2399 = vxpose.xlu0.b32.cont [8/16] 0.0, 128
        %2400 = vxpose.xlu0.b32.cont [9/16] 0.0, 128
        %2401 = vxpose.xlu0.b32.cont [10/16] 0.0, 128
        %2402 = vxpose.xlu0.b32.cont [11/16] 0.0, 128
        %2403 = vxpose.xlu0.b32.cont [12/16] 0.0, 128
        %2404 = vxpose.xlu0.b32.cont [13/16] 0.0, 128
        %2405 = vxpose.xlu0.b32.cont [14/16] 0.0, 128
        %2406 = vxpose.xlu0.b32.cont [15/16] 0.0, 128
        %2407 = vxpose.xlu0.b32.end [16/16] 0.0, 128
        %v2408 = vpop.trf.xlu0
        %v2409 = vpop.trf.xlu0
        %v2410 = vpop.trf.xlu0
        %v2411 = vpop.trf.xlu0
        %v2412 = vpop.trf.xlu0
        %v2413 = vpop.trf.xlu0
        %v2414 = vpop.trf.xlu0
        %v2415 = vpop.trf.xlu0
        %v2416 = vpop.trf.xlu0
        %v2417 = vpop.trf.xlu0
        %v2418 = vpop.trf.xlu0
        %v2419 = vpop.trf.xlu0
        %v2420 = vpop.trf.xlu0
        %v2421 = vpop.trf.xlu0
        %v2422 = vpop.trf.xlu0
        %v2423 = vpop.trf.xlu0
        %v2425 = vsel %vm373, %v1928, 0
        %v2428 = vsel %vm373, %v1929, 0
        %v2431 = vsel %vm373, %v1930, 0
        %v2434 = vsel %vm373, %v1931, 0
        %v2437 = vsel %vm373, %v1960, 0
        %v2440 = vsel %vm373, %v1961, 0
        %v2443 = vsel %vm373, %v1962, 0
        %v2446 = vsel %vm373, %v1963, 0
        %v2449 = vsel %vm373, %v1992, 0
        %v2452 = vsel %vm373, %v1993, 0
        %v2455 = vsel %vm373, %v1994, 0
        %v2458 = vsel %vm373, %v1995, 0
        %v2461 = vsel %vm373, %v2024, 0
        %v2464 = vsel %vm373, %v2025, 0
        %v2467 = vsel %vm373, %v2026, 0
        %v2470 = vsel %vm373, %v2027, 0
        %v2473 = vsel %vm373, %v2056, 0
        %v2476 = vsel %vm373, %v2057, 0
        %v2479 = vsel %vm373, %v2058, 0
        %v2482 = vsel %vm373, %v2059, 0
        %v2485 = vsel %vm373, %v2088, 0
        %v2488 = vsel %vm373, %v2089, 0
        %v2491 = vsel %vm373, %v2090, 0
        %v2494 = vsel %vm373, %v2091, 0
        %v2497 = vsel %vm373, %v2120, 0
        %v2500 = vsel %vm373, %v2121, 0
        %v2503 = vsel %vm373, %v2122, 0
        %v2506 = vsel %vm373, %v2123, 0
        %v2509 = vsel %vm373, %v2152, 0
        %v2512 = vsel %vm373, %v2153, 0
        %v2515 = vsel %vm373, %v2154, 0
        %v2518 = vsel %vm373, %v2155, 0
        %v2521 = vsel %vm373, %v2184, 0
        %v2524 = vsel %vm373, %v2185, 0
        %v2527 = vsel %vm373, %v2186, 0
        %v2530 = vsel %vm373, %v2187, 0
        %v2533 = vsel %vm373, %v2216, 0
        %v2536 = vsel %vm373, %v2217, 0
        %v2539 = vsel %vm373, %v2218, 0
        %v2542 = vsel %vm373, %v2219, 0
        %v2545 = vsel %vm373, %v2248, 0
        %v2548 = vsel %vm373, %v2249, 0
        %v2551 = vsel %vm373, %v2250, 0
        %v2554 = vsel %vm373, %v2251, 0
        %v2557 = vsel %vm373, %v2280, 0
        %v2560 = vsel %vm373, %v2281, 0
        %v2563 = vsel %vm373, %v2282, 0
        %v2566 = vsel %vm373, %v2283, 0
        %v2569 = vsel %vm373, %v2312, 0
        %v2572 = vsel %vm373, %v2313, 0
        %v2575 = vsel %vm373, %v2314, 0
        %v2578 = vsel %vm373, %v2315, 0
        %v2581 = vsel %vm373, %v2344, 0
        %v2584 = vsel %vm373, %v2345, 0
        %v2587 = vsel %vm373, %v2346, 0
        %v2590 = vsel %vm373, %v2347, 0
        %v2593 = vsel %vm373, %v2376, 0
        %v2596 = vsel %vm373, %v2377, 0
        %v2599 = vsel %vm373, %v2378, 0
        %v2602 = vsel %vm373, %v2379, 0
        %v2605 = vsel %vm373, %v2408, 0
        %v2608 = vsel %vm373, %v2409, 0
        %v2611 = vsel %vm373, %v2410, 0
        %v2614 = vsel %vm373, %v2411, 0
        %2616 = vmatprep.subr.mxu0 0.0
        %2617 = vmatpush1.msra.mxu0 %v369
        %2618 = vmatprep.subr.mxu0 0.0
        %2619 = vmatpush1.msra.mxu0 %v370
        %2620 = vmatprep.subr.mxu0 0.0
        %2621 = vmatpush1.msra.mxu0 %v371
        %2622 = vmatprep.subr.mxu0 0.0
        %2623 = vmatpush1.msra.mxu0 %v372
        %2624 = vmatprep.subr.mxu0 0.0
        %2625 = vmatpush1.msra.mxu0 0.0
        %2626 = vmatprep.subr.mxu0 0.0
        %2627 = vmatpush1.msra.mxu0 0.0
        %2628 = vmatprep.subr.mxu0 0.0
        %2629 = vmatpush1.msra.mxu0 0.0
        %2630 = vmatprep.subr.mxu0 0.0
        %2631 = vmatpush1.msra.mxu0 0.0
        %2632 = vmatprep.subr.mxu0 0.0
        %2633 = vmatpush1.msra.mxu0 0.0
        %2634 = vmatprep.subr.mxu0 0.0
        %2635 = vmatpush1.msra.mxu0 0.0
        %2636 = vmatprep.subr.mxu0 0.0
        %2637 = vmatpush1.msra.mxu0 0.0
        %2638 = vmatprep.subr.mxu0 0.0
        %2639 = vmatpush1.msra.mxu0 0.0
        %2640 = vmatprep.subr.mxu0 0.0
        %2641 = vmatpush1.msra.mxu0 0.0
        %2642 = vmatprep.subr.mxu0 0.0
        %2643 = vmatpush1.msra.mxu0 0.0
        %2644 = vmatprep.subr.mxu0 0.0
        %2645 = vmatpush1.msra.mxu0 0.0
        %2646 = vmatprep.subr.mxu0 0.0
        %2647 = vmatpush1.msra.mxu0 0.0
        %2648 = vmatprep.subr.mxu0 0.0
        %2649 = vmatpush1.msra.mxu0 0.0
        %2650 = vmatprep.subr.mxu0 0.0
        %2651 = vmatpush1.msra.mxu0 0.0
        %2652 = vmatprep.subr.mxu0 0.0
        %2653 = vmatpush1.msra.mxu0 0.0
        %2654 = vmatprep.subr.mxu0 0.0
        %2655 = vmatpush1.msra.mxu0 0.0
        %2656 = vmatprep.subr.mxu0 0.0
        %2657 = vmatpush1.msra.mxu0 0.0
        %2658 = vmatprep.subr.mxu0 0.0
        %2659 = vmatpush1.msra.mxu0 0.0
        %2660 = vmatprep.subr.mxu0 0.0
        %2661 = vmatpush1.msra.mxu0 0.0
        %2662 = vmatprep.subr.mxu0 0.0
        %2663 = vmatpush1.msra.mxu0 0.0
        %2664 = vmatprep.subr.mxu0 0.0
        %2665 = vmatpush1.msra.mxu0 0.0
        %2666 = vmatprep.subr.mxu0 0.0
        %2667 = vmatpush1.msra.mxu0 0.0
        %2668 = vmatprep.subr.mxu0 0.0
        %2669 = vmatpush1.msra.mxu0 0.0
        %2670 = vmatprep.subr.mxu0 0.0
        %2671 = vmatpush1.msra.mxu0 0.0
        %2672 = vmatprep.subr.mxu0 0.0
        %2673 = vmatpush1.msra.mxu0 0.0
        %2674 = vmatprep.subr.mxu0 0.0
        %2675 = vmatpush1.msra.mxu0 0.0
        %2676 = vmatprep.subr.mxu0 0.0
        %2677 = vmatpush1.msra.mxu0 0.0
        %2678 = vmatprep.subr.mxu0 0.0
        %2679 = vmatpush1.msra.mxu0 0.0
        %2680 = vmatprep.mubr.f32.mxu0 0.0
        %2681 = vmatmul.mubr.f32.gmra.mrb[0].mxu0 %v2425
        %v2682 = vpop.f32.mrb[0].mxu0
        %v2683 = vadd.f32 0.0, %v2682
        %v2684 = vpop.f32.mrb[0].mxu0
        %2685 = vmatprep.mubr.f32.mxu0 0.0
        %2686 = vmatmul.mubr.f32.gmra.mrb[0].mxu0 %v2428
        %v2687 = vpop.f32.mrb[0].mxu0
        %v2688 = vadd.f32 0.0, %v2687
        %v2689 = vpop.f32.mrb[0].mxu0
        %2690 = vmatprep.mubr.f32.mxu0 0.0
        %2691 = vmatmul.mubr.f32.gmra.mrb[0].mxu0 %v2431
        %v2692 = vpop.f32.mrb[0].mxu0
        %v2693 = vadd.f32 0.0, %v2692
        %v2694 = vpop.f32.mrb[0].mxu0
        %2695 = vmatprep.mubr.f32.mxu0 0.0
        %2696 = vmatmul.mubr.f32.gmra.mrb[0].mxu0 %v2434
        %v2697 = vpop.f32.mrb[0].mxu0
        %v2698 = vadd.f32 0.0, %v2697
        %v2699 = vpop.f32.mrb[0].mxu0
        %2700 = vmatprep.mubr.f32.mxu0 0.0
        %2701 = vmatmul.mubr.f32.gmra.mrb[0].mxu0 %v2437
        %v2702 = vpop.f32.mrb[0].mxu0
        %v2703 = vadd.f32 0.0, %v2702
        %v2704 = vpop.f32.mrb[0].mxu0
        %2705 = vmatprep.mubr.f32.mxu0 0.0
        %2706 = vmatmul.mubr.f32.gmra.mrb[0].mxu0 %v2440
        %v2707 = vpop.f32.mrb[0].mxu0
        %v2708 = vadd.f32 0.0, %v2707
        %v2709 = vpop.f32.mrb[0].mxu0
        %2710 = vmatprep.mubr.f32.mxu0 0.0
        %2711 = vmatmul.mubr.f32.gmra.mrb[0].mxu0 %v2443
        %v2712 = vpop.f32.mrb[0].mxu0
        %v2713 = vadd.f32 0.0, %v2712
        %v2714 = vpop.f32.mrb[0].mxu0
        %2715 = vmatprep.mubr.f32.mxu0 0.0
        %2716 = vmatmul.mubr.f32.gmra.mrb[0].mxu0 %v2446
        %v2717 = vpop.f32.mrb[0].mxu0
        %v2718 = vadd.f32 0.0, %v2717
        %v2719 = vpop.f32.mrb[0].mxu0
        %2720 = vmatprep.mubr.f32.mxu0 0.0
        %2721 = vmatmul.mubr.f32.gmra.mrb[0].mxu0 %v2449
        %v2722 = vpop.f32.mrb[0].mxu0
        %v2723 = vadd.f32 0.0, %v2722
        %v2724 = vpop.f32.mrb[0].mxu0
        %2725 = vmatprep.mubr.f32.mxu0 0.0
        %2726 = vmatmul.mubr.f32.gmra.mrb[0].mxu0 %v2452
        %v2727 = vpop.f32.mrb[0].mxu0
        %v2728 = vadd.f32 0.0, %v2727
        %v2729 = vpop.f32.mrb[0].mxu0
        %2730 = vmatprep.mubr.f32.mxu0 0.0
        %2731 = vmatmul.mubr.f32.gmra.mrb[0].mxu0 %v2455
        %v2732 = vpop.f32.mrb[0].mxu0
        %v2733 = vadd.f32 0.0, %v2732
        %v2734 = vpop.f32.mrb[0].mxu0
        %2735 = vmatprep.mubr.f32.mxu0 0.0
        %2736 = vmatmul.mubr.f32.gmra.mrb[0].mxu0 %v2458
        %v2737 = vpop.f32.mrb[0].mxu0
        %v2738 = vadd.f32 0.0, %v2737
        %v2739 = vpop.f32.mrb[0].mxu0
        %2740 = vmatprep.mubr.f32.mxu0 0.0
        %2741 = vmatmul.mubr.f32.gmra.mrb[0].mxu0 %v2461
        %v2742 = vpop.f32.mrb[0].mxu0
        %v2743 = vadd.f32 0.0, %v2742
        %v2744 = vpop.f32.mrb[0].mxu0
        %2745 = vmatprep.mubr.f32.mxu0 0.0
        %2746 = vmatmul.mubr.f32.gmra.mrb[0].mxu0 %v2464
        %v2747 = vpop.f32.mrb[0].mxu0
        %v2748 = vadd.f32 0.0, %v2747
        %v2749 = vpop.f32.mrb[0].mxu0
        %2750 = vmatprep.mubr.f32.mxu0 0.0
        %2751 = vmatmul.mubr.f32.gmra.mrb[0].mxu0 %v2467
        %v2752 = vpop.f32.mrb[0].mxu0
        %v2753 = vadd.f32 0.0, %v2752
        %v2754 = vpop.f32.mrb[0].mxu0
        %2755 = vmatprep.mubr.f32.mxu0 0.0
        %2756 = vmatmul.mubr.f32.gmra.mrb[0].mxu0 %v2470
        %v2757 = vpop.f32.mrb[0].mxu0
        %v2758 = vadd.f32 0.0, %v2757
        %v2759 = vpop.f32.mrb[0].mxu0
        %2760 = vmatprep.mubr.f32.mxu0 0.0
        %2761 = vmatmul.mubr.f32.gmra.mrb[0].mxu0 %v2473
        %v2762 = vpop.f32.mrb[0].mxu0
        %v2763 = vadd.f32 0.0, %v2762
        %v2764 = vpop.f32.mrb[0].mxu0
        %2765 = vmatprep.mubr.f32.mxu0 0.0
        %2766 = vmatmul.mubr.f32.gmra.mrb[0].mxu0 %v2476
        %v2767 = vpop.f32.mrb[0].mxu0
        %v2768 = vadd.f32 0.0, %v2767
        %v2769 = vpop.f32.mrb[0].mxu0
        %2770 = vmatprep.mubr.f32.mxu0 0.0
        %2771 = vmatmul.mubr.f32.gmra.mrb[0].mxu0 %v2479
        %v2772 = vpop.f32.mrb[0].mxu0
        %v2773 = vadd.f32 0.0, %v2772
        %v2774 = vpop.f32.mrb[0].mxu0
        %2775 = vmatprep.mubr.f32.mxu0 0.0
        %2776 = vmatmul.mubr.f32.gmra.mrb[0].mxu0 %v2482
        %v2777 = vpop.f32.mrb[0].mxu0
        %v2778 = vadd.f32 0.0, %v2777
        %v2779 = vpop.f32.mrb[0].mxu0
        %2780 = vmatprep.mubr.f32.mxu0 0.0
        %2781 = vmatmul.mubr.f32.gmra.mrb[0].mxu0 %v2485
        %v2782 = vpop.f32.mrb[0].mxu0
        %v2783 = vadd.f32 0.0, %v2782
        %v2784 = vpop.f32.mrb[0].mxu0
        %2785 = vmatprep.mubr.f32.mxu0 0.0
        %2786 = vmatmul.mubr.f32.gmra.mrb[0].mxu0 %v2488
        %v2787 = vpop.f32.mrb[0].mxu0
        %v2788 = vadd.f32 0.0, %v2787
        %v2789 = vpop.f32.mrb[0].mxu0
        %2790 = vmatprep.mubr.f32.mxu0 0.0
        %2791 = vmatmul.mubr.f32.gmra.mrb[0].mxu0 %v2491
        %v2792 = vpop.f32.mrb[0].mxu0
        %v2793 = vadd.f32 0.0, %v2792
        %v2794 = vpop.f32.mrb[0].mxu0
        %2795 = vmatprep.mubr.f32.mxu0 0.0
        %2796 = vmatmul.mubr.f32.gmra.mrb[0].mxu0 %v2494
        %v2797 = vpop.f32.mrb[0].mxu0
        %v2798 = vadd.f32 0.0, %v2797
        %v2799 = vpop.f32.mrb[0].mxu0
        %2800 = vmatprep.mubr.f32.mxu0 0.0
        %2801 = vmatmul.mubr.f32.gmra.mrb[0].mxu0 %v2497
        %v2802 = vpop.f32.mrb[0].mxu0
        %v2803 = vadd.f32 0.0, %v2802
        %v2804 = vpop.f32.mrb[0].mxu0
        %2805 = vmatprep.mubr.f32.mxu0 0.0
        %2806 = vmatmul.mubr.f32.gmra.mrb[0].mxu0 %v2500
        %v2807 = vpop.f32.mrb[0].mxu0
        %v2808 = vadd.f32 0.0, %v2807
        %v2809 = vpop.f32.mrb[0].mxu0
        %2810 = vmatprep.mubr.f32.mxu0 0.0
        %2811 = vmatmul.mubr.f32.gmra.mrb[0].mxu0 %v2503
        %v2812 = vpop.f32.mrb[0].mxu0
        %v2813 = vadd.f32 0.0, %v2812
        %v2814 = vpop.f32.mrb[0].mxu0
        %2815 = vmatprep.mubr.f32.mxu0 0.0
        %2816 = vmatmul.mubr.f32.gmra.mrb[0].mxu0 %v2506
        %v2817 = vpop.f32.mrb[0].mxu0
        %v2818 = vadd.f32 0.0, %v2817
        %v2819 = vpop.f32.mrb[0].mxu0
        %2820 = vmatprep.mubr.f32.mxu0 0.0
        %2821 = vmatmul.mubr.f32.gmra.mrb[0].mxu0 %v2509
        %v2822 = vpop.f32.mrb[0].mxu0
        %v2823 = vadd.f32 0.0, %v2822
        %v2824 = vpop.f32.mrb[0].mxu0
        %2825 = vmatprep.mubr.f32.mxu0 0.0
        %2826 = vmatmul.mubr.f32.gmra.mrb[0].mxu0 %v2512
        %v2827 = vpop.f32.mrb[0].mxu0
        %v2828 = vadd.f32 0.0, %v2827
        %v2829 = vpop.f32.mrb[0].mxu0
        %2830 = vmatprep.mubr.f32.mxu0 0.0
        %2831 = vmatmul.mubr.f32.gmra.mrb[0].mxu0 %v2515
        %v2832 = vpop.f32.mrb[0].mxu0
        %v2833 = vadd.f32 0.0, %v2832
        %v2834 = vpop.f32.mrb[0].mxu0
        %2835 = vmatprep.mubr.f32.mxu0 0.0
        %2836 = vmatmul.mubr.f32.gmra.mrb[0].mxu0 %v2518
        %v2837 = vpop.f32.mrb[0].mxu0
        %v2838 = vadd.f32 0.0, %v2837
        %v2839 = vpop.f32.mrb[0].mxu0
        %2840 = vmatprep.mubr.f32.mxu0 0.0
        %2841 = vmatmul.mubr.f32.gmra.mrb[0].mxu0 %v2521
        %v2842 = vpop.f32.mrb[0].mxu0
        %v2843 = vadd.f32 0.0, %v2842
        %v2844 = vpop.f32.mrb[0].mxu0
        %2845 = vmatprep.mubr.f32.mxu0 0.0
        %2846 = vmatmul.mubr.f32.gmra.mrb[0].mxu0 %v2524
        %v2847 = vpop.f32.mrb[0].mxu0
        %v2848 = vadd.f32 0.0, %v2847
        %v2849 = vpop.f32.mrb[0].mxu0
        %2850 = vmatprep.mubr.f32.mxu0 0.0
        %2851 = vmatmul.mubr.f32.gmra.mrb[0].mxu0 %v2527
        %v2852 = vpop.f32.mrb[0].mxu0
        %v2853 = vadd.f32 0.0, %v2852
        %v2854 = vpop.f32.mrb[0].mxu0
        %2855 = vmatprep.mubr.f32.mxu0 0.0
        %2856 = vmatmul.mubr.f32.gmra.mrb[0].mxu0 %v2530
        %v2857 = vpop.f32.mrb[0].mxu0
        %v2858 = vadd.f32 0.0, %v2857
        %v2859 = vpop.f32.mrb[0].mxu0
        %2860 = vmatprep.mubr.f32.mxu0 0.0
        %2861 = vmatmul.mubr.f32.gmra.mrb[0].mxu0 %v2533
        %v2862 = vpop.f32.mrb[0].mxu0
        %v2863 = vadd.f32 0.0, %v2862
        %v2864 = vpop.f32.mrb[0].mxu0
        %2865 = vmatprep.mubr.f32.mxu0 0.0
        %2866 = vmatmul.mubr.f32.gmra.mrb[0].mxu0 %v2536
        %v2867 = vpop.f32.mrb[0].mxu0
        %v2868 = vadd.f32 0.0, %v2867
        %v2869 = vpop.f32.mrb[0].mxu0
        %2870 = vmatprep.mubr.f32.mxu0 0.0
        %2871 = vmatmul.mubr.f32.gmra.mrb[0].mxu0 %v2539
        %v2872 = vpop.f32.mrb[0].mxu0
        %v2873 = vadd.f32 0.0, %v2872
        %v2874 = vpop.f32.mrb[0].mxu0
        %2875 = vmatprep.mubr.f32.mxu0 0.0
        %2876 = vmatmul.mubr.f32.gmra.mrb[0].mxu0 %v2542
        %v2877 = vpop.f32.mrb[0].mxu0
        %v2878 = vadd.f32 0.0, %v2877
        %v2879 = vpop.f32.mrb[0].mxu0
        %2880 = vmatprep.mubr.f32.mxu0 0.0
        %2881 = vmatmul.mubr.f32.gmra.mrb[0].mxu0 %v2545
        %v2882 = vpop.f32.mrb[0].mxu0
        %v2883 = vadd.f32 0.0, %v2882
        %v2884 = vpop.f32.mrb[0].mxu0
        %2885 = vmatprep.mubr.f32.mxu0 0.0
        %2886 = vmatmul.mubr.f32.gmra.mrb[0].mxu0 %v2548
        %v2887 = vpop.f32.mrb[0].mxu0
        %v2888 = vadd.f32 0.0, %v2887
        %v2889 = vpop.f32.mrb[0].mxu0
        %2890 = vmatprep.mubr.f32.mxu0 0.0
        %2891 = vmatmul.mubr.f32.gmra.mrb[0].mxu0 %v2551
        %v2892 = vpop.f32.mrb[0].mxu0
        %v2893 = vadd.f32 0.0, %v2892
        %v2894 = vpop.f32.mrb[0].mxu0
        %2895 = vmatprep.mubr.f32.mxu0 0.0
        %2896 = vmatmul.mubr.f32.gmra.mrb[0].mxu0 %v2554
        %v2897 = vpop.f32.mrb[0].mxu0
        %v2898 = vadd.f32 0.0, %v2897
        %v2899 = vpop.f32.mrb[0].mxu0
        %2900 = vmatprep.mubr.f32.mxu0 0.0
        %2901 = vmatmul.mubr.f32.gmra.mrb[0].mxu0 %v2557
        %v2902 = vpop.f32.mrb[0].mxu0
        %v2903 = vadd.f32 0.0, %v2902
        %v2904 = vpop.f32.mrb[0].mxu0
        %2905 = vmatprep.mubr.f32.mxu0 0.0
        %2906 = vmatmul.mubr.f32.gmra.mrb[0].mxu0 %v2560
        %v2907 = vpop.f32.mrb[0].mxu0
        %v2908 = vadd.f32 0.0, %v2907
        %v2909 = vpop.f32.mrb[0].mxu0
        %2910 = vmatprep.mubr.f32.mxu0 0.0
        %2911 = vmatmul.mubr.f32.gmra.mrb[0].mxu0 %v2563
        %v2912 = vpop.f32.mrb[0].mxu0
        %v2913 = vadd.f32 0.0, %v2912
        %v2914 = vpop.f32.mrb[0].mxu0
        %2915 = vmatprep.mubr.f32.mxu0 0.0
        %2916 = vmatmul.mubr.f32.gmra.mrb[0].mxu0 %v2566
        %v2917 = vpop.f32.mrb[0].mxu0
        %v2918 = vadd.f32 0.0, %v2917
        %v2919 = vpop.f32.mrb[0].mxu0
        %2920 = vmatprep.mubr.f32.mxu0 0.0
        %2921 = vmatmul.mubr.f32.gmra.mrb[0].mxu0 %v2569
        %v2922 = vpop.f32.mrb[0].mxu0
        %v2923 = vadd.f32 0.0, %v2922
        %v2924 = vpop.f32.mrb[0].mxu0
        %2925 = vmatprep.mubr.f32.mxu0 0.0
        %2926 = vmatmul.mubr.f32.gmra.mrb[0].mxu0 %v2572
        %v2927 = vpop.f32.mrb[0].mxu0
        %v2928 = vadd.f32 0.0, %v2927
        %v2929 = vpop.f32.mrb[0].mxu0
        %2930 = vmatprep.mubr.f32.mxu0 0.0
        %2931 = vmatmul.mubr.f32.gmra.mrb[0].mxu0 %v2575
        %v2932 = vpop.f32.mrb[0].mxu0
        %v2933 = vadd.f32 0.0, %v2932
        %v2934 = vpop.f32.mrb[0].mxu0
        %2935 = vmatprep.mubr.f32.mxu0 0.0
        %2936 = vmatmul.mubr.f32.gmra.mrb[0].mxu0 %v2578
        %v2937 = vpop.f32.mrb[0].mxu0
        %v2938 = vadd.f32 0.0, %v2937
        %v2939 = vpop.f32.mrb[0].mxu0
        %2940 = vmatprep.mubr.f32.mxu0 0.0
        %2941 = vmatmul.mubr.f32.gmra.mrb[0].mxu0 %v2581
        %v2942 = vpop.f32.mrb[0].mxu0
        %v2943 = vadd.f32 0.0, %v2942
        %v2944 = vpop.f32.mrb[0].mxu0
        %2945 = vmatprep.mubr.f32.mxu0 0.0
        %2946 = vmatmul.mubr.f32.gmra.mrb[0].mxu0 %v2584
        %v2947 = vpop.f32.mrb[0].mxu0
        %v2948 = vadd.f32 0.0, %v2947
        %v2949 = vpop.f32.mrb[0].mxu0
        %2950 = vmatprep.mubr.f32.mxu0 0.0
        %2951 = vmatmul.mubr.f32.gmra.mrb[0].mxu0 %v2587
        %v2952 = vpop.f32.mrb[0].mxu0
        %v2953 = vadd.f32 0.0, %v2952
        %v2954 = vpop.f32.mrb[0].mxu0
        %2955 = vmatprep.mubr.f32.mxu0 0.0
        %2956 = vmatmul.mubr.f32.gmra.mrb[0].mxu0 %v2590
        %v2957 = vpop.f32.mrb[0].mxu0
        %v2958 = vadd.f32 0.0, %v2957
        %v2959 = vpop.f32.mrb[0].mxu0
        %2960 = vmatprep.mubr.f32.mxu0 0.0
        %2961 = vmatmul.mubr.f32.gmra.mrb[0].mxu0 %v2593
        %v2962 = vpop.f32.mrb[0].mxu0
        %v2963 = vadd.f32 0.0, %v2962
        %v2964 = vpop.f32.mrb[0].mxu0
        %2965 = vmatprep.mubr.f32.mxu0 0.0
        %2966 = vmatmul.mubr.f32.gmra.mrb[0].mxu0 %v2596
        %v2967 = vpop.f32.mrb[0].mxu0
        %v2968 = vadd.f32 0.0, %v2967
        %v2969 = vpop.f32.mrb[0].mxu0
        %2970 = vmatprep.mubr.f32.mxu0 0.0
        %2971 = vmatmul.mubr.f32.gmra.mrb[0].mxu0 %v2599
        %v2972 = vpop.f32.mrb[0].mxu0
        %v2973 = vadd.f32 0.0, %v2972
        %v2974 = vpop.f32.mrb[0].mxu0
        %2975 = vmatprep.mubr.f32.mxu0 0.0
        %2976 = vmatmul.mubr.f32.gmra.mrb[0].mxu0 %v2602
        %v2977 = vpop.f32.mrb[0].mxu0
        %v2978 = vadd.f32 0.0, %v2977
        %v2979 = vpop.f32.mrb[0].mxu0
        %2980 = vmatprep.mubr.f32.mxu0 0.0
        %2981 = vmatmul.mubr.f32.gmra.mrb[0].mxu0 %v2605
        %v2982 = vpop.f32.mrb[0].mxu0
        %v2983 = vadd.f32 0.0, %v2982
        %v2984 = vpop.f32.mrb[0].mxu0
        %2985 = vmatprep.mubr.f32.mxu0 0.0
        %2986 = vmatmul.mubr.f32.gmra.mrb[0].mxu0 %v2608
        %v2987 = vpop.f32.mrb[0].mxu0
        %v2988 = vadd.f32 0.0, %v2987
        %v2989 = vpop.f32.mrb[0].mxu0
        %2990 = vmatprep.mubr.f32.mxu0 0.0
        %2991 = vmatmul.mubr.f32.gmra.mrb[0].mxu0 %v2611
        %v2992 = vpop.f32.mrb[0].mxu0
        %v2993 = vadd.f32 0.0, %v2992
        %v2994 = vpop.f32.mrb[0].mxu0
        %2995 = vmatprep.mubr.f32.mxu0 0.0
        %2996 = vmatmul.mubr.f32.gmra.mrb[0].mxu0 %v2614
        %v2997 = vpop.f32.mrb[0].mxu0
        %v2998 = vadd.f32 0.0, %v2997
        %v2999 = vpop.f32.mrb[0].mxu0
        %3000 = vdwg.mxu0
        %v3002 = vsel %vm373, %v1416, 0
        %v3005 = vsel %vm373, %v1417, 0
        %v3008 = vsel %vm373, %v1418, 0
        %v3011 = vsel %vm373, %v1419, 0
        %v3014 = vsel %vm373, %v1448, 0
        %v3017 = vsel %vm373, %v1449, 0
        %v3020 = vsel %vm373, %v1450, 0
        %v3023 = vsel %vm373, %v1451, 0
        %v3026 = vsel %vm373, %v1480, 0
        %v3029 = vsel %vm373, %v1481, 0
        %v3032 = vsel %vm373, %v1482, 0
        %v3035 = vsel %vm373, %v1483, 0
        %v3038 = vsel %vm373, %v1512, 0
        %v3041 = vsel %vm373, %v1513, 0
        %v3044 = vsel %vm373, %v1514, 0
        %v3047 = vsel %vm373, %v1515, 0
        %v3050 = vsel %vm373, %v1544, 0
        %v3053 = vsel %vm373, %v1545, 0
        %v3056 = vsel %vm373, %v1546, 0
        %v3059 = vsel %vm373, %v1547, 0
        %v3062 = vsel %vm373, %v1576, 0
        %v3065 = vsel %vm373, %v1577, 0
        %v3068 = vsel %vm373, %v1578, 0
        %v3071 = vsel %vm373, %v1579, 0
        %v3074 = vsel %vm373, %v1608, 0
        %v3077 = vsel %vm373, %v1609, 0
        %v3080 = vsel %vm373, %v1610, 0
        %v3083 = vsel %vm373, %v1611, 0
        %v3086 = vsel %vm373, %v1640, 0
        %v3089 = vsel %vm373, %v1641, 0
        %v3092 = vsel %vm373, %v1642, 0
        %v3095 = vsel %vm373, %v1643, 0
        %v3098 = vsel %vm373, %v1672, 0
        %v3101 = vsel %vm373, %v1673, 0
        %v3104 = vsel %vm373, %v1674, 0
        %v3107 = vsel %vm373, %v1675, 0
        %v3110 = vsel %vm373, %v1704, 0
        %v3113 = vsel %vm373, %v1705, 0
        %v3116 = vsel %vm373, %v1706, 0
        %v3119 = vsel %vm373, %v1707, 0
        %v3122 = vsel %vm373, %v1736, 0
        %v3125 = vsel %vm373, %v1737, 0
        %v3128 = vsel %vm373, %v1738, 0
        %v3131 = vsel %vm373, %v1739, 0
        %v3134 = vsel %vm373, %v1768, 0
        %v3137 = vsel %vm373, %v1769, 0
        %v3140 = vsel %vm373, %v1770, 0
        %v3143 = vsel %vm373, %v1771, 0
        %v3146 = vsel %vm373, %v1800, 0
        %v3149 = vsel %vm373, %v1801, 0
        %v3152 = vsel %vm373, %v1802, 0
        %v3155 = vsel %vm373, %v1803, 0
        %v3158 = vsel %vm373, %v1832, 0
        %v3161 = vsel %vm373, %v1833, 0
        %v3164 = vsel %vm373, %v1834, 0
        %v3167 = vsel %vm373, %v1835, 0
        %v3170 = vsel %vm373, %v1864, 0
        %v3173 = vsel %vm373, %v1865, 0
        %v3176 = vsel %vm373, %v1866, 0
        %v3179 = vsel %vm373, %v1867, 0
        %v3182 = vsel %vm373, %v1896, 0
        %v3185 = vsel %vm373, %v1897, 0
        %v3188 = vsel %vm373, %v1898, 0
        %v3191 = vsel %vm373, %v1899, 0
        %3193 = vmatprep.subr.mxu0 0.0
        %3194 = vmatpush1.msra.mxu0 %v365
        %3195 = vmatprep.subr.mxu0 0.0
        %3196 = vmatpush1.msra.mxu0 %v366
        %3197 = vmatprep.subr.mxu0 0.0
        %3198 = vmatpush1.msra.mxu0 %v367
        %3199 = vmatprep.subr.mxu0 0.0
        %3200 = vmatpush1.msra.mxu0 %v368
        %3201 = vmatprep.subr.mxu0 0.0
        %3202 = vmatpush1.msra.mxu0 0.0
        %3203 = vmatprep.subr.mxu0 0.0
        %3204 = vmatpush1.msra.mxu0 0.0
        %3205 = vmatprep.subr.mxu0 0.0
        %3206 = vmatpush1.msra.mxu0 0.0
        %3207 = vmatprep.subr.mxu0 0.0
        %3208 = vmatpush1.msra.mxu0 0.0
        %3209 = vmatprep.subr.mxu0 0.0
        %3210 = vmatpush1.msra.mxu0 0.0
        %3211 = vmatprep.subr.mxu0 0.0
        %3212 = vmatpush1.msra.mxu0 0.0
        %3213 = vmatprep.subr.mxu0 0.0
        %3214 = vmatpush1.msra.mxu0 0.0
        %3215 = vmatprep.subr.mxu0 0.0
        %3216 = vmatpush1.msra.mxu0 0.0
        %3217 = vmatprep.subr.mxu0 0.0
        %3218 = vmatpush1.msra.mxu0 0.0
        %3219 = vmatprep.subr.mxu0 0.0
        %3220 = vmatpush1.msra.mxu0 0.0
        %3221 = vmatprep.subr.mxu0 0.0
        %3222 = vmatpush1.msra.mxu0 0.0
        %3223 = vmatprep.subr.mxu0 0.0
        %3224 = vmatpush1.msra.mxu0 0.0
        %3225 = vmatprep.subr.mxu0 0.0
        %3226 = vmatpush1.msra.mxu0 0.0
        %3227 = vmatprep.subr.mxu0 0.0
        %3228 = vmatpush1.msra.mxu0 0.0
        %3229 = vmatprep.subr.mxu0 0.0
        %3230 = vmatpush1.msra.mxu0 0.0
        %3231 = vmatprep.subr.mxu0 0.0
        %3232 = vmatpush1.msra.mxu0 0.0
        %3233 = vmatprep.subr.mxu0 0.0
        %3234 = vmatpush1.msra.mxu0 0.0
        %3235 = vmatprep.subr.mxu0 0.0
        %3236 = vmatpush1.msra.mxu0 0.0
        %3237 = vmatprep.subr.mxu0 0.0
        %3238 = vmatpush1.msra.mxu0 0.0
        %3239 = vmatprep.subr.mxu0 0.0
        %3240 = vmatpush1.msra.mxu0 0.0
        %3241 = vmatprep.subr.mxu0 0.0
        %3242 = vmatpush1.msra.mxu0 0.0
        %3243 = vmatprep.subr.mxu0 0.0
        %3244 = vmatpush1.msra.mxu0 0.0
        %3245 = vmatprep.subr.mxu0 0.0
        %3246 = vmatpush1.msra.mxu0 0.0
        %3247 = vmatprep.subr.mxu0 0.0
        %3248 = vmatpush1.msra.mxu0 0.0
        %3249 = vmatprep.subr.mxu0 0.0
        %3250 = vmatpush1.msra.mxu0 0.0
        %3251 = vmatprep.subr.mxu0 0.0
        %3252 = vmatpush1.msra.mxu0 0.0
        %3253 = vmatprep.subr.mxu0 0.0
        %3254 = vmatpush1.msra.mxu0 0.0
        %3255 = vmatprep.subr.mxu0 0.0
        %3256 = vmatpush1.msra.mxu0 0.0
        %3257 = vmatprep.mubr.f32.mxu0 0.0
        %3258 = vmatmul.mubr.f32.gmra.mrb[0].mxu0 %v3002
        %v3259 = vpop.f32.mrb[0].mxu0
        %v3260 = vadd.f32 %v2683, %v3259
        %v3261 = vpop.f32.mrb[0].mxu0
        %3262 = vmatprep.mubr.f32.mxu0 0.0
        %3263 = vmatmul.mubr.f32.gmra.mrb[0].mxu0 %v3005
        %v3264 = vpop.f32.mrb[0].mxu0
        %v3265 = vadd.f32 %v2688, %v3264
        %v3266 = vpop.f32.mrb[0].mxu0
        %3267 = vmatprep.mubr.f32.mxu0 0.0
        %3268 = vmatmul.mubr.f32.gmra.mrb[0].mxu0 %v3008
        %v3269 = vpop.f32.mrb[0].mxu0
        %v3270 = vadd.f32 %v2693, %v3269
        %v3271 = vpop.f32.mrb[0].mxu0
        %3272 = vmatprep.mubr.f32.mxu0 0.0
        %3273 = vmatmul.mubr.f32.gmra.mrb[0].mxu0 %v3011
        %v3274 = vpop.f32.mrb[0].mxu0
        %v3275 = vadd.f32 %v2698, %v3274
        %v3276 = vpop.f32.mrb[0].mxu0
        %3277 = vmatprep.mubr.f32.mxu0 0.0
        %3278 = vmatmul.mubr.f32.gmra.mrb[0].mxu0 %v3014
        %v3279 = vpop.f32.mrb[0].mxu0
        %v3280 = vadd.f32 %v2703, %v3279
        %v3281 = vpop.f32.mrb[0].mxu0
        %3282 = vmatprep.mubr.f32.mxu0 0.0
        %3283 = vmatmul.mubr.f32.gmra.mrb[0].mxu0 %v3017
        %v3284 = vpop.f32.mrb[0].mxu0
        %v3285 = vadd.f32 %v2708, %v3284
        %v3286 = vpop.f32.mrb[0].mxu0
        %3287 = vmatprep.mubr.f32.mxu0 0.0
        %3288 = vmatmul.mubr.f32.gmra.mrb[0].mxu0 %v3020
        %v3289 = vpop.f32.mrb[0].mxu0
        %v3290 = vadd.f32 %v2713, %v3289
        %v3291 = vpop.f32.mrb[0].mxu0
        %3292 = vmatprep.mubr.f32.mxu0 0.0
        %3293 = vmatmul.mubr.f32.gmra.mrb[0].mxu0 %v3023
        %v3294 = vpop.f32.mrb[0].mxu0
        %v3295 = vadd.f32 %v2718, %v3294
        %v3296 = vpop.f32.mrb[0].mxu0
        %3297 = vmatprep.mubr.f32.mxu0 0.0
        %3298 = vmatmul.mubr.f32.gmra.mrb[0].mxu0 %v3026
        %v3299 = vpop.f32.mrb[0].mxu0
        %v3300 = vadd.f32 %v2723, %v3299
        %v3301 = vpop.f32.mrb[0].mxu0
        %3302 = vmatprep.mubr.f32.mxu0 0.0
        %3303 = vmatmul.mubr.f32.gmra.mrb[0].mxu0 %v3029
        %v3304 = vpop.f32.mrb[0].mxu0
        %v3305 = vadd.f32 %v2728, %v3304
        %v3306 = vpop.f32.mrb[0].mxu0
        %3307 = vmatprep.mubr.f32.mxu0 0.0
        %3308 = vmatmul.mubr.f32.gmra.mrb[0].mxu0 %v3032
        %v3309 = vpop.f32.mrb[0].mxu0
        %v3310 = vadd.f32 %v2733, %v3309
        %v3311 = vpop.f32.mrb[0].mxu0
        %3312 = vmatprep.mubr.f32.mxu0 0.0
        %3313 = vmatmul.mubr.f32.gmra.mrb[0].mxu0 %v3035
        %v3314 = vpop.f32.mrb[0].mxu0
        %v3315 = vadd.f32 %v2738, %v3314
        %v3316 = vpop.f32.mrb[0].mxu0
        %3317 = vmatprep.mubr.f32.mxu0 0.0
        %3318 = vmatmul.mubr.f32.gmra.mrb[0].mxu0 %v3038
        %v3319 = vpop.f32.mrb[0].mxu0
        %v3320 = vadd.f32 %v2743, %v3319
        %v3321 = vpop.f32.mrb[0].mxu0
        %3322 = vmatprep.mubr.f32.mxu0 0.0
        %3323 = vmatmul.mubr.f32.gmra.mrb[0].mxu0 %v3041
        %v3324 = vpop.f32.mrb[0].mxu0
        %v3325 = vadd.f32 %v2748, %v3324
        %v3326 = vpop.f32.mrb[0].mxu0
        %3327 = vmatprep.mubr.f32.mxu0 0.0
        %3328 = vmatmul.mubr.f32.gmra.mrb[0].mxu0 %v3044
        %v3329 = vpop.f32.mrb[0].mxu0
        %v3330 = vadd.f32 %v2753, %v3329
        %v3331 = vpop.f32.mrb[0].mxu0
        %3332 = vmatprep.mubr.f32.mxu0 0.0
        %3333 = vmatmul.mubr.f32.gmra.mrb[0].mxu0 %v3047
        %v3334 = vpop.f32.mrb[0].mxu0
        %v3335 = vadd.f32 %v2758, %v3334
        %v3336 = vpop.f32.mrb[0].mxu0
        %3337 = vmatprep.mubr.f32.mxu0 0.0
        %3338 = vmatmul.mubr.f32.gmra.mrb[0].mxu0 %v3050
        %v3339 = vpop.f32.mrb[0].mxu0
        %v3340 = vadd.f32 %v2763, %v3339
        %v3341 = vpop.f32.mrb[0].mxu0
        %3342 = vmatprep.mubr.f32.mxu0 0.0
        %3343 = vmatmul.mubr.f32.gmra.mrb[0].mxu0 %v3053
        %v3344 = vpop.f32.mrb[0].mxu0
        %v3345 = vadd.f32 %v2768, %v3344
        %v3346 = vpop.f32.mrb[0].mxu0
        %3347 = vmatprep.mubr.f32.mxu0 0.0
        %3348 = vmatmul.mubr.f32.gmra.mrb[0].mxu0 %v3056
        %v3349 = vpop.f32.mrb[0].mxu0
        %v3350 = vadd.f32 %v2773, %v3349
        %v3351 = vpop.f32.mrb[0].mxu0
        %3352 = vmatprep.mubr.f32.mxu0 0.0
        %3353 = vmatmul.mubr.f32.gmra.mrb[0].mxu0 %v3059
        %v3354 = vpop.f32.mrb[0].mxu0
        %v3355 = vadd.f32 %v2778, %v3354
        %v3356 = vpop.f32.mrb[0].mxu0
        %3357 = vmatprep.mubr.f32.mxu0 0.0
        %3358 = vmatmul.mubr.f32.gmra.mrb[0].mxu0 %v3062
        %v3359 = vpop.f32.mrb[0].mxu0
        %v3360 = vadd.f32 %v2783, %v3359
        %v3361 = vpop.f32.mrb[0].mxu0
        %3362 = vmatprep.mubr.f32.mxu0 0.0
        %3363 = vmatmul.mubr.f32.gmra.mrb[0].mxu0 %v3065
        %v3364 = vpop.f32.mrb[0].mxu0
        %v3365 = vadd.f32 %v2788, %v3364
        %v3366 = vpop.f32.mrb[0].mxu0
        %3367 = vmatprep.mubr.f32.mxu0 0.0
        %3368 = vmatmul.mubr.f32.gmra.mrb[0].mxu0 %v3068
        %v3369 = vpop.f32.mrb[0].mxu0
        %v3370 = vadd.f32 %v2793, %v3369
        %v3371 = vpop.f32.mrb[0].mxu0
        %3372 = vmatprep.mubr.f32.mxu0 0.0
        %3373 = vmatmul.mubr.f32.gmra.mrb[0].mxu0 %v3071
        %v3374 = vpop.f32.mrb[0].mxu0
        %v3375 = vadd.f32 %v2798, %v3374
        %v3376 = vpop.f32.mrb[0].mxu0
        %3377 = vmatprep.mubr.f32.mxu0 0.0
        %3378 = vmatmul.mubr.f32.gmra.mrb[0].mxu0 %v3074
        %v3379 = vpop.f32.mrb[0].mxu0
        %v3380 = vadd.f32 %v2803, %v3379
        %v3381 = vpop.f32.mrb[0].mxu0
        %3382 = vmatprep.mubr.f32.mxu0 0.0
        %3383 = vmatmul.mubr.f32.gmra.mrb[0].mxu0 %v3077
        %v3384 = vpop.f32.mrb[0].mxu0
        %v3385 = vadd.f32 %v2808, %v3384
        %v3386 = vpop.f32.mrb[0].mxu0
        %3387 = vmatprep.mubr.f32.mxu0 0.0
        %3388 = vmatmul.mubr.f32.gmra.mrb[0].mxu0 %v3080
        %v3389 = vpop.f32.mrb[0].mxu0
        %v3390 = vadd.f32 %v2813, %v3389
        %v3391 = vpop.f32.mrb[0].mxu0
        %3392 = vmatprep.mubr.f32.mxu0 0.0
        %3393 = vmatmul.mubr.f32.gmra.mrb[0].mxu0 %v3083
        %v3394 = vpop.f32.mrb[0].mxu0
        %v3395 = vadd.f32 %v2818, %v3394
        %v3396 = vpop.f32.mrb[0].mxu0
        %3397 = vmatprep.mubr.f32.mxu0 0.0
        %3398 = vmatmul.mubr.f32.gmra.mrb[0].mxu0 %v3086
        %v3399 = vpop.f32.mrb[0].mxu0
        %v3400 = vadd.f32 %v2823, %v3399
        %v3401 = vpop.f32.mrb[0].mxu0
        %3402 = vmatprep.mubr.f32.mxu0 0.0
        %3403 = vmatmul.mubr.f32.gmra.mrb[0].mxu0 %v3089
        %v3404 = vpop.f32.mrb[0].mxu0
        %v3405 = vadd.f32 %v2828, %v3404
        %v3406 = vpop.f32.mrb[0].mxu0
        %3407 = vmatprep.mubr.f32.mxu0 0.0
        %3408 = vmatmul.mubr.f32.gmra.mrb[0].mxu0 %v3092
        %v3409 = vpop.f32.mrb[0].mxu0
        %v3410 = vadd.f32 %v2833, %v3409
        %v3411 = vpop.f32.mrb[0].mxu0
        %3412 = vmatprep.mubr.f32.mxu0 0.0
        %3413 = vmatmul.mubr.f32.gmra.mrb[0].mxu0 %v3095
        %v3414 = vpop.f32.mrb[0].mxu0
        %v3415 = vadd.f32 %v2838, %v3414
        %v3416 = vpop.f32.mrb[0].mxu0
        %3417 = vmatprep.mubr.f32.mxu0 0.0
        %3418 = vmatmul.mubr.f32.gmra.mrb[0].mxu0 %v3098
        %v3419 = vpop.f32.mrb[0].mxu0
        %v3420 = vadd.f32 %v2843, %v3419
        %v3421 = vpop.f32.mrb[0].mxu0
        %3422 = vmatprep.mubr.f32.mxu0 0.0
        %3423 = vmatmul.mubr.f32.gmra.mrb[0].mxu0 %v3101
        %v3424 = vpop.f32.mrb[0].mxu0
        %v3425 = vadd.f32 %v2848, %v3424
        %v3426 = vpop.f32.mrb[0].mxu0
        %3427 = vmatprep.mubr.f32.mxu0 0.0
        %3428 = vmatmul.mubr.f32.gmra.mrb[0].mxu0 %v3104
        %v3429 = vpop.f32.mrb[0].mxu0
        %v3430 = vadd.f32 %v2853, %v3429
        %v3431 = vpop.f32.mrb[0].mxu0
        %3432 = vmatprep.mubr.f32.mxu0 0.0
        %3433 = vmatmul.mubr.f32.gmra.mrb[0].mxu0 %v3107
        %v3434 = vpop.f32.mrb[0].mxu0
        %v3435 = vadd.f32 %v2858, %v3434
        %v3436 = vpop.f32.mrb[0].mxu0
        %3437 = vmatprep.mubr.f32.mxu0 0.0
        %3438 = vmatmul.mubr.f32.gmra.mrb[0].mxu0 %v3110
        %v3439 = vpop.f32.mrb[0].mxu0
        %v3440 = vadd.f32 %v2863, %v3439
        %v3441 = vpop.f32.mrb[0].mxu0
        %3442 = vmatprep.mubr.f32.mxu0 0.0
        %3443 = vmatmul.mubr.f32.gmra.mrb[0].mxu0 %v3113
        %v3444 = vpop.f32.mrb[0].mxu0
        %v3445 = vadd.f32 %v2868, %v3444
        %v3446 = vpop.f32.mrb[0].mxu0
        %3447 = vmatprep.mubr.f32.mxu0 0.0
        %3448 = vmatmul.mubr.f32.gmra.mrb[0].mxu0 %v3116
        %v3449 = vpop.f32.mrb[0].mxu0
        %v3450 = vadd.f32 %v2873, %v3449
        %v3451 = vpop.f32.mrb[0].mxu0
        %3452 = vmatprep.mubr.f32.mxu0 0.0
        %3453 = vmatmul.mubr.f32.gmra.mrb[0].mxu0 %v3119
        %v3454 = vpop.f32.mrb[0].mxu0
        %v3455 = vadd.f32 %v2878, %v3454
        %v3456 = vpop.f32.mrb[0].mxu0
        %3457 = vmatprep.mubr.f32.mxu0 0.0
        %3458 = vmatmul.mubr.f32.gmra.mrb[0].mxu0 %v3122
        %v3459 = vpop.f32.mrb[0].mxu0
        %v3460 = vadd.f32 %v2883, %v3459
        %v3461 = vpop.f32.mrb[0].mxu0
        %3462 = vmatprep.mubr.f32.mxu0 0.0
        %3463 = vmatmul.mubr.f32.gmra.mrb[0].mxu0 %v3125
        %v3464 = vpop.f32.mrb[0].mxu0
        %v3465 = vadd.f32 %v2888, %v3464
        %v3466 = vpop.f32.mrb[0].mxu0
        %3467 = vmatprep.mubr.f32.mxu0 0.0
        %3468 = vmatmul.mubr.f32.gmra.mrb[0].mxu0 %v3128
        %v3469 = vpop.f32.mrb[0].mxu0
        %v3470 = vadd.f32 %v2893, %v3469
        %v3471 = vpop.f32.mrb[0].mxu0
        %3472 = vmatprep.mubr.f32.mxu0 0.0
        %3473 = vmatmul.mubr.f32.gmra.mrb[0].mxu0 %v3131
        %v3474 = vpop.f32.mrb[0].mxu0
        %v3475 = vadd.f32 %v2898, %v3474
        %v3476 = vpop.f32.mrb[0].mxu0
        %3477 = vmatprep.mubr.f32.mxu0 0.0
        %3478 = vmatmul.mubr.f32.gmra.mrb[0].mxu0 %v3134
        %v3479 = vpop.f32.mrb[0].mxu0
        %v3480 = vadd.f32 %v2903, %v3479
        %v3481 = vpop.f32.mrb[0].mxu0
        %3482 = vmatprep.mubr.f32.mxu0 0.0
        %3483 = vmatmul.mubr.f32.gmra.mrb[0].mxu0 %v3137
        %v3484 = vpop.f32.mrb[0].mxu0
        %v3485 = vadd.f32 %v2908, %v3484
        %v3486 = vpop.f32.mrb[0].mxu0
        %3487 = vmatprep.mubr.f32.mxu0 0.0
        %3488 = vmatmul.mubr.f32.gmra.mrb[0].mxu0 %v3140
        %v3489 = vpop.f32.mrb[0].mxu0
        %v3490 = vadd.f32 %v2913, %v3489
        %v3491 = vpop.f32.mrb[0].mxu0
        %3492 = vmatprep.mubr.f32.mxu0 0.0
        %3493 = vmatmul.mubr.f32.gmra.mrb[0].mxu0 %v3143
        %v3494 = vpop.f32.mrb[0].mxu0
        %v3495 = vadd.f32 %v2918, %v3494
        %v3496 = vpop.f32.mrb[0].mxu0
        %3497 = vmatprep.mubr.f32.mxu0 0.0
        %3498 = vmatmul.mubr.f32.gmra.mrb[0].mxu0 %v3146
        %v3499 = vpop.f32.mrb[0].mxu0
        %v3500 = vadd.f32 %v2923, %v3499
        %v3501 = vpop.f32.mrb[0].mxu0
        %3502 = vmatprep.mubr.f32.mxu0 0.0
        %3503 = vmatmul.mubr.f32.gmra.mrb[0].mxu0 %v3149
        %v3504 = vpop.f32.mrb[0].mxu0
        %v3505 = vadd.f32 %v2928, %v3504
        %v3506 = vpop.f32.mrb[0].mxu0
        %3507 = vmatprep.mubr.f32.mxu0 0.0
        %3508 = vmatmul.mubr.f32.gmra.mrb[0].mxu0 %v3152
        %v3509 = vpop.f32.mrb[0].mxu0
        %v3510 = vadd.f32 %v2933, %v3509
        %v3511 = vpop.f32.mrb[0].mxu0
        %3512 = vmatprep.mubr.f32.mxu0 0.0
        %3513 = vmatmul.mubr.f32.gmra.mrb[0].mxu0 %v3155
        %v3514 = vpop.f32.mrb[0].mxu0
        %v3515 = vadd.f32 %v2938, %v3514
        %v3516 = vpop.f32.mrb[0].mxu0
        %3517 = vmatprep.mubr.f32.mxu0 0.0
        %3518 = vmatmul.mubr.f32.gmra.mrb[0].mxu0 %v3158
        %v3519 = vpop.f32.mrb[0].mxu0
        %v3520 = vadd.f32 %v2943, %v3519
        %v3521 = vpop.f32.mrb[0].mxu0
        %3522 = vmatprep.mubr.f32.mxu0 0.0
        %3523 = vmatmul.mubr.f32.gmra.mrb[0].mxu0 %v3161
        %v3524 = vpop.f32.mrb[0].mxu0
        %v3525 = vadd.f32 %v2948, %v3524
        %v3526 = vpop.f32.mrb[0].mxu0
        %3527 = vmatprep.mubr.f32.mxu0 0.0
        %3528 = vmatmul.mubr.f32.gmra.mrb[0].mxu0 %v3164
        %v3529 = vpop.f32.mrb[0].mxu0
        %v3530 = vadd.f32 %v2953, %v3529
        %v3531 = vpop.f32.mrb[0].mxu0
        %3532 = vmatprep.mubr.f32.mxu0 0.0
        %3533 = vmatmul.mubr.f32.gmra.mrb[0].mxu0 %v3167
        %v3534 = vpop.f32.mrb[0].mxu0
        %v3535 = vadd.f32 %v2958, %v3534
        %v3536 = vpop.f32.mrb[0].mxu0
        %3537 = vmatprep.mubr.f32.mxu0 0.0
        %3538 = vmatmul.mubr.f32.gmra.mrb[0].mxu0 %v3170
        %v3539 = vpop.f32.mrb[0].mxu0
        %v3540 = vadd.f32 %v2963, %v3539
        %v3541 = vpop.f32.mrb[0].mxu0
        %3542 = vmatprep.mubr.f32.mxu0 0.0
        %3543 = vmatmul.mubr.f32.gmra.mrb[0].mxu0 %v3173
        %v3544 = vpop.f32.mrb[0].mxu0
        %v3545 = vadd.f32 %v2968, %v3544
        %v3546 = vpop.f32.mrb[0].mxu0
        %3547 = vmatprep.mubr.f32.mxu0 0.0
        %3548 = vmatmul.mubr.f32.gmra.mrb[0].mxu0 %v3176
        %v3549 = vpop.f32.mrb[0].mxu0
        %v3550 = vadd.f32 %v2973, %v3549
        %v3551 = vpop.f32.mrb[0].mxu0
        %3552 = vmatprep.mubr.f32.mxu0 0.0
        %3553 = vmatmul.mubr.f32.gmra.mrb[0].mxu0 %v3179
        %v3554 = vpop.f32.mrb[0].mxu0
        %v3555 = vadd.f32 %v2978, %v3554
        %v3556 = vpop.f32.mrb[0].mxu0
        %3557 = vmatprep.mubr.f32.mxu0 0.0
        %3558 = vmatmul.mubr.f32.gmra.mrb[0].mxu0 %v3182
        %v3559 = vpop.f32.mrb[0].mxu0
        %v3560 = vadd.f32 %v2983, %v3559
        %v3561 = vpop.f32.mrb[0].mxu0
        %3562 = vmatprep.mubr.f32.mxu0 0.0
        %3563 = vmatmul.mubr.f32.gmra.mrb[0].mxu0 %v3185
        %v3564 = vpop.f32.mrb[0].mxu0
        %v3565 = vadd.f32 %v2988, %v3564
        %v3566 = vpop.f32.mrb[0].mxu0
        %3567 = vmatprep.mubr.f32.mxu0 0.0
        %3568 = vmatmul.mubr.f32.gmra.mrb[0].mxu0 %v3188
        %v3569 = vpop.f32.mrb[0].mxu0
        %v3570 = vadd.f32 %v2993, %v3569
        %v3571 = vpop.f32.mrb[0].mxu0
        %3572 = vmatprep.mubr.f32.mxu0 0.0
        %3573 = vmatmul.mubr.f32.gmra.mrb[0].mxu0 %v3191
        %v3574 = vpop.f32.mrb[0].mxu0
        %v3575 = vadd.f32 %v2998, %v3574
        %v3576 = vpop.f32.mrb[0].mxu0
        %3577 = vdwg.mxu0
        %3578 = vmatprep.subr.mxu0 0.0
        %3579 = vmatpush1.msra.mxu0 %v365
        %3580 = vmatprep.subr.mxu0 0.0
        %3581 = vmatpush1.msra.mxu0 %v366
        %3582 = vmatprep.subr.mxu0 0.0
        %3583 = vmatpush1.msra.mxu0 %v367
        %3584 = vmatprep.subr.mxu0 0.0
        %3585 = vmatpush1.msra.mxu0 %v368
        %3586 = vmatprep.subr.mxu0 0.0
        %3587 = vmatpush1.msra.mxu0 0.0
        %3588 = vmatprep.subr.mxu0 0.0
        %3589 = vmatpush1.msra.mxu0 0.0
        %3590 = vmatprep.subr.mxu0 0.0
        %3591 = vmatpush1.msra.mxu0 0.0
        %3592 = vmatprep.subr.mxu0 0.0
        %3593 = vmatpush1.msra.mxu0 0.0
        %3594 = vmatprep.subr.mxu0 0.0
        %3595 = vmatpush1.msra.mxu0 0.0
        %3596 = vmatprep.subr.mxu0 0.0
        %3597 = vmatpush1.msra.mxu0 0.0
        %3598 = vmatprep.subr.mxu0 0.0
        %3599 = vmatpush1.msra.mxu0 0.0
        %3600 = vmatprep.subr.mxu0 0.0
        %3601 = vmatpush1.msra.mxu0 0.0
        %3602 = vmatprep.subr.mxu0 0.0
        %3603 = vmatpush1.msra.mxu0 0.0
        %3604 = vmatprep.subr.mxu0 0.0
        %3605 = vmatpush1.msra.mxu0 0.0
        %3606 = vmatprep.subr.mxu0 0.0
        %3607 = vmatpush1.msra.mxu0 0.0
        %3608 = vmatprep.subr.mxu0 0.0
        %3609 = vmatpush1.msra.mxu0 0.0
        %3610 = vmatprep.subr.mxu0 0.0
        %3611 = vmatpush1.msra.mxu0 0.0
        %3612 = vmatprep.subr.mxu0 0.0
        %3613 = vmatpush1.msra.mxu0 0.0
        %3614 = vmatprep.subr.mxu0 0.0
        %3615 = vmatpush1.msra.mxu0 0.0
        %3616 = vmatprep.subr.mxu0 0.0
        %3617 = vmatpush1.msra.mxu0 0.0
        %3618 = vmatprep.subr.mxu0 0.0
        %3619 = vmatpush1.msra.mxu0 0.0
        %3620 = vmatprep.subr.mxu0 0.0
        %3621 = vmatpush1.msra.mxu0 0.0
        %3622 = vmatprep.subr.mxu0 0.0
        %3623 = vmatpush1.msra.mxu0 0.0
        %3624 = vmatprep.subr.mxu0 0.0
        %3625 = vmatpush1.msra.mxu0 0.0
        %3626 = vmatprep.subr.mxu0 0.0
        %3627 = vmatpush1.msra.mxu0 0.0
        %3628 = vmatprep.subr.mxu0 0.0
        %3629 = vmatpush1.msra.mxu0 0.0
        %3630 = vmatprep.subr.mxu0 0.0
        %3631 = vmatpush1.msra.mxu0 0.0
        %3632 = vmatprep.subr.mxu0 0.0
        %3633 = vmatpush1.msra.mxu0 0.0
        %3634 = vmatprep.subr.mxu0 0.0
        %3635 = vmatpush1.msra.mxu0 0.0
        %3636 = vmatprep.subr.mxu0 0.0
        %3637 = vmatpush1.msra.mxu0 0.0
        %3638 = vmatprep.subr.mxu0 0.0
        %3639 = vmatpush1.msra.mxu0 0.0
        %3640 = vmatprep.subr.mxu0 0.0
        %3641 = vmatpush1.msra.mxu0 0.0
        %3642 = vmatprep.mubr.f32.mxu0 0.0
        %3643 = vmatmul.mubr.f32.gmra.mrb[0].mxu0 %v2425
        %v3644 = vpop.f32.mrb[0].mxu0
        %v3645 = vadd.f32 0.0, %v3644
        %v3646 = vpop.f32.mrb[0].mxu0
        %3647 = vmatprep.mubr.f32.mxu0 0.0
        %3648 = vmatmul.mubr.f32.gmra.mrb[0].mxu0 %v2428
        %v3649 = vpop.f32.mrb[0].mxu0
        %v3650 = vadd.f32 0.0, %v3649
        %v3651 = vpop.f32.mrb[0].mxu0
        %3652 = vmatprep.mubr.f32.mxu0 0.0
        %3653 = vmatmul.mubr.f32.gmra.mrb[0].mxu0 %v2431
        %v3654 = vpop.f32.mrb[0].mxu0
        %v3655 = vadd.f32 0.0, %v3654
        %v3656 = vpop.f32.mrb[0].mxu0
        %3657 = vmatprep.mubr.f32.mxu0 0.0
        %3658 = vmatmul.mubr.f32.gmra.mrb[0].mxu0 %v2434
        %v3659 = vpop.f32.mrb[0].mxu0
        %v3660 = vadd.f32 0.0, %v3659
        %v3661 = vpop.f32.mrb[0].mxu0
        %3662 = vmatprep.mubr.f32.mxu0 0.0
        %3663 = vmatmul.mubr.f32.gmra.mrb[0].mxu0 %v2437
        %v3664 = vpop.f32.mrb[0].mxu0
        %v3665 = vadd.f32 0.0, %v3664
        %v3666 = vpop.f32.mrb[0].mxu0
        %3667 = vmatprep.mubr.f32.mxu0 0.0
        %3668 = vmatmul.mubr.f32.gmra.mrb[0].mxu0 %v2440
        %v3669 = vpop.f32.mrb[0].mxu0
        %v3670 = vadd.f32 0.0, %v3669
        %v3671 = vpop.f32.mrb[0].mxu0
        %3672 = vmatprep.mubr.f32.mxu0 0.0
        %3673 = vmatmul.mubr.f32.gmra.mrb[0].mxu0 %v2443
        %v3674 = vpop.f32.mrb[0].mxu0
        %v3675 = vadd.f32 0.0, %v3674
        %v3676 = vpop.f32.mrb[0].mxu0
        %3677 = vmatprep.mubr.f32.mxu0 0.0
        %3678 = vmatmul.mubr.f32.gmra.mrb[0].mxu0 %v2446
        %v3679 = vpop.f32.mrb[0].mxu0
        %v3680 = vadd.f32 0.0, %v3679
        %v3681 = vpop.f32.mrb[0].mxu0
        %3682 = vmatprep.mubr.f32.mxu0 0.0
        %3683 = vmatmul.mubr.f32.gmra.mrb[0].mxu0 %v2449
        %v3684 = vpop.f32.mrb[0].mxu0
        %v3685 = vadd.f32 0.0, %v3684
        %v3686 = vpop.f32.mrb[0].mxu0
        %3687 = vmatprep.mubr.f32.mxu0 0.0
        %3688 = vmatmul.mubr.f32.gmra.mrb[0].mxu0 %v2452
        %v3689 = vpop.f32.mrb[0].mxu0
        %v3690 = vadd.f32 0.0, %v3689
        %v3691 = vpop.f32.mrb[0].mxu0
        %3692 = vmatprep.mubr.f32.mxu0 0.0
        %3693 = vmatmul.mubr.f32.gmra.mrb[0].mxu0 %v2455
        %v3694 = vpop.f32.mrb[0].mxu0
        %v3695 = vadd.f32 0.0, %v3694
        %v3696 = vpop.f32.mrb[0].mxu0
        %3697 = vmatprep.mubr.f32.mxu0 0.0
        %3698 = vmatmul.mubr.f32.gmra.mrb[0].mxu0 %v2458
        %v3699 = vpop.f32.mrb[0].mxu0
        %v3700 = vadd.f32 0.0, %v3699
        %v3701 = vpop.f32.mrb[0].mxu0
        %3702 = vmatprep.mubr.f32.mxu0 0.0
        %3703 = vmatmul.mubr.f32.gmra.mrb[0].mxu0 %v2461
        %v3704 = vpop.f32.mrb[0].mxu0
        %v3705 = vadd.f32 0.0, %v3704
        %v3706 = vpop.f32.mrb[0].mxu0
        %3707 = vmatprep.mubr.f32.mxu0 0.0
        %3708 = vmatmul.mubr.f32.gmra.mrb[0].mxu0 %v2464
        %v3709 = vpop.f32.mrb[0].mxu0
        %v3710 = vadd.f32 0.0, %v3709
        %v3711 = vpop.f32.mrb[0].mxu0
        %3712 = vmatprep.mubr.f32.mxu0 0.0
        %3713 = vmatmul.mubr.f32.gmra.mrb[0].mxu0 %v2467
        %v3714 = vpop.f32.mrb[0].mxu0
        %v3715 = vadd.f32 0.0, %v3714
        %v3716 = vpop.f32.mrb[0].mxu0
        %3717 = vmatprep.mubr.f32.mxu0 0.0
        %3718 = vmatmul.mubr.f32.gmra.mrb[0].mxu0 %v2470
        %v3719 = vpop.f32.mrb[0].mxu0
        %v3720 = vadd.f32 0.0, %v3719
        %v3721 = vpop.f32.mrb[0].mxu0
        %3722 = vmatprep.mubr.f32.mxu0 0.0
        %3723 = vmatmul.mubr.f32.gmra.mrb[0].mxu0 %v2473
        %v3724 = vpop.f32.mrb[0].mxu0
        %v3725 = vadd.f32 0.0, %v3724
        %v3726 = vpop.f32.mrb[0].mxu0
        %3727 = vmatprep.mubr.f32.mxu0 0.0
        %3728 = vmatmul.mubr.f32.gmra.mrb[0].mxu0 %v2476
        %v3729 = vpop.f32.mrb[0].mxu0
        %v3730 = vadd.f32 0.0, %v3729
        %v3731 = vpop.f32.mrb[0].mxu0
        %3732 = vmatprep.mubr.f32.mxu0 0.0
        %3733 = vmatmul.mubr.f32.gmra.mrb[0].mxu0 %v2479
        %v3734 = vpop.f32.mrb[0].mxu0
        %v3735 = vadd.f32 0.0, %v3734
        %v3736 = vpop.f32.mrb[0].mxu0
        %3737 = vmatprep.mubr.f32.mxu0 0.0
        %3738 = vmatmul.mubr.f32.gmra.mrb[0].mxu0 %v2482
        %v3739 = vpop.f32.mrb[0].mxu0
        %v3740 = vadd.f32 0.0, %v3739
        %v3741 = vpop.f32.mrb[0].mxu0
        %3742 = vmatprep.mubr.f32.mxu0 0.0
        %3743 = vmatmul.mubr.f32.gmra.mrb[0].mxu0 %v2485
        %v3744 = vpop.f32.mrb[0].mxu0
        %v3745 = vadd.f32 0.0, %v3744
        %v3746 = vpop.f32.mrb[0].mxu0
        %3747 = vmatprep.mubr.f32.mxu0 0.0
        %3748 = vmatmul.mubr.f32.gmra.mrb[0].mxu0 %v2488
        %v3749 = vpop.f32.mrb[0].mxu0
        %v3750 = vadd.f32 0.0, %v3749
        %v3751 = vpop.f32.mrb[0].mxu0
        %3752 = vmatprep.mubr.f32.mxu0 0.0
        %3753 = vmatmul.mubr.f32.gmra.mrb[0].mxu0 %v2491
        %v3754 = vpop.f32.mrb[0].mxu0
        %v3755 = vadd.f32 0.0, %v3754
        %v3756 = vpop.f32.mrb[0].mxu0
        %3757 = vmatprep.mubr.f32.mxu0 0.0
        %3758 = vmatmul.mubr.f32.gmra.mrb[0].mxu0 %v2494
        %v3759 = vpop.f32.mrb[0].mxu0
        %v3760 = vadd.f32 0.0, %v3759
        %v3761 = vpop.f32.mrb[0].mxu0
        %3762 = vmatprep.mubr.f32.mxu0 0.0
        %3763 = vmatmul.mubr.f32.gmra.mrb[0].mxu0 %v2497
        %v3764 = vpop.f32.mrb[0].mxu0
        %v3765 = vadd.f32 0.0, %v3764
        %v3766 = vpop.f32.mrb[0].mxu0
        %3767 = vmatprep.mubr.f32.mxu0 0.0
        %3768 = vmatmul.mubr.f32.gmra.mrb[0].mxu0 %v2500
        %v3769 = vpop.f32.mrb[0].mxu0
        %v3770 = vadd.f32 0.0, %v3769
        %v3771 = vpop.f32.mrb[0].mxu0
        %3772 = vmatprep.mubr.f32.mxu0 0.0
        %3773 = vmatmul.mubr.f32.gmra.mrb[0].mxu0 %v2503
        %v3774 = vpop.f32.mrb[0].mxu0
        %v3775 = vadd.f32 0.0, %v3774
        %v3776 = vpop.f32.mrb[0].mxu0
        %3777 = vmatprep.mubr.f32.mxu0 0.0
        %3778 = vmatmul.mubr.f32.gmra.mrb[0].mxu0 %v2506
        %v3779 = vpop.f32.mrb[0].mxu0
        %v3780 = vadd.f32 0.0, %v3779
        %v3781 = vpop.f32.mrb[0].mxu0
        %3782 = vmatprep.mubr.f32.mxu0 0.0
        %3783 = vmatmul.mubr.f32.gmra.mrb[0].mxu0 %v2509
        %v3784 = vpop.f32.mrb[0].mxu0
        %v3785 = vadd.f32 0.0, %v3784
        %v3786 = vpop.f32.mrb[0].mxu0
        %3787 = vmatprep.mubr.f32.mxu0 0.0
        %3788 = vmatmul.mubr.f32.gmra.mrb[0].mxu0 %v2512
        %v3789 = vpop.f32.mrb[0].mxu0
        %v3790 = vadd.f32 0.0, %v3789
        %v3791 = vpop.f32.mrb[0].mxu0
        %3792 = vmatprep.mubr.f32.mxu0 0.0
        %3793 = vmatmul.mubr.f32.gmra.mrb[0].mxu0 %v2515
        %v3794 = vpop.f32.mrb[0].mxu0
        %v3795 = vadd.f32 0.0, %v3794
        %v3796 = vpop.f32.mrb[0].mxu0
        %3797 = vmatprep.mubr.f32.mxu0 0.0
        %3798 = vmatmul.mubr.f32.gmra.mrb[0].mxu0 %v2518
        %v3799 = vpop.f32.mrb[0].mxu0
        %v3800 = vadd.f32 0.0, %v3799
        %v3801 = vpop.f32.mrb[0].mxu0
        %3802 = vmatprep.mubr.f32.mxu0 0.0
        %3803 = vmatmul.mubr.f32.gmra.mrb[0].mxu0 %v2521
        %v3804 = vpop.f32.mrb[0].mxu0
        %v3805 = vadd.f32 0.0, %v3804
        %v3806 = vpop.f32.mrb[0].mxu0
        %3807 = vmatprep.mubr.f32.mxu0 0.0
        %3808 = vmatmul.mubr.f32.gmra.mrb[0].mxu0 %v2524
        %v3809 = vpop.f32.mrb[0].mxu0
        %v3810 = vadd.f32 0.0, %v3809
        %v3811 = vpop.f32.mrb[0].mxu0
        %3812 = vmatprep.mubr.f32.mxu0 0.0
        %3813 = vmatmul.mubr.f32.gmra.mrb[0].mxu0 %v2527
        %v3814 = vpop.f32.mrb[0].mxu0
        %v3815 = vadd.f32 0.0, %v3814
        %v3816 = vpop.f32.mrb[0].mxu0
        %3817 = vmatprep.mubr.f32.mxu0 0.0
        %3818 = vmatmul.mubr.f32.gmra.mrb[0].mxu0 %v2530
        %v3819 = vpop.f32.mrb[0].mxu0
        %v3820 = vadd.f32 0.0, %v3819
        %v3821 = vpop.f32.mrb[0].mxu0
        %3822 = vmatprep.mubr.f32.mxu0 0.0
        %3823 = vmatmul.mubr.f32.gmra.mrb[0].mxu0 %v2533
        %v3824 = vpop.f32.mrb[0].mxu0
        %v3825 = vadd.f32 0.0, %v3824
        %v3826 = vpop.f32.mrb[0].mxu0
        %3827 = vmatprep.mubr.f32.mxu0 0.0
        %3828 = vmatmul.mubr.f32.gmra.mrb[0].mxu0 %v2536
        %v3829 = vpop.f32.mrb[0].mxu0
        %v3830 = vadd.f32 0.0, %v3829
        %v3831 = vpop.f32.mrb[0].mxu0
        %3832 = vmatprep.mubr.f32.mxu0 0.0
        %3833 = vmatmul.mubr.f32.gmra.mrb[0].mxu0 %v2539
        %v3834 = vpop.f32.mrb[0].mxu0
        %v3835 = vadd.f32 0.0, %v3834
        %v3836 = vpop.f32.mrb[0].mxu0
        %3837 = vmatprep.mubr.f32.mxu0 0.0
        %3838 = vmatmul.mubr.f32.gmra.mrb[0].mxu0 %v2542
        %v3839 = vpop.f32.mrb[0].mxu0
        %v3840 = vadd.f32 0.0, %v3839
        %v3841 = vpop.f32.mrb[0].mxu0
        %3842 = vmatprep.mubr.f32.mxu0 0.0
        %3843 = vmatmul.mubr.f32.gmra.mrb[0].mxu0 %v2545
        %v3844 = vpop.f32.mrb[0].mxu0
        %v3845 = vadd.f32 0.0, %v3844
        %v3846 = vpop.f32.mrb[0].mxu0
        %3847 = vmatprep.mubr.f32.mxu0 0.0
        %3848 = vmatmul.mubr.f32.gmra.mrb[0].mxu0 %v2548
        %v3849 = vpop.f32.mrb[0].mxu0
        %v3850 = vadd.f32 0.0, %v3849
        %v3851 = vpop.f32.mrb[0].mxu0
        %3852 = vmatprep.mubr.f32.mxu0 0.0
        %3853 = vmatmul.mubr.f32.gmra.mrb[0].mxu0 %v2551
        %v3854 = vpop.f32.mrb[0].mxu0
        %v3855 = vadd.f32 0.0, %v3854
        %v3856 = vpop.f32.mrb[0].mxu0
        %3857 = vmatprep.mubr.f32.mxu0 0.0
        %3858 = vmatmul.mubr.f32.gmra.mrb[0].mxu0 %v2554
        %v3859 = vpop.f32.mrb[0].mxu0
        %v3860 = vadd.f32 0.0, %v3859
        %v3861 = vpop.f32.mrb[0].mxu0
        %3862 = vmatprep.mubr.f32.mxu0 0.0
        %3863 = vmatmul.mubr.f32.gmra.mrb[0].mxu0 %v2557
        %v3864 = vpop.f32.mrb[0].mxu0
        %v3865 = vadd.f32 0.0, %v3864
        %v3866 = vpop.f32.mrb[0].mxu0
        %3867 = vmatprep.mubr.f32.mxu0 0.0
        %3868 = vmatmul.mubr.f32.gmra.mrb[0].mxu0 %v2560
        %v3869 = vpop.f32.mrb[0].mxu0
        %v3870 = vadd.f32 0.0, %v3869
        %v3871 = vpop.f32.mrb[0].mxu0
        %3872 = vmatprep.mubr.f32.mxu0 0.0
        %3873 = vmatmul.mubr.f32.gmra.mrb[0].mxu0 %v2563
        %v3874 = vpop.f32.mrb[0].mxu0
        %v3875 = vadd.f32 0.0, %v3874
        %v3876 = vpop.f32.mrb[0].mxu0
        %3877 = vmatprep.mubr.f32.mxu0 0.0
        %3878 = vmatmul.mubr.f32.gmra.mrb[0].mxu0 %v2566
        %v3879 = vpop.f32.mrb[0].mxu0
        %v3880 = vadd.f32 0.0, %v3879
        %v3881 = vpop.f32.mrb[0].mxu0
        %3882 = vmatprep.mubr.f32.mxu0 0.0
        %3883 = vmatmul.mubr.f32.gmra.mrb[0].mxu0 %v2569
        %v3884 = vpop.f32.mrb[0].mxu0
        %v3885 = vadd.f32 0.0, %v3884
        %v3886 = vpop.f32.mrb[0].mxu0
        %3887 = vmatprep.mubr.f32.mxu0 0.0
        %3888 = vmatmul.mubr.f32.gmra.mrb[0].mxu0 %v2572
        %v3889 = vpop.f32.mrb[0].mxu0
        %v3890 = vadd.f32 0.0, %v3889
        %v3891 = vpop.f32.mrb[0].mxu0
        %3892 = vmatprep.mubr.f32.mxu0 0.0
        %3893 = vmatmul.mubr.f32.gmra.mrb[0].mxu0 %v2575
        %v3894 = vpop.f32.mrb[0].mxu0
        %v3895 = vadd.f32 0.0, %v3894
        %v3896 = vpop.f32.mrb[0].mxu0
        %3897 = vmatprep.mubr.f32.mxu0 0.0
        %3898 = vmatmul.mubr.f32.gmra.mrb[0].mxu0 %v2578
        %v3899 = vpop.f32.mrb[0].mxu0
        %v3900 = vadd.f32 0.0, %v3899
        %v3901 = vpop.f32.mrb[0].mxu0
        %3902 = vmatprep.mubr.f32.mxu0 0.0
        %3903 = vmatmul.mubr.f32.gmra.mrb[0].mxu0 %v2581
        %v3904 = vpop.f32.mrb[0].mxu0
        %v3905 = vadd.f32 0.0, %v3904
        %v3906 = vpop.f32.mrb[0].mxu0
        %3907 = vmatprep.mubr.f32.mxu0 0.0
        %3908 = vmatmul.mubr.f32.gmra.mrb[0].mxu0 %v2584
        %v3909 = vpop.f32.mrb[0].mxu0
        %v3910 = vadd.f32 0.0, %v3909
        %v3911 = vpop.f32.mrb[0].mxu0
        %3912 = vmatprep.mubr.f32.mxu0 0.0
        %3913 = vmatmul.mubr.f32.gmra.mrb[0].mxu0 %v2587
        %v3914 = vpop.f32.mrb[0].mxu0
        %v3915 = vadd.f32 0.0, %v3914
        %v3916 = vpop.f32.mrb[0].mxu0
        %3917 = vmatprep.mubr.f32.mxu0 0.0
        %3918 = vmatmul.mubr.f32.gmra.mrb[0].mxu0 %v2590
        %v3919 = vpop.f32.mrb[0].mxu0
        %v3920 = vadd.f32 0.0, %v3919
        %v3921 = vpop.f32.mrb[0].mxu0
        %3922 = vmatprep.mubr.f32.mxu0 0.0
        %3923 = vmatmul.mubr.f32.gmra.mrb[0].mxu0 %v2593
        %v3924 = vpop.f32.mrb[0].mxu0
        %v3925 = vadd.f32 0.0, %v3924
        %v3926 = vpop.f32.mrb[0].mxu0
        %3927 = vmatprep.mubr.f32.mxu0 0.0
        %3928 = vmatmul.mubr.f32.gmra.mrb[0].mxu0 %v2596
        %v3929 = vpop.f32.mrb[0].mxu0
        %v3930 = vadd.f32 0.0, %v3929
        %v3931 = vpop.f32.mrb[0].mxu0
        %3932 = vmatprep.mubr.f32.mxu0 0.0
        %3933 = vmatmul.mubr.f32.gmra.mrb[0].mxu0 %v2599
        %v3934 = vpop.f32.mrb[0].mxu0
        %v3935 = vadd.f32 0.0, %v3934
        %v3936 = vpop.f32.mrb[0].mxu0
        %3937 = vmatprep.mubr.f32.mxu0 0.0
        %3938 = vmatmul.mubr.f32.gmra.mrb[0].mxu0 %v2602
        %v3939 = vpop.f32.mrb[0].mxu0
        %v3940 = vadd.f32 0.0, %v3939
        %v3941 = vpop.f32.mrb[0].mxu0
        %3942 = vmatprep.mubr.f32.mxu0 0.0
        %3943 = vmatmul.mubr.f32.gmra.mrb[0].mxu0 %v2605
        %v3944 = vpop.f32.mrb[0].mxu0
        %v3945 = vadd.f32 0.0, %v3944
        %v3946 = vpop.f32.mrb[0].mxu0
        %3947 = vmatprep.mubr.f32.mxu0 0.0
        %3948 = vmatmul.mubr.f32.gmra.mrb[0].mxu0 %v2608
        %v3949 = vpop.f32.mrb[0].mxu0
        %v3950 = vadd.f32 0.0, %v3949
        %v3951 = vpop.f32.mrb[0].mxu0
        %3952 = vmatprep.mubr.f32.mxu0 0.0
        %3953 = vmatmul.mubr.f32.gmra.mrb[0].mxu0 %v2611
        %v3954 = vpop.f32.mrb[0].mxu0
        %v3955 = vadd.f32 0.0, %v3954
        %v3956 = vpop.f32.mrb[0].mxu0
        %3957 = vmatprep.mubr.f32.mxu0 0.0
        %3958 = vmatmul.mubr.f32.gmra.mrb[0].mxu0 %v2614
        %v3959 = vpop.f32.mrb[0].mxu0
        %v3960 = vadd.f32 0.0, %v3959
        %v3961 = vpop.f32.mrb[0].mxu0
        %3962 = vdwg.mxu0
        %3963 = vmatprep.subr.mxu0 0.0
        %3964 = vmatpush1.msra.mxu0 %v369
        %3965 = vmatprep.subr.mxu0 0.0
        %3966 = vmatpush1.msra.mxu0 %v370
        %3967 = vmatprep.subr.mxu0 0.0
        %3968 = vmatpush1.msra.mxu0 %v371
        %3969 = vmatprep.subr.mxu0 0.0
        %3970 = vmatpush1.msra.mxu0 %v372
        %3971 = vmatprep.subr.mxu0 0.0
        %3972 = vmatpush1.msra.mxu0 0.0
        %3973 = vmatprep.subr.mxu0 0.0
        %3974 = vmatpush1.msra.mxu0 0.0
        %3975 = vmatprep.subr.mxu0 0.0
        %3976 = vmatpush1.msra.mxu0 0.0
        %3977 = vmatprep.subr.mxu0 0.0
        %3978 = vmatpush1.msra.mxu0 0.0
        %3979 = vmatprep.subr.mxu0 0.0
        %3980 = vmatpush1.msra.mxu0 0.0
        %3981 = vmatprep.subr.mxu0 0.0
        %3982 = vmatpush1.msra.mxu0 0.0
        %3983 = vmatprep.subr.mxu0 0.0
        %3984 = vmatpush1.msra.mxu0 0.0
        %3985 = vmatprep.subr.mxu0 0.0
        %3986 = vmatpush1.msra.mxu0 0.0
        %3987 = vmatprep.subr.mxu0 0.0
        %3988 = vmatpush1.msra.mxu0 0.0
        %3989 = vmatprep.subr.mxu0 0.0
        %3990 = vmatpush1.msra.mxu0 0.0
        %3991 = vmatprep.subr.mxu0 0.0
        %3992 = vmatpush1.msra.mxu0 0.0
        %3993 = vmatprep.subr.mxu0 0.0
        %3994 = vmatpush1.msra.mxu0 0.0
        %3995 = vmatprep.subr.mxu0 0.0
        %3996 = vmatpush1.msra.mxu0 0.0
        %3997 = vmatprep.subr.mxu0 0.0
        %3998 = vmatpush1.msra.mxu0 0.0
        %3999 = vmatprep.subr.mxu0 0.0
        %4000 = vmatpush1.msra.mxu0 0.0
        %4001 = vmatprep.subr.mxu0 0.0
        %4002 = vmatpush1.msra.mxu0 0.0
        %4003 = vmatprep.subr.mxu0 0.0
        %4004 = vmatpush1.msra.mxu0 0.0
        %4005 = vmatprep.subr.mxu0 0.0
        %4006 = vmatpush1.msra.mxu0 0.0
        %4007 = vmatprep.subr.mxu0 0.0
        %4008 = vmatpush1.msra.mxu0 0.0
        %4009 = vmatprep.subr.mxu0 0.0
        %4010 = vmatpush1.msra.mxu0 0.0
        %4011 = vmatprep.subr.mxu0 0.0
        %4012 = vmatpush1.msra.mxu0 0.0
        %4013 = vmatprep.subr.mxu0 0.0
        %4014 = vmatpush1.msra.mxu0 0.0
        %4015 = vmatprep.subr.mxu0 0.0
        %4016 = vmatpush1.msra.mxu0 0.0
        %4017 = vmatprep.subr.mxu0 0.0
        %4018 = vmatpush1.msra.mxu0 0.0
        %4019 = vmatprep.subr.mxu0 0.0
        %4020 = vmatpush1.msra.mxu0 0.0
        %4021 = vmatprep.subr.mxu0 0.0
        %4022 = vmatpush1.msra.mxu0 0.0
        %4023 = vmatprep.subr.mxu0 0.0
        %4024 = vmatpush1.msra.mxu0 0.0
        %4025 = vmatprep.subr.mxu0 0.0
        %4026 = vmatpush1.msra.mxu0 0.0
        %4027 = vmatprep.mubr.f32.mxu0 0.0
        %4028 = vmatmul.mubr.f32.gmra.mrb[0].mxu0 %v3002
        %v4029 = vpop.f32.mrb[0].mxu0
        %v4030 = vadd.f32 0.0, %v4029
        %v4031 = vpop.f32.mrb[0].mxu0
        %4032 = vmatprep.mubr.f32.mxu0 0.0
        %4033 = vmatmul.mubr.f32.gmra.mrb[0].mxu0 %v3005
        %v4034 = vpop.f32.mrb[0].mxu0
        %v4035 = vadd.f32 0.0, %v4034
        %v4036 = vpop.f32.mrb[0].mxu0
        %4037 = vmatprep.mubr.f32.mxu0 0.0
        %4038 = vmatmul.mubr.f32.gmra.mrb[0].mxu0 %v3008
        %v4039 = vpop.f32.mrb[0].mxu0
        %v4040 = vadd.f32 0.0, %v4039
        %v4041 = vpop.f32.mrb[0].mxu0
        %4042 = vmatprep.mubr.f32.mxu0 0.0
        %4043 = vmatmul.mubr.f32.gmra.mrb[0].mxu0 %v3011
        %v4044 = vpop.f32.mrb[0].mxu0
        %v4045 = vadd.f32 0.0, %v4044
        %v4046 = vpop.f32.mrb[0].mxu0
        %4047 = vmatprep.mubr.f32.mxu0 0.0
        %4048 = vmatmul.mubr.f32.gmra.mrb[0].mxu0 %v3014
        %v4049 = vpop.f32.mrb[0].mxu0
        %v4050 = vadd.f32 0.0, %v4049
        %v4051 = vpop.f32.mrb[0].mxu0
        %4052 = vmatprep.mubr.f32.mxu0 0.0
        %4053 = vmatmul.mubr.f32.gmra.mrb[0].mxu0 %v3017
        %v4054 = vpop.f32.mrb[0].mxu0
        %v4055 = vadd.f32 0.0, %v4054
        %v4056 = vpop.f32.mrb[0].mxu0
        %4057 = vmatprep.mubr.f32.mxu0 0.0
        %4058 = vmatmul.mubr.f32.gmra.mrb[0].mxu0 %v3020
        %v4059 = vpop.f32.mrb[0].mxu0
        %v4060 = vadd.f32 0.0, %v4059
        %v4061 = vpop.f32.mrb[0].mxu0
        %4062 = vmatprep.mubr.f32.mxu0 0.0
        %4063 = vmatmul.mubr.f32.gmra.mrb[0].mxu0 %v3023
        %v4064 = vpop.f32.mrb[0].mxu0
        %v4065 = vadd.f32 0.0, %v4064
        %v4066 = vpop.f32.mrb[0].mxu0
        %4067 = vmatprep.mubr.f32.mxu0 0.0
        %4068 = vmatmul.mubr.f32.gmra.mrb[0].mxu0 %v3026
        %v4069 = vpop.f32.mrb[0].mxu0
        %v4070 = vadd.f32 0.0, %v4069
        %v4071 = vpop.f32.mrb[0].mxu0
        %4072 = vmatprep.mubr.f32.mxu0 0.0
        %4073 = vmatmul.mubr.f32.gmra.mrb[0].mxu0 %v3029
        %v4074 = vpop.f32.mrb[0].mxu0
        %v4075 = vadd.f32 0.0, %v4074
        %v4076 = vpop.f32.mrb[0].mxu0
        %4077 = vmatprep.mubr.f32.mxu0 0.0
        %4078 = vmatmul.mubr.f32.gmra.mrb[0].mxu0 %v3032
        %v4079 = vpop.f32.mrb[0].mxu0
        %v4080 = vadd.f32 0.0, %v4079
        %v4081 = vpop.f32.mrb[0].mxu0
        %4082 = vmatprep.mubr.f32.mxu0 0.0
        %4083 = vmatmul.mubr.f32.gmra.mrb[0].mxu0 %v3035
        %v4084 = vpop.f32.mrb[0].mxu0
        %v4085 = vadd.f32 0.0, %v4084
        %v4086 = vpop.f32.mrb[0].mxu0
        %4087 = vmatprep.mubr.f32.mxu0 0.0
        %4088 = vmatmul.mubr.f32.gmra.mrb[0].mxu0 %v3038
        %v4089 = vpop.f32.mrb[0].mxu0
        %v4090 = vadd.f32 0.0, %v4089
        %v4091 = vpop.f32.mrb[0].mxu0
        %4092 = vmatprep.mubr.f32.mxu0 0.0
        %4093 = vmatmul.mubr.f32.gmra.mrb[0].mxu0 %v3041
        %v4094 = vpop.f32.mrb[0].mxu0
        %v4095 = vadd.f32 0.0, %v4094
        %v4096 = vpop.f32.mrb[0].mxu0
        %4097 = vmatprep.mubr.f32.mxu0 0.0
        %4098 = vmatmul.mubr.f32.gmra.mrb[0].mxu0 %v3044
        %v4099 = vpop.f32.mrb[0].mxu0
        %v4100 = vadd.f32 0.0, %v4099
        %v4101 = vpop.f32.mrb[0].mxu0
        %4102 = vmatprep.mubr.f32.mxu0 0.0
        %4103 = vmatmul.mubr.f32.gmra.mrb[0].mxu0 %v3047
        %v4104 = vpop.f32.mrb[0].mxu0
        %v4105 = vadd.f32 0.0, %v4104
        %v4106 = vpop.f32.mrb[0].mxu0
        %4107 = vmatprep.mubr.f32.mxu0 0.0
        %4108 = vmatmul.mubr.f32.gmra.mrb[0].mxu0 %v3050
        %v4109 = vpop.f32.mrb[0].mxu0
        %v4110 = vadd.f32 0.0, %v4109
        %v4111 = vpop.f32.mrb[0].mxu0
        %4112 = vmatprep.mubr.f32.mxu0 0.0
        %4113 = vmatmul.mubr.f32.gmra.mrb[0].mxu0 %v3053
        %v4114 = vpop.f32.mrb[0].mxu0
        %v4115 = vadd.f32 0.0, %v4114
        %v4116 = vpop.f32.mrb[0].mxu0
        %4117 = vmatprep.mubr.f32.mxu0 0.0
        %4118 = vmatmul.mubr.f32.gmra.mrb[0].mxu0 %v3056
        %v4119 = vpop.f32.mrb[0].mxu0
        %v4120 = vadd.f32 0.0, %v4119
        %v4121 = vpop.f32.mrb[0].mxu0
        %4122 = vmatprep.mubr.f32.mxu0 0.0
        %4123 = vmatmul.mubr.f32.gmra.mrb[0].mxu0 %v3059
        %v4124 = vpop.f32.mrb[0].mxu0
        %v4125 = vadd.f32 0.0, %v4124
        %v4126 = vpop.f32.mrb[0].mxu0
        %4127 = vmatprep.mubr.f32.mxu0 0.0
        %4128 = vmatmul.mubr.f32.gmra.mrb[0].mxu0 %v3062
        %v4129 = vpop.f32.mrb[0].mxu0
        %v4130 = vadd.f32 0.0, %v4129
        %v4131 = vpop.f32.mrb[0].mxu0
        %4132 = vmatprep.mubr.f32.mxu0 0.0
        %4133 = vmatmul.mubr.f32.gmra.mrb[0].mxu0 %v3065
        %v4134 = vpop.f32.mrb[0].mxu0
        %v4135 = vadd.f32 0.0, %v4134
        %v4136 = vpop.f32.mrb[0].mxu0
        %4137 = vmatprep.mubr.f32.mxu0 0.0
        %4138 = vmatmul.mubr.f32.gmra.mrb[0].mxu0 %v3068
        %v4139 = vpop.f32.mrb[0].mxu0
        %v4140 = vadd.f32 0.0, %v4139
        %v4141 = vpop.f32.mrb[0].mxu0
        %4142 = vmatprep.mubr.f32.mxu0 0.0
        %4143 = vmatmul.mubr.f32.gmra.mrb[0].mxu0 %v3071
        %v4144 = vpop.f32.mrb[0].mxu0
        %v4145 = vadd.f32 0.0, %v4144
        %v4146 = vpop.f32.mrb[0].mxu0
        %4147 = vmatprep.mubr.f32.mxu0 0.0
        %4148 = vmatmul.mubr.f32.gmra.mrb[0].mxu0 %v3074
        %v4149 = vpop.f32.mrb[0].mxu0
        %v4150 = vadd.f32 0.0, %v4149
        %v4151 = vpop.f32.mrb[0].mxu0
        %4152 = vmatprep.mubr.f32.mxu0 0.0
        %4153 = vmatmul.mubr.f32.gmra.mrb[0].mxu0 %v3077
        %v4154 = vpop.f32.mrb[0].mxu0
        %v4155 = vadd.f32 0.0, %v4154
        %v4156 = vpop.f32.mrb[0].mxu0
        %4157 = vmatprep.mubr.f32.mxu0 0.0
        %4158 = vmatmul.mubr.f32.gmra.mrb[0].mxu0 %v3080
        %v4159 = vpop.f32.mrb[0].mxu0
        %v4160 = vadd.f32 0.0, %v4159
        %v4161 = vpop.f32.mrb[0].mxu0
        %4162 = vmatprep.mubr.f32.mxu0 0.0
        %4163 = vmatmul.mubr.f32.gmra.mrb[0].mxu0 %v3083
        %v4164 = vpop.f32.mrb[0].mxu0
        %v4165 = vadd.f32 0.0, %v4164
        %v4166 = vpop.f32.mrb[0].mxu0
        %4167 = vmatprep.mubr.f32.mxu0 0.0
        %4168 = vmatmul.mubr.f32.gmra.mrb[0].mxu0 %v3086
        %v4169 = vpop.f32.mrb[0].mxu0
        %v4170 = vadd.f32 0.0, %v4169
        %v4171 = vpop.f32.mrb[0].mxu0
        %4172 = vmatprep.mubr.f32.mxu0 0.0
        %4173 = vmatmul.mubr.f32.gmra.mrb[0].mxu0 %v3089
        %v4174 = vpop.f32.mrb[0].mxu0
        %v4175 = vadd.f32 0.0, %v4174
        %v4176 = vpop.f32.mrb[0].mxu0
        %4177 = vmatprep.mubr.f32.mxu0 0.0
        %4178 = vmatmul.mubr.f32.gmra.mrb[0].mxu0 %v3092
        %v4179 = vpop.f32.mrb[0].mxu0
        %v4180 = vadd.f32 0.0, %v4179
        %v4181 = vpop.f32.mrb[0].mxu0
        %4182 = vmatprep.mubr.f32.mxu0 0.0
        %4183 = vmatmul.mubr.f32.gmra.mrb[0].mxu0 %v3095
        %v4184 = vpop.f32.mrb[0].mxu0
        %v4185 = vadd.f32 0.0, %v4184
        %v4186 = vpop.f32.mrb[0].mxu0
        %4187 = vmatprep.mubr.f32.mxu0 0.0
        %4188 = vmatmul.mubr.f32.gmra.mrb[0].mxu0 %v3098
        %v4189 = vpop.f32.mrb[0].mxu0
        %v4190 = vadd.f32 0.0, %v4189
        %v4191 = vpop.f32.mrb[0].mxu0
        %4192 = vmatprep.mubr.f32.mxu0 0.0
        %4193 = vmatmul.mubr.f32.gmra.mrb[0].mxu0 %v3101
        %v4194 = vpop.f32.mrb[0].mxu0
        %v4195 = vadd.f32 0.0, %v4194
        %v4196 = vpop.f32.mrb[0].mxu0
        %4197 = vmatprep.mubr.f32.mxu0 0.0
        %4198 = vmatmul.mubr.f32.gmra.mrb[0].mxu0 %v3104
        %v4199 = vpop.f32.mrb[0].mxu0
        %v4200 = vadd.f32 0.0, %v4199
        %v4201 = vpop.f32.mrb[0].mxu0
        %4202 = vmatprep.mubr.f32.mxu0 0.0
        %4203 = vmatmul.mubr.f32.gmra.mrb[0].mxu0 %v3107
        %v4204 = vpop.f32.mrb[0].mxu0
        %v4205 = vadd.f32 0.0, %v4204
        %v4206 = vpop.f32.mrb[0].mxu0
        %4207 = vmatprep.mubr.f32.mxu0 0.0
        %4208 = vmatmul.mubr.f32.gmra.mrb[0].mxu0 %v3110
        %v4209 = vpop.f32.mrb[0].mxu0
        %v4210 = vadd.f32 0.0, %v4209
        %v4211 = vpop.f32.mrb[0].mxu0
        %4212 = vmatprep.mubr.f32.mxu0 0.0
        %4213 = vmatmul.mubr.f32.gmra.mrb[0].mxu0 %v3113
        %v4214 = vpop.f32.mrb[0].mxu0
        %v4215 = vadd.f32 0.0, %v4214
        %v4216 = vpop.f32.mrb[0].mxu0
        %4217 = vmatprep.mubr.f32.mxu0 0.0
        %4218 = vmatmul.mubr.f32.gmra.mrb[0].mxu0 %v3116
        %v4219 = vpop.f32.mrb[0].mxu0
        %v4220 = vadd.f32 0.0, %v4219
        %v4221 = vpop.f32.mrb[0].mxu0
        %4222 = vmatprep.mubr.f32.mxu0 0.0
        %4223 = vmatmul.mubr.f32.gmra.mrb[0].mxu0 %v3119
        %v4224 = vpop.f32.mrb[0].mxu0
        %v4225 = vadd.f32 0.0, %v4224
        %v4226 = vpop.f32.mrb[0].mxu0
        %4227 = vmatprep.mubr.f32.mxu0 0.0
        %4228 = vmatmul.mubr.f32.gmra.mrb[0].mxu0 %v3122
        %v4229 = vpop.f32.mrb[0].mxu0
        %v4230 = vadd.f32 0.0, %v4229
        %v4231 = vpop.f32.mrb[0].mxu0
        %4232 = vmatprep.mubr.f32.mxu0 0.0
        %4233 = vmatmul.mubr.f32.gmra.mrb[0].mxu0 %v3125
        %v4234 = vpop.f32.mrb[0].mxu0
        %v4235 = vadd.f32 0.0, %v4234
        %v4236 = vpop.f32.mrb[0].mxu0
        %4237 = vmatprep.mubr.f32.mxu0 0.0
        %4238 = vmatmul.mubr.f32.gmra.mrb[0].mxu0 %v3128
        %v4239 = vpop.f32.mrb[0].mxu0
        %v4240 = vadd.f32 0.0, %v4239
        %v4241 = vpop.f32.mrb[0].mxu0
        %4242 = vmatprep.mubr.f32.mxu0 0.0
        %4243 = vmatmul.mubr.f32.gmra.mrb[0].mxu0 %v3131
        %v4244 = vpop.f32.mrb[0].mxu0
        %v4245 = vadd.f32 0.0, %v4244
        %v4246 = vpop.f32.mrb[0].mxu0
        %4247 = vmatprep.mubr.f32.mxu0 0.0
        %4248 = vmatmul.mubr.f32.gmra.mrb[0].mxu0 %v3134
        %v4249 = vpop.f32.mrb[0].mxu0
        %v4250 = vadd.f32 0.0, %v4249
        %v4251 = vpop.f32.mrb[0].mxu0
        %4252 = vmatprep.mubr.f32.mxu0 0.0
        %4253 = vmatmul.mubr.f32.gmra.mrb[0].mxu0 %v3137
        %v4254 = vpop.f32.mrb[0].mxu0
        %v4255 = vadd.f32 0.0, %v4254
        %v4256 = vpop.f32.mrb[0].mxu0
        %4257 = vmatprep.mubr.f32.mxu0 0.0
        %4258 = vmatmul.mubr.f32.gmra.mrb[0].mxu0 %v3140
        %v4259 = vpop.f32.mrb[0].mxu0
        %v4260 = vadd.f32 0.0, %v4259
        %v4261 = vpop.f32.mrb[0].mxu0
        %4262 = vmatprep.mubr.f32.mxu0 0.0
        %4263 = vmatmul.mubr.f32.gmra.mrb[0].mxu0 %v3143
        %v4264 = vpop.f32.mrb[0].mxu0
        %v4265 = vadd.f32 0.0, %v4264
        %v4266 = vpop.f32.mrb[0].mxu0
        %4267 = vmatprep.mubr.f32.mxu0 0.0
        %4268 = vmatmul.mubr.f32.gmra.mrb[0].mxu0 %v3146
        %v4269 = vpop.f32.mrb[0].mxu0
        %v4270 = vadd.f32 0.0, %v4269
        %v4271 = vpop.f32.mrb[0].mxu0
        %4272 = vmatprep.mubr.f32.mxu0 0.0
        %4273 = vmatmul.mubr.f32.gmra.mrb[0].mxu0 %v3149
        %v4274 = vpop.f32.mrb[0].mxu0
        %v4275 = vadd.f32 0.0, %v4274
        %v4276 = vpop.f32.mrb[0].mxu0
        %4277 = vmatprep.mubr.f32.mxu0 0.0
        %4278 = vmatmul.mubr.f32.gmra.mrb[0].mxu0 %v3152
        %v4279 = vpop.f32.mrb[0].mxu0
        %v4280 = vadd.f32 0.0, %v4279
        %v4281 = vpop.f32.mrb[0].mxu0
        %4282 = vmatprep.mubr.f32.mxu0 0.0
        %4283 = vmatmul.mubr.f32.gmra.mrb[0].mxu0 %v3155
        %v4284 = vpop.f32.mrb[0].mxu0
        %v4285 = vadd.f32 0.0, %v4284
        %v4286 = vpop.f32.mrb[0].mxu0
        %4287 = vmatprep.mubr.f32.mxu0 0.0
        %4288 = vmatmul.mubr.f32.gmra.mrb[0].mxu0 %v3158
        %v4289 = vpop.f32.mrb[0].mxu0
        %v4290 = vadd.f32 0.0, %v4289
        %v4291 = vpop.f32.mrb[0].mxu0
        %4292 = vmatprep.mubr.f32.mxu0 0.0
        %4293 = vmatmul.mubr.f32.gmra.mrb[0].mxu0 %v3161
        %v4294 = vpop.f32.mrb[0].mxu0
        %v4295 = vadd.f32 0.0, %v4294
        %v4296 = vpop.f32.mrb[0].mxu0
        %4297 = vmatprep.mubr.f32.mxu0 0.0
        %4298 = vmatmul.mubr.f32.gmra.mrb[0].mxu0 %v3164
        %v4299 = vpop.f32.mrb[0].mxu0
        %v4300 = vadd.f32 0.0, %v4299
        %v4301 = vpop.f32.mrb[0].mxu0
        %4302 = vmatprep.mubr.f32.mxu0 0.0
        %4303 = vmatmul.mubr.f32.gmra.mrb[0].mxu0 %v3167
        %v4304 = vpop.f32.mrb[0].mxu0
        %v4305 = vadd.f32 0.0, %v4304
        %v4306 = vpop.f32.mrb[0].mxu0
        %4307 = vmatprep.mubr.f32.mxu0 0.0
        %4308 = vmatmul.mubr.f32.gmra.mrb[0].mxu0 %v3170
        %v4309 = vpop.f32.mrb[0].mxu0
        %v4310 = vadd.f32 0.0, %v4309
        %v4311 = vpop.f32.mrb[0].mxu0
        %4312 = vmatprep.mubr.f32.mxu0 0.0
        %4313 = vmatmul.mubr.f32.gmra.mrb[0].mxu0 %v3173
        %v4314 = vpop.f32.mrb[0].mxu0
        %v4315 = vadd.f32 0.0, %v4314
        %v4316 = vpop.f32.mrb[0].mxu0
        %4317 = vmatprep.mubr.f32.mxu0 0.0
        %4318 = vmatmul.mubr.f32.gmra.mrb[0].mxu0 %v3176
        %v4319 = vpop.f32.mrb[0].mxu0
        %v4320 = vadd.f32 0.0, %v4319
        %v4321 = vpop.f32.mrb[0].mxu0
        %4322 = vmatprep.mubr.f32.mxu0 0.0
        %4323 = vmatmul.mubr.f32.gmra.mrb[0].mxu0 %v3179
        %v4324 = vpop.f32.mrb[0].mxu0
        %v4325 = vadd.f32 0.0, %v4324
        %v4326 = vpop.f32.mrb[0].mxu0
        %4327 = vmatprep.mubr.f32.mxu0 0.0
        %4328 = vmatmul.mubr.f32.gmra.mrb[0].mxu0 %v3182
        %v4329 = vpop.f32.mrb[0].mxu0
        %v4330 = vadd.f32 0.0, %v4329
        %v4331 = vpop.f32.mrb[0].mxu0
        %4332 = vmatprep.mubr.f32.mxu0 0.0
        %4333 = vmatmul.mubr.f32.gmra.mrb[0].mxu0 %v3185
        %v4334 = vpop.f32.mrb[0].mxu0
        %v4335 = vadd.f32 0.0, %v4334
        %v4336 = vpop.f32.mrb[0].mxu0
        %4337 = vmatprep.mubr.f32.mxu0 0.0
        %4338 = vmatmul.mubr.f32.gmra.mrb[0].mxu0 %v3188
        %v4339 = vpop.f32.mrb[0].mxu0
        %v4340 = vadd.f32 0.0, %v4339
        %v4341 = vpop.f32.mrb[0].mxu0
        %4342 = vmatprep.mubr.f32.mxu0 0.0
        %4343 = vmatmul.mubr.f32.gmra.mrb[0].mxu0 %v3191
        %v4344 = vpop.f32.mrb[0].mxu0
        %v4345 = vadd.f32 0.0, %v4344
        %v4346 = vpop.f32.mrb[0].mxu0
        %4347 = vdwg.mxu0
        %v4348 = vsub.f32 %v3645, %v4030
        %v4349 = vsub.f32 %v3650, %v4035
        %v4350 = vsub.f32 %v3655, %v4040
        %v4351 = vsub.f32 %v3660, %v4045
        %v4352 = vsub.f32 %v3665, %v4050
        %v4353 = vsub.f32 %v3670, %v4055
        %v4354 = vsub.f32 %v3675, %v4060
        %v4355 = vsub.f32 %v3680, %v4065
        %v4356 = vsub.f32 %v3685, %v4070
        %v4357 = vsub.f32 %v3690, %v4075
        %v4358 = vsub.f32 %v3695, %v4080
        %v4359 = vsub.f32 %v3700, %v4085
        %v4360 = vsub.f32 %v3705, %v4090
        %v4361 = vsub.f32 %v3710, %v4095
        %v4362 = vsub.f32 %v3715, %v4100
        %v4363 = vsub.f32 %v3720, %v4105
        %v4364 = vsub.f32 %v3725, %v4110
        %v4365 = vsub.f32 %v3730, %v4115
        %v4366 = vsub.f32 %v3735, %v4120
        %v4367 = vsub.f32 %v3740, %v4125
        %v4368 = vsub.f32 %v3745, %v4130
        %v4369 = vsub.f32 %v3750, %v4135
        %v4370 = vsub.f32 %v3755, %v4140
        %v4371 = vsub.f32 %v3760, %v4145
        %v4372 = vsub.f32 %v3765, %v4150
        %v4373 = vsub.f32 %v3770, %v4155
        %v4374 = vsub.f32 %v3775, %v4160
        %v4375 = vsub.f32 %v3780, %v4165
        %v4376 = vsub.f32 %v3785, %v4170
        %v4377 = vsub.f32 %v3790, %v4175
        %v4378 = vsub.f32 %v3795, %v4180
        %v4379 = vsub.f32 %v3800, %v4185
        %v4380 = vsub.f32 %v3805, %v4190
        %v4381 = vsub.f32 %v3810, %v4195
        %v4382 = vsub.f32 %v3815, %v4200
        %v4383 = vsub.f32 %v3820, %v4205
        %v4384 = vsub.f32 %v3825, %v4210
        %v4385 = vsub.f32 %v3830, %v4215
        %v4386 = vsub.f32 %v3835, %v4220
        %v4387 = vsub.f32 %v3840, %v4225
        %v4388 = vsub.f32 %v3845, %v4230
        %v4389 = vsub.f32 %v3850, %v4235
        %v4390 = vsub.f32 %v3855, %v4240
        %v4391 = vsub.f32 %v3860, %v4245
        %v4392 = vsub.f32 %v3865, %v4250
        %v4393 = vsub.f32 %v3870, %v4255
        %v4394 = vsub.f32 %v3875, %v4260
        %v4395 = vsub.f32 %v3880, %v4265
        %v4396 = vsub.f32 %v3885, %v4270
        %v4397 = vsub.f32 %v3890, %v4275
        %v4398 = vsub.f32 %v3895, %v4280
        %v4399 = vsub.f32 %v3900, %v4285
        %v4400 = vsub.f32 %v3905, %v4290
        %v4401 = vsub.f32 %v3910, %v4295
        %v4402 = vsub.f32 %v3915, %v4300
        %v4403 = vsub.f32 %v3920, %v4305
        %v4404 = vsub.f32 %v3925, %v4310
        %v4405 = vsub.f32 %v3930, %v4315
        %v4406 = vsub.f32 %v3935, %v4320
        %v4407 = vsub.f32 %v3940, %v4325
        %v4408 = vsub.f32 %v3945, %v4330
        %v4409 = vsub.f32 %v3950, %v4335
        %v4410 = vsub.f32 %v3955, %v4340
        %v4411 = vsub.f32 %v3960, %v4345
        %v4412 = vld [vmem:[#allocation5] sm:$0xff]
        %v4413 = vld [vmem:[#allocation5 + $0x8] sm:$0xff]
        %v4414 = vld [vmem:[#allocation5 + $0x10] sm:$0xff]
        %v4415 = vld [vmem:[#allocation5 + $0x18] sm:$0xff]
        %v4416 = vld [vmem:[#allocation5 + $0x20] sm:$0xff]
        %v4417 = vld [vmem:[#allocation5 + $0x28] sm:$0xff]
        %v4418 = vld [vmem:[#allocation5 + $0x30] sm:$0xff]
        %v4419 = vld [vmem:[#allocation5 + $0x38] sm:$0xff]
        %v4420 = vld [vmem:[#allocation5 + $0x40] sm:$0xff]
        %v4421 = vld [vmem:[#allocation5 + $0x48] sm:$0xff]
        %v4422 = vld [vmem:[#allocation5 + $0x50] sm:$0xff]
        %v4423 = vld [vmem:[#allocation5 + $0x58] sm:$0xff]
        %v4424 = vld [vmem:[#allocation5 + $0x60] sm:$0xff]
        %v4425 = vld [vmem:[#allocation5 + $0x68] sm:$0xff]
        %v4426 = vld [vmem:[#allocation5 + $0x70] sm:$0xff]
        %v4427 = vld [vmem:[#allocation5 + $0x78] sm:$0xff]
        %v4428 = vld [vmem:[#allocation5 + $0x80] sm:$0xff]
        %v4429 = vld [vmem:[#allocation5 + $0x88] sm:$0xff]
        %v4430 = vld [vmem:[#allocation5 + $0x90] sm:$0xff]
        %v4431 = vld [vmem:[#allocation5 + $0x98] sm:$0xff]
        %v4432 = vld [vmem:[#allocation5 + $0xa0] sm:$0xff]
        %v4433 = vld [vmem:[#allocation5 + $0xa8] sm:$0xff]
        %v4434 = vld [vmem:[#allocation5 + $0xb0] sm:$0xff]
        %v4435 = vld [vmem:[#allocation5 + $0xb8] sm:$0xff]
        %v4436 = vld [vmem:[#allocation5 + $0xc0] sm:$0xff]
        %v4437 = vld [vmem:[#allocation5 + $0xc8] sm:$0xff]
        %v4438 = vld [vmem:[#allocation5 + $0xd0] sm:$0xff]
        %v4439 = vld [vmem:[#allocation5 + $0xd8] sm:$0xff]
        %v4440 = vld [vmem:[#allocation5 + $0xe0] sm:$0xff]
        %v4441 = vld [vmem:[#allocation5 + $0xe8] sm:$0xff]
        %v4442 = vld [vmem:[#allocation5 + $0xf0] sm:$0xff]
        %v4443 = vld [vmem:[#allocation5 + $0xf8] sm:$0xff]
        %v4444 = vld [vmem:[#allocation5 + $0x100] sm:$0xff]
        %v4445 = vld [vmem:[#allocation5 + $0x108] sm:$0xff]
        %v4446 = vld [vmem:[#allocation5 + $0x110] sm:$0xff]
        %v4447 = vld [vmem:[#allocation5 + $0x118] sm:$0xff]
        %v4448 = vld [vmem:[#allocation5 + $0x120] sm:$0xff]
        %v4449 = vld [vmem:[#allocation5 + $0x128] sm:$0xff]
        %v4450 = vld [vmem:[#allocation5 + $0x130] sm:$0xff]
        %v4451 = vld [vmem:[#allocation5 + $0x138] sm:$0xff]
        %v4452 = vld [vmem:[#allocation5 + $0x140] sm:$0xff]
        %v4453 = vld [vmem:[#allocation5 + $0x148] sm:$0xff]
        %v4454 = vld [vmem:[#allocation5 + $0x150] sm:$0xff]
        %v4455 = vld [vmem:[#allocation5 + $0x158] sm:$0xff]
        %v4456 = vld [vmem:[#allocation5 + $0x160] sm:$0xff]
        %v4457 = vld [vmem:[#allocation5 + $0x168] sm:$0xff]
        %v4458 = vld [vmem:[#allocation5 + $0x170] sm:$0xff]
        %v4459 = vld [vmem:[#allocation5 + $0x178] sm:$0xff]
        %v4460 = vld [vmem:[#allocation5 + $0x180] sm:$0xff]
        %v4461 = vld [vmem:[#allocation5 + $0x188] sm:$0xff]
        %v4462 = vld [vmem:[#allocation5 + $0x190] sm:$0xff]
        %v4463 = vld [vmem:[#allocation5 + $0x198] sm:$0xff]
        %v4464 = vld [vmem:[#allocation5 + $0x1a0] sm:$0xff]
        %v4465 = vld [vmem:[#allocation5 + $0x1a8] sm:$0xff]
        %v4466 = vld [vmem:[#allocation5 + $0x1b0] sm:$0xff]
        %v4467 = vld [vmem:[#allocation5 + $0x1b8] sm:$0xff]
        %v4468 = vld [vmem:[#allocation5 + $0x1c0] sm:$0xff]
        %v4469 = vld [vmem:[#allocation5 + $0x1c8] sm:$0xff]
        %v4470 = vld [vmem:[#allocation5 + $0x1d0] sm:$0xff]
        %v4471 = vld [vmem:[#allocation5 + $0x1d8] sm:$0xff]
        %v4472 = vld [vmem:[#allocation5 + $0x1e0] sm:$0xff]
        %v4473 = vld [vmem:[#allocation5 + $0x1e8] sm:$0xff]
        %v4474 = vld [vmem:[#allocation5 + $0x1f0] sm:$0xff]
        %v4475 = vld [vmem:[#allocation5 + $0x1f8] sm:$0xff]
        %v4476 = vld [vmem:[#allocation7] sm:$0xff]
        %v4477 = vld [vmem:[#allocation7 + $0x8] sm:$0xff]
        %v4478 = vld [vmem:[#allocation7 + $0x10] sm:$0xff]
        %v4479 = vld [vmem:[#allocation7 + $0x18] sm:$0xff]
        %v4480 = vld [vmem:[#allocation7 + $0x20] sm:$0xff]
        %v4481 = vld [vmem:[#allocation7 + $0x28] sm:$0xff]
        %v4482 = vld [vmem:[#allocation7 + $0x30] sm:$0xff]
        %v4483 = vld [vmem:[#allocation7 + $0x38] sm:$0xff]
        %v4484 = vld [vmem:[#allocation7 + $0x40] sm:$0xff]
        %v4485 = vld [vmem:[#allocation7 + $0x48] sm:$0xff]
        %v4486 = vld [vmem:[#allocation7 + $0x50] sm:$0xff]
        %v4487 = vld [vmem:[#allocation7 + $0x58] sm:$0xff]
        %v4488 = vld [vmem:[#allocation7 + $0x60] sm:$0xff]
        %v4489 = vld [vmem:[#allocation7 + $0x68] sm:$0xff]
        %v4490 = vld [vmem:[#allocation7 + $0x70] sm:$0xff]
        %v4491 = vld [vmem:[#allocation7 + $0x78] sm:$0xff]
        %v4492 = vld [vmem:[#allocation7 + $0x80] sm:$0xff]
        %v4493 = vld [vmem:[#allocation7 + $0x88] sm:$0xff]
        %v4494 = vld [vmem:[#allocation7 + $0x90] sm:$0xff]
        %v4495 = vld [vmem:[#allocation7 + $0x98] sm:$0xff]
        %v4496 = vld [vmem:[#allocation7 + $0xa0] sm:$0xff]
        %v4497 = vld [vmem:[#allocation7 + $0xa8] sm:$0xff]
        %v4498 = vld [vmem:[#allocation7 + $0xb0] sm:$0xff]
        %v4499 = vld [vmem:[#allocation7 + $0xb8] sm:$0xff]
        %v4500 = vld [vmem:[#allocation7 + $0xc0] sm:$0xff]
        %v4501 = vld [vmem:[#allocation7 + $0xc8] sm:$0xff]
        %v4502 = vld [vmem:[#allocation7 + $0xd0] sm:$0xff]
        %v4503 = vld [vmem:[#allocation7 + $0xd8] sm:$0xff]
        %v4504 = vld [vmem:[#allocation7 + $0xe0] sm:$0xff]
        %v4505 = vld [vmem:[#allocation7 + $0xe8] sm:$0xff]
        %v4506 = vld [vmem:[#allocation7 + $0xf0] sm:$0xff]
        %v4507 = vld [vmem:[#allocation7 + $0xf8] sm:$0xff]
        %v4508 = vld [vmem:[#allocation7 + $0x100] sm:$0xff]
        %v4509 = vld [vmem:[#allocation7 + $0x108] sm:$0xff]
        %v4510 = vld [vmem:[#allocation7 + $0x110] sm:$0xff]
        %v4511 = vld [vmem:[#allocation7 + $0x118] sm:$0xff]
        %v4512 = vld [vmem:[#allocation7 + $0x120] sm:$0xff]
        %v4513 = vld [vmem:[#allocation7 + $0x128] sm:$0xff]
        %v4514 = vld [vmem:[#allocation7 + $0x130] sm:$0xff]
        %v4515 = vld [vmem:[#allocation7 + $0x138] sm:$0xff]
        %v4516 = vld [vmem:[#allocation7 + $0x140] sm:$0xff]
        %v4517 = vld [vmem:[#allocation7 + $0x148] sm:$0xff]
        %v4518 = vld [vmem:[#allocation7 + $0x150] sm:$0xff]
        %v4519 = vld [vmem:[#allocation7 + $0x158] sm:$0xff]
        %v4520 = vld [vmem:[#allocation7 + $0x160] sm:$0xff]
        %v4521 = vld [vmem:[#allocation7 + $0x168] sm:$0xff]
        %v4522 = vld [vmem:[#allocation7 + $0x170] sm:$0xff]
        %v4523 = vld [vmem:[#allocation7 + $0x178] sm:$0xff]
        %v4524 = vld [vmem:[#allocation7 + $0x180] sm:$0xff]
        %v4525 = vld [vmem:[#allocation7 + $0x188] sm:$0xff]
        %v4526 = vld [vmem:[#allocation7 + $0x190] sm:$0xff]
        %v4527 = vld [vmem:[#allocation7 + $0x198] sm:$0xff]
        %v4528 = vld [vmem:[#allocation7 + $0x1a0] sm:$0xff]
        %v4529 = vld [vmem:[#allocation7 + $0x1a8] sm:$0xff]
        %v4530 = vld [vmem:[#allocation7 + $0x1b0] sm:$0xff]
        %v4531 = vld [vmem:[#allocation7 + $0x1b8] sm:$0xff]
        %v4532 = vld [vmem:[#allocation7 + $0x1c0] sm:$0xff]
        %v4533 = vld [vmem:[#allocation7 + $0x1c8] sm:$0xff]
        %v4534 = vld [vmem:[#allocation7 + $0x1d0] sm:$0xff]
        %v4535 = vld [vmem:[#allocation7 + $0x1d8] sm:$0xff]
        %v4536 = vld [vmem:[#allocation7 + $0x1e0] sm:$0xff]
        %v4537 = vld [vmem:[#allocation7 + $0x1e8] sm:$0xff]
        %v4538 = vld [vmem:[#allocation7 + $0x1f0] sm:$0xff]
        %v4539 = vld [vmem:[#allocation7 + $0x1f8] sm:$0xff]
        %v4540 = vmul.f32 %v3260, %v4412
        %v4541 = vmul.f32 %v3265, %v4413
        %v4542 = vmul.f32 %v3270, %v4414
        %v4543 = vmul.f32 %v3275, %v4415
        %v4544 = vmul.f32 %v3280, %v4416
        %v4545 = vmul.f32 %v3285, %v4417
        %v4546 = vmul.f32 %v3290, %v4418
        %v4547 = vmul.f32 %v3295, %v4419
        %v4548 = vmul.f32 %v3300, %v4420
        %v4549 = vmul.f32 %v3305, %v4421
        %v4550 = vmul.f32 %v3310, %v4422
        %v4551 = vmul.f32 %v3315, %v4423
        %v4552 = vmul.f32 %v3320, %v4424
        %v4553 = vmul.f32 %v3325, %v4425
        %v4554 = vmul.f32 %v3330, %v4426
        %v4555 = vmul.f32 %v3335, %v4427
        %v4556 = vmul.f32 %v3340, %v4428
        %v4557 = vmul.f32 %v3345, %v4429
        %v4558 = vmul.f32 %v3350, %v4430
        %v4559 = vmul.f32 %v3355, %v4431
        %v4560 = vmul.f32 %v3360, %v4432
        %v4561 = vmul.f32 %v3365, %v4433
        %v4562 = vmul.f32 %v3370, %v4434
        %v4563 = vmul.f32 %v3375, %v4435
        %v4564 = vmul.f32 %v3380, %v4436
        %v4565 = vmul.f32 %v3385, %v4437
        %v4566 = vmul.f32 %v3390, %v4438
        %v4567 = vmul.f32 %v3395, %v4439
        %v4568 = vmul.f32 %v3400, %v4440
        %v4569 = vmul.f32 %v3405, %v4441
        %v4570 = vmul.f32 %v3410, %v4442
        %v4571 = vmul.f32 %v3415, %v4443
        %v4572 = vmul.f32 %v3420, %v4444
        %v4573 = vmul.f32 %v3425, %v4445
        %v4574 = vmul.f32 %v3430, %v4446
        %v4575 = vmul.f32 %v3435, %v4447
        %v4576 = vmul.f32 %v3440, %v4448
        %v4577 = vmul.f32 %v3445, %v4449
        %v4578 = vmul.f32 %v3450, %v4450
        %v4579 = vmul.f32 %v3455, %v4451
        %v4580 = vmul.f32 %v3460, %v4452
        %v4581 = vmul.f32 %v3465, %v4453
        %v4582 = vmul.f32 %v3470, %v4454
        %v4583 = vmul.f32 %v3475, %v4455
        %v4584 = vmul.f32 %v3480, %v4456
        %v4585 = vmul.f32 %v3485, %v4457
        %v4586 = vmul.f32 %v3490, %v4458
        %v4587 = vmul.f32 %v3495, %v4459
        %v4588 = vmul.f32 %v3500, %v4460
        %v4589 = vmul.f32 %v3505, %v4461
        %v4590 = vmul.f32 %v3510, %v4462
        %v4591 = vmul.f32 %v3515, %v4463
        %v4592 = vmul.f32 %v3520, %v4464
        %v4593 = vmul.f32 %v3525, %v4465
        %v4594 = vmul.f32 %v3530, %v4466
        %v4595 = vmul.f32 %v3535, %v4467
        %v4596 = vmul.f32 %v3540, %v4468
        %v4597 = vmul.f32 %v3545, %v4469
        %v4598 = vmul.f32 %v3550, %v4470
        %v4599 = vmul.f32 %v3555, %v4471
        %v4600 = vmul.f32 %v3560, %v4472
        %v4601 = vmul.f32 %v3565, %v4473
        %v4602 = vmul.f32 %v3570, %v4474
        %v4603 = vmul.f32 %v3575, %v4475
        %v4604 = vmul.f32 %v4348, %v4476
        %v4605 = vmul.f32 %v4349, %v4477
        %v4606 = vmul.f32 %v4350, %v4478
        %v4607 = vmul.f32 %v4351, %v4479
        %v4608 = vmul.f32 %v4352, %v4480
        %v4609 = vmul.f32 %v4353, %v4481
        %v4610 = vmul.f32 %v4354, %v4482
        %v4611 = vmul.f32 %v4355, %v4483
        %v4612 = vmul.f32 %v4356, %v4484
        %v4613 = vmul.f32 %v4357, %v4485
        %v4614 = vmul.f32 %v4358, %v4486
        %v4615 = vmul.f32 %v4359, %v4487
        %v4616 = vmul.f32 %v4360, %v4488
        %v4617 = vmul.f32 %v4361, %v4489
        %v4618 = vmul.f32 %v4362, %v4490
        %v4619 = vmul.f32 %v4363, %v4491
        %v4620 = vmul.f32 %v4364, %v4492
        %v4621 = vmul.f32 %v4365, %v4493
        %v4622 = vmul.f32 %v4366, %v4494
        %v4623 = vmul.f32 %v4367, %v4495
        %v4624 = vmul.f32 %v4368, %v4496
        %v4625 = vmul.f32 %v4369, %v4497
        %v4626 = vmul.f32 %v4370, %v4498
        %v4627 = vmul.f32 %v4371, %v4499
        %v4628 = vmul.f32 %v4372, %v4500
        %v4629 = vmul.f32 %v4373, %v4501
        %v4630 = vmul.f32 %v4374, %v4502
        %v4631 = vmul.f32 %v4375, %v4503
        %v4632 = vmul.f32 %v4376, %v4504
        %v4633 = vmul.f32 %v4377, %v4505
        %v4634 = vmul.f32 %v4378, %v4506
        %v4635 = vmul.f32 %v4379, %v4507
        %v4636 = vmul.f32 %v4380, %v4508
        %v4637 = vmul.f32 %v4381, %v4509
        %v4638 = vmul.f32 %v4382, %v4510
        %v4639 = vmul.f32 %v4383, %v4511
        %v4640 = vmul.f32 %v4384, %v4512
        %v4641 = vmul.f32 %v4385, %v4513
        %v4642 = vmul.f32 %v4386, %v4514
        %v4643 = vmul.f32 %v4387, %v4515
        %v4644 = vmul.f32 %v4388, %v4516
        %v4645 = vmul.f32 %v4389, %v4517
        %v4646 = vmul.f32 %v4390, %v4518
        %v4647 = vmul.f32 %v4391, %v4519
        %v4648 = vmul.f32 %v4392, %v4520
        %v4649 = vmul.f32 %v4393, %v4521
        %v4650 = vmul.f32 %v4394, %v4522
        %v4651 = vmul.f32 %v4395, %v4523
        %v4652 = vmul.f32 %v4396, %v4524
        %v4653 = vmul.f32 %v4397, %v4525
        %v4654 = vmul.f32 %v4398, %v4526
        %v4655 = vmul.f32 %v4399, %v4527
        %v4656 = vmul.f32 %v4400, %v4528
        %v4657 = vmul.f32 %v4401, %v4529
        %v4658 = vmul.f32 %v4402, %v4530
        %v4659 = vmul.f32 %v4403, %v4531
        %v4660 = vmul.f32 %v4404, %v4532
        %v4661 = vmul.f32 %v4405, %v4533
        %v4662 = vmul.f32 %v4406, %v4534
        %v4663 = vmul.f32 %v4407, %v4535
        %v4664 = vmul.f32 %v4408, %v4536
        %v4665 = vmul.f32 %v4409, %v4537
        %v4666 = vmul.f32 %v4410, %v4538
        %v4667 = vmul.f32 %v4411, %v4539
        %v4668 = vsub.f32 %v4540, %v4604
        %v4669 = vsub.f32 %v4541, %v4605
        %v4670 = vsub.f32 %v4542, %v4606
        %v4671 = vsub.f32 %v4543, %v4607
        %v4672 = vsub.f32 %v4544, %v4608
        %v4673 = vsub.f32 %v4545, %v4609
        %v4674 = vsub.f32 %v4546, %v4610
        %v4675 = vsub.f32 %v4547, %v4611
        %v4676 = vsub.f32 %v4548, %v4612
        %v4677 = vsub.f32 %v4549, %v4613
        %v4678 = vsub.f32 %v4550, %v4614
        %v4679 = vsub.f32 %v4551, %v4615
        %v4680 = vsub.f32 %v4552, %v4616
        %v4681 = vsub.f32 %v4553, %v4617
        %v4682 = vsub.f32 %v4554, %v4618
        %v4683 = vsub.f32 %v4555, %v4619
        %v4684 = vsub.f32 %v4556, %v4620
        %v4685 = vsub.f32 %v4557, %v4621
        %v4686 = vsub.f32 %v4558, %v4622
        %v4687 = vsub.f32 %v4559, %v4623
        %v4688 = vsub.f32 %v4560, %v4624
        %v4689 = vsub.f32 %v4561, %v4625
        %v4690 = vsub.f32 %v4562, %v4626
        %v4691 = vsub.f32 %v4563, %v4627
        %v4692 = vsub.f32 %v4564, %v4628
        %v4693 = vsub.f32 %v4565, %v4629
        %v4694 = vsub.f32 %v4566, %v4630
        %v4695 = vsub.f32 %v4567, %v4631
        %v4696 = vsub.f32 %v4568, %v4632
        %v4697 = vsub.f32 %v4569, %v4633
        %v4698 = vsub.f32 %v4570, %v4634
        %v4699 = vsub.f32 %v4571, %v4635
        %v4700 = vsub.f32 %v4572, %v4636
        %v4701 = vsub.f32 %v4573, %v4637
        %v4702 = vsub.f32 %v4574, %v4638
        %v4703 = vsub.f32 %v4575, %v4639
        %v4704 = vsub.f32 %v4576, %v4640
        %v4705 = vsub.f32 %v4577, %v4641
        %v4706 = vsub.f32 %v4578, %v4642
        %v4707 = vsub.f32 %v4579, %v4643
        %v4708 = vsub.f32 %v4580, %v4644
        %v4709 = vsub.f32 %v4581, %v4645
        %v4710 = vsub.f32 %v4582, %v4646
        %v4711 = vsub.f32 %v4583, %v4647
        %v4712 = vsub.f32 %v4584, %v4648
        %v4713 = vsub.f32 %v4585, %v4649
        %v4714 = vsub.f32 %v4586, %v4650
        %v4715 = vsub.f32 %v4587, %v4651
        %v4716 = vsub.f32 %v4588, %v4652
        %v4717 = vsub.f32 %v4589, %v4653
        %v4718 = vsub.f32 %v4590, %v4654
        %v4719 = vsub.f32 %v4591, %v4655
        %v4720 = vsub.f32 %v4592, %v4656
        %v4721 = vsub.f32 %v4593, %v4657
        %v4722 = vsub.f32 %v4594, %v4658
        %v4723 = vsub.f32 %v4595, %v4659
        %v4724 = vsub.f32 %v4596, %v4660
        %v4725 = vsub.f32 %v4597, %v4661
        %v4726 = vsub.f32 %v4598, %v4662
        %v4727 = vsub.f32 %v4599, %v4663
        %v4728 = vsub.f32 %v4600, %v4664
        %v4729 = vsub.f32 %v4601, %v4665
        %v4730 = vsub.f32 %v4602, %v4666
        %v4731 = vsub.f32 %v4603, %v4667
        %v4732 = vmul.f32 %v3260, %v4476
        %v4733 = vmul.f32 %v3265, %v4477
        %v4734 = vmul.f32 %v3270, %v4478
        %v4735 = vmul.f32 %v3275, %v4479
        %v4736 = vmul.f32 %v3280, %v4480
        %v4737 = vmul.f32 %v3285, %v4481
        %v4738 = vmul.f32 %v3290, %v4482
        %v4739 = vmul.f32 %v3295, %v4483
        %v4740 = vmul.f32 %v3300, %v4484
        %v4741 = vmul.f32 %v3305, %v4485
        %v4742 = vmul.f32 %v3310, %v4486
        %v4743 = vmul.f32 %v3315, %v4487
        %v4744 = vmul.f32 %v3320, %v4488
        %v4745 = vmul.f32 %v3325, %v4489
        %v4746 = vmul.f32 %v3330, %v4490
        %v4747 = vmul.f32 %v3335, %v4491
        %v4748 = vmul.f32 %v3340, %v4492
        %v4749 = vmul.f32 %v3345, %v4493
        %v4750 = vmul.f32 %v3350, %v4494
        %v4751 = vmul.f32 %v3355, %v4495
        %v4752 = vmul.f32 %v3360, %v4496
        %v4753 = vmul.f32 %v3365, %v4497
        %v4754 = vmul.f32 %v3370, %v4498
        %v4755 = vmul.f32 %v3375, %v4499
        %v4756 = vmul.f32 %v3380, %v4500
        %v4757 = vmul.f32 %v3385, %v4501
        %v4758 = vmul.f32 %v3390, %v4502
        %v4759 = vmul.f32 %v3395, %v4503
        %v4760 = vmul.f32 %v3400, %v4504
        %v4761 = vmul.f32 %v3405, %v4505
        %v4762 = vmul.f32 %v3410, %v4506
        %v4763 = vmul.f32 %v3415, %v4507
        %v4764 = vmul.f32 %v3420, %v4508
        %v4765 = vmul.f32 %v3425, %v4509
        %v4766 = vmul.f32 %v3430, %v4510
        %v4767 = vmul.f32 %v3435, %v4511
        %v4768 = vmul.f32 %v3440, %v4512
        %v4769 = vmul.f32 %v3445, %v4513
        %v4770 = vmul.f32 %v3450, %v4514
        %v4771 = vmul.f32 %v3455, %v4515
        %v4772 = vmul.f32 %v3460, %v4516
        %v4773 = vmul.f32 %v3465, %v4517
        %v4774 = vmul.f32 %v3470, %v4518
        %v4775 = vmul.f32 %v3475, %v4519
        %v4776 = vmul.f32 %v3480, %v4520
        %v4777 = vmul.f32 %v3485, %v4521
        %v4778 = vmul.f32 %v3490, %v4522
        %v4779 = vmul.f32 %v3495, %v4523
        %v4780 = vmul.f32 %v3500, %v4524
        %v4781 = vmul.f32 %v3505, %v4525
        %v4782 = vmul.f32 %v3510, %v4526
        %v4783 = vmul.f32 %v3515, %v4527
        %v4784 = vmul.f32 %v3520, %v4528
        %v4785 = vmul.f32 %v3525, %v4529
        %v4786 = vmul.f32 %v3530, %v4530
        %v4787 = vmul.f32 %v3535, %v4531
        %v4788 = vmul.f32 %v3540, %v4532
        %v4789 = vmul.f32 %v3545, %v4533
        %v4790 = vmul.f32 %v3550, %v4534
        %v4791 = vmul.f32 %v3555, %v4535
        %v4792 = vmul.f32 %v3560, %v4536
        %v4793 = vmul.f32 %v3565, %v4537
        %v4794 = vmul.f32 %v3570, %v4538
        %v4795 = vmul.f32 %v3575, %v4539
        %v4796 = vmul.f32 %v4348, %v4412
        %v4797 = vmul.f32 %v4349, %v4413
        %v4798 = vmul.f32 %v4350, %v4414
        %v4799 = vmul.f32 %v4351, %v4415
        %v4800 = vmul.f32 %v4352, %v4416
        %v4801 = vmul.f32 %v4353, %v4417
        %v4802 = vmul.f32 %v4354, %v4418
        %v4803 = vmul.f32 %v4355, %v4419
        %v4804 = vmul.f32 %v4356, %v4420
        %v4805 = vmul.f32 %v4357, %v4421
        %v4806 = vmul.f32 %v4358, %v4422
        %v4807 = vmul.f32 %v4359, %v4423
        %v4808 = vmul.f32 %v4360, %v4424
        %v4809 = vmul.f32 %v4361, %v4425
        %v4810 = vmul.f32 %v4362, %v4426
        %v4811 = vmul.f32 %v4363, %v4427
        %v4812 = vmul.f32 %v4364, %v4428
        %v4813 = vmul.f32 %v4365, %v4429
        %v4814 = vmul.f32 %v4366, %v4430
        %v4815 = vmul.f32 %v4367, %v4431
        %v4816 = vmul.f32 %v4368, %v4432
        %v4817 = vmul.f32 %v4369, %v4433
        %v4818 = vmul.f32 %v4370, %v4434
        %v4819 = vmul.f32 %v4371, %v4435
        %v4820 = vmul.f32 %v4372, %v4436
        %v4821 = vmul.f32 %v4373, %v4437
        %v4822 = vmul.f32 %v4374, %v4438
        %v4823 = vmul.f32 %v4375, %v4439
        %v4824 = vmul.f32 %v4376, %v4440
        %v4825 = vmul.f32 %v4377, %v4441
        %v4826 = vmul.f32 %v4378, %v4442
        %v4827 = vmul.f32 %v4379, %v4443
        %v4828 = vmul.f32 %v4380, %v4444
        %v4829 = vmul.f32 %v4381, %v4445
        %v4830 = vmul.f32 %v4382, %v4446
        %v4831 = vmul.f32 %v4383, %v4447
        %v4832 = vmul.f32 %v4384, %v4448
        %v4833 = vmul.f32 %v4385, %v4449
        %v4834 = vmul.f32 %v4386, %v4450
        %v4835 = vmul.f32 %v4387, %v4451
        %v4836 = vmul.f32 %v4388, %v4452
        %v4837 = vmul.f32 %v4389, %v4453
        %v4838 = vmul.f32 %v4390, %v4454
        %v4839 = vmul.f32 %v4391, %v4455
        %v4840 = vmul.f32 %v4392, %v4456
        %v4841 = vmul.f32 %v4393, %v4457
        %v4842 = vmul.f32 %v4394, %v4458
        %v4843 = vmul.f32 %v4395, %v4459
        %v4844 = vmul.f32 %v4396, %v4460
        %v4845 = vmul.f32 %v4397, %v4461
        %v4846 = vmul.f32 %v4398, %v4462
        %v4847 = vmul.f32 %v4399, %v4463
        %v4848 = vmul.f32 %v4400, %v4464
        %v4849 = vmul.f32 %v4401, %v4465
        %v4850 = vmul.f32 %v4402, %v4466
        %v4851 = vmul.f32 %v4403, %v4467
        %v4852 = vmul.f32 %v4404, %v4468
        %v4853 = vmul.f32 %v4405, %v4469
        %v4854 = vmul.f32 %v4406, %v4470
        %v4855 = vmul.f32 %v4407, %v4471
        %v4856 = vmul.f32 %v4408, %v4472
        %v4857 = vmul.f32 %v4409, %v4473
        %v4858 = vmul.f32 %v4410, %v4474
        %v4859 = vmul.f32 %v4411, %v4475
        %v4860 = vadd.f32 %v4732, %v4796
        %v4861 = vadd.f32 %v4733, %v4797
        %v4862 = vadd.f32 %v4734, %v4798
        %v4863 = vadd.f32 %v4735, %v4799
        %v4864 = vadd.f32 %v4736, %v4800
        %v4865 = vadd.f32 %v4737, %v4801
        %v4866 = vadd.f32 %v4738, %v4802
        %v4867 = vadd.f32 %v4739, %v4803
        %v4868 = vadd.f32 %v4740, %v4804
        %v4869 = vadd.f32 %v4741, %v4805
        %v4870 = vadd.f32 %v4742, %v4806
        %v4871 = vadd.f32 %v4743, %v4807
        %v4872 = vadd.f32 %v4744, %v4808
        %v4873 = vadd.f32 %v4745, %v4809
        %v4874 = vadd.f32 %v4746, %v4810
        %v4875 = vadd.f32 %v4747, %v4811
        %v4876 = vadd.f32 %v4748, %v4812
        %v4877 = vadd.f32 %v4749, %v4813
        %v4878 = vadd.f32 %v4750, %v4814
        %v4879 = vadd.f32 %v4751, %v4815
        %v4880 = vadd.f32 %v4752, %v4816
        %v4881 = vadd.f32 %v4753, %v4817
        %v4882 = vadd.f32 %v4754, %v4818
        %v4883 = vadd.f32 %v4755, %v4819
        %v4884 = vadd.f32 %v4756, %v4820
        %v4885 = vadd.f32 %v4757, %v4821
        %v4886 = vadd.f32 %v4758, %v4822
        %v4887 = vadd.f32 %v4759, %v4823
        %v4888 = vadd.f32 %v4760, %v4824
        %v4889 = vadd.f32 %v4761, %v4825
        %v4890 = vadd.f32 %v4762, %v4826
        %v4891 = vadd.f32 %v4763, %v4827
        %v4892 = vadd.f32 %v4764, %v4828
        %v4893 = vadd.f32 %v4765, %v4829
        %v4894 = vadd.f32 %v4766, %v4830
        %v4895 = vadd.f32 %v4767, %v4831
        %v4896 = vadd.f32 %v4768, %v4832
        %v4897 = vadd.f32 %v4769, %v4833
        %v4898 = vadd.f32 %v4770, %v4834
        %v4899 = vadd.f32 %v4771, %v4835
        %v4900 = vadd.f32 %v4772, %v4836
        %v4901 = vadd.f32 %v4773, %v4837
        %v4902 = vadd.f32 %v4774, %v4838
        %v4903 = vadd.f32 %v4775, %v4839
        %v4904 = vadd.f32 %v4776, %v4840
        %v4905 = vadd.f32 %v4777, %v4841
        %v4906 = vadd.f32 %v4778, %v4842
        %v4907 = vadd.f32 %v4779, %v4843
        %v4908 = vadd.f32 %v4780, %v4844
        %v4909 = vadd.f32 %v4781, %v4845
        %v4910 = vadd.f32 %v4782, %v4846
        %v4911 = vadd.f32 %v4783, %v4847
        %v4912 = vadd.f32 %v4784, %v4848
        %v4913 = vadd.f32 %v4785, %v4849
        %v4914 = vadd.f32 %v4786, %v4850
        %v4915 = vadd.f32 %v4787, %v4851
        %v4916 = vadd.f32 %v4788, %v4852
        %v4917 = vadd.f32 %v4789, %v4853
        %v4918 = vadd.f32 %v4790, %v4854
        %v4919 = vadd.f32 %v4791, %v4855
        %v4920 = vadd.f32 %v4792, %v4856
        %v4921 = vadd.f32 %v4793, %v4857
        %v4922 = vadd.f32 %v4794, %v4858
        %v4923 = vadd.f32 %v4795, %v4859
        %v4925 = vsel %vm373, %v4668, 0
        %v4928 = vsel %vm373, %v4669, 0
        %v4931 = vsel %vm373, %v4670, 0
        %v4934 = vsel %vm373, %v4671, 0
        %v4937 = vsel %vm373, %v4672, 0
        %v4940 = vsel %vm373, %v4673, 0
        %v4943 = vsel %vm373, %v4674, 0
        %v4946 = vsel %vm373, %v4675, 0
        %v4949 = vsel %vm373, %v4676, 0
        %v4952 = vsel %vm373, %v4677, 0
        %v4955 = vsel %vm373, %v4678, 0
        %v4958 = vsel %vm373, %v4679, 0
        %v4961 = vsel %vm373, %v4680, 0
        %v4964 = vsel %vm373, %v4681, 0
        %v4967 = vsel %vm373, %v4682, 0
        %v4970 = vsel %vm373, %v4683, 0
        %v4973 = vsel %vm373, %v4684, 0
        %v4976 = vsel %vm373, %v4685, 0
        %v4979 = vsel %vm373, %v4686, 0
        %v4982 = vsel %vm373, %v4687, 0
        %v4985 = vsel %vm373, %v4688, 0
        %v4988 = vsel %vm373, %v4689, 0
        %v4991 = vsel %vm373, %v4690, 0
        %v4994 = vsel %vm373, %v4691, 0
        %v4997 = vsel %vm373, %v4692, 0
        %v5000 = vsel %vm373, %v4693, 0
        %v5003 = vsel %vm373, %v4694, 0
        %v5006 = vsel %vm373, %v4695, 0
        %v5009 = vsel %vm373, %v4696, 0
        %v5012 = vsel %vm373, %v4697, 0
        %v5015 = vsel %vm373, %v4698, 0
        %v5018 = vsel %vm373, %v4699, 0
        %v5021 = vsel %vm373, %v4700, 0
        %v5024 = vsel %vm373, %v4701, 0
        %v5027 = vsel %vm373, %v4702, 0
        %v5030 = vsel %vm373, %v4703, 0
        %v5033 = vsel %vm373, %v4704, 0
        %v5036 = vsel %vm373, %v4705, 0
        %v5039 = vsel %vm373, %v4706, 0
        %v5042 = vsel %vm373, %v4707, 0
        %v5045 = vsel %vm373, %v4708, 0
        %v5048 = vsel %vm373, %v4709, 0
        %v5051 = vsel %vm373, %v4710, 0
        %v5054 = vsel %vm373, %v4711, 0
        %v5057 = vsel %vm373, %v4712, 0
        %v5060 = vsel %vm373, %v4713, 0
        %v5063 = vsel %vm373, %v4714, 0
        %v5066 = vsel %vm373, %v4715, 0
        %v5069 = vsel %vm373, %v4716, 0
        %v5072 = vsel %vm373, %v4717, 0
        %v5075 = vsel %vm373, %v4718, 0
        %v5078 = vsel %vm373, %v4719, 0
        %v5081 = vsel %vm373, %v4720, 0
        %v5084 = vsel %vm373, %v4721, 0
        %v5087 = vsel %vm373, %v4722, 0
        %v5090 = vsel %vm373, %v4723, 0
        %v5093 = vsel %vm373, %v4724, 0
        %v5096 = vsel %vm373, %v4725, 0
        %v5099 = vsel %vm373, %v4726, 0
        %v5102 = vsel %vm373, %v4727, 0
        %v5105 = vsel %vm373, %v4728, 0
        %v5108 = vsel %vm373, %v4729, 0
        %v5111 = vsel %vm373, %v4730, 0
        %v5114 = vsel %vm373, %v4731, 0
        %5116 = vmatprep.subr.mxu0 0.0
        %5117 = vmatpush1.msra.mxu0 %v365
        %5118 = vmatprep.subr.mxu0 0.0
        %5119 = vmatpush1.msra.mxu0 %v366
        %5120 = vmatprep.subr.mxu0 0.0
        %5121 = vmatpush1.msra.mxu0 %v367
        %5122 = vmatprep.subr.mxu0 0.0
        %5123 = vmatpush1.msra.mxu0 %v368
        %5124 = vmatprep.subr.mxu0 0.0
        %5125 = vmatpush1.msra.mxu0 0.0
        %5126 = vmatprep.subr.mxu0 0.0
        %5127 = vmatpush1.msra.mxu0 0.0
        %5128 = vmatprep.subr.mxu0 0.0
        %5129 = vmatpush1.msra.mxu0 0.0
        %5130 = vmatprep.subr.mxu0 0.0
        %5131 = vmatpush1.msra.mxu0 0.0
        %5132 = vmatprep.subr.mxu0 0.0
        %5133 = vmatpush1.msra.mxu0 0.0
        %5134 = vmatprep.subr.mxu0 0.0
        %5135 = vmatpush1.msra.mxu0 0.0
        %5136 = vmatprep.subr.mxu0 0.0
        %5137 = vmatpush1.msra.mxu0 0.0
        %5138 = vmatprep.subr.mxu0 0.0
        %5139 = vmatpush1.msra.mxu0 0.0
        %5140 = vmatprep.subr.mxu0 0.0
        %5141 = vmatpush1.msra.mxu0 0.0
        %5142 = vmatprep.subr.mxu0 0.0
        %5143 = vmatpush1.msra.mxu0 0.0
        %5144 = vmatprep.subr.mxu0 0.0
        %5145 = vmatpush1.msra.mxu0 0.0
        %5146 = vmatprep.subr.mxu0 0.0
        %5147 = vmatpush1.msra.mxu0 0.0
        %5148 = vmatprep.subr.mxu0 0.0
        %5149 = vmatpush1.msra.mxu0 0.0
        %5150 = vmatprep.subr.mxu0 0.0
        %5151 = vmatpush1.msra.mxu0 0.0
        %5152 = vmatprep.subr.mxu0 0.0
        %5153 = vmatpush1.msra.mxu0 0.0
        %5154 = vmatprep.subr.mxu0 0.0
        %5155 = vmatpush1.msra.mxu0 0.0
        %5156 = vmatprep.subr.mxu0 0.0
        %5157 = vmatpush1.msra.mxu0 0.0
        %5158 = vmatprep.subr.mxu0 0.0
        %5159 = vmatpush1.msra.mxu0 0.0
        %5160 = vmatprep.subr.mxu0 0.0
        %5161 = vmatpush1.msra.mxu0 0.0
        %5162 = vmatprep.subr.mxu0 0.0
        %5163 = vmatpush1.msra.mxu0 0.0
        %5164 = vmatprep.subr.mxu0 0.0
        %5165 = vmatpush1.msra.mxu0 0.0
        %5166 = vmatprep.subr.mxu0 0.0
        %5167 = vmatpush1.msra.mxu0 0.0
        %5168 = vmatprep.subr.mxu0 0.0
        %5169 = vmatpush1.msra.mxu0 0.0
        %5170 = vmatprep.subr.mxu0 0.0
        %5171 = vmatpush1.msra.mxu0 0.0
        %5172 = vmatprep.subr.mxu0 0.0
        %5173 = vmatpush1.msra.mxu0 0.0
        %5174 = vmatprep.subr.mxu0 0.0
        %5175 = vmatpush1.msra.mxu0 0.0
        %5176 = vmatprep.subr.mxu0 0.0
        %5177 = vmatpush1.msra.mxu0 0.0
        %5178 = vmatprep.subr.mxu0 0.0
        %5179 = vmatpush1.msra.mxu0 0.0
        %5180 = vmatprep.mubr.f32.mxu0 0.0
        %5181 = vmatmul.mubr.f32.gmra.mrb[0].mxu0 %v4925
        %v5182 = vpop.f32.mrb[0].mxu0
        %v5183 = vadd.f32 0.0, %v5182
        %v5184 = vpop.f32.mrb[0].mxu0
        %5185 = vmatprep.mubr.f32.mxu0 0.0
        %5186 = vmatmul.mubr.f32.gmra.mrb[0].mxu0 %v4928
        %v5187 = vpop.f32.mrb[0].mxu0
        %v5188 = vadd.f32 0.0, %v5187
        %v5189 = vpop.f32.mrb[0].mxu0
        %5190 = vmatprep.mubr.f32.mxu0 0.0
        %5191 = vmatmul.mubr.f32.gmra.mrb[0].mxu0 %v4931
        %v5192 = vpop.f32.mrb[0].mxu0
        %v5193 = vadd.f32 0.0, %v5192
        %v5194 = vpop.f32.mrb[0].mxu0
        %5195 = vmatprep.mubr.f32.mxu0 0.0
        %5196 = vmatmul.mubr.f32.gmra.mrb[0].mxu0 %v4934
        %v5197 = vpop.f32.mrb[0].mxu0
        %v5198 = vadd.f32 0.0, %v5197
        %v5199 = vpop.f32.mrb[0].mxu0
        %5200 = vmatprep.mubr.f32.mxu0 0.0
        %5201 = vmatmul.mubr.f32.gmra.mrb[0].mxu0 %v4937
        %v5202 = vpop.f32.mrb[0].mxu0
        %v5203 = vadd.f32 0.0, %v5202
        %v5204 = vpop.f32.mrb[0].mxu0
        %5205 = vmatprep.mubr.f32.mxu0 0.0
        %5206 = vmatmul.mubr.f32.gmra.mrb[0].mxu0 %v4940
        %v5207 = vpop.f32.mrb[0].mxu0
        %v5208 = vadd.f32 0.0, %v5207
        %v5209 = vpop.f32.mrb[0].mxu0
        %5210 = vmatprep.mubr.f32.mxu0 0.0
        %5211 = vmatmul.mubr.f32.gmra.mrb[0].mxu0 %v4943
        %v5212 = vpop.f32.mrb[0].mxu0
        %v5213 = vadd.f32 0.0, %v5212
        %v5214 = vpop.f32.mrb[0].mxu0
        %5215 = vmatprep.mubr.f32.mxu0 0.0
        %5216 = vmatmul.mubr.f32.gmra.mrb[0].mxu0 %v4946
        %v5217 = vpop.f32.mrb[0].mxu0
        %v5218 = vadd.f32 0.0, %v5217
        %v5219 = vpop.f32.mrb[0].mxu0
        %5220 = vmatprep.mubr.f32.mxu0 0.0
        %5221 = vmatmul.mubr.f32.gmra.mrb[0].mxu0 %v4949
        %v5222 = vpop.f32.mrb[0].mxu0
        %v5223 = vadd.f32 0.0, %v5222
        %v5224 = vpop.f32.mrb[0].mxu0
        %5225 = vmatprep.mubr.f32.mxu0 0.0
        %5226 = vmatmul.mubr.f32.gmra.mrb[0].mxu0 %v4952
        %v5227 = vpop.f32.mrb[0].mxu0
        %v5228 = vadd.f32 0.0, %v5227
        %v5229 = vpop.f32.mrb[0].mxu0
        %5230 = vmatprep.mubr.f32.mxu0 0.0
        %5231 = vmatmul.mubr.f32.gmra.mrb[0].mxu0 %v4955
        %v5232 = vpop.f32.mrb[0].mxu0
        %v5233 = vadd.f32 0.0, %v5232
        %v5234 = vpop.f32.mrb[0].mxu0
        %5235 = vmatprep.mubr.f32.mxu0 0.0
        %5236 = vmatmul.mubr.f32.gmra.mrb[0].mxu0 %v4958
        %v5237 = vpop.f32.mrb[0].mxu0
        %v5238 = vadd.f32 0.0, %v5237
        %v5239 = vpop.f32.mrb[0].mxu0
        %5240 = vmatprep.mubr.f32.mxu0 0.0
        %5241 = vmatmul.mubr.f32.gmra.mrb[0].mxu0 %v4961
        %v5242 = vpop.f32.mrb[0].mxu0
        %v5243 = vadd.f32 0.0, %v5242
        %v5244 = vpop.f32.mrb[0].mxu0
        %5245 = vmatprep.mubr.f32.mxu0 0.0
        %5246 = vmatmul.mubr.f32.gmra.mrb[0].mxu0 %v4964
        %v5247 = vpop.f32.mrb[0].mxu0
        %v5248 = vadd.f32 0.0, %v5247
        %v5249 = vpop.f32.mrb[0].mxu0
        %5250 = vmatprep.mubr.f32.mxu0 0.0
        %5251 = vmatmul.mubr.f32.gmra.mrb[0].mxu0 %v4967
        %v5252 = vpop.f32.mrb[0].mxu0
        %v5253 = vadd.f32 0.0, %v5252
        %v5254 = vpop.f32.mrb[0].mxu0
        %5255 = vmatprep.mubr.f32.mxu0 0.0
        %5256 = vmatmul.mubr.f32.gmra.mrb[0].mxu0 %v4970
        %v5257 = vpop.f32.mrb[0].mxu0
        %v5258 = vadd.f32 0.0, %v5257
        %v5259 = vpop.f32.mrb[0].mxu0
        %5260 = vmatprep.mubr.f32.mxu0 0.0
        %5261 = vmatmul.mubr.f32.gmra.mrb[0].mxu0 %v4973
        %v5262 = vpop.f32.mrb[0].mxu0
        %v5263 = vadd.f32 0.0, %v5262
        %v5264 = vpop.f32.mrb[0].mxu0
        %5265 = vmatprep.mubr.f32.mxu0 0.0
        %5266 = vmatmul.mubr.f32.gmra.mrb[0].mxu0 %v4976
        %v5267 = vpop.f32.mrb[0].mxu0
        %v5268 = vadd.f32 0.0, %v5267
        %v5269 = vpop.f32.mrb[0].mxu0
        %5270 = vmatprep.mubr.f32.mxu0 0.0
        %5271 = vmatmul.mubr.f32.gmra.mrb[0].mxu0 %v4979
        %v5272 = vpop.f32.mrb[0].mxu0
        %v5273 = vadd.f32 0.0, %v5272
        %v5274 = vpop.f32.mrb[0].mxu0
        %5275 = vmatprep.mubr.f32.mxu0 0.0
        %5276 = vmatmul.mubr.f32.gmra.mrb[0].mxu0 %v4982
        %v5277 = vpop.f32.mrb[0].mxu0
        %v5278 = vadd.f32 0.0, %v5277
        %v5279 = vpop.f32.mrb[0].mxu0
        %5280 = vmatprep.mubr.f32.mxu0 0.0
        %5281 = vmatmul.mubr.f32.gmra.mrb[0].mxu0 %v4985
        %v5282 = vpop.f32.mrb[0].mxu0
        %v5283 = vadd.f32 0.0, %v5282
        %v5284 = vpop.f32.mrb[0].mxu0
        %5285 = vmatprep.mubr.f32.mxu0 0.0
        %5286 = vmatmul.mubr.f32.gmra.mrb[0].mxu0 %v4988
        %v5287 = vpop.f32.mrb[0].mxu0
        %v5288 = vadd.f32 0.0, %v5287
        %v5289 = vpop.f32.mrb[0].mxu0
        %5290 = vmatprep.mubr.f32.mxu0 0.0
        %5291 = vmatmul.mubr.f32.gmra.mrb[0].mxu0 %v4991
        %v5292 = vpop.f32.mrb[0].mxu0
        %v5293 = vadd.f32 0.0, %v5292
        %v5294 = vpop.f32.mrb[0].mxu0
        %5295 = vmatprep.mubr.f32.mxu0 0.0
        %5296 = vmatmul.mubr.f32.gmra.mrb[0].mxu0 %v4994
        %v5297 = vpop.f32.mrb[0].mxu0
        %v5298 = vadd.f32 0.0, %v5297
        %v5299 = vpop.f32.mrb[0].mxu0
        %5300 = vmatprep.mubr.f32.mxu0 0.0
        %5301 = vmatmul.mubr.f32.gmra.mrb[0].mxu0 %v4997
        %v5302 = vpop.f32.mrb[0].mxu0
        %v5303 = vadd.f32 0.0, %v5302
        %v5304 = vpop.f32.mrb[0].mxu0
        %5305 = vmatprep.mubr.f32.mxu0 0.0
        %5306 = vmatmul.mubr.f32.gmra.mrb[0].mxu0 %v5000
        %v5307 = vpop.f32.mrb[0].mxu0
        %v5308 = vadd.f32 0.0, %v5307
        %v5309 = vpop.f32.mrb[0].mxu0
        %5310 = vmatprep.mubr.f32.mxu0 0.0
        %5311 = vmatmul.mubr.f32.gmra.mrb[0].mxu0 %v5003
        %v5312 = vpop.f32.mrb[0].mxu0
        %v5313 = vadd.f32 0.0, %v5312
        %v5314 = vpop.f32.mrb[0].mxu0
        %5315 = vmatprep.mubr.f32.mxu0 0.0
        %5316 = vmatmul.mubr.f32.gmra.mrb[0].mxu0 %v5006
        %v5317 = vpop.f32.mrb[0].mxu0
        %v5318 = vadd.f32 0.0, %v5317
        %v5319 = vpop.f32.mrb[0].mxu0
        %5320 = vmatprep.mubr.f32.mxu0 0.0
        %5321 = vmatmul.mubr.f32.gmra.mrb[0].mxu0 %v5009
        %v5322 = vpop.f32.mrb[0].mxu0
        %v5323 = vadd.f32 0.0, %v5322
        %v5324 = vpop.f32.mrb[0].mxu0
        %5325 = vmatprep.mubr.f32.mxu0 0.0
        %5326 = vmatmul.mubr.f32.gmra.mrb[0].mxu0 %v5012
        %v5327 = vpop.f32.mrb[0].mxu0
        %v5328 = vadd.f32 0.0, %v5327
        %v5329 = vpop.f32.mrb[0].mxu0
        %5330 = vmatprep.mubr.f32.mxu0 0.0
        %5331 = vmatmul.mubr.f32.gmra.mrb[0].mxu0 %v5015
        %v5332 = vpop.f32.mrb[0].mxu0
        %v5333 = vadd.f32 0.0, %v5332
        %v5334 = vpop.f32.mrb[0].mxu0
        %5335 = vmatprep.mubr.f32.mxu0 0.0
        %5336 = vmatmul.mubr.f32.gmra.mrb[0].mxu0 %v5018
        %v5337 = vpop.f32.mrb[0].mxu0
        %v5338 = vadd.f32 0.0, %v5337
        %v5339 = vpop.f32.mrb[0].mxu0
        %5340 = vmatprep.mubr.f32.mxu0 0.0
        %5341 = vmatmul.mubr.f32.gmra.mrb[0].mxu0 %v5021
        %v5342 = vpop.f32.mrb[0].mxu0
        %v5343 = vadd.f32 0.0, %v5342
        %v5344 = vpop.f32.mrb[0].mxu0
        %5345 = vmatprep.mubr.f32.mxu0 0.0
        %5346 = vmatmul.mubr.f32.gmra.mrb[0].mxu0 %v5024
        %v5347 = vpop.f32.mrb[0].mxu0
        %v5348 = vadd.f32 0.0, %v5347
        %v5349 = vpop.f32.mrb[0].mxu0
        %5350 = vmatprep.mubr.f32.mxu0 0.0
        %5351 = vmatmul.mubr.f32.gmra.mrb[0].mxu0 %v5027
        %v5352 = vpop.f32.mrb[0].mxu0
        %v5353 = vadd.f32 0.0, %v5352
        %v5354 = vpop.f32.mrb[0].mxu0
        %5355 = vmatprep.mubr.f32.mxu0 0.0
        %5356 = vmatmul.mubr.f32.gmra.mrb[0].mxu0 %v5030
        %v5357 = vpop.f32.mrb[0].mxu0
        %v5358 = vadd.f32 0.0, %v5357
        %v5359 = vpop.f32.mrb[0].mxu0
        %5360 = vmatprep.mubr.f32.mxu0 0.0
        %5361 = vmatmul.mubr.f32.gmra.mrb[0].mxu0 %v5033
        %v5362 = vpop.f32.mrb[0].mxu0
        %v5363 = vadd.f32 0.0, %v5362
        %v5364 = vpop.f32.mrb[0].mxu0
        %5365 = vmatprep.mubr.f32.mxu0 0.0
        %5366 = vmatmul.mubr.f32.gmra.mrb[0].mxu0 %v5036
        %v5367 = vpop.f32.mrb[0].mxu0
        %v5368 = vadd.f32 0.0, %v5367
        %v5369 = vpop.f32.mrb[0].mxu0
        %5370 = vmatprep.mubr.f32.mxu0 0.0
        %5371 = vmatmul.mubr.f32.gmra.mrb[0].mxu0 %v5039
        %v5372 = vpop.f32.mrb[0].mxu0
        %v5373 = vadd.f32 0.0, %v5372
        %v5374 = vpop.f32.mrb[0].mxu0
        %5375 = vmatprep.mubr.f32.mxu0 0.0
        %5376 = vmatmul.mubr.f32.gmra.mrb[0].mxu0 %v5042
        %v5377 = vpop.f32.mrb[0].mxu0
        %v5378 = vadd.f32 0.0, %v5377
        %v5379 = vpop.f32.mrb[0].mxu0
        %5380 = vmatprep.mubr.f32.mxu0 0.0
        %5381 = vmatmul.mubr.f32.gmra.mrb[0].mxu0 %v5045
        %v5382 = vpop.f32.mrb[0].mxu0
        %v5383 = vadd.f32 0.0, %v5382
        %v5384 = vpop.f32.mrb[0].mxu0
        %5385 = vmatprep.mubr.f32.mxu0 0.0
        %5386 = vmatmul.mubr.f32.gmra.mrb[0].mxu0 %v5048
        %v5387 = vpop.f32.mrb[0].mxu0
        %v5388 = vadd.f32 0.0, %v5387
        %v5389 = vpop.f32.mrb[0].mxu0
        %5390 = vmatprep.mubr.f32.mxu0 0.0
        %5391 = vmatmul.mubr.f32.gmra.mrb[0].mxu0 %v5051
        %v5392 = vpop.f32.mrb[0].mxu0
        %v5393 = vadd.f32 0.0, %v5392
        %v5394 = vpop.f32.mrb[0].mxu0
        %5395 = vmatprep.mubr.f32.mxu0 0.0
        %5396 = vmatmul.mubr.f32.gmra.mrb[0].mxu0 %v5054
        %v5397 = vpop.f32.mrb[0].mxu0
        %v5398 = vadd.f32 0.0, %v5397
        %v5399 = vpop.f32.mrb[0].mxu0
        %5400 = vmatprep.mubr.f32.mxu0 0.0
        %5401 = vmatmul.mubr.f32.gmra.mrb[0].mxu0 %v5057
        %v5402 = vpop.f32.mrb[0].mxu0
        %v5403 = vadd.f32 0.0, %v5402
        %v5404 = vpop.f32.mrb[0].mxu0
        %5405 = vmatprep.mubr.f32.mxu0 0.0
        %5406 = vmatmul.mubr.f32.gmra.mrb[0].mxu0 %v5060
        %v5407 = vpop.f32.mrb[0].mxu0
        %v5408 = vadd.f32 0.0, %v5407
        %v5409 = vpop.f32.mrb[0].mxu0
        %5410 = vmatprep.mubr.f32.mxu0 0.0
        %5411 = vmatmul.mubr.f32.gmra.mrb[0].mxu0 %v5063
        %v5412 = vpop.f32.mrb[0].mxu0
        %v5413 = vadd.f32 0.0, %v5412
        %v5414 = vpop.f32.mrb[0].mxu0
        %5415 = vmatprep.mubr.f32.mxu0 0.0
        %5416 = vmatmul.mubr.f32.gmra.mrb[0].mxu0 %v5066
        %v5417 = vpop.f32.mrb[0].mxu0
        %v5418 = vadd.f32 0.0, %v5417
        %v5419 = vpop.f32.mrb[0].mxu0
        %5420 = vmatprep.mubr.f32.mxu0 0.0
        %5421 = vmatmul.mubr.f32.gmra.mrb[0].mxu0 %v5069
        %v5422 = vpop.f32.mrb[0].mxu0
        %v5423 = vadd.f32 0.0, %v5422
        %v5424 = vpop.f32.mrb[0].mxu0
        %5425 = vmatprep.mubr.f32.mxu0 0.0
        %5426 = vmatmul.mubr.f32.gmra.mrb[0].mxu0 %v5072
        %v5427 = vpop.f32.mrb[0].mxu0
        %v5428 = vadd.f32 0.0, %v5427
        %v5429 = vpop.f32.mrb[0].mxu0
        %5430 = vmatprep.mubr.f32.mxu0 0.0
        %5431 = vmatmul.mubr.f32.gmra.mrb[0].mxu0 %v5075
        %v5432 = vpop.f32.mrb[0].mxu0
        %v5433 = vadd.f32 0.0, %v5432
        %v5434 = vpop.f32.mrb[0].mxu0
        %5435 = vmatprep.mubr.f32.mxu0 0.0
        %5436 = vmatmul.mubr.f32.gmra.mrb[0].mxu0 %v5078
        %v5437 = vpop.f32.mrb[0].mxu0
        %v5438 = vadd.f32 0.0, %v5437
        %v5439 = vpop.f32.mrb[0].mxu0
        %5440 = vmatprep.mubr.f32.mxu0 0.0
        %5441 = vmatmul.mubr.f32.gmra.mrb[0].mxu0 %v5081
        %v5442 = vpop.f32.mrb[0].mxu0
        %v5443 = vadd.f32 0.0, %v5442
        %v5444 = vpop.f32.mrb[0].mxu0
        %5445 = vmatprep.mubr.f32.mxu0 0.0
        %5446 = vmatmul.mubr.f32.gmra.mrb[0].mxu0 %v5084
        %v5447 = vpop.f32.mrb[0].mxu0
        %v5448 = vadd.f32 0.0, %v5447
        %v5449 = vpop.f32.mrb[0].mxu0
        %5450 = vmatprep.mubr.f32.mxu0 0.0
        %5451 = vmatmul.mubr.f32.gmra.mrb[0].mxu0 %v5087
        %v5452 = vpop.f32.mrb[0].mxu0
        %v5453 = vadd.f32 0.0, %v5452
        %v5454 = vpop.f32.mrb[0].mxu0
        %5455 = vmatprep.mubr.f32.mxu0 0.0
        %5456 = vmatmul.mubr.f32.gmra.mrb[0].mxu0 %v5090
        %v5457 = vpop.f32.mrb[0].mxu0
        %v5458 = vadd.f32 0.0, %v5457
        %v5459 = vpop.f32.mrb[0].mxu0
        %5460 = vmatprep.mubr.f32.mxu0 0.0
        %5461 = vmatmul.mubr.f32.gmra.mrb[0].mxu0 %v5093
        %v5462 = vpop.f32.mrb[0].mxu0
        %v5463 = vadd.f32 0.0, %v5462
        %v5464 = vpop.f32.mrb[0].mxu0
        %5465 = vmatprep.mubr.f32.mxu0 0.0
        %5466 = vmatmul.mubr.f32.gmra.mrb[0].mxu0 %v5096
        %v5467 = vpop.f32.mrb[0].mxu0
        %v5468 = vadd.f32 0.0, %v5467
        %v5469 = vpop.f32.mrb[0].mxu0
        %5470 = vmatprep.mubr.f32.mxu0 0.0
        %5471 = vmatmul.mubr.f32.gmra.mrb[0].mxu0 %v5099
        %v5472 = vpop.f32.mrb[0].mxu0
        %v5473 = vadd.f32 0.0, %v5472
        %v5474 = vpop.f32.mrb[0].mxu0
        %5475 = vmatprep.mubr.f32.mxu0 0.0
        %5476 = vmatmul.mubr.f32.gmra.mrb[0].mxu0 %v5102
        %v5477 = vpop.f32.mrb[0].mxu0
        %v5478 = vadd.f32 0.0, %v5477
        %v5479 = vpop.f32.mrb[0].mxu0
        %5480 = vmatprep.mubr.f32.mxu0 0.0
        %5481 = vmatmul.mubr.f32.gmra.mrb[0].mxu0 %v5105
        %v5482 = vpop.f32.mrb[0].mxu0
        %v5483 = vadd.f32 0.0, %v5482
        %v5484 = vpop.f32.mrb[0].mxu0
        %5485 = vmatprep.mubr.f32.mxu0 0.0
        %5486 = vmatmul.mubr.f32.gmra.mrb[0].mxu0 %v5108
        %v5487 = vpop.f32.mrb[0].mxu0
        %v5488 = vadd.f32 0.0, %v5487
        %v5489 = vpop.f32.mrb[0].mxu0
        %5490 = vmatprep.mubr.f32.mxu0 0.0
        %5491 = vmatmul.mubr.f32.gmra.mrb[0].mxu0 %v5111
        %v5492 = vpop.f32.mrb[0].mxu0
        %v5493 = vadd.f32 0.0, %v5492
        %v5494 = vpop.f32.mrb[0].mxu0
        %5495 = vmatprep.mubr.f32.mxu0 0.0
        %5496 = vmatmul.mubr.f32.gmra.mrb[0].mxu0 %v5114
        %v5497 = vpop.f32.mrb[0].mxu0
        %v5498 = vadd.f32 0.0, %v5497
        %v5499 = vpop.f32.mrb[0].mxu0
        %5500 = vdwg.mxu0
        %v5502 = vsel %vm373, %v4860, 0
        %v5505 = vsel %vm373, %v4861, 0
        %v5508 = vsel %vm373, %v4862, 0
        %v5511 = vsel %vm373, %v4863, 0
        %v5514 = vsel %vm373, %v4864, 0
        %v5517 = vsel %vm373, %v4865, 0
        %v5520 = vsel %vm373, %v4866, 0
        %v5523 = vsel %vm373, %v4867, 0
        %v5526 = vsel %vm373, %v4868, 0
        %v5529 = vsel %vm373, %v4869, 0
        %v5532 = vsel %vm373, %v4870, 0
        %v5535 = vsel %vm373, %v4871, 0
        %v5538 = vsel %vm373, %v4872, 0
        %v5541 = vsel %vm373, %v4873, 0
        %v5544 = vsel %vm373, %v4874, 0
        %v5547 = vsel %vm373, %v4875, 0
        %v5550 = vsel %vm373, %v4876, 0
        %v5553 = vsel %vm373, %v4877, 0
        %v5556 = vsel %vm373, %v4878, 0
        %v5559 = vsel %vm373, %v4879, 0
        %v5562 = vsel %vm373, %v4880, 0
        %v5565 = vsel %vm373, %v4881, 0
        %v5568 = vsel %vm373, %v4882, 0
        %v5571 = vsel %vm373, %v4883, 0
        %v5574 = vsel %vm373, %v4884, 0
        %v5577 = vsel %vm373, %v4885, 0
        %v5580 = vsel %vm373, %v4886, 0
        %v5583 = vsel %vm373, %v4887, 0
        %v5586 = vsel %vm373, %v4888, 0
        %v5589 = vsel %vm373, %v4889, 0
        %v5592 = vsel %vm373, %v4890, 0
        %v5595 = vsel %vm373, %v4891, 0
        %v5598 = vsel %vm373, %v4892, 0
        %v5601 = vsel %vm373, %v4893, 0
        %v5604 = vsel %vm373, %v4894, 0
        %v5607 = vsel %vm373, %v4895, 0
        %v5610 = vsel %vm373, %v4896, 0
        %v5613 = vsel %vm373, %v4897, 0
        %v5616 = vsel %vm373, %v4898, 0
        %v5619 = vsel %vm373, %v4899, 0
        %v5622 = vsel %vm373, %v4900, 0
        %v5625 = vsel %vm373, %v4901, 0
        %v5628 = vsel %vm373, %v4902, 0
        %v5631 = vsel %vm373, %v4903, 0
        %v5634 = vsel %vm373, %v4904, 0
        %v5637 = vsel %vm373, %v4905, 0
        %v5640 = vsel %vm373, %v4906, 0
        %v5643 = vsel %vm373, %v4907, 0
        %v5646 = vsel %vm373, %v4908, 0
        %v5649 = vsel %vm373, %v4909, 0
        %v5652 = vsel %vm373, %v4910, 0
        %v5655 = vsel %vm373, %v4911, 0
        %v5658 = vsel %vm373, %v4912, 0
        %v5661 = vsel %vm373, %v4913, 0
        %v5664 = vsel %vm373, %v4914, 0
        %v5667 = vsel %vm373, %v4915, 0
        %v5670 = vsel %vm373, %v4916, 0
        %v5673 = vsel %vm373, %v4917, 0
        %v5676 = vsel %vm373, %v4918, 0
        %v5679 = vsel %vm373, %v4919, 0
        %v5682 = vsel %vm373, %v4920, 0
        %v5685 = vsel %vm373, %v4921, 0
        %v5688 = vsel %vm373, %v4922, 0
        %v5691 = vsel %vm373, %v4923, 0
        %5693 = vmatprep.subr.mxu0 0.0
        %5694 = vmatpush1.msra.mxu0 %v369
        %5695 = vmatprep.subr.mxu0 0.0
        %5696 = vmatpush1.msra.mxu0 %v370
        %5697 = vmatprep.subr.mxu0 0.0
        %5698 = vmatpush1.msra.mxu0 %v371
        %5699 = vmatprep.subr.mxu0 0.0
        %5700 = vmatpush1.msra.mxu0 %v372
        %5701 = vmatprep.subr.mxu0 0.0
        %5702 = vmatpush1.msra.mxu0 0.0
        %5703 = vmatprep.subr.mxu0 0.0
        %5704 = vmatpush1.msra.mxu0 0.0
        %5705 = vmatprep.subr.mxu0 0.0
        %5706 = vmatpush1.msra.mxu0 0.0
        %5707 = vmatprep.subr.mxu0 0.0
        %5708 = vmatpush1.msra.mxu0 0.0
        %5709 = vmatprep.subr.mxu0 0.0
        %5710 = vmatpush1.msra.mxu0 0.0
        %5711 = vmatprep.subr.mxu0 0.0
        %5712 = vmatpush1.msra.mxu0 0.0
        %5713 = vmatprep.subr.mxu0 0.0
        %5714 = vmatpush1.msra.mxu0 0.0
        %5715 = vmatprep.subr.mxu0 0.0
        %5716 = vmatpush1.msra.mxu0 0.0
        %5717 = vmatprep.subr.mxu0 0.0
        %5718 = vmatpush1.msra.mxu0 0.0
        %5719 = vmatprep.subr.mxu0 0.0
        %5720 = vmatpush1.msra.mxu0 0.0
        %5721 = vmatprep.subr.mxu0 0.0
        %5722 = vmatpush1.msra.mxu0 0.0
        %5723 = vmatprep.subr.mxu0 0.0
        %5724 = vmatpush1.msra.mxu0 0.0
        %5725 = vmatprep.subr.mxu0 0.0
        %5726 = vmatpush1.msra.mxu0 0.0
        %5727 = vmatprep.subr.mxu0 0.0
        %5728 = vmatpush1.msra.mxu0 0.0
        %5729 = vmatprep.subr.mxu0 0.0
        %5730 = vmatpush1.msra.mxu0 0.0
        %5731 = vmatprep.subr.mxu0 0.0
        %5732 = vmatpush1.msra.mxu0 0.0
        %5733 = vmatprep.subr.mxu0 0.0
        %5734 = vmatpush1.msra.mxu0 0.0
        %5735 = vmatprep.subr.mxu0 0.0
        %5736 = vmatpush1.msra.mxu0 0.0
        %5737 = vmatprep.subr.mxu0 0.0
        %5738 = vmatpush1.msra.mxu0 0.0
        %5739 = vmatprep.subr.mxu0 0.0
        %5740 = vmatpush1.msra.mxu0 0.0
        %5741 = vmatprep.subr.mxu0 0.0
        %5742 = vmatpush1.msra.mxu0 0.0
        %5743 = vmatprep.subr.mxu0 0.0
        %5744 = vmatpush1.msra.mxu0 0.0
        %5745 = vmatprep.subr.mxu0 0.0
        %5746 = vmatpush1.msra.mxu0 0.0
        %5747 = vmatprep.subr.mxu0 0.0
        %5748 = vmatpush1.msra.mxu0 0.0
        %5749 = vmatprep.subr.mxu0 0.0
        %5750 = vmatpush1.msra.mxu0 0.0
        %5751 = vmatprep.subr.mxu0 0.0
        %5752 = vmatpush1.msra.mxu0 0.0
        %5753 = vmatprep.subr.mxu0 0.0
        %5754 = vmatpush1.msra.mxu0 0.0
        %5755 = vmatprep.subr.mxu0 0.0
        %5756 = vmatpush1.msra.mxu0 0.0
        %5757 = vmatprep.mubr.f32.mxu0 0.0
        %5758 = vmatmul.mubr.f32.gmra.mrb[0].mxu0 %v5502
        %v5759 = vpop.f32.mrb[0].mxu0
        %v5760 = vadd.f32 0.0, %v5759
        %v5761 = vpop.f32.mrb[0].mxu0
        %5762 = vmatprep.mubr.f32.mxu0 0.0
        %5763 = vmatmul.mubr.f32.gmra.mrb[0].mxu0 %v5505
        %v5764 = vpop.f32.mrb[0].mxu0
        %v5765 = vadd.f32 0.0, %v5764
        %v5766 = vpop.f32.mrb[0].mxu0
        %5767 = vmatprep.mubr.f32.mxu0 0.0
        %5768 = vmatmul.mubr.f32.gmra.mrb[0].mxu0 %v5508
        %v5769 = vpop.f32.mrb[0].mxu0
        %v5770 = vadd.f32 0.0, %v5769
        %v5771 = vpop.f32.mrb[0].mxu0
        %5772 = vmatprep.mubr.f32.mxu0 0.0
        %5773 = vmatmul.mubr.f32.gmra.mrb[0].mxu0 %v5511
        %v5774 = vpop.f32.mrb[0].mxu0
        %v5775 = vadd.f32 0.0, %v5774
        %v5776 = vpop.f32.mrb[0].mxu0
        %5777 = vmatprep.mubr.f32.mxu0 0.0
        %5778 = vmatmul.mubr.f32.gmra.mrb[0].mxu0 %v5514
        %v5779 = vpop.f32.mrb[0].mxu0
        %v5780 = vadd.f32 0.0, %v5779
        %v5781 = vpop.f32.mrb[0].mxu0
        %5782 = vmatprep.mubr.f32.mxu0 0.0
        %5783 = vmatmul.mubr.f32.gmra.mrb[0].mxu0 %v5517
        %v5784 = vpop.f32.mrb[0].mxu0
        %v5785 = vadd.f32 0.0, %v5784
        %v5786 = vpop.f32.mrb[0].mxu0
        %5787 = vmatprep.mubr.f32.mxu0 0.0
        %5788 = vmatmul.mubr.f32.gmra.mrb[0].mxu0 %v5520
        %v5789 = vpop.f32.mrb[0].mxu0
        %v5790 = vadd.f32 0.0, %v5789
        %v5791 = vpop.f32.mrb[0].mxu0
        %5792 = vmatprep.mubr.f32.mxu0 0.0
        %5793 = vmatmul.mubr.f32.gmra.mrb[0].mxu0 %v5523
        %v5794 = vpop.f32.mrb[0].mxu0
        %v5795 = vadd.f32 0.0, %v5794
        %v5796 = vpop.f32.mrb[0].mxu0
        %5797 = vmatprep.mubr.f32.mxu0 0.0
        %5798 = vmatmul.mubr.f32.gmra.mrb[0].mxu0 %v5526
        %v5799 = vpop.f32.mrb[0].mxu0
        %v5800 = vadd.f32 0.0, %v5799
        %v5801 = vpop.f32.mrb[0].mxu0
        %5802 = vmatprep.mubr.f32.mxu0 0.0
        %5803 = vmatmul.mubr.f32.gmra.mrb[0].mxu0 %v5529
        %v5804 = vpop.f32.mrb[0].mxu0
        %v5805 = vadd.f32 0.0, %v5804
        %v5806 = vpop.f32.mrb[0].mxu0
        %5807 = vmatprep.mubr.f32.mxu0 0.0
        %5808 = vmatmul.mubr.f32.gmra.mrb[0].mxu0 %v5532
        %v5809 = vpop.f32.mrb[0].mxu0
        %v5810 = vadd.f32 0.0, %v5809
        %v5811 = vpop.f32.mrb[0].mxu0
        %5812 = vmatprep.mubr.f32.mxu0 0.0
        %5813 = vmatmul.mubr.f32.gmra.mrb[0].mxu0 %v5535
        %v5814 = vpop.f32.mrb[0].mxu0
        %v5815 = vadd.f32 0.0, %v5814
        %v5816 = vpop.f32.mrb[0].mxu0
        %5817 = vmatprep.mubr.f32.mxu0 0.0
        %5818 = vmatmul.mubr.f32.gmra.mrb[0].mxu0 %v5538
        %v5819 = vpop.f32.mrb[0].mxu0
        %v5820 = vadd.f32 0.0, %v5819
        %v5821 = vpop.f32.mrb[0].mxu0
        %5822 = vmatprep.mubr.f32.mxu0 0.0
        %5823 = vmatmul.mubr.f32.gmra.mrb[0].mxu0 %v5541
        %v5824 = vpop.f32.mrb[0].mxu0
        %v5825 = vadd.f32 0.0, %v5824
        %v5826 = vpop.f32.mrb[0].mxu0
        %5827 = vmatprep.mubr.f32.mxu0 0.0
        %5828 = vmatmul.mubr.f32.gmra.mrb[0].mxu0 %v5544
        %v5829 = vpop.f32.mrb[0].mxu0
        %v5830 = vadd.f32 0.0, %v5829
        %v5831 = vpop.f32.mrb[0].mxu0
        %5832 = vmatprep.mubr.f32.mxu0 0.0
        %5833 = vmatmul.mubr.f32.gmra.mrb[0].mxu0 %v5547
        %v5834 = vpop.f32.mrb[0].mxu0
        %v5835 = vadd.f32 0.0, %v5834
        %v5836 = vpop.f32.mrb[0].mxu0
        %5837 = vmatprep.mubr.f32.mxu0 0.0
        %5838 = vmatmul.mubr.f32.gmra.mrb[0].mxu0 %v5550
        %v5839 = vpop.f32.mrb[0].mxu0
        %v5840 = vadd.f32 0.0, %v5839
        %v5841 = vpop.f32.mrb[0].mxu0
        %5842 = vmatprep.mubr.f32.mxu0 0.0
        %5843 = vmatmul.mubr.f32.gmra.mrb[0].mxu0 %v5553
        %v5844 = vpop.f32.mrb[0].mxu0
        %v5845 = vadd.f32 0.0, %v5844
        %v5846 = vpop.f32.mrb[0].mxu0
        %5847 = vmatprep.mubr.f32.mxu0 0.0
        %5848 = vmatmul.mubr.f32.gmra.mrb[0].mxu0 %v5556
        %v5849 = vpop.f32.mrb[0].mxu0
        %v5850 = vadd.f32 0.0, %v5849
        %v5851 = vpop.f32.mrb[0].mxu0
        %5852 = vmatprep.mubr.f32.mxu0 0.0
        %5853 = vmatmul.mubr.f32.gmra.mrb[0].mxu0 %v5559
        %v5854 = vpop.f32.mrb[0].mxu0
        %v5855 = vadd.f32 0.0, %v5854
        %v5856 = vpop.f32.mrb[0].mxu0
        %5857 = vmatprep.mubr.f32.mxu0 0.0
        %5858 = vmatmul.mubr.f32.gmra.mrb[0].mxu0 %v5562
        %v5859 = vpop.f32.mrb[0].mxu0
        %v5860 = vadd.f32 0.0, %v5859
        %v5861 = vpop.f32.mrb[0].mxu0
        %5862 = vmatprep.mubr.f32.mxu0 0.0
        %5863 = vmatmul.mubr.f32.gmra.mrb[0].mxu0 %v5565
        %v5864 = vpop.f32.mrb[0].mxu0
        %v5865 = vadd.f32 0.0, %v5864
        %v5866 = vpop.f32.mrb[0].mxu0
        %5867 = vmatprep.mubr.f32.mxu0 0.0
        %5868 = vmatmul.mubr.f32.gmra.mrb[0].mxu0 %v5568
        %v5869 = vpop.f32.mrb[0].mxu0
        %v5870 = vadd.f32 0.0, %v5869
        %v5871 = vpop.f32.mrb[0].mxu0
        %5872 = vmatprep.mubr.f32.mxu0 0.0
        %5873 = vmatmul.mubr.f32.gmra.mrb[0].mxu0 %v5571
        %v5874 = vpop.f32.mrb[0].mxu0
        %v5875 = vadd.f32 0.0, %v5874
        %v5876 = vpop.f32.mrb[0].mxu0
        %5877 = vmatprep.mubr.f32.mxu0 0.0
        %5878 = vmatmul.mubr.f32.gmra.mrb[0].mxu0 %v5574
        %v5879 = vpop.f32.mrb[0].mxu0
        %v5880 = vadd.f32 0.0, %v5879
        %v5881 = vpop.f32.mrb[0].mxu0
        %5882 = vmatprep.mubr.f32.mxu0 0.0
        %5883 = vmatmul.mubr.f32.gmra.mrb[0].mxu0 %v5577
        %v5884 = vpop.f32.mrb[0].mxu0
        %v5885 = vadd.f32 0.0, %v5884
        %v5886 = vpop.f32.mrb[0].mxu0
        %5887 = vmatprep.mubr.f32.mxu0 0.0
        %5888 = vmatmul.mubr.f32.gmra.mrb[0].mxu0 %v5580
        %v5889 = vpop.f32.mrb[0].mxu0
        %v5890 = vadd.f32 0.0, %v5889
        %v5891 = vpop.f32.mrb[0].mxu0
        %5892 = vmatprep.mubr.f32.mxu0 0.0
        %5893 = vmatmul.mubr.f32.gmra.mrb[0].mxu0 %v5583
        %v5894 = vpop.f32.mrb[0].mxu0
        %v5895 = vadd.f32 0.0, %v5894
        %v5896 = vpop.f32.mrb[0].mxu0
        %5897 = vmatprep.mubr.f32.mxu0 0.0
        %5898 = vmatmul.mubr.f32.gmra.mrb[0].mxu0 %v5586
        %v5899 = vpop.f32.mrb[0].mxu0
        %v5900 = vadd.f32 0.0, %v5899
        %v5901 = vpop.f32.mrb[0].mxu0
        %5902 = vmatprep.mubr.f32.mxu0 0.0
        %5903 = vmatmul.mubr.f32.gmra.mrb[0].mxu0 %v5589
        %v5904 = vpop.f32.mrb[0].mxu0
        %v5905 = vadd.f32 0.0, %v5904
        %v5906 = vpop.f32.mrb[0].mxu0
        %5907 = vmatprep.mubr.f32.mxu0 0.0
        %5908 = vmatmul.mubr.f32.gmra.mrb[0].mxu0 %v5592
        %v5909 = vpop.f32.mrb[0].mxu0
        %v5910 = vadd.f32 0.0, %v5909
        %v5911 = vpop.f32.mrb[0].mxu0
        %5912 = vmatprep.mubr.f32.mxu0 0.0
        %5913 = vmatmul.mubr.f32.gmra.mrb[0].mxu0 %v5595
        %v5914 = vpop.f32.mrb[0].mxu0
        %v5915 = vadd.f32 0.0, %v5914
        %v5916 = vpop.f32.mrb[0].mxu0
        %5917 = vmatprep.mubr.f32.mxu0 0.0
        %5918 = vmatmul.mubr.f32.gmra.mrb[0].mxu0 %v5598
        %v5919 = vpop.f32.mrb[0].mxu0
        %v5920 = vadd.f32 0.0, %v5919
        %v5921 = vpop.f32.mrb[0].mxu0
        %5922 = vmatprep.mubr.f32.mxu0 0.0
        %5923 = vmatmul.mubr.f32.gmra.mrb[0].mxu0 %v5601
        %v5924 = vpop.f32.mrb[0].mxu0
        %v5925 = vadd.f32 0.0, %v5924
        %v5926 = vpop.f32.mrb[0].mxu0
        %5927 = vmatprep.mubr.f32.mxu0 0.0
        %5928 = vmatmul.mubr.f32.gmra.mrb[0].mxu0 %v5604
        %v5929 = vpop.f32.mrb[0].mxu0
        %v5930 = vadd.f32 0.0, %v5929
        %v5931 = vpop.f32.mrb[0].mxu0
        %5932 = vmatprep.mubr.f32.mxu0 0.0
        %5933 = vmatmul.mubr.f32.gmra.mrb[0].mxu0 %v5607
        %v5934 = vpop.f32.mrb[0].mxu0
        %v5935 = vadd.f32 0.0, %v5934
        %v5936 = vpop.f32.mrb[0].mxu0
        %5937 = vmatprep.mubr.f32.mxu0 0.0
        %5938 = vmatmul.mubr.f32.gmra.mrb[0].mxu0 %v5610
        %v5939 = vpop.f32.mrb[0].mxu0
        %v5940 = vadd.f32 0.0, %v5939
        %v5941 = vpop.f32.mrb[0].mxu0
        %5942 = vmatprep.mubr.f32.mxu0 0.0
        %5943 = vmatmul.mubr.f32.gmra.mrb[0].mxu0 %v5613
        %v5944 = vpop.f32.mrb[0].mxu0
        %v5945 = vadd.f32 0.0, %v5944
        %v5946 = vpop.f32.mrb[0].mxu0
        %5947 = vmatprep.mubr.f32.mxu0 0.0
        %5948 = vmatmul.mubr.f32.gmra.mrb[0].mxu0 %v5616
        %v5949 = vpop.f32.mrb[0].mxu0
        %v5950 = vadd.f32 0.0, %v5949
        %v5951 = vpop.f32.mrb[0].mxu0
        %5952 = vmatprep.mubr.f32.mxu0 0.0
        %5953 = vmatmul.mubr.f32.gmra.mrb[0].mxu0 %v5619
        %v5954 = vpop.f32.mrb[0].mxu0
        %v5955 = vadd.f32 0.0, %v5954
        %v5956 = vpop.f32.mrb[0].mxu0
        %5957 = vmatprep.mubr.f32.mxu0 0.0
        %5958 = vmatmul.mubr.f32.gmra.mrb[0].mxu0 %v5622
        %v5959 = vpop.f32.mrb[0].mxu0
        %v5960 = vadd.f32 0.0, %v5959
        %v5961 = vpop.f32.mrb[0].mxu0
        %5962 = vmatprep.mubr.f32.mxu0 0.0
        %5963 = vmatmul.mubr.f32.gmra.mrb[0].mxu0 %v5625
        %v5964 = vpop.f32.mrb[0].mxu0
        %v5965 = vadd.f32 0.0, %v5964
        %v5966 = vpop.f32.mrb[0].mxu0
        %5967 = vmatprep.mubr.f32.mxu0 0.0
        %5968 = vmatmul.mubr.f32.gmra.mrb[0].mxu0 %v5628
        %v5969 = vpop.f32.mrb[0].mxu0
        %v5970 = vadd.f32 0.0, %v5969
        %v5971 = vpop.f32.mrb[0].mxu0
        %5972 = vmatprep.mubr.f32.mxu0 0.0
        %5973 = vmatmul.mubr.f32.gmra.mrb[0].mxu0 %v5631
        %v5974 = vpop.f32.mrb[0].mxu0
        %v5975 = vadd.f32 0.0, %v5974
        %v5976 = vpop.f32.mrb[0].mxu0
        %5977 = vmatprep.mubr.f32.mxu0 0.0
        %5978 = vmatmul.mubr.f32.gmra.mrb[0].mxu0 %v5634
        %v5979 = vpop.f32.mrb[0].mxu0
        %v5980 = vadd.f32 0.0, %v5979
        %v5981 = vpop.f32.mrb[0].mxu0
        %5982 = vmatprep.mubr.f32.mxu0 0.0
        %5983 = vmatmul.mubr.f32.gmra.mrb[0].mxu0 %v5637
        %v5984 = vpop.f32.mrb[0].mxu0
        %v5985 = vadd.f32 0.0, %v5984
        %v5986 = vpop.f32.mrb[0].mxu0
        %5987 = vmatprep.mubr.f32.mxu0 0.0
        %5988 = vmatmul.mubr.f32.gmra.mrb[0].mxu0 %v5640
        %v5989 = vpop.f32.mrb[0].mxu0
        %v5990 = vadd.f32 0.0, %v5989
        %v5991 = vpop.f32.mrb[0].mxu0
        %5992 = vmatprep.mubr.f32.mxu0 0.0
        %5993 = vmatmul.mubr.f32.gmra.mrb[0].mxu0 %v5643
        %v5994 = vpop.f32.mrb[0].mxu0
        %v5995 = vadd.f32 0.0, %v5994
        %v5996 = vpop.f32.mrb[0].mxu0
        %5997 = vmatprep.mubr.f32.mxu0 0.0
        %5998 = vmatmul.mubr.f32.gmra.mrb[0].mxu0 %v5646
        %v5999 = vpop.f32.mrb[0].mxu0
        %v6000 = vadd.f32 0.0, %v5999
        %v6001 = vpop.f32.mrb[0].mxu0
        %6002 = vmatprep.mubr.f32.mxu0 0.0
        %6003 = vmatmul.mubr.f32.gmra.mrb[0].mxu0 %v5649
        %v6004 = vpop.f32.mrb[0].mxu0
        %v6005 = vadd.f32 0.0, %v6004
        %v6006 = vpop.f32.mrb[0].mxu0
        %6007 = vmatprep.mubr.f32.mxu0 0.0
        %6008 = vmatmul.mubr.f32.gmra.mrb[0].mxu0 %v5652
        %v6009 = vpop.f32.mrb[0].mxu0
        %v6010 = vadd.f32 0.0, %v6009
        %v6011 = vpop.f32.mrb[0].mxu0
        %6012 = vmatprep.mubr.f32.mxu0 0.0
        %6013 = vmatmul.mubr.f32.gmra.mrb[0].mxu0 %v5655
        %v6014 = vpop.f32.mrb[0].mxu0
        %v6015 = vadd.f32 0.0, %v6014
        %v6016 = vpop.f32.mrb[0].mxu0
        %6017 = vmatprep.mubr.f32.mxu0 0.0
        %6018 = vmatmul.mubr.f32.gmra.mrb[0].mxu0 %v5658
        %v6019 = vpop.f32.mrb[0].mxu0
        %v6020 = vadd.f32 0.0, %v6019
        %v6021 = vpop.f32.mrb[0].mxu0
        %6022 = vmatprep.mubr.f32.mxu0 0.0
        %6023 = vmatmul.mubr.f32.gmra.mrb[0].mxu0 %v5661
        %v6024 = vpop.f32.mrb[0].mxu0
        %v6025 = vadd.f32 0.0, %v6024
        %v6026 = vpop.f32.mrb[0].mxu0
        %6027 = vmatprep.mubr.f32.mxu0 0.0
        %6028 = vmatmul.mubr.f32.gmra.mrb[0].mxu0 %v5664
        %v6029 = vpop.f32.mrb[0].mxu0
        %v6030 = vadd.f32 0.0, %v6029
        %v6031 = vpop.f32.mrb[0].mxu0
        %6032 = vmatprep.mubr.f32.mxu0 0.0
        %6033 = vmatmul.mubr.f32.gmra.mrb[0].mxu0 %v5667
        %v6034 = vpop.f32.mrb[0].mxu0
        %v6035 = vadd.f32 0.0, %v6034
        %v6036 = vpop.f32.mrb[0].mxu0
        %6037 = vmatprep.mubr.f32.mxu0 0.0
        %6038 = vmatmul.mubr.f32.gmra.mrb[0].mxu0 %v5670
        %v6039 = vpop.f32.mrb[0].mxu0
        %v6040 = vadd.f32 0.0, %v6039
        %v6041 = vpop.f32.mrb[0].mxu0
        %6042 = vmatprep.mubr.f32.mxu0 0.0
        %6043 = vmatmul.mubr.f32.gmra.mrb[0].mxu0 %v5673
        %v6044 = vpop.f32.mrb[0].mxu0
        %v6045 = vadd.f32 0.0, %v6044
        %v6046 = vpop.f32.mrb[0].mxu0
        %6047 = vmatprep.mubr.f32.mxu0 0.0
        %6048 = vmatmul.mubr.f32.gmra.mrb[0].mxu0 %v5676
        %v6049 = vpop.f32.mrb[0].mxu0
        %v6050 = vadd.f32 0.0, %v6049
        %v6051 = vpop.f32.mrb[0].mxu0
        %6052 = vmatprep.mubr.f32.mxu0 0.0
        %6053 = vmatmul.mubr.f32.gmra.mrb[0].mxu0 %v5679
        %v6054 = vpop.f32.mrb[0].mxu0
        %v6055 = vadd.f32 0.0, %v6054
        %v6056 = vpop.f32.mrb[0].mxu0
        %6057 = vmatprep.mubr.f32.mxu0 0.0
        %6058 = vmatmul.mubr.f32.gmra.mrb[0].mxu0 %v5682
        %v6059 = vpop.f32.mrb[0].mxu0
        %v6060 = vadd.f32 0.0, %v6059
        %v6061 = vpop.f32.mrb[0].mxu0
        %6062 = vmatprep.mubr.f32.mxu0 0.0
        %6063 = vmatmul.mubr.f32.gmra.mrb[0].mxu0 %v5685
        %v6064 = vpop.f32.mrb[0].mxu0
        %v6065 = vadd.f32 0.0, %v6064
        %v6066 = vpop.f32.mrb[0].mxu0
        %6067 = vmatprep.mubr.f32.mxu0 0.0
        %6068 = vmatmul.mubr.f32.gmra.mrb[0].mxu0 %v5688
        %v6069 = vpop.f32.mrb[0].mxu0
        %v6070 = vadd.f32 0.0, %v6069
        %v6071 = vpop.f32.mrb[0].mxu0
        %6072 = vmatprep.mubr.f32.mxu0 0.0
        %6073 = vmatmul.mubr.f32.gmra.mrb[0].mxu0 %v5691
        %v6074 = vpop.f32.mrb[0].mxu0
        %v6075 = vadd.f32 0.0, %v6074
        %v6076 = vpop.f32.mrb[0].mxu0
        %6077 = vdwg.mxu0
        %v6078 = vsub.f32 %v5183, %v5760
        %v6079 = vsub.f32 %v5188, %v5765
        %v6080 = vsub.f32 %v5193, %v5770
        %v6081 = vsub.f32 %v5198, %v5775
        %v6082 = vsub.f32 %v5203, %v5780
        %v6083 = vsub.f32 %v5208, %v5785
        %v6084 = vsub.f32 %v5213, %v5790
        %v6085 = vsub.f32 %v5218, %v5795
        %v6086 = vsub.f32 %v5223, %v5800
        %v6087 = vsub.f32 %v5228, %v5805
        %v6088 = vsub.f32 %v5233, %v5810
        %v6089 = vsub.f32 %v5238, %v5815
        %v6090 = vsub.f32 %v5243, %v5820
        %v6091 = vsub.f32 %v5248, %v5825
        %v6092 = vsub.f32 %v5253, %v5830
        %v6093 = vsub.f32 %v5258, %v5835
        %v6094 = vsub.f32 %v5263, %v5840
        %v6095 = vsub.f32 %v5268, %v5845
        %v6096 = vsub.f32 %v5273, %v5850
        %v6097 = vsub.f32 %v5278, %v5855
        %v6098 = vsub.f32 %v5283, %v5860
        %v6099 = vsub.f32 %v5288, %v5865
        %v6100 = vsub.f32 %v5293, %v5870
        %v6101 = vsub.f32 %v5298, %v5875
        %v6102 = vsub.f32 %v5303, %v5880
        %v6103 = vsub.f32 %v5308, %v5885
        %v6104 = vsub.f32 %v5313, %v5890
        %v6105 = vsub.f32 %v5318, %v5895
        %v6106 = vsub.f32 %v5323, %v5900
        %v6107 = vsub.f32 %v5328, %v5905
        %v6108 = vsub.f32 %v5333, %v5910
        %v6109 = vsub.f32 %v5338, %v5915
        %v6110 = vsub.f32 %v5343, %v5920
        %v6111 = vsub.f32 %v5348, %v5925
        %v6112 = vsub.f32 %v5353, %v5930
        %v6113 = vsub.f32 %v5358, %v5935
        %v6114 = vsub.f32 %v5363, %v5940
        %v6115 = vsub.f32 %v5368, %v5945
        %v6116 = vsub.f32 %v5373, %v5950
        %v6117 = vsub.f32 %v5378, %v5955
        %v6118 = vsub.f32 %v5383, %v5960
        %v6119 = vsub.f32 %v5388, %v5965
        %v6120 = vsub.f32 %v5393, %v5970
        %v6121 = vsub.f32 %v5398, %v5975
        %v6122 = vsub.f32 %v5403, %v5980
        %v6123 = vsub.f32 %v5408, %v5985
        %v6124 = vsub.f32 %v5413, %v5990
        %v6125 = vsub.f32 %v5418, %v5995
        %v6126 = vsub.f32 %v5423, %v6000
        %v6127 = vsub.f32 %v5428, %v6005
        %v6128 = vsub.f32 %v5433, %v6010
        %v6129 = vsub.f32 %v5438, %v6015
        %v6130 = vsub.f32 %v5443, %v6020
        %v6131 = vsub.f32 %v5448, %v6025
        %v6132 = vsub.f32 %v5453, %v6030
        %v6133 = vsub.f32 %v5458, %v6035
        %v6134 = vsub.f32 %v5463, %v6040
        %v6135 = vsub.f32 %v5468, %v6045
        %v6136 = vsub.f32 %v5473, %v6050
        %v6137 = vsub.f32 %v5478, %v6055
        %v6138 = vsub.f32 %v5483, %v6060
        %v6139 = vsub.f32 %v5488, %v6065
        %v6140 = vsub.f32 %v5493, %v6070
        %v6141 = vsub.f32 %v5498, %v6075
        %6142 = vmatprep.subr.mxu0 0.0
        %6143 = vmatpush1.msra.mxu0 %v365
        %6144 = vmatprep.subr.mxu0 0.0
        %6145 = vmatpush1.msra.mxu0 %v366
        %6146 = vmatprep.subr.mxu0 0.0
        %6147 = vmatpush1.msra.mxu0 %v367
        %6148 = vmatprep.subr.mxu0 0.0
        %6149 = vmatpush1.msra.mxu0 %v368
        %6150 = vmatprep.subr.mxu0 0.0
        %6151 = vmatpush1.msra.mxu0 0.0
        %6152 = vmatprep.subr.mxu0 0.0
        %6153 = vmatpush1.msra.mxu0 0.0
        %6154 = vmatprep.subr.mxu0 0.0
        %6155 = vmatpush1.msra.mxu0 0.0
        %6156 = vmatprep.subr.mxu0 0.0
        %6157 = vmatpush1.msra.mxu0 0.0
        %6158 = vmatprep.subr.mxu0 0.0
        %6159 = vmatpush1.msra.mxu0 0.0
        %6160 = vmatprep.subr.mxu0 0.0
        %6161 = vmatpush1.msra.mxu0 0.0
        %6162 = vmatprep.subr.mxu0 0.0
        %6163 = vmatpush1.msra.mxu0 0.0
        %6164 = vmatprep.subr.mxu0 0.0
        %6165 = vmatpush1.msra.mxu0 0.0
        %6166 = vmatprep.subr.mxu0 0.0
        %6167 = vmatpush1.msra.mxu0 0.0
        %6168 = vmatprep.subr.mxu0 0.0
        %6169 = vmatpush1.msra.mxu0 0.0
        %6170 = vmatprep.subr.mxu0 0.0
        %6171 = vmatpush1.msra.mxu0 0.0
        %6172 = vmatprep.subr.mxu0 0.0
        %6173 = vmatpush1.msra.mxu0 0.0
        %6174 = vmatprep.subr.mxu0 0.0
        %6175 = vmatpush1.msra.mxu0 0.0
        %6176 = vmatprep.subr.mxu0 0.0
        %6177 = vmatpush1.msra.mxu0 0.0
        %6178 = vmatprep.subr.mxu0 0.0
        %6179 = vmatpush1.msra.mxu0 0.0
        %6180 = vmatprep.subr.mxu0 0.0
        %6181 = vmatpush1.msra.mxu0 0.0
        %6182 = vmatprep.subr.mxu0 0.0
        %6183 = vmatpush1.msra.mxu0 0.0
        %6184 = vmatprep.subr.mxu0 0.0
        %6185 = vmatpush1.msra.mxu0 0.0
        %6186 = vmatprep.subr.mxu0 0.0
        %6187 = vmatpush1.msra.mxu0 0.0
        %6188 = vmatprep.subr.mxu0 0.0
        %6189 = vmatpush1.msra.mxu0 0.0
        %6190 = vmatprep.subr.mxu0 0.0
        %6191 = vmatpush1.msra.mxu0 0.0
        %6192 = vmatprep.subr.mxu0 0.0
        %6193 = vmatpush1.msra.mxu0 0.0
        %6194 = vmatprep.subr.mxu0 0.0
        %6195 = vmatpush1.msra.mxu0 0.0
        %6196 = vmatprep.subr.mxu0 0.0
        %6197 = vmatpush1.msra.mxu0 0.0
        %6198 = vmatprep.subr.mxu0 0.0
        %6199 = vmatpush1.msra.mxu0 0.0
        %6200 = vmatprep.subr.mxu0 0.0
        %6201 = vmatpush1.msra.mxu0 0.0
        %6202 = vmatprep.subr.mxu0 0.0
        %6203 = vmatpush1.msra.mxu0 0.0
        %6204 = vmatprep.subr.mxu0 0.0
        %6205 = vmatpush1.msra.mxu0 0.0
        %6206 = vmatprep.mubr.f32.mxu0 0.0
        %6207 = vmatmul.mubr.f32.gmra.mrb[0].mxu0 %v5502
        %v6208 = vpop.f32.mrb[0].mxu0
        %v6209 = vadd.f32 0.0, %v6208
        %v6210 = vpop.f32.mrb[0].mxu0
        %6211 = vmatprep.mubr.f32.mxu0 0.0
        %6212 = vmatmul.mubr.f32.gmra.mrb[0].mxu0 %v5505
        %v6213 = vpop.f32.mrb[0].mxu0
        %v6214 = vadd.f32 0.0, %v6213
        %v6215 = vpop.f32.mrb[0].mxu0
        %6216 = vmatprep.mubr.f32.mxu0 0.0
        %6217 = vmatmul.mubr.f32.gmra.mrb[0].mxu0 %v5508
        %v6218 = vpop.f32.mrb[0].mxu0
        %v6219 = vadd.f32 0.0, %v6218
        %v6220 = vpop.f32.mrb[0].mxu0
        %6221 = vmatprep.mubr.f32.mxu0 0.0
        %6222 = vmatmul.mubr.f32.gmra.mrb[0].mxu0 %v5511
        %v6223 = vpop.f32.mrb[0].mxu0
        %v6224 = vadd.f32 0.0, %v6223
        %v6225 = vpop.f32.mrb[0].mxu0
        %6226 = vmatprep.mubr.f32.mxu0 0.0
        %6227 = vmatmul.mubr.f32.gmra.mrb[0].mxu0 %v5514
        %v6228 = vpop.f32.mrb[0].mxu0
        %v6229 = vadd.f32 0.0, %v6228
        %v6230 = vpop.f32.mrb[0].mxu0
        %6231 = vmatprep.mubr.f32.mxu0 0.0
        %6232 = vmatmul.mubr.f32.gmra.mrb[0].mxu0 %v5517
        %v6233 = vpop.f32.mrb[0].mxu0
        %v6234 = vadd.f32 0.0, %v6233
        %v6235 = vpop.f32.mrb[0].mxu0
        %6236 = vmatprep.mubr.f32.mxu0 0.0
        %6237 = vmatmul.mubr.f32.gmra.mrb[0].mxu0 %v5520
        %v6238 = vpop.f32.mrb[0].mxu0
        %v6239 = vadd.f32 0.0, %v6238
        %v6240 = vpop.f32.mrb[0].mxu0
        %6241 = vmatprep.mubr.f32.mxu0 0.0
        %6242 = vmatmul.mubr.f32.gmra.mrb[0].mxu0 %v5523
        %v6243 = vpop.f32.mrb[0].mxu0
        %v6244 = vadd.f32 0.0, %v6243
        %v6245 = vpop.f32.mrb[0].mxu0
        %6246 = vmatprep.mubr.f32.mxu0 0.0
        %6247 = vmatmul.mubr.f32.gmra.mrb[0].mxu0 %v5526
        %v6248 = vpop.f32.mrb[0].mxu0
        %v6249 = vadd.f32 0.0, %v6248
        %v6250 = vpop.f32.mrb[0].mxu0
        %6251 = vmatprep.mubr.f32.mxu0 0.0
        %6252 = vmatmul.mubr.f32.gmra.mrb[0].mxu0 %v5529
        %v6253 = vpop.f32.mrb[0].mxu0
        %v6254 = vadd.f32 0.0, %v6253
        %v6255 = vpop.f32.mrb[0].mxu0
        %6256 = vmatprep.mubr.f32.mxu0 0.0
        %6257 = vmatmul.mubr.f32.gmra.mrb[0].mxu0 %v5532
        %v6258 = vpop.f32.mrb[0].mxu0
        %v6259 = vadd.f32 0.0, %v6258
        %v6260 = vpop.f32.mrb[0].mxu0
        %6261 = vmatprep.mubr.f32.mxu0 0.0
        %6262 = vmatmul.mubr.f32.gmra.mrb[0].mxu0 %v5535
        %v6263 = vpop.f32.mrb[0].mxu0
        %v6264 = vadd.f32 0.0, %v6263
        %v6265 = vpop.f32.mrb[0].mxu0
        %6266 = vmatprep.mubr.f32.mxu0 0.0
        %6267 = vmatmul.mubr.f32.gmra.mrb[0].mxu0 %v5538
        %v6268 = vpop.f32.mrb[0].mxu0
        %v6269 = vadd.f32 0.0, %v6268
        %v6270 = vpop.f32.mrb[0].mxu0
        %6271 = vmatprep.mubr.f32.mxu0 0.0
        %6272 = vmatmul.mubr.f32.gmra.mrb[0].mxu0 %v5541
        %v6273 = vpop.f32.mrb[0].mxu0
        %v6274 = vadd.f32 0.0, %v6273
        %v6275 = vpop.f32.mrb[0].mxu0
        %6276 = vmatprep.mubr.f32.mxu0 0.0
        %6277 = vmatmul.mubr.f32.gmra.mrb[0].mxu0 %v5544
        %v6278 = vpop.f32.mrb[0].mxu0
        %v6279 = vadd.f32 0.0, %v6278
        %v6280 = vpop.f32.mrb[0].mxu0
        %6281 = vmatprep.mubr.f32.mxu0 0.0
        %6282 = vmatmul.mubr.f32.gmra.mrb[0].mxu0 %v5547
        %v6283 = vpop.f32.mrb[0].mxu0
        %v6284 = vadd.f32 0.0, %v6283
        %v6285 = vpop.f32.mrb[0].mxu0
        %6286 = vmatprep.mubr.f32.mxu0 0.0
        %6287 = vmatmul.mubr.f32.gmra.mrb[0].mxu0 %v5550
        %v6288 = vpop.f32.mrb[0].mxu0
        %v6289 = vadd.f32 0.0, %v6288
        %v6290 = vpop.f32.mrb[0].mxu0
        %6291 = vmatprep.mubr.f32.mxu0 0.0
        %6292 = vmatmul.mubr.f32.gmra.mrb[0].mxu0 %v5553
        %v6293 = vpop.f32.mrb[0].mxu0
        %v6294 = vadd.f32 0.0, %v6293
        %v6295 = vpop.f32.mrb[0].mxu0
        %6296 = vmatprep.mubr.f32.mxu0 0.0
        %6297 = vmatmul.mubr.f32.gmra.mrb[0].mxu0 %v5556
        %v6298 = vpop.f32.mrb[0].mxu0
        %v6299 = vadd.f32 0.0, %v6298
        %v6300 = vpop.f32.mrb[0].mxu0
        %6301 = vmatprep.mubr.f32.mxu0 0.0
        %6302 = vmatmul.mubr.f32.gmra.mrb[0].mxu0 %v5559
        %v6303 = vpop.f32.mrb[0].mxu0
        %v6304 = vadd.f32 0.0, %v6303
        %v6305 = vpop.f32.mrb[0].mxu0
        %6306 = vmatprep.mubr.f32.mxu0 0.0
        %6307 = vmatmul.mubr.f32.gmra.mrb[0].mxu0 %v5562
        %v6308 = vpop.f32.mrb[0].mxu0
        %v6309 = vadd.f32 0.0, %v6308
        %v6310 = vpop.f32.mrb[0].mxu0
        %6311 = vmatprep.mubr.f32.mxu0 0.0
        %6312 = vmatmul.mubr.f32.gmra.mrb[0].mxu0 %v5565
        %v6313 = vpop.f32.mrb[0].mxu0
        %v6314 = vadd.f32 0.0, %v6313
        %v6315 = vpop.f32.mrb[0].mxu0
        %6316 = vmatprep.mubr.f32.mxu0 0.0
        %6317 = vmatmul.mubr.f32.gmra.mrb[0].mxu0 %v5568
        %v6318 = vpop.f32.mrb[0].mxu0
        %v6319 = vadd.f32 0.0, %v6318
        %v6320 = vpop.f32.mrb[0].mxu0
        %6321 = vmatprep.mubr.f32.mxu0 0.0
        %6322 = vmatmul.mubr.f32.gmra.mrb[0].mxu0 %v5571
        %v6323 = vpop.f32.mrb[0].mxu0
        %v6324 = vadd.f32 0.0, %v6323
        %v6325 = vpop.f32.mrb[0].mxu0
        %6326 = vmatprep.mubr.f32.mxu0 0.0
        %6327 = vmatmul.mubr.f32.gmra.mrb[0].mxu0 %v5574
        %v6328 = vpop.f32.mrb[0].mxu0
        %v6329 = vadd.f32 0.0, %v6328
        %v6330 = vpop.f32.mrb[0].mxu0
        %6331 = vmatprep.mubr.f32.mxu0 0.0
        %6332 = vmatmul.mubr.f32.gmra.mrb[0].mxu0 %v5577
        %v6333 = vpop.f32.mrb[0].mxu0
        %v6334 = vadd.f32 0.0, %v6333
        %v6335 = vpop.f32.mrb[0].mxu0
        %6336 = vmatprep.mubr.f32.mxu0 0.0
        %6337 = vmatmul.mubr.f32.gmra.mrb[0].mxu0 %v5580
        %v6338 = vpop.f32.mrb[0].mxu0
        %v6339 = vadd.f32 0.0, %v6338
        %v6340 = vpop.f32.mrb[0].mxu0
        %6341 = vmatprep.mubr.f32.mxu0 0.0
        %6342 = vmatmul.mubr.f32.gmra.mrb[0].mxu0 %v5583
        %v6343 = vpop.f32.mrb[0].mxu0
        %v6344 = vadd.f32 0.0, %v6343
        %v6345 = vpop.f32.mrb[0].mxu0
        %6346 = vmatprep.mubr.f32.mxu0 0.0
        %6347 = vmatmul.mubr.f32.gmra.mrb[0].mxu0 %v5586
        %v6348 = vpop.f32.mrb[0].mxu0
        %v6349 = vadd.f32 0.0, %v6348
        %v6350 = vpop.f32.mrb[0].mxu0
        %6351 = vmatprep.mubr.f32.mxu0 0.0
        %6352 = vmatmul.mubr.f32.gmra.mrb[0].mxu0 %v5589
        %v6353 = vpop.f32.mrb[0].mxu0
        %v6354 = vadd.f32 0.0, %v6353
        %v6355 = vpop.f32.mrb[0].mxu0
        %6356 = vmatprep.mubr.f32.mxu0 0.0
        %6357 = vmatmul.mubr.f32.gmra.mrb[0].mxu0 %v5592
        %v6358 = vpop.f32.mrb[0].mxu0
        %v6359 = vadd.f32 0.0, %v6358
        %v6360 = vpop.f32.mrb[0].mxu0
        %6361 = vmatprep.mubr.f32.mxu0 0.0
        %6362 = vmatmul.mubr.f32.gmra.mrb[0].mxu0 %v5595
        %v6363 = vpop.f32.mrb[0].mxu0
        %v6364 = vadd.f32 0.0, %v6363
        %v6365 = vpop.f32.mrb[0].mxu0
        %6366 = vmatprep.mubr.f32.mxu0 0.0
        %6367 = vmatmul.mubr.f32.gmra.mrb[0].mxu0 %v5598
        %v6368 = vpop.f32.mrb[0].mxu0
        %v6369 = vadd.f32 0.0, %v6368
        %v6370 = vpop.f32.mrb[0].mxu0
        %6371 = vmatprep.mubr.f32.mxu0 0.0
        %6372 = vmatmul.mubr.f32.gmra.mrb[0].mxu0 %v5601
        %v6373 = vpop.f32.mrb[0].mxu0
        %v6374 = vadd.f32 0.0, %v6373
        %v6375 = vpop.f32.mrb[0].mxu0
        %6376 = vmatprep.mubr.f32.mxu0 0.0
        %6377 = vmatmul.mubr.f32.gmra.mrb[0].mxu0 %v5604
        %v6378 = vpop.f32.mrb[0].mxu0
        %v6379 = vadd.f32 0.0, %v6378
        %v6380 = vpop.f32.mrb[0].mxu0
        %6381 = vmatprep.mubr.f32.mxu0 0.0
        %6382 = vmatmul.mubr.f32.gmra.mrb[0].mxu0 %v5607
        %v6383 = vpop.f32.mrb[0].mxu0
        %v6384 = vadd.f32 0.0, %v6383
        %v6385 = vpop.f32.mrb[0].mxu0
        %6386 = vmatprep.mubr.f32.mxu0 0.0
        %6387 = vmatmul.mubr.f32.gmra.mrb[0].mxu0 %v5610
        %v6388 = vpop.f32.mrb[0].mxu0
        %v6389 = vadd.f32 0.0, %v6388
        %v6390 = vpop.f32.mrb[0].mxu0
        %6391 = vmatprep.mubr.f32.mxu0 0.0
        %6392 = vmatmul.mubr.f32.gmra.mrb[0].mxu0 %v5613
        %v6393 = vpop.f32.mrb[0].mxu0
        %v6394 = vadd.f32 0.0, %v6393
        %v6395 = vpop.f32.mrb[0].mxu0
        %6396 = vmatprep.mubr.f32.mxu0 0.0
        %6397 = vmatmul.mubr.f32.gmra.mrb[0].mxu0 %v5616
        %v6398 = vpop.f32.mrb[0].mxu0
        %v6399 = vadd.f32 0.0, %v6398
        %v6400 = vpop.f32.mrb[0].mxu0
        %6401 = vmatprep.mubr.f32.mxu0 0.0
        %6402 = vmatmul.mubr.f32.gmra.mrb[0].mxu0 %v5619
        %v6403 = vpop.f32.mrb[0].mxu0
        %v6404 = vadd.f32 0.0, %v6403
        %v6405 = vpop.f32.mrb[0].mxu0
        %6406 = vmatprep.mubr.f32.mxu0 0.0
        %6407 = vmatmul.mubr.f32.gmra.mrb[0].mxu0 %v5622
        %v6408 = vpop.f32.mrb[0].mxu0
        %v6409 = vadd.f32 0.0, %v6408
        %v6410 = vpop.f32.mrb[0].mxu0
        %6411 = vmatprep.mubr.f32.mxu0 0.0
        %6412 = vmatmul.mubr.f32.gmra.mrb[0].mxu0 %v5625
        %v6413 = vpop.f32.mrb[0].mxu0
        %v6414 = vadd.f32 0.0, %v6413
        %v6415 = vpop.f32.mrb[0].mxu0
        %6416 = vmatprep.mubr.f32.mxu0 0.0
        %6417 = vmatmul.mubr.f32.gmra.mrb[0].mxu0 %v5628
        %v6418 = vpop.f32.mrb[0].mxu0
        %v6419 = vadd.f32 0.0, %v6418
        %v6420 = vpop.f32.mrb[0].mxu0
        %6421 = vmatprep.mubr.f32.mxu0 0.0
        %6422 = vmatmul.mubr.f32.gmra.mrb[0].mxu0 %v5631
        %v6423 = vpop.f32.mrb[0].mxu0
        %v6424 = vadd.f32 0.0, %v6423
        %v6425 = vpop.f32.mrb[0].mxu0
        %6426 = vmatprep.mubr.f32.mxu0 0.0
        %6427 = vmatmul.mubr.f32.gmra.mrb[0].mxu0 %v5634
        %v6428 = vpop.f32.mrb[0].mxu0
        %v6429 = vadd.f32 0.0, %v6428
        %v6430 = vpop.f32.mrb[0].mxu0
        %6431 = vmatprep.mubr.f32.mxu0 0.0
        %6432 = vmatmul.mubr.f32.gmra.mrb[0].mxu0 %v5637
        %v6433 = vpop.f32.mrb[0].mxu0
        %v6434 = vadd.f32 0.0, %v6433
        %v6435 = vpop.f32.mrb[0].mxu0
        %6436 = vmatprep.mubr.f32.mxu0 0.0
        %6437 = vmatmul.mubr.f32.gmra.mrb[0].mxu0 %v5640
        %v6438 = vpop.f32.mrb[0].mxu0
        %v6439 = vadd.f32 0.0, %v6438
        %v6440 = vpop.f32.mrb[0].mxu0
        %6441 = vmatprep.mubr.f32.mxu0 0.0
        %6442 = vmatmul.mubr.f32.gmra.mrb[0].mxu0 %v5643
        %v6443 = vpop.f32.mrb[0].mxu0
        %v6444 = vadd.f32 0.0, %v6443
        %v6445 = vpop.f32.mrb[0].mxu0
        %6446 = vmatprep.mubr.f32.mxu0 0.0
        %6447 = vmatmul.mubr.f32.gmra.mrb[0].mxu0 %v5646
        %v6448 = vpop.f32.mrb[0].mxu0
        %v6449 = vadd.f32 0.0, %v6448
        %v6450 = vpop.f32.mrb[0].mxu0
        %6451 = vmatprep.mubr.f32.mxu0 0.0
        %6452 = vmatmul.mubr.f32.gmra.mrb[0].mxu0 %v5649
        %v6453 = vpop.f32.mrb[0].mxu0
        %v6454 = vadd.f32 0.0, %v6453
        %v6455 = vpop.f32.mrb[0].mxu0
        %6456 = vmatprep.mubr.f32.mxu0 0.0
        %6457 = vmatmul.mubr.f32.gmra.mrb[0].mxu0 %v5652
        %v6458 = vpop.f32.mrb[0].mxu0
        %v6459 = vadd.f32 0.0, %v6458
        %v6460 = vpop.f32.mrb[0].mxu0
        %6461 = vmatprep.mubr.f32.mxu0 0.0
        %6462 = vmatmul.mubr.f32.gmra.mrb[0].mxu0 %v5655
        %v6463 = vpop.f32.mrb[0].mxu0
        %v6464 = vadd.f32 0.0, %v6463
        %v6465 = vpop.f32.mrb[0].mxu0
        %6466 = vmatprep.mubr.f32.mxu0 0.0
        %6467 = vmatmul.mubr.f32.gmra.mrb[0].mxu0 %v5658
        %v6468 = vpop.f32.mrb[0].mxu0
        %v6469 = vadd.f32 0.0, %v6468
        %v6470 = vpop.f32.mrb[0].mxu0
        %6471 = vmatprep.mubr.f32.mxu0 0.0
        %6472 = vmatmul.mubr.f32.gmra.mrb[0].mxu0 %v5661
        %v6473 = vpop.f32.mrb[0].mxu0
        %v6474 = vadd.f32 0.0, %v6473
        %v6475 = vpop.f32.mrb[0].mxu0
        %6476 = vmatprep.mubr.f32.mxu0 0.0
        %6477 = vmatmul.mubr.f32.gmra.mrb[0].mxu0 %v5664
        %v6478 = vpop.f32.mrb[0].mxu0
        %v6479 = vadd.f32 0.0, %v6478
        %v6480 = vpop.f32.mrb[0].mxu0
        %6481 = vmatprep.mubr.f32.mxu0 0.0
        %6482 = vmatmul.mubr.f32.gmra.mrb[0].mxu0 %v5667
        %v6483 = vpop.f32.mrb[0].mxu0
        %v6484 = vadd.f32 0.0, %v6483
        %v6485 = vpop.f32.mrb[0].mxu0
        %6486 = vmatprep.mubr.f32.mxu0 0.0
        %6487 = vmatmul.mubr.f32.gmra.mrb[0].mxu0 %v5670
        %v6488 = vpop.f32.mrb[0].mxu0
        %v6489 = vadd.f32 0.0, %v6488
        %v6490 = vpop.f32.mrb[0].mxu0
        %6491 = vmatprep.mubr.f32.mxu0 0.0
        %6492 = vmatmul.mubr.f32.gmra.mrb[0].mxu0 %v5673
        %v6493 = vpop.f32.mrb[0].mxu0
        %v6494 = vadd.f32 0.0, %v6493
        %v6495 = vpop.f32.mrb[0].mxu0
        %6496 = vmatprep.mubr.f32.mxu0 0.0
        %6497 = vmatmul.mubr.f32.gmra.mrb[0].mxu0 %v5676
        %v6498 = vpop.f32.mrb[0].mxu0
        %v6499 = vadd.f32 0.0, %v6498
        %v6500 = vpop.f32.mrb[0].mxu0
        %6501 = vmatprep.mubr.f32.mxu0 0.0
        %6502 = vmatmul.mubr.f32.gmra.mrb[0].mxu0 %v5679
        %v6503 = vpop.f32.mrb[0].mxu0
        %v6504 = vadd.f32 0.0, %v6503
        %v6505 = vpop.f32.mrb[0].mxu0
        %6506 = vmatprep.mubr.f32.mxu0 0.0
        %6507 = vmatmul.mubr.f32.gmra.mrb[0].mxu0 %v5682
        %v6508 = vpop.f32.mrb[0].mxu0
        %v6509 = vadd.f32 0.0, %v6508
        %v6510 = vpop.f32.mrb[0].mxu0
        %6511 = vmatprep.mubr.f32.mxu0 0.0
        %6512 = vmatmul.mubr.f32.gmra.mrb[0].mxu0 %v5685
        %v6513 = vpop.f32.mrb[0].mxu0
        %v6514 = vadd.f32 0.0, %v6513
        %v6515 = vpop.f32.mrb[0].mxu0
        %6516 = vmatprep.mubr.f32.mxu0 0.0
        %6517 = vmatmul.mubr.f32.gmra.mrb[0].mxu0 %v5688
        %v6518 = vpop.f32.mrb[0].mxu0
        %v6519 = vadd.f32 0.0, %v6518
        %v6520 = vpop.f32.mrb[0].mxu0
        %6521 = vmatprep.mubr.f32.mxu0 0.0
        %6522 = vmatmul.mubr.f32.gmra.mrb[0].mxu0 %v5691
        %v6523 = vpop.f32.mrb[0].mxu0
        %v6524 = vadd.f32 0.0, %v6523
        %v6525 = vpop.f32.mrb[0].mxu0
        %6526 = vdwg.mxu0
        %6527 = vmatprep.subr.mxu0 0.0
        %6528 = vmatpush1.msra.mxu0 %v369
        %6529 = vmatprep.subr.mxu0 0.0
        %6530 = vmatpush1.msra.mxu0 %v370
        %6531 = vmatprep.subr.mxu0 0.0
        %6532 = vmatpush1.msra.mxu0 %v371
        %6533 = vmatprep.subr.mxu0 0.0
        %6534 = vmatpush1.msra.mxu0 %v372
        %6535 = vmatprep.subr.mxu0 0.0
        %6536 = vmatpush1.msra.mxu0 0.0
        %6537 = vmatprep.subr.mxu0 0.0
        %6538 = vmatpush1.msra.mxu0 0.0
        %6539 = vmatprep.subr.mxu0 0.0
        %6540 = vmatpush1.msra.mxu0 0.0
        %6541 = vmatprep.subr.mxu0 0.0
        %6542 = vmatpush1.msra.mxu0 0.0
        %6543 = vmatprep.subr.mxu0 0.0
        %6544 = vmatpush1.msra.mxu0 0.0
        %6545 = vmatprep.subr.mxu0 0.0
        %6546 = vmatpush1.msra.mxu0 0.0
        %6547 = vmatprep.subr.mxu0 0.0
        %6548 = vmatpush1.msra.mxu0 0.0
        %6549 = vmatprep.subr.mxu0 0.0
        %6550 = vmatpush1.msra.mxu0 0.0
        %6551 = vmatprep.subr.mxu0 0.0
        %6552 = vmatpush1.msra.mxu0 0.0
        %6553 = vmatprep.subr.mxu0 0.0
        %6554 = vmatpush1.msra.mxu0 0.0
        %6555 = vmatprep.subr.mxu0 0.0
        %6556 = vmatpush1.msra.mxu0 0.0
        %6557 = vmatprep.subr.mxu0 0.0
        %6558 = vmatpush1.msra.mxu0 0.0
        %6559 = vmatprep.subr.mxu0 0.0
        %6560 = vmatpush1.msra.mxu0 0.0
        %6561 = vmatprep.subr.mxu0 0.0
        %6562 = vmatpush1.msra.mxu0 0.0
        %6563 = vmatprep.subr.mxu0 0.0
        %6564 = vmatpush1.msra.mxu0 0.0
        %6565 = vmatprep.subr.mxu0 0.0
        %6566 = vmatpush1.msra.mxu0 0.0
        %6567 = vmatprep.subr.mxu0 0.0
        %6568 = vmatpush1.msra.mxu0 0.0
        %6569 = vmatprep.subr.mxu0 0.0
        %6570 = vmatpush1.msra.mxu0 0.0
        %6571 = vmatprep.subr.mxu0 0.0
        %6572 = vmatpush1.msra.mxu0 0.0
        %6573 = vmatprep.subr.mxu0 0.0
        %6574 = vmatpush1.msra.mxu0 0.0
        %6575 = vmatprep.subr.mxu0 0.0
        %6576 = vmatpush1.msra.mxu0 0.0
        %6577 = vmatprep.subr.mxu0 0.0
        %6578 = vmatpush1.msra.mxu0 0.0
        %6579 = vmatprep.subr.mxu0 0.0
        %6580 = vmatpush1.msra.mxu0 0.0
        %6581 = vmatprep.subr.mxu0 0.0
        %6582 = vmatpush1.msra.mxu0 0.0
        %6583 = vmatprep.subr.mxu0 0.0
        %6584 = vmatpush1.msra.mxu0 0.0
        %6585 = vmatprep.subr.mxu0 0.0
        %6586 = vmatpush1.msra.mxu0 0.0
        %6587 = vmatprep.subr.mxu0 0.0
        %6588 = vmatpush1.msra.mxu0 0.0
        %6589 = vmatprep.subr.mxu0 0.0
        %6590 = vmatpush1.msra.mxu0 0.0
        %6591 = vmatprep.mubr.f32.mxu0 0.0
        %6592 = vmatmul.mubr.f32.gmra.mrb[0].mxu0 %v4925
        %v6593 = vpop.f32.mrb[0].mxu0
        %v6594 = vadd.f32 %v6209, %v6593
        %v6595 = vpop.f32.mrb[0].mxu0
        %6596 = vmatprep.mubr.f32.mxu0 0.0
        %6597 = vmatmul.mubr.f32.gmra.mrb[0].mxu0 %v4928
        %v6598 = vpop.f32.mrb[0].mxu0
        %v6599 = vadd.f32 %v6214, %v6598
        %v6600 = vpop.f32.mrb[0].mxu0
        %6601 = vmatprep.mubr.f32.mxu0 0.0
        %6602 = vmatmul.mubr.f32.gmra.mrb[0].mxu0 %v4931
        %v6603 = vpop.f32.mrb[0].mxu0
        %v6604 = vadd.f32 %v6219, %v6603
        %v6605 = vpop.f32.mrb[0].mxu0
        %6606 = vmatprep.mubr.f32.mxu0 0.0
        %6607 = vmatmul.mubr.f32.gmra.mrb[0].mxu0 %v4934
        %v6608 = vpop.f32.mrb[0].mxu0
        %v6609 = vadd.f32 %v6224, %v6608
        %v6610 = vpop.f32.mrb[0].mxu0
        %6611 = vmatprep.mubr.f32.mxu0 0.0
        %6612 = vmatmul.mubr.f32.gmra.mrb[0].mxu0 %v4937
        %v6613 = vpop.f32.mrb[0].mxu0
        %v6614 = vadd.f32 %v6229, %v6613
        %v6615 = vpop.f32.mrb[0].mxu0
        %6616 = vmatprep.mubr.f32.mxu0 0.0
        %6617 = vmatmul.mubr.f32.gmra.mrb[0].mxu0 %v4940
        %v6618 = vpop.f32.mrb[0].mxu0
        %v6619 = vadd.f32 %v6234, %v6618
        %v6620 = vpop.f32.mrb[0].mxu0
        %6621 = vmatprep.mubr.f32.mxu0 0.0
        %6622 = vmatmul.mubr.f32.gmra.mrb[0].mxu0 %v4943
        %v6623 = vpop.f32.mrb[0].mxu0
        %v6624 = vadd.f32 %v6239, %v6623
        %v6625 = vpop.f32.mrb[0].mxu0
        %6626 = vmatprep.mubr.f32.mxu0 0.0
        %6627 = vmatmul.mubr.f32.gmra.mrb[0].mxu0 %v4946
        %v6628 = vpop.f32.mrb[0].mxu0
        %v6629 = vadd.f32 %v6244, %v6628
        %v6630 = vpop.f32.mrb[0].mxu0
        %6631 = vmatprep.mubr.f32.mxu0 0.0
        %6632 = vmatmul.mubr.f32.gmra.mrb[0].mxu0 %v4949
        %v6633 = vpop.f32.mrb[0].mxu0
        %v6634 = vadd.f32 %v6249, %v6633
        %v6635 = vpop.f32.mrb[0].mxu0
        %6636 = vmatprep.mubr.f32.mxu0 0.0
        %6637 = vmatmul.mubr.f32.gmra.mrb[0].mxu0 %v4952
        %v6638 = vpop.f32.mrb[0].mxu0
        %v6639 = vadd.f32 %v6254, %v6638
        %v6640 = vpop.f32.mrb[0].mxu0
        %6641 = vmatprep.mubr.f32.mxu0 0.0
        %6642 = vmatmul.mubr.f32.gmra.mrb[0].mxu0 %v4955
        %v6643 = vpop.f32.mrb[0].mxu0
        %v6644 = vadd.f32 %v6259, %v6643
        %v6645 = vpop.f32.mrb[0].mxu0
        %6646 = vmatprep.mubr.f32.mxu0 0.0
        %6647 = vmatmul.mubr.f32.gmra.mrb[0].mxu0 %v4958
        %v6648 = vpop.f32.mrb[0].mxu0
        %v6649 = vadd.f32 %v6264, %v6648
        %v6650 = vpop.f32.mrb[0].mxu0
        %6651 = vmatprep.mubr.f32.mxu0 0.0
        %6652 = vmatmul.mubr.f32.gmra.mrb[0].mxu0 %v4961
        %v6653 = vpop.f32.mrb[0].mxu0
        %v6654 = vadd.f32 %v6269, %v6653
        %v6655 = vpop.f32.mrb[0].mxu0
        %6656 = vmatprep.mubr.f32.mxu0 0.0
        %6657 = vmatmul.mubr.f32.gmra.mrb[0].mxu0 %v4964
        %v6658 = vpop.f32.mrb[0].mxu0
        %v6659 = vadd.f32 %v6274, %v6658
        %v6660 = vpop.f32.mrb[0].mxu0
        %6661 = vmatprep.mubr.f32.mxu0 0.0
        %6662 = vmatmul.mubr.f32.gmra.mrb[0].mxu0 %v4967
        %v6663 = vpop.f32.mrb[0].mxu0
        %v6664 = vadd.f32 %v6279, %v6663
        %v6665 = vpop.f32.mrb[0].mxu0
        %6666 = vmatprep.mubr.f32.mxu0 0.0
        %6667 = vmatmul.mubr.f32.gmra.mrb[0].mxu0 %v4970
        %v6668 = vpop.f32.mrb[0].mxu0
        %v6669 = vadd.f32 %v6284, %v6668
        %v6670 = vpop.f32.mrb[0].mxu0
        %6671 = vmatprep.mubr.f32.mxu0 0.0
        %6672 = vmatmul.mubr.f32.gmra.mrb[0].mxu0 %v4973
        %v6673 = vpop.f32.mrb[0].mxu0
        %v6674 = vadd.f32 %v6289, %v6673
        %v6675 = vpop.f32.mrb[0].mxu0
        %6676 = vmatprep.mubr.f32.mxu0 0.0
        %6677 = vmatmul.mubr.f32.gmra.mrb[0].mxu0 %v4976
        %v6678 = vpop.f32.mrb[0].mxu0
        %v6679 = vadd.f32 %v6294, %v6678
        %v6680 = vpop.f32.mrb[0].mxu0
        %6681 = vmatprep.mubr.f32.mxu0 0.0
        %6682 = vmatmul.mubr.f32.gmra.mrb[0].mxu0 %v4979
        %v6683 = vpop.f32.mrb[0].mxu0
        %v6684 = vadd.f32 %v6299, %v6683
        %v6685 = vpop.f32.mrb[0].mxu0
        %6686 = vmatprep.mubr.f32.mxu0 0.0
        %6687 = vmatmul.mubr.f32.gmra.mrb[0].mxu0 %v4982
        %v6688 = vpop.f32.mrb[0].mxu0
        %v6689 = vadd.f32 %v6304, %v6688
        %v6690 = vpop.f32.mrb[0].mxu0
        %6691 = vmatprep.mubr.f32.mxu0 0.0
        %6692 = vmatmul.mubr.f32.gmra.mrb[0].mxu0 %v4985
        %v6693 = vpop.f32.mrb[0].mxu0
        %v6694 = vadd.f32 %v6309, %v6693
        %v6695 = vpop.f32.mrb[0].mxu0
        %6696 = vmatprep.mubr.f32.mxu0 0.0
        %6697 = vmatmul.mubr.f32.gmra.mrb[0].mxu0 %v4988
        %v6698 = vpop.f32.mrb[0].mxu0
        %v6699 = vadd.f32 %v6314, %v6698
        %v6700 = vpop.f32.mrb[0].mxu0
        %6701 = vmatprep.mubr.f32.mxu0 0.0
        %6702 = vmatmul.mubr.f32.gmra.mrb[0].mxu0 %v4991
        %v6703 = vpop.f32.mrb[0].mxu0
        %v6704 = vadd.f32 %v6319, %v6703
        %v6705 = vpop.f32.mrb[0].mxu0
        %6706 = vmatprep.mubr.f32.mxu0 0.0
        %6707 = vmatmul.mubr.f32.gmra.mrb[0].mxu0 %v4994
        %v6708 = vpop.f32.mrb[0].mxu0
        %v6709 = vadd.f32 %v6324, %v6708
        %v6710 = vpop.f32.mrb[0].mxu0
        %6711 = vmatprep.mubr.f32.mxu0 0.0
        %6712 = vmatmul.mubr.f32.gmra.mrb[0].mxu0 %v4997
        %v6713 = vpop.f32.mrb[0].mxu0
        %v6714 = vadd.f32 %v6329, %v6713
        %v6715 = vpop.f32.mrb[0].mxu0
        %6716 = vmatprep.mubr.f32.mxu0 0.0
        %6717 = vmatmul.mubr.f32.gmra.mrb[0].mxu0 %v5000
        %v6718 = vpop.f32.mrb[0].mxu0
        %v6719 = vadd.f32 %v6334, %v6718
        %v6720 = vpop.f32.mrb[0].mxu0
        %6721 = vmatprep.mubr.f32.mxu0 0.0
        %6722 = vmatmul.mubr.f32.gmra.mrb[0].mxu0 %v5003
        %v6723 = vpop.f32.mrb[0].mxu0
        %v6724 = vadd.f32 %v6339, %v6723
        %v6725 = vpop.f32.mrb[0].mxu0
        %6726 = vmatprep.mubr.f32.mxu0 0.0
        %6727 = vmatmul.mubr.f32.gmra.mrb[0].mxu0 %v5006
        %v6728 = vpop.f32.mrb[0].mxu0
        %v6729 = vadd.f32 %v6344, %v6728
        %v6730 = vpop.f32.mrb[0].mxu0
        %6731 = vmatprep.mubr.f32.mxu0 0.0
        %6732 = vmatmul.mubr.f32.gmra.mrb[0].mxu0 %v5009
        %v6733 = vpop.f32.mrb[0].mxu0
        %v6734 = vadd.f32 %v6349, %v6733
        %v6735 = vpop.f32.mrb[0].mxu0
        %6736 = vmatprep.mubr.f32.mxu0 0.0
        %6737 = vmatmul.mubr.f32.gmra.mrb[0].mxu0 %v5012
        %v6738 = vpop.f32.mrb[0].mxu0
        %v6739 = vadd.f32 %v6354, %v6738
        %v6740 = vpop.f32.mrb[0].mxu0
        %6741 = vmatprep.mubr.f32.mxu0 0.0
        %6742 = vmatmul.mubr.f32.gmra.mrb[0].mxu0 %v5015
        %v6743 = vpop.f32.mrb[0].mxu0
        %v6744 = vadd.f32 %v6359, %v6743
        %v6745 = vpop.f32.mrb[0].mxu0
        %6746 = vmatprep.mubr.f32.mxu0 0.0
        %6747 = vmatmul.mubr.f32.gmra.mrb[0].mxu0 %v5018
        %v6748 = vpop.f32.mrb[0].mxu0
        %v6749 = vadd.f32 %v6364, %v6748
        %v6750 = vpop.f32.mrb[0].mxu0
        %6751 = vmatprep.mubr.f32.mxu0 0.0
        %6752 = vmatmul.mubr.f32.gmra.mrb[0].mxu0 %v5021
        %v6753 = vpop.f32.mrb[0].mxu0
        %v6754 = vadd.f32 %v6369, %v6753
        %v6755 = vpop.f32.mrb[0].mxu0
        %6756 = vmatprep.mubr.f32.mxu0 0.0
        %6757 = vmatmul.mubr.f32.gmra.mrb[0].mxu0 %v5024
        %v6758 = vpop.f32.mrb[0].mxu0
        %v6759 = vadd.f32 %v6374, %v6758
        %v6760 = vpop.f32.mrb[0].mxu0
        %6761 = vmatprep.mubr.f32.mxu0 0.0
        %6762 = vmatmul.mubr.f32.gmra.mrb[0].mxu0 %v5027
        %v6763 = vpop.f32.mrb[0].mxu0
        %v6764 = vadd.f32 %v6379, %v6763
        %v6765 = vpop.f32.mrb[0].mxu0
        %6766 = vmatprep.mubr.f32.mxu0 0.0
        %6767 = vmatmul.mubr.f32.gmra.mrb[0].mxu0 %v5030
        %v6768 = vpop.f32.mrb[0].mxu0
        %v6769 = vadd.f32 %v6384, %v6768
        %v6770 = vpop.f32.mrb[0].mxu0
        %6771 = vmatprep.mubr.f32.mxu0 0.0
        %6772 = vmatmul.mubr.f32.gmra.mrb[0].mxu0 %v5033
        %v6773 = vpop.f32.mrb[0].mxu0
        %v6774 = vadd.f32 %v6389, %v6773
        %v6775 = vpop.f32.mrb[0].mxu0
        %6776 = vmatprep.mubr.f32.mxu0 0.0
        %6777 = vmatmul.mubr.f32.gmra.mrb[0].mxu0 %v5036
        %v6778 = vpop.f32.mrb[0].mxu0
        %v6779 = vadd.f32 %v6394, %v6778
        %v6780 = vpop.f32.mrb[0].mxu0
        %6781 = vmatprep.mubr.f32.mxu0 0.0
        %6782 = vmatmul.mubr.f32.gmra.mrb[0].mxu0 %v5039
        %v6783 = vpop.f32.mrb[0].mxu0
        %v6784 = vadd.f32 %v6399, %v6783
        %v6785 = vpop.f32.mrb[0].mxu0
        %6786 = vmatprep.mubr.f32.mxu0 0.0
        %6787 = vmatmul.mubr.f32.gmra.mrb[0].mxu0 %v5042
        %v6788 = vpop.f32.mrb[0].mxu0
        %v6789 = vadd.f32 %v6404, %v6788
        %v6790 = vpop.f32.mrb[0].mxu0
        %6791 = vmatprep.mubr.f32.mxu0 0.0
        %6792 = vmatmul.mubr.f32.gmra.mrb[0].mxu0 %v5045
        %v6793 = vpop.f32.mrb[0].mxu0
        %v6794 = vadd.f32 %v6409, %v6793
        %v6795 = vpop.f32.mrb[0].mxu0
        %6796 = vmatprep.mubr.f32.mxu0 0.0
        %6797 = vmatmul.mubr.f32.gmra.mrb[0].mxu0 %v5048
        %v6798 = vpop.f32.mrb[0].mxu0
        %v6799 = vadd.f32 %v6414, %v6798
        %v6800 = vpop.f32.mrb[0].mxu0
        %6801 = vmatprep.mubr.f32.mxu0 0.0
        %6802 = vmatmul.mubr.f32.gmra.mrb[0].mxu0 %v5051
        %v6803 = vpop.f32.mrb[0].mxu0
        %v6804 = vadd.f32 %v6419, %v6803
        %v6805 = vpop.f32.mrb[0].mxu0
        %6806 = vmatprep.mubr.f32.mxu0 0.0
        %6807 = vmatmul.mubr.f32.gmra.mrb[0].mxu0 %v5054
        %v6808 = vpop.f32.mrb[0].mxu0
        %v6809 = vadd.f32 %v6424, %v6808
        %v6810 = vpop.f32.mrb[0].mxu0
        %6811 = vmatprep.mubr.f32.mxu0 0.0
        %6812 = vmatmul.mubr.f32.gmra.mrb[0].mxu0 %v5057
        %v6813 = vpop.f32.mrb[0].mxu0
        %v6814 = vadd.f32 %v6429, %v6813
        %v6815 = vpop.f32.mrb[0].mxu0
        %6816 = vmatprep.mubr.f32.mxu0 0.0
        %6817 = vmatmul.mubr.f32.gmra.mrb[0].mxu0 %v5060
        %v6818 = vpop.f32.mrb[0].mxu0
        %v6819 = vadd.f32 %v6434, %v6818
        %v6820 = vpop.f32.mrb[0].mxu0
        %6821 = vmatprep.mubr.f32.mxu0 0.0
        %6822 = vmatmul.mubr.f32.gmra.mrb[0].mxu0 %v5063
        %v6823 = vpop.f32.mrb[0].mxu0
        %v6824 = vadd.f32 %v6439, %v6823
        %v6825 = vpop.f32.mrb[0].mxu0
        %6826 = vmatprep.mubr.f32.mxu0 0.0
        %6827 = vmatmul.mubr.f32.gmra.mrb[0].mxu0 %v5066
        %v6828 = vpop.f32.mrb[0].mxu0
        %v6829 = vadd.f32 %v6444, %v6828
        %v6830 = vpop.f32.mrb[0].mxu0
        %6831 = vmatprep.mubr.f32.mxu0 0.0
        %6832 = vmatmul.mubr.f32.gmra.mrb[0].mxu0 %v5069
        %v6833 = vpop.f32.mrb[0].mxu0
        %v6834 = vadd.f32 %v6449, %v6833
        %v6835 = vpop.f32.mrb[0].mxu0
        %6836 = vmatprep.mubr.f32.mxu0 0.0
        %6837 = vmatmul.mubr.f32.gmra.mrb[0].mxu0 %v5072
        %v6838 = vpop.f32.mrb[0].mxu0
        %v6839 = vadd.f32 %v6454, %v6838
        %v6840 = vpop.f32.mrb[0].mxu0
        %6841 = vmatprep.mubr.f32.mxu0 0.0
        %6842 = vmatmul.mubr.f32.gmra.mrb[0].mxu0 %v5075
        %v6843 = vpop.f32.mrb[0].mxu0
        %v6844 = vadd.f32 %v6459, %v6843
        %v6845 = vpop.f32.mrb[0].mxu0
        %6846 = vmatprep.mubr.f32.mxu0 0.0
        %6847 = vmatmul.mubr.f32.gmra.mrb[0].mxu0 %v5078
        %v6848 = vpop.f32.mrb[0].mxu0
        %v6849 = vadd.f32 %v6464, %v6848
        %v6850 = vpop.f32.mrb[0].mxu0
        %6851 = vmatprep.mubr.f32.mxu0 0.0
        %6852 = vmatmul.mubr.f32.gmra.mrb[0].mxu0 %v5081
        %v6853 = vpop.f32.mrb[0].mxu0
        %v6854 = vadd.f32 %v6469, %v6853
        %v6855 = vpop.f32.mrb[0].mxu0
        %6856 = vmatprep.mubr.f32.mxu0 0.0
        %6857 = vmatmul.mubr.f32.gmra.mrb[0].mxu0 %v5084
        %v6858 = vpop.f32.mrb[0].mxu0
        %v6859 = vadd.f32 %v6474, %v6858
        %v6860 = vpop.f32.mrb[0].mxu0
        %6861 = vmatprep.mubr.f32.mxu0 0.0
        %6862 = vmatmul.mubr.f32.gmra.mrb[0].mxu0 %v5087
        %v6863 = vpop.f32.mrb[0].mxu0
        %v6864 = vadd.f32 %v6479, %v6863
        %v6865 = vpop.f32.mrb[0].mxu0
        %6866 = vmatprep.mubr.f32.mxu0 0.0
        %6867 = vmatmul.mubr.f32.gmra.mrb[0].mxu0 %v5090
        %v6868 = vpop.f32.mrb[0].mxu0
        %v6869 = vadd.f32 %v6484, %v6868
        %v6870 = vpop.f32.mrb[0].mxu0
        %6871 = vmatprep.mubr.f32.mxu0 0.0
        %6872 = vmatmul.mubr.f32.gmra.mrb[0].mxu0 %v5093
        %v6873 = vpop.f32.mrb[0].mxu0
        %v6874 = vadd.f32 %v6489, %v6873
        %v6875 = vpop.f32.mrb[0].mxu0
        %6876 = vmatprep.mubr.f32.mxu0 0.0
        %6877 = vmatmul.mubr.f32.gmra.mrb[0].mxu0 %v5096
        %v6878 = vpop.f32.mrb[0].mxu0
        %v6879 = vadd.f32 %v6494, %v6878
        %v6880 = vpop.f32.mrb[0].mxu0
        %6881 = vmatprep.mubr.f32.mxu0 0.0
        %6882 = vmatmul.mubr.f32.gmra.mrb[0].mxu0 %v5099
        %v6883 = vpop.f32.mrb[0].mxu0
        %v6884 = vadd.f32 %v6499, %v6883
        %v6885 = vpop.f32.mrb[0].mxu0
        %6886 = vmatprep.mubr.f32.mxu0 0.0
        %6887 = vmatmul.mubr.f32.gmra.mrb[0].mxu0 %v5102
        %v6888 = vpop.f32.mrb[0].mxu0
        %v6889 = vadd.f32 %v6504, %v6888
        %v6890 = vpop.f32.mrb[0].mxu0
        %6891 = vmatprep.mubr.f32.mxu0 0.0
        %6892 = vmatmul.mubr.f32.gmra.mrb[0].mxu0 %v5105
        %v6893 = vpop.f32.mrb[0].mxu0
        %v6894 = vadd.f32 %v6509, %v6893
        %v6895 = vpop.f32.mrb[0].mxu0
        %6896 = vmatprep.mubr.f32.mxu0 0.0
        %6897 = vmatmul.mubr.f32.gmra.mrb[0].mxu0 %v5108
        %v6898 = vpop.f32.mrb[0].mxu0
        %v6899 = vadd.f32 %v6514, %v6898
        %v6900 = vpop.f32.mrb[0].mxu0
        %6901 = vmatprep.mubr.f32.mxu0 0.0
        %6902 = vmatmul.mubr.f32.gmra.mrb[0].mxu0 %v5111
        %v6903 = vpop.f32.mrb[0].mxu0
        %v6904 = vadd.f32 %v6519, %v6903
        %v6905 = vpop.f32.mrb[0].mxu0
        %6906 = vmatprep.mubr.f32.mxu0 0.0
        %6907 = vmatmul.mubr.f32.gmra.mrb[0].mxu0 %v5114
        %v6908 = vpop.f32.mrb[0].mxu0
        %v6909 = vadd.f32 %v6524, %v6908
        %v6910 = vpop.f32.mrb[0].mxu0
        %6911 = vdwg.mxu0
        %6912 = vxpose.xlu0.b32.start [1/16] %v6078, 128
        %6913 = vxpose.xlu0.b32.cont [2/16] %v6079, 128
        %6914 = vxpose.xlu0.b32.cont [3/16] %v6080, 128
        %6915 = vxpose.xlu0.b32.cont [4/16] %v6081, 128
        %6916 = vxpose.xlu0.b32.cont [5/16] 0.0, 128
        %6917 = vxpose.xlu0.b32.cont [6/16] 0.0, 128
        %6918 = vxpose.xlu0.b32.cont [7/16] 0.0, 128
        %6919 = vxpose.xlu0.b32.cont [8/16] 0.0, 128
        %6920 = vxpose.xlu0.b32.cont [9/16] 0.0, 128
        %6921 = vxpose.xlu0.b32.cont [10/16] 0.0, 128
        %6922 = vxpose.xlu0.b32.cont [11/16] 0.0, 128
        %6923 = vxpose.xlu0.b32.cont [12/16] 0.0, 128
        %6924 = vxpose.xlu0.b32.cont [13/16] 0.0, 128
        %6925 = vxpose.xlu0.b32.cont [14/16] 0.0, 128
        %6926 = vxpose.xlu0.b32.cont [15/16] 0.0, 128
        %6927 = vxpose.xlu0.b32.end [16/16] 0.0, 128
        %v6928 = vpop.trf.xlu0
        %v6929 = vpop.trf.xlu0
        %v6930 = vpop.trf.xlu0
        %v6931 = vpop.trf.xlu0
        %v6932 = vpop.trf.xlu0
        %v6933 = vpop.trf.xlu0
        %v6934 = vpop.trf.xlu0
        %v6935 = vpop.trf.xlu0
        %v6936 = vpop.trf.xlu0
        %v6937 = vpop.trf.xlu0
        %v6938 = vpop.trf.xlu0
        %v6939 = vpop.trf.xlu0
        %v6940 = vpop.trf.xlu0
        %v6941 = vpop.trf.xlu0
        %v6942 = vpop.trf.xlu0
        %v6943 = vpop.trf.xlu0
        %6944 = vxpose.xlu0.b32.start [1/16] %v6082, 128
        %6945 = vxpose.xlu0.b32.cont [2/16] %v6083, 128
        %6946 = vxpose.xlu0.b32.cont [3/16] %v6084, 128
        %6947 = vxpose.xlu0.b32.cont [4/16] %v6085, 128
        %6948 = vxpose.xlu0.b32.cont [5/16] 0.0, 128
        %6949 = vxpose.xlu0.b32.cont [6/16] 0.0, 128
        %6950 = vxpose.xlu0.b32.cont [7/16] 0.0, 128
        %6951 = vxpose.xlu0.b32.cont [8/16] 0.0, 128
        %6952 = vxpose.xlu0.b32.cont [9/16] 0.0, 128
        %6953 = vxpose.xlu0.b32.cont [10/16] 0.0, 128
        %6954 = vxpose.xlu0.b32.cont [11/16] 0.0, 128
        %6955 = vxpose.xlu0.b32.cont [12/16] 0.0, 128
        %6956 = vxpose.xlu0.b32.cont [13/16] 0.0, 128
        %6957 = vxpose.xlu0.b32.cont [14/16] 0.0, 128
        %6958 = vxpose.xlu0.b32.cont [15/16] 0.0, 128
        %6959 = vxpose.xlu0.b32.end [16/16] 0.0, 128
        %v6960 = vpop.trf.xlu0
        %v6961 = vpop.trf.xlu0
        %v6962 = vpop.trf.xlu0
        %v6963 = vpop.trf.xlu0
        %v6964 = vpop.trf.xlu0
        %v6965 = vpop.trf.xlu0
        %v6966 = vpop.trf.xlu0
        %v6967 = vpop.trf.xlu0
        %v6968 = vpop.trf.xlu0
        %v6969 = vpop.trf.xlu0
        %v6970 = vpop.trf.xlu0
        %v6971 = vpop.trf.xlu0
        %v6972 = vpop.trf.xlu0
        %v6973 = vpop.trf.xlu0
        %v6974 = vpop.trf.xlu0
        %v6975 = vpop.trf.xlu0
        %6976 = vxpose.xlu0.b32.start [1/16] %v6086, 128
        %6977 = vxpose.xlu0.b32.cont [2/16] %v6087, 128
        %6978 = vxpose.xlu0.b32.cont [3/16] %v6088, 128
        %6979 = vxpose.xlu0.b32.cont [4/16] %v6089, 128
        %6980 = vxpose.xlu0.b32.cont [5/16] 0.0, 128
        %6981 = vxpose.xlu0.b32.cont [6/16] 0.0, 128
        %6982 = vxpose.xlu0.b32.cont [7/16] 0.0, 128
        %6983 = vxpose.xlu0.b32.cont [8/16] 0.0, 128
        %6984 = vxpose.xlu0.b32.cont [9/16] 0.0, 128
        %6985 = vxpose.xlu0.b32.cont [10/16] 0.0, 128
        %6986 = vxpose.xlu0.b32.cont [11/16] 0.0, 128
        %6987 = vxpose.xlu0.b32.cont [12/16] 0.0, 128
        %6988 = vxpose.xlu0.b32.cont [13/16] 0.0, 128
        %6989 = vxpose.xlu0.b32.cont [14/16] 0.0, 128
        %6990 = vxpose.xlu0.b32.cont [15/16] 0.0, 128
        %6991 = vxpose.xlu0.b32.end [16/16] 0.0, 128
        %v6992 = vpop.trf.xlu0
        %v6993 = vpop.trf.xlu0
        %v6994 = vpop.trf.xlu0
        %v6995 = vpop.trf.xlu0
        %v6996 = vpop.trf.xlu0
        %v6997 = vpop.trf.xlu0
        %v6998 = vpop.trf.xlu0
        %v6999 = vpop.trf.xlu0
        %v7000 = vpop.trf.xlu0
        %v7001 = vpop.trf.xlu0
        %v7002 = vpop.trf.xlu0
        %v7003 = vpop.trf.xlu0
        %v7004 = vpop.trf.xlu0
        %v7005 = vpop.trf.xlu0
        %v7006 = vpop.trf.xlu0
        %v7007 = vpop.trf.xlu0
        %7008 = vxpose.xlu0.b32.start [1/16] %v6090, 128
        %7009 = vxpose.xlu0.b32.cont [2/16] %v6091, 128
        %7010 = vxpose.xlu0.b32.cont [3/16] %v6092, 128
        %7011 = vxpose.xlu0.b32.cont [4/16] %v6093, 128
        %7012 = vxpose.xlu0.b32.cont [5/16] 0.0, 128
        %7013 = vxpose.xlu0.b32.cont [6/16] 0.0, 128
        %7014 = vxpose.xlu0.b32.cont [7/16] 0.0, 128
        %7015 = vxpose.xlu0.b32.cont [8/16] 0.0, 128
        %7016 = vxpose.xlu0.b32.cont [9/16] 0.0, 128
        %7017 = vxpose.xlu0.b32.cont [10/16] 0.0, 128
        %7018 = vxpose.xlu0.b32.cont [11/16] 0.0, 128
        %7019 = vxpose.xlu0.b32.cont [12/16] 0.0, 128
        %7020 = vxpose.xlu0.b32.cont [13/16] 0.0, 128
        %7021 = vxpose.xlu0.b32.cont [14/16] 0.0, 128
        %7022 = vxpose.xlu0.b32.cont [15/16] 0.0, 128
        %7023 = vxpose.xlu0.b32.end [16/16] 0.0, 128
        %v7024 = vpop.trf.xlu0
        %v7025 = vpop.trf.xlu0
        %v7026 = vpop.trf.xlu0
        %v7027 = vpop.trf.xlu0
        %v7028 = vpop.trf.xlu0
        %v7029 = vpop.trf.xlu0
        %v7030 = vpop.trf.xlu0
        %v7031 = vpop.trf.xlu0
        %v7032 = vpop.trf.xlu0
        %v7033 = vpop.trf.xlu0
        %v7034 = vpop.trf.xlu0
        %v7035 = vpop.trf.xlu0
        %v7036 = vpop.trf.xlu0
        %v7037 = vpop.trf.xlu0
        %v7038 = vpop.trf.xlu0
        %v7039 = vpop.trf.xlu0
        %7040 = vxpose.xlu0.b32.start [1/16] %v6094, 128
        %7041 = vxpose.xlu0.b32.cont [2/16] %v6095, 128
        %7042 = vxpose.xlu0.b32.cont [3/16] %v6096, 128
        %7043 = vxpose.xlu0.b32.cont [4/16] %v6097, 128
        %7044 = vxpose.xlu0.b32.cont [5/16] 0.0, 128
        %7045 = vxpose.xlu0.b32.cont [6/16] 0.0, 128
        %7046 = vxpose.xlu0.b32.cont [7/16] 0.0, 128
        %7047 = vxpose.xlu0.b32.cont [8/16] 0.0, 128
        %7048 = vxpose.xlu0.b32.cont [9/16] 0.0, 128
        %7049 = vxpose.xlu0.b32.cont [10/16] 0.0, 128
        %7050 = vxpose.xlu0.b32.cont [11/16] 0.0, 128
        %7051 = vxpose.xlu0.b32.cont [12/16] 0.0, 128
        %7052 = vxpose.xlu0.b32.cont [13/16] 0.0, 128
        %7053 = vxpose.xlu0.b32.cont [14/16] 0.0, 128
        %7054 = vxpose.xlu0.b32.cont [15/16] 0.0, 128
        %7055 = vxpose.xlu0.b32.end [16/16] 0.0, 128
        %v7056 = vpop.trf.xlu0
        %v7057 = vpop.trf.xlu0
        %v7058 = vpop.trf.xlu0
        %v7059 = vpop.trf.xlu0
        %v7060 = vpop.trf.xlu0
        %v7061 = vpop.trf.xlu0
        %v7062 = vpop.trf.xlu0
        %v7063 = vpop.trf.xlu0
        %v7064 = vpop.trf.xlu0
        %v7065 = vpop.trf.xlu0
        %v7066 = vpop.trf.xlu0
        %v7067 = vpop.trf.xlu0
        %v7068 = vpop.trf.xlu0
        %v7069 = vpop.trf.xlu0
        %v7070 = vpop.trf.xlu0
        %v7071 = vpop.trf.xlu0
        %7072 = vxpose.xlu0.b32.start [1/16] %v6098, 128
        %7073 = vxpose.xlu0.b32.cont [2/16] %v6099, 128
        %7074 = vxpose.xlu0.b32.cont [3/16] %v6100, 128
        %7075 = vxpose.xlu0.b32.cont [4/16] %v6101, 128
        %7076 = vxpose.xlu0.b32.cont [5/16] 0.0, 128
        %7077 = vxpose.xlu0.b32.cont [6/16] 0.0, 128
        %7078 = vxpose.xlu0.b32.cont [7/16] 0.0, 128
        %7079 = vxpose.xlu0.b32.cont [8/16] 0.0, 128
        %7080 = vxpose.xlu0.b32.cont [9/16] 0.0, 128
        %7081 = vxpose.xlu0.b32.cont [10/16] 0.0, 128
        %7082 = vxpose.xlu0.b32.cont [11/16] 0.0, 128
        %7083 = vxpose.xlu0.b32.cont [12/16] 0.0, 128
        %7084 = vxpose.xlu0.b32.cont [13/16] 0.0, 128
        %7085 = vxpose.xlu0.b32.cont [14/16] 0.0, 128
        %7086 = vxpose.xlu0.b32.cont [15/16] 0.0, 128
        %7087 = vxpose.xlu0.b32.end [16/16] 0.0, 128
        %v7088 = vpop.trf.xlu0
        %v7089 = vpop.trf.xlu0
        %v7090 = vpop.trf.xlu0
        %v7091 = vpop.trf.xlu0
        %v7092 = vpop.trf.xlu0
        %v7093 = vpop.trf.xlu0
        %v7094 = vpop.trf.xlu0
        %v7095 = vpop.trf.xlu0
        %v7096 = vpop.trf.xlu0
        %v7097 = vpop.trf.xlu0
        %v7098 = vpop.trf.xlu0
        %v7099 = vpop.trf.xlu0
        %v7100 = vpop.trf.xlu0
        %v7101 = vpop.trf.xlu0
        %v7102 = vpop.trf.xlu0
        %v7103 = vpop.trf.xlu0
        %7104 = vxpose.xlu0.b32.start [1/16] %v6102, 128
        %7105 = vxpose.xlu0.b32.cont [2/16] %v6103, 128
        %7106 = vxpose.xlu0.b32.cont [3/16] %v6104, 128
        %7107 = vxpose.xlu0.b32.cont [4/16] %v6105, 128
        %7108 = vxpose.xlu0.b32.cont [5/16] 0.0, 128
        %7109 = vxpose.xlu0.b32.cont [6/16] 0.0, 128
        %7110 = vxpose.xlu0.b32.cont [7/16] 0.0, 128
        %7111 = vxpose.xlu0.b32.cont [8/16] 0.0, 128
        %7112 = vxpose.xlu0.b32.cont [9/16] 0.0, 128
        %7113 = vxpose.xlu0.b32.cont [10/16] 0.0, 128
        %7114 = vxpose.xlu0.b32.cont [11/16] 0.0, 128
        %7115 = vxpose.xlu0.b32.cont [12/16] 0.0, 128
        %7116 = vxpose.xlu0.b32.cont [13/16] 0.0, 128
        %7117 = vxpose.xlu0.b32.cont [14/16] 0.0, 128
        %7118 = vxpose.xlu0.b32.cont [15/16] 0.0, 128
        %7119 = vxpose.xlu0.b32.end [16/16] 0.0, 128
        %v7120 = vpop.trf.xlu0
        %v7121 = vpop.trf.xlu0
        %v7122 = vpop.trf.xlu0
        %v7123 = vpop.trf.xlu0
        %v7124 = vpop.trf.xlu0
        %v7125 = vpop.trf.xlu0
        %v7126 = vpop.trf.xlu0
        %v7127 = vpop.trf.xlu0
        %v7128 = vpop.trf.xlu0
        %v7129 = vpop.trf.xlu0
        %v7130 = vpop.trf.xlu0
        %v7131 = vpop.trf.xlu0
        %v7132 = vpop.trf.xlu0
        %v7133 = vpop.trf.xlu0
        %v7134 = vpop.trf.xlu0
        %v7135 = vpop.trf.xlu0
        %7136 = vxpose.xlu0.b32.start [1/16] %v6106, 128
        %7137 = vxpose.xlu0.b32.cont [2/16] %v6107, 128
        %7138 = vxpose.xlu0.b32.cont [3/16] %v6108, 128
        %7139 = vxpose.xlu0.b32.cont [4/16] %v6109, 128
        %7140 = vxpose.xlu0.b32.cont [5/16] 0.0, 128
        %7141 = vxpose.xlu0.b32.cont [6/16] 0.0, 128
        %7142 = vxpose.xlu0.b32.cont [7/16] 0.0, 128
        %7143 = vxpose.xlu0.b32.cont [8/16] 0.0, 128
        %7144 = vxpose.xlu0.b32.cont [9/16] 0.0, 128
        %7145 = vxpose.xlu0.b32.cont [10/16] 0.0, 128
        %7146 = vxpose.xlu0.b32.cont [11/16] 0.0, 128
        %7147 = vxpose.xlu0.b32.cont [12/16] 0.0, 128
        %7148 = vxpose.xlu0.b32.cont [13/16] 0.0, 128
        %7149 = vxpose.xlu0.b32.cont [14/16] 0.0, 128
        %7150 = vxpose.xlu0.b32.cont [15/16] 0.0, 128
        %7151 = vxpose.xlu0.b32.end [16/16] 0.0, 128
        %v7152 = vpop.trf.xlu0
        %v7153 = vpop.trf.xlu0
        %v7154 = vpop.trf.xlu0
        %v7155 = vpop.trf.xlu0
        %v7156 = vpop.trf.xlu0
        %v7157 = vpop.trf.xlu0
        %v7158 = vpop.trf.xlu0
        %v7159 = vpop.trf.xlu0
        %v7160 = vpop.trf.xlu0
        %v7161 = vpop.trf.xlu0
        %v7162 = vpop.trf.xlu0
        %v7163 = vpop.trf.xlu0
        %v7164 = vpop.trf.xlu0
        %v7165 = vpop.trf.xlu0
        %v7166 = vpop.trf.xlu0
        %v7167 = vpop.trf.xlu0
        %7168 = vxpose.xlu0.b32.start [1/16] %v6110, 128
        %7169 = vxpose.xlu0.b32.cont [2/16] %v6111, 128
        %7170 = vxpose.xlu0.b32.cont [3/16] %v6112, 128
        %7171 = vxpose.xlu0.b32.cont [4/16] %v6113, 128
        %7172 = vxpose.xlu0.b32.cont [5/16] 0.0, 128
        %7173 = vxpose.xlu0.b32.cont [6/16] 0.0, 128
        %7174 = vxpose.xlu0.b32.cont [7/16] 0.0, 128
        %7175 = vxpose.xlu0.b32.cont [8/16] 0.0, 128
        %7176 = vxpose.xlu0.b32.cont [9/16] 0.0, 128
        %7177 = vxpose.xlu0.b32.cont [10/16] 0.0, 128
        %7178 = vxpose.xlu0.b32.cont [11/16] 0.0, 128
        %7179 = vxpose.xlu0.b32.cont [12/16] 0.0, 128
        %7180 = vxpose.xlu0.b32.cont [13/16] 0.0, 128
        %7181 = vxpose.xlu0.b32.cont [14/16] 0.0, 128
        %7182 = vxpose.xlu0.b32.cont [15/16] 0.0, 128
        %7183 = vxpose.xlu0.b32.end [16/16] 0.0, 128
        %v7184 = vpop.trf.xlu0
        %v7185 = vpop.trf.xlu0
        %v7186 = vpop.trf.xlu0
        %v7187 = vpop.trf.xlu0
        %v7188 = vpop.trf.xlu0
        %v7189 = vpop.trf.xlu0
        %v7190 = vpop.trf.xlu0
        %v7191 = vpop.trf.xlu0
        %v7192 = vpop.trf.xlu0
        %v7193 = vpop.trf.xlu0
        %v7194 = vpop.trf.xlu0
        %v7195 = vpop.trf.xlu0
        %v7196 = vpop.trf.xlu0
        %v7197 = vpop.trf.xlu0
        %v7198 = vpop.trf.xlu0
        %v7199 = vpop.trf.xlu0
        %7200 = vxpose.xlu0.b32.start [1/16] %v6114, 128
        %7201 = vxpose.xlu0.b32.cont [2/16] %v6115, 128
        %7202 = vxpose.xlu0.b32.cont [3/16] %v6116, 128
        %7203 = vxpose.xlu0.b32.cont [4/16] %v6117, 128
        %7204 = vxpose.xlu0.b32.cont [5/16] 0.0, 128
        %7205 = vxpose.xlu0.b32.cont [6/16] 0.0, 128
        %7206 = vxpose.xlu0.b32.cont [7/16] 0.0, 128
        %7207 = vxpose.xlu0.b32.cont [8/16] 0.0, 128
        %7208 = vxpose.xlu0.b32.cont [9/16] 0.0, 128
        %7209 = vxpose.xlu0.b32.cont [10/16] 0.0, 128
        %7210 = vxpose.xlu0.b32.cont [11/16] 0.0, 128
        %7211 = vxpose.xlu0.b32.cont [12/16] 0.0, 128
        %7212 = vxpose.xlu0.b32.cont [13/16] 0.0, 128
        %7213 = vxpose.xlu0.b32.cont [14/16] 0.0, 128
        %7214 = vxpose.xlu0.b32.cont [15/16] 0.0, 128
        %7215 = vxpose.xlu0.b32.end [16/16] 0.0, 128
        %v7216 = vpop.trf.xlu0
        %v7217 = vpop.trf.xlu0
        %v7218 = vpop.trf.xlu0
        %v7219 = vpop.trf.xlu0
        %v7220 = vpop.trf.xlu0
        %v7221 = vpop.trf.xlu0
        %v7222 = vpop.trf.xlu0
        %v7223 = vpop.trf.xlu0
        %v7224 = vpop.trf.xlu0
        %v7225 = vpop.trf.xlu0
        %v7226 = vpop.trf.xlu0
        %v7227 = vpop.trf.xlu0
        %v7228 = vpop.trf.xlu0
        %v7229 = vpop.trf.xlu0
        %v7230 = vpop.trf.xlu0
        %v7231 = vpop.trf.xlu0
        %7232 = vxpose.xlu0.b32.start [1/16] %v6118, 128
        %7233 = vxpose.xlu0.b32.cont [2/16] %v6119, 128
        %7234 = vxpose.xlu0.b32.cont [3/16] %v6120, 128
        %7235 = vxpose.xlu0.b32.cont [4/16] %v6121, 128
        %7236 = vxpose.xlu0.b32.cont [5/16] 0.0, 128
        %7237 = vxpose.xlu0.b32.cont [6/16] 0.0, 128
        %7238 = vxpose.xlu0.b32.cont [7/16] 0.0, 128
        %7239 = vxpose.xlu0.b32.cont [8/16] 0.0, 128
        %7240 = vxpose.xlu0.b32.cont [9/16] 0.0, 128
        %7241 = vxpose.xlu0.b32.cont [10/16] 0.0, 128
        %7242 = vxpose.xlu0.b32.cont [11/16] 0.0, 128
        %7243 = vxpose.xlu0.b32.cont [12/16] 0.0, 128
        %7244 = vxpose.xlu0.b32.cont [13/16] 0.0, 128
        %7245 = vxpose.xlu0.b32.cont [14/16] 0.0, 128
        %7246 = vxpose.xlu0.b32.cont [15/16] 0.0, 128
        %7247 = vxpose.xlu0.b32.end [16/16] 0.0, 128
        %v7248 = vpop.trf.xlu0
        %v7249 = vpop.trf.xlu0
        %v7250 = vpop.trf.xlu0
        %v7251 = vpop.trf.xlu0
        %v7252 = vpop.trf.xlu0
        %v7253 = vpop.trf.xlu0
        %v7254 = vpop.trf.xlu0
        %v7255 = vpop.trf.xlu0
        %v7256 = vpop.trf.xlu0
        %v7257 = vpop.trf.xlu0
        %v7258 = vpop.trf.xlu0
        %v7259 = vpop.trf.xlu0
        %v7260 = vpop.trf.xlu0
        %v7261 = vpop.trf.xlu0
        %v7262 = vpop.trf.xlu0
        %v7263 = vpop.trf.xlu0
        %7264 = vxpose.xlu0.b32.start [1/16] %v6122, 128
        %7265 = vxpose.xlu0.b32.cont [2/16] %v6123, 128
        %7266 = vxpose.xlu0.b32.cont [3/16] %v6124, 128
        %7267 = vxpose.xlu0.b32.cont [4/16] %v6125, 128
        %7268 = vxpose.xlu0.b32.cont [5/16] 0.0, 128
        %7269 = vxpose.xlu0.b32.cont [6/16] 0.0, 128
        %7270 = vxpose.xlu0.b32.cont [7/16] 0.0, 128
        %7271 = vxpose.xlu0.b32.cont [8/16] 0.0, 128
        %7272 = vxpose.xlu0.b32.cont [9/16] 0.0, 128
        %7273 = vxpose.xlu0.b32.cont [10/16] 0.0, 128
        %7274 = vxpose.xlu0.b32.cont [11/16] 0.0, 128
        %7275 = vxpose.xlu0.b32.cont [12/16] 0.0, 128
        %7276 = vxpose.xlu0.b32.cont [13/16] 0.0, 128
        %7277 = vxpose.xlu0.b32.cont [14/16] 0.0, 128
        %7278 = vxpose.xlu0.b32.cont [15/16] 0.0, 128
        %7279 = vxpose.xlu0.b32.end [16/16] 0.0, 128
        %v7280 = vpop.trf.xlu0
        %v7281 = vpop.trf.xlu0
        %v7282 = vpop.trf.xlu0
        %v7283 = vpop.trf.xlu0
        %v7284 = vpop.trf.xlu0
        %v7285 = vpop.trf.xlu0
        %v7286 = vpop.trf.xlu0
        %v7287 = vpop.trf.xlu0
        %v7288 = vpop.trf.xlu0
        %v7289 = vpop.trf.xlu0
        %v7290 = vpop.trf.xlu0
        %v7291 = vpop.trf.xlu0
        %v7292 = vpop.trf.xlu0
        %v7293 = vpop.trf.xlu0
        %v7294 = vpop.trf.xlu0
        %v7295 = vpop.trf.xlu0
        %7296 = vxpose.xlu0.b32.start [1/16] %v6126, 128
        %7297 = vxpose.xlu0.b32.cont [2/16] %v6127, 128
        %7298 = vxpose.xlu0.b32.cont [3/16] %v6128, 128
        %7299 = vxpose.xlu0.b32.cont [4/16] %v6129, 128
        %7300 = vxpose.xlu0.b32.cont [5/16] 0.0, 128
        %7301 = vxpose.xlu0.b32.cont [6/16] 0.0, 128
        %7302 = vxpose.xlu0.b32.cont [7/16] 0.0, 128
        %7303 = vxpose.xlu0.b32.cont [8/16] 0.0, 128
        %7304 = vxpose.xlu0.b32.cont [9/16] 0.0, 128
        %7305 = vxpose.xlu0.b32.cont [10/16] 0.0, 128
        %7306 = vxpose.xlu0.b32.cont [11/16] 0.0, 128
        %7307 = vxpose.xlu0.b32.cont [12/16] 0.0, 128
        %7308 = vxpose.xlu0.b32.cont [13/16] 0.0, 128
        %7309 = vxpose.xlu0.b32.cont [14/16] 0.0, 128
        %7310 = vxpose.xlu0.b32.cont [15/16] 0.0, 128
        %7311 = vxpose.xlu0.b32.end [16/16] 0.0, 128
        %v7312 = vpop.trf.xlu0
        %v7313 = vpop.trf.xlu0
        %v7314 = vpop.trf.xlu0
        %v7315 = vpop.trf.xlu0
        %v7316 = vpop.trf.xlu0
        %v7317 = vpop.trf.xlu0
        %v7318 = vpop.trf.xlu0
        %v7319 = vpop.trf.xlu0
        %v7320 = vpop.trf.xlu0
        %v7321 = vpop.trf.xlu0
        %v7322 = vpop.trf.xlu0
        %v7323 = vpop.trf.xlu0
        %v7324 = vpop.trf.xlu0
        %v7325 = vpop.trf.xlu0
        %v7326 = vpop.trf.xlu0
        %v7327 = vpop.trf.xlu0
        %7328 = vxpose.xlu0.b32.start [1/16] %v6130, 128
        %7329 = vxpose.xlu0.b32.cont [2/16] %v6131, 128
        %7330 = vxpose.xlu0.b32.cont [3/16] %v6132, 128
        %7331 = vxpose.xlu0.b32.cont [4/16] %v6133, 128
        %7332 = vxpose.xlu0.b32.cont [5/16] 0.0, 128
        %7333 = vxpose.xlu0.b32.cont [6/16] 0.0, 128
        %7334 = vxpose.xlu0.b32.cont [7/16] 0.0, 128
        %7335 = vxpose.xlu0.b32.cont [8/16] 0.0, 128
        %7336 = vxpose.xlu0.b32.cont [9/16] 0.0, 128
        %7337 = vxpose.xlu0.b32.cont [10/16] 0.0, 128
        %7338 = vxpose.xlu0.b32.cont [11/16] 0.0, 128
        %7339 = vxpose.xlu0.b32.cont [12/16] 0.0, 128
        %7340 = vxpose.xlu0.b32.cont [13/16] 0.0, 128
        %7341 = vxpose.xlu0.b32.cont [14/16] 0.0, 128
        %7342 = vxpose.xlu0.b32.cont [15/16] 0.0, 128
        %7343 = vxpose.xlu0.b32.end [16/16] 0.0, 128
        %v7344 = vpop.trf.xlu0
        %v7345 = vpop.trf.xlu0
        %v7346 = vpop.trf.xlu0
        %v7347 = vpop.trf.xlu0
        %v7348 = vpop.trf.xlu0
        %v7349 = vpop.trf.xlu0
        %v7350 = vpop.trf.xlu0
        %v7351 = vpop.trf.xlu0
        %v7352 = vpop.trf.xlu0
        %v7353 = vpop.trf.xlu0
        %v7354 = vpop.trf.xlu0
        %v7355 = vpop.trf.xlu0
        %v7356 = vpop.trf.xlu0
        %v7357 = vpop.trf.xlu0
        %v7358 = vpop.trf.xlu0
        %v7359 = vpop.trf.xlu0
        %7360 = vxpose.xlu0.b32.start [1/16] %v6134, 128
        %7361 = vxpose.xlu0.b32.cont [2/16] %v6135, 128
        %7362 = vxpose.xlu0.b32.cont [3/16] %v6136, 128
        %7363 = vxpose.xlu0.b32.cont [4/16] %v6137, 128
        %7364 = vxpose.xlu0.b32.cont [5/16] 0.0, 128
        %7365 = vxpose.xlu0.b32.cont [6/16] 0.0, 128
        %7366 = vxpose.xlu0.b32.cont [7/16] 0.0, 128
        %7367 = vxpose.xlu0.b32.cont [8/16] 0.0, 128
        %7368 = vxpose.xlu0.b32.cont [9/16] 0.0, 128
        %7369 = vxpose.xlu0.b32.cont [10/16] 0.0, 128
        %7370 = vxpose.xlu0.b32.cont [11/16] 0.0, 128
        %7371 = vxpose.xlu0.b32.cont [12/16] 0.0, 128
        %7372 = vxpose.xlu0.b32.cont [13/16] 0.0, 128
        %7373 = vxpose.xlu0.b32.cont [14/16] 0.0, 128
        %7374 = vxpose.xlu0.b32.cont [15/16] 0.0, 128
        %7375 = vxpose.xlu0.b32.end [16/16] 0.0, 128
        %v7376 = vpop.trf.xlu0
        %v7377 = vpop.trf.xlu0
        %v7378 = vpop.trf.xlu0
        %v7379 = vpop.trf.xlu0
        %v7380 = vpop.trf.xlu0
        %v7381 = vpop.trf.xlu0
        %v7382 = vpop.trf.xlu0
        %v7383 = vpop.trf.xlu0
        %v7384 = vpop.trf.xlu0
        %v7385 = vpop.trf.xlu0
        %v7386 = vpop.trf.xlu0
        %v7387 = vpop.trf.xlu0
        %v7388 = vpop.trf.xlu0
        %v7389 = vpop.trf.xlu0
        %v7390 = vpop.trf.xlu0
        %v7391 = vpop.trf.xlu0
        %7392 = vxpose.xlu0.b32.start [1/16] %v6138, 128
        %7393 = vxpose.xlu0.b32.cont [2/16] %v6139, 128
        %7394 = vxpose.xlu0.b32.cont [3/16] %v6140, 128
        %7395 = vxpose.xlu0.b32.cont [4/16] %v6141, 128
        %7396 = vxpose.xlu0.b32.cont [5/16] 0.0, 128
        %7397 = vxpose.xlu0.b32.cont [6/16] 0.0, 128
        %7398 = vxpose.xlu0.b32.cont [7/16] 0.0, 128
        %7399 = vxpose.xlu0.b32.cont [8/16] 0.0, 128
        %7400 = vxpose.xlu0.b32.cont [9/16] 0.0, 128
        %7401 = vxpose.xlu0.b32.cont [10/16] 0.0, 128
        %7402 = vxpose.xlu0.b32.cont [11/16] 0.0, 128
        %7403 = vxpose.xlu0.b32.cont [12/16] 0.0, 128
        %7404 = vxpose.xlu0.b32.cont [13/16] 0.0, 128
        %7405 = vxpose.xlu0.b32.cont [14/16] 0.0, 128
        %7406 = vxpose.xlu0.b32.cont [15/16] 0.0, 128
        %7407 = vxpose.xlu0.b32.end [16/16] 0.0, 128
        %v7408 = vpop.trf.xlu0
        %v7409 = vpop.trf.xlu0
        %v7410 = vpop.trf.xlu0
        %v7411 = vpop.trf.xlu0
        %v7412 = vpop.trf.xlu0
        %v7413 = vpop.trf.xlu0
        %v7414 = vpop.trf.xlu0
        %v7415 = vpop.trf.xlu0
        %v7416 = vpop.trf.xlu0
        %v7417 = vpop.trf.xlu0
        %v7418 = vpop.trf.xlu0
        %v7419 = vpop.trf.xlu0
        %v7420 = vpop.trf.xlu0
        %v7421 = vpop.trf.xlu0
        %v7422 = vpop.trf.xlu0
        %v7423 = vpop.trf.xlu0
        %7424 = vxpose.xlu0.b32.start [1/16] %v6594, 128
        %7425 = vxpose.xlu0.b32.cont [2/16] %v6599, 128
        %7426 = vxpose.xlu0.b32.cont [3/16] %v6604, 128
        %7427 = vxpose.xlu0.b32.cont [4/16] %v6609, 128
        %7428 = vxpose.xlu0.b32.cont [5/16] 0.0, 128
        %7429 = vxpose.xlu0.b32.cont [6/16] 0.0, 128
        %7430 = vxpose.xlu0.b32.cont [7/16] 0.0, 128
        %7431 = vxpose.xlu0.b32.cont [8/16] 0.0, 128
        %7432 = vxpose.xlu0.b32.cont [9/16] 0.0, 128
        %7433 = vxpose.xlu0.b32.cont [10/16] 0.0, 128
        %7434 = vxpose.xlu0.b32.cont [11/16] 0.0, 128
        %7435 = vxpose.xlu0.b32.cont [12/16] 0.0, 128
        %7436 = vxpose.xlu0.b32.cont [13/16] 0.0, 128
        %7437 = vxpose.xlu0.b32.cont [14/16] 0.0, 128
        %7438 = vxpose.xlu0.b32.cont [15/16] 0.0, 128
        %7439 = vxpose.xlu0.b32.end [16/16] 0.0, 128
        %v7440 = vpop.trf.xlu0
        %v7441 = vpop.trf.xlu0
        %v7442 = vpop.trf.xlu0
        %v7443 = vpop.trf.xlu0
        %v7444 = vpop.trf.xlu0
        %v7445 = vpop.trf.xlu0
        %v7446 = vpop.trf.xlu0
        %v7447 = vpop.trf.xlu0
        %v7448 = vpop.trf.xlu0
        %v7449 = vpop.trf.xlu0
        %v7450 = vpop.trf.xlu0
        %v7451 = vpop.trf.xlu0
        %v7452 = vpop.trf.xlu0
        %v7453 = vpop.trf.xlu0
        %v7454 = vpop.trf.xlu0
        %v7455 = vpop.trf.xlu0
        %7456 = vxpose.xlu0.b32.start [1/16] %v6614, 128
        %7457 = vxpose.xlu0.b32.cont [2/16] %v6619, 128
        %7458 = vxpose.xlu0.b32.cont [3/16] %v6624, 128
        %7459 = vxpose.xlu0.b32.cont [4/16] %v6629, 128
        %7460 = vxpose.xlu0.b32.cont [5/16] 0.0, 128
        %7461 = vxpose.xlu0.b32.cont [6/16] 0.0, 128
        %7462 = vxpose.xlu0.b32.cont [7/16] 0.0, 128
        %7463 = vxpose.xlu0.b32.cont [8/16] 0.0, 128
        %7464 = vxpose.xlu0.b32.cont [9/16] 0.0, 128
        %7465 = vxpose.xlu0.b32.cont [10/16] 0.0, 128
        %7466 = vxpose.xlu0.b32.cont [11/16] 0.0, 128
        %7467 = vxpose.xlu0.b32.cont [12/16] 0.0, 128
        %7468 = vxpose.xlu0.b32.cont [13/16] 0.0, 128
        %7469 = vxpose.xlu0.b32.cont [14/16] 0.0, 128
        %7470 = vxpose.xlu0.b32.cont [15/16] 0.0, 128
        %7471 = vxpose.xlu0.b32.end [16/16] 0.0, 128
        %v7472 = vpop.trf.xlu0
        %v7473 = vpop.trf.xlu0
        %v7474 = vpop.trf.xlu0
        %v7475 = vpop.trf.xlu0
        %v7476 = vpop.trf.xlu0
        %v7477 = vpop.trf.xlu0
        %v7478 = vpop.trf.xlu0
        %v7479 = vpop.trf.xlu0
        %v7480 = vpop.trf.xlu0
        %v7481 = vpop.trf.xlu0
        %v7482 = vpop.trf.xlu0
        %v7483 = vpop.trf.xlu0
        %v7484 = vpop.trf.xlu0
        %v7485 = vpop.trf.xlu0
        %v7486 = vpop.trf.xlu0
        %v7487 = vpop.trf.xlu0
        %7488 = vxpose.xlu0.b32.start [1/16] %v6634, 128
        %7489 = vxpose.xlu0.b32.cont [2/16] %v6639, 128
        %7490 = vxpose.xlu0.b32.cont [3/16] %v6644, 128
        %7491 = vxpose.xlu0.b32.cont [4/16] %v6649, 128
        %7492 = vxpose.xlu0.b32.cont [5/16] 0.0, 128
        %7493 = vxpose.xlu0.b32.cont [6/16] 0.0, 128
        %7494 = vxpose.xlu0.b32.cont [7/16] 0.0, 128
        %7495 = vxpose.xlu0.b32.cont [8/16] 0.0, 128
        %7496 = vxpose.xlu0.b32.cont [9/16] 0.0, 128
        %7497 = vxpose.xlu0.b32.cont [10/16] 0.0, 128
        %7498 = vxpose.xlu0.b32.cont [11/16] 0.0, 128
        %7499 = vxpose.xlu0.b32.cont [12/16] 0.0, 128
        %7500 = vxpose.xlu0.b32.cont [13/16] 0.0, 128
        %7501 = vxpose.xlu0.b32.cont [14/16] 0.0, 128
        %7502 = vxpose.xlu0.b32.cont [15/16] 0.0, 128
        %7503 = vxpose.xlu0.b32.end [16/16] 0.0, 128
        %v7504 = vpop.trf.xlu0
        %v7505 = vpop.trf.xlu0
        %v7506 = vpop.trf.xlu0
        %v7507 = vpop.trf.xlu0
        %v7508 = vpop.trf.xlu0
        %v7509 = vpop.trf.xlu0
        %v7510 = vpop.trf.xlu0
        %v7511 = vpop.trf.xlu0
        %v7512 = vpop.trf.xlu0
        %v7513 = vpop.trf.xlu0
        %v7514 = vpop.trf.xlu0
        %v7515 = vpop.trf.xlu0
        %v7516 = vpop.trf.xlu0
        %v7517 = vpop.trf.xlu0
        %v7518 = vpop.trf.xlu0
        %v7519 = vpop.trf.xlu0
        %7520 = vxpose.xlu0.b32.start [1/16] %v6654, 128
        %7521 = vxpose.xlu0.b32.cont [2/16] %v6659, 128
        %7522 = vxpose.xlu0.b32.cont [3/16] %v6664, 128
        %7523 = vxpose.xlu0.b32.cont [4/16] %v6669, 128
        %7524 = vxpose.xlu0.b32.cont [5/16] 0.0, 128
        %7525 = vxpose.xlu0.b32.cont [6/16] 0.0, 128
        %7526 = vxpose.xlu0.b32.cont [7/16] 0.0, 128
        %7527 = vxpose.xlu0.b32.cont [8/16] 0.0, 128
        %7528 = vxpose.xlu0.b32.cont [9/16] 0.0, 128
        %7529 = vxpose.xlu0.b32.cont [10/16] 0.0, 128
        %7530 = vxpose.xlu0.b32.cont [11/16] 0.0, 128
        %7531 = vxpose.xlu0.b32.cont [12/16] 0.0, 128
        %7532 = vxpose.xlu0.b32.cont [13/16] 0.0, 128
        %7533 = vxpose.xlu0.b32.cont [14/16] 0.0, 128
        %7534 = vxpose.xlu0.b32.cont [15/16] 0.0, 128
        %7535 = vxpose.xlu0.b32.end [16/16] 0.0, 128
        %v7536 = vpop.trf.xlu0
        %v7537 = vpop.trf.xlu0
        %v7538 = vpop.trf.xlu0
        %v7539 = vpop.trf.xlu0
        %v7540 = vpop.trf.xlu0
        %v7541 = vpop.trf.xlu0
        %v7542 = vpop.trf.xlu0
        %v7543 = vpop.trf.xlu0
        %v7544 = vpop.trf.xlu0
        %v7545 = vpop.trf.xlu0
        %v7546 = vpop.trf.xlu0
        %v7547 = vpop.trf.xlu0
        %v7548 = vpop.trf.xlu0
        %v7549 = vpop.trf.xlu0
        %v7550 = vpop.trf.xlu0
        %v7551 = vpop.trf.xlu0
        %7552 = vxpose.xlu0.b32.start [1/16] %v6674, 128
        %7553 = vxpose.xlu0.b32.cont [2/16] %v6679, 128
        %7554 = vxpose.xlu0.b32.cont [3/16] %v6684, 128
        %7555 = vxpose.xlu0.b32.cont [4/16] %v6689, 128
        %7556 = vxpose.xlu0.b32.cont [5/16] 0.0, 128
        %7557 = vxpose.xlu0.b32.cont [6/16] 0.0, 128
        %7558 = vxpose.xlu0.b32.cont [7/16] 0.0, 128
        %7559 = vxpose.xlu0.b32.cont [8/16] 0.0, 128
        %7560 = vxpose.xlu0.b32.cont [9/16] 0.0, 128
        %7561 = vxpose.xlu0.b32.cont [10/16] 0.0, 128
        %7562 = vxpose.xlu0.b32.cont [11/16] 0.0, 128
        %7563 = vxpose.xlu0.b32.cont [12/16] 0.0, 128
        %7564 = vxpose.xlu0.b32.cont [13/16] 0.0, 128
        %7565 = vxpose.xlu0.b32.cont [14/16] 0.0, 128
        %7566 = vxpose.xlu0.b32.cont [15/16] 0.0, 128
        %7567 = vxpose.xlu0.b32.end [16/16] 0.0, 128
        %v7568 = vpop.trf.xlu0
        %v7569 = vpop.trf.xlu0
        %v7570 = vpop.trf.xlu0
        %v7571 = vpop.trf.xlu0
        %v7572 = vpop.trf.xlu0
        %v7573 = vpop.trf.xlu0
        %v7574 = vpop.trf.xlu0
        %v7575 = vpop.trf.xlu0
        %v7576 = vpop.trf.xlu0
        %v7577 = vpop.trf.xlu0
        %v7578 = vpop.trf.xlu0
        %v7579 = vpop.trf.xlu0
        %v7580 = vpop.trf.xlu0
        %v7581 = vpop.trf.xlu0
        %v7582 = vpop.trf.xlu0
        %v7583 = vpop.trf.xlu0
        %7584 = vxpose.xlu0.b32.start [1/16] %v6694, 128
        %7585 = vxpose.xlu0.b32.cont [2/16] %v6699, 128
        %7586 = vxpose.xlu0.b32.cont [3/16] %v6704, 128
        %7587 = vxpose.xlu0.b32.cont [4/16] %v6709, 128
        %7588 = vxpose.xlu0.b32.cont [5/16] 0.0, 128
        %7589 = vxpose.xlu0.b32.cont [6/16] 0.0, 128
        %7590 = vxpose.xlu0.b32.cont [7/16] 0.0, 128
        %7591 = vxpose.xlu0.b32.cont [8/16] 0.0, 128
        %7592 = vxpose.xlu0.b32.cont [9/16] 0.0, 128
        %7593 = vxpose.xlu0.b32.cont [10/16] 0.0, 128
        %7594 = vxpose.xlu0.b32.cont [11/16] 0.0, 128
        %7595 = vxpose.xlu0.b32.cont [12/16] 0.0, 128
        %7596 = vxpose.xlu0.b32.cont [13/16] 0.0, 128
        %7597 = vxpose.xlu0.b32.cont [14/16] 0.0, 128
        %7598 = vxpose.xlu0.b32.cont [15/16] 0.0, 128
        %7599 = vxpose.xlu0.b32.end [16/16] 0.0, 128
        %v7600 = vpop.trf.xlu0
        %v7601 = vpop.trf.xlu0
        %v7602 = vpop.trf.xlu0
        %v7603 = vpop.trf.xlu0
        %v7604 = vpop.trf.xlu0
        %v7605 = vpop.trf.xlu0
        %v7606 = vpop.trf.xlu0
        %v7607 = vpop.trf.xlu0
        %v7608 = vpop.trf.xlu0
        %v7609 = vpop.trf.xlu0
        %v7610 = vpop.trf.xlu0
        %v7611 = vpop.trf.xlu0
        %v7612 = vpop.trf.xlu0
        %v7613 = vpop.trf.xlu0
        %v7614 = vpop.trf.xlu0
        %v7615 = vpop.trf.xlu0
        %7616 = vxpose.xlu0.b32.start [1/16] %v6714, 128
        %7617 = vxpose.xlu0.b32.cont [2/16] %v6719, 128
        %7618 = vxpose.xlu0.b32.cont [3/16] %v6724, 128
        %7619 = vxpose.xlu0.b32.cont [4/16] %v6729, 128
        %7620 = vxpose.xlu0.b32.cont [5/16] 0.0, 128
        %7621 = vxpose.xlu0.b32.cont [6/16] 0.0, 128
        %7622 = vxpose.xlu0.b32.cont [7/16] 0.0, 128
        %7623 = vxpose.xlu0.b32.cont [8/16] 0.0, 128
        %7624 = vxpose.xlu0.b32.cont [9/16] 0.0, 128
        %7625 = vxpose.xlu0.b32.cont [10/16] 0.0, 128
        %7626 = vxpose.xlu0.b32.cont [11/16] 0.0, 128
        %7627 = vxpose.xlu0.b32.cont [12/16] 0.0, 128
        %7628 = vxpose.xlu0.b32.cont [13/16] 0.0, 128
        %7629 = vxpose.xlu0.b32.cont [14/16] 0.0, 128
        %7630 = vxpose.xlu0.b32.cont [15/16] 0.0, 128
        %7631 = vxpose.xlu0.b32.end [16/16] 0.0, 128
        %v7632 = vpop.trf.xlu0
        %v7633 = vpop.trf.xlu0
        %v7634 = vpop.trf.xlu0
        %v7635 = vpop.trf.xlu0
        %v7636 = vpop.trf.xlu0
        %v7637 = vpop.trf.xlu0
        %v7638 = vpop.trf.xlu0
        %v7639 = vpop.trf.xlu0
        %v7640 = vpop.trf.xlu0
        %v7641 = vpop.trf.xlu0
        %v7642 = vpop.trf.xlu0
        %v7643 = vpop.trf.xlu0
        %v7644 = vpop.trf.xlu0
        %v7645 = vpop.trf.xlu0
        %v7646 = vpop.trf.xlu0
        %v7647 = vpop.trf.xlu0
        %7648 = vxpose.xlu0.b32.start [1/16] %v6734, 128
        %7649 = vxpose.xlu0.b32.cont [2/16] %v6739, 128
        %7650 = vxpose.xlu0.b32.cont [3/16] %v6744, 128
        %7651 = vxpose.xlu0.b32.cont [4/16] %v6749, 128
        %7652 = vxpose.xlu0.b32.cont [5/16] 0.0, 128
        %7653 = vxpose.xlu0.b32.cont [6/16] 0.0, 128
        %7654 = vxpose.xlu0.b32.cont [7/16] 0.0, 128
        %7655 = vxpose.xlu0.b32.cont [8/16] 0.0, 128
        %7656 = vxpose.xlu0.b32.cont [9/16] 0.0, 128
        %7657 = vxpose.xlu0.b32.cont [10/16] 0.0, 128
        %7658 = vxpose.xlu0.b32.cont [11/16] 0.0, 128
        %7659 = vxpose.xlu0.b32.cont [12/16] 0.0, 128
        %7660 = vxpose.xlu0.b32.cont [13/16] 0.0, 128
        %7661 = vxpose.xlu0.b32.cont [14/16] 0.0, 128
        %7662 = vxpose.xlu0.b32.cont [15/16] 0.0, 128
        %7663 = vxpose.xlu0.b32.end [16/16] 0.0, 128
        %v7664 = vpop.trf.xlu0
        %v7665 = vpop.trf.xlu0
        %v7666 = vpop.trf.xlu0
        %v7667 = vpop.trf.xlu0
        %v7668 = vpop.trf.xlu0
        %v7669 = vpop.trf.xlu0
        %v7670 = vpop.trf.xlu0
        %v7671 = vpop.trf.xlu0
        %v7672 = vpop.trf.xlu0
        %v7673 = vpop.trf.xlu0
        %v7674 = vpop.trf.xlu0
        %v7675 = vpop.trf.xlu0
        %v7676 = vpop.trf.xlu0
        %v7677 = vpop.trf.xlu0
        %v7678 = vpop.trf.xlu0
        %v7679 = vpop.trf.xlu0
        %7680 = vxpose.xlu0.b32.start [1/16] %v6754, 128
        %7681 = vxpose.xlu0.b32.cont [2/16] %v6759, 128
        %7682 = vxpose.xlu0.b32.cont [3/16] %v6764, 128
        %7683 = vxpose.xlu0.b32.cont [4/16] %v6769, 128
        %7684 = vxpose.xlu0.b32.cont [5/16] 0.0, 128
        %7685 = vxpose.xlu0.b32.cont [6/16] 0.0, 128
        %7686 = vxpose.xlu0.b32.cont [7/16] 0.0, 128
        %7687 = vxpose.xlu0.b32.cont [8/16] 0.0, 128
        %7688 = vxpose.xlu0.b32.cont [9/16] 0.0, 128
        %7689 = vxpose.xlu0.b32.cont [10/16] 0.0, 128
        %7690 = vxpose.xlu0.b32.cont [11/16] 0.0, 128
        %7691 = vxpose.xlu0.b32.cont [12/16] 0.0, 128
        %7692 = vxpose.xlu0.b32.cont [13/16] 0.0, 128
        %7693 = vxpose.xlu0.b32.cont [14/16] 0.0, 128
        %7694 = vxpose.xlu0.b32.cont [15/16] 0.0, 128
        %7695 = vxpose.xlu0.b32.end [16/16] 0.0, 128
        %v7696 = vpop.trf.xlu0
        %v7697 = vpop.trf.xlu0
        %v7698 = vpop.trf.xlu0
        %v7699 = vpop.trf.xlu0
        %v7700 = vpop.trf.xlu0
        %v7701 = vpop.trf.xlu0
        %v7702 = vpop.trf.xlu0
        %v7703 = vpop.trf.xlu0
        %v7704 = vpop.trf.xlu0
        %v7705 = vpop.trf.xlu0
        %v7706 = vpop.trf.xlu0
        %v7707 = vpop.trf.xlu0
        %v7708 = vpop.trf.xlu0
        %v7709 = vpop.trf.xlu0
        %v7710 = vpop.trf.xlu0
        %v7711 = vpop.trf.xlu0
        %7712 = vxpose.xlu0.b32.start [1/16] %v6774, 128
        %7713 = vxpose.xlu0.b32.cont [2/16] %v6779, 128
        %7714 = vxpose.xlu0.b32.cont [3/16] %v6784, 128
        %7715 = vxpose.xlu0.b32.cont [4/16] %v6789, 128
        %7716 = vxpose.xlu0.b32.cont [5/16] 0.0, 128
        %7717 = vxpose.xlu0.b32.cont [6/16] 0.0, 128
        %7718 = vxpose.xlu0.b32.cont [7/16] 0.0, 128
        %7719 = vxpose.xlu0.b32.cont [8/16] 0.0, 128
        %7720 = vxpose.xlu0.b32.cont [9/16] 0.0, 128
        %7721 = vxpose.xlu0.b32.cont [10/16] 0.0, 128
        %7722 = vxpose.xlu0.b32.cont [11/16] 0.0, 128
        %7723 = vxpose.xlu0.b32.cont [12/16] 0.0, 128
        %7724 = vxpose.xlu0.b32.cont [13/16] 0.0, 128
        %7725 = vxpose.xlu0.b32.cont [14/16] 0.0, 128
        %7726 = vxpose.xlu0.b32.cont [15/16] 0.0, 128
        %7727 = vxpose.xlu0.b32.end [16/16] 0.0, 128
        %v7728 = vpop.trf.xlu0
        %v7729 = vpop.trf.xlu0
        %v7730 = vpop.trf.xlu0
        %v7731 = vpop.trf.xlu0
        %v7732 = vpop.trf.xlu0
        %v7733 = vpop.trf.xlu0
        %v7734 = vpop.trf.xlu0
        %v7735 = vpop.trf.xlu0
        %v7736 = vpop.trf.xlu0
        %v7737 = vpop.trf.xlu0
        %v7738 = vpop.trf.xlu0
        %v7739 = vpop.trf.xlu0
        %v7740 = vpop.trf.xlu0
        %v7741 = vpop.trf.xlu0
        %v7742 = vpop.trf.xlu0
        %v7743 = vpop.trf.xlu0
        %7744 = vxpose.xlu0.b32.start [1/16] %v6794, 128
        %7745 = vxpose.xlu0.b32.cont [2/16] %v6799, 128
        %7746 = vxpose.xlu0.b32.cont [3/16] %v6804, 128
        %7747 = vxpose.xlu0.b32.cont [4/16] %v6809, 128
        %7748 = vxpose.xlu0.b32.cont [5/16] 0.0, 128
        %7749 = vxpose.xlu0.b32.cont [6/16] 0.0, 128
        %7750 = vxpose.xlu0.b32.cont [7/16] 0.0, 128
        %7751 = vxpose.xlu0.b32.cont [8/16] 0.0, 128
        %7752 = vxpose.xlu0.b32.cont [9/16] 0.0, 128
        %7753 = vxpose.xlu0.b32.cont [10/16] 0.0, 128
        %7754 = vxpose.xlu0.b32.cont [11/16] 0.0, 128
        %7755 = vxpose.xlu0.b32.cont [12/16] 0.0, 128
        %7756 = vxpose.xlu0.b32.cont [13/16] 0.0, 128
        %7757 = vxpose.xlu0.b32.cont [14/16] 0.0, 128
        %7758 = vxpose.xlu0.b32.cont [15/16] 0.0, 128
        %7759 = vxpose.xlu0.b32.end [16/16] 0.0, 128
        %v7760 = vpop.trf.xlu0
        %v7761 = vpop.trf.xlu0
        %v7762 = vpop.trf.xlu0
        %v7763 = vpop.trf.xlu0
        %v7764 = vpop.trf.xlu0
        %v7765 = vpop.trf.xlu0
        %v7766 = vpop.trf.xlu0
        %v7767 = vpop.trf.xlu0
        %v7768 = vpop.trf.xlu0
        %v7769 = vpop.trf.xlu0
        %v7770 = vpop.trf.xlu0
        %v7771 = vpop.trf.xlu0
        %v7772 = vpop.trf.xlu0
        %v7773 = vpop.trf.xlu0
        %v7774 = vpop.trf.xlu0
        %v7775 = vpop.trf.xlu0
        %7776 = vxpose.xlu0.b32.start [1/16] %v6814, 128
        %7777 = vxpose.xlu0.b32.cont [2/16] %v6819, 128
        %7778 = vxpose.xlu0.b32.cont [3/16] %v6824, 128
        %7779 = vxpose.xlu0.b32.cont [4/16] %v6829, 128
        %7780 = vxpose.xlu0.b32.cont [5/16] 0.0, 128
        %7781 = vxpose.xlu0.b32.cont [6/16] 0.0, 128
        %7782 = vxpose.xlu0.b32.cont [7/16] 0.0, 128
        %7783 = vxpose.xlu0.b32.cont [8/16] 0.0, 128
        %7784 = vxpose.xlu0.b32.cont [9/16] 0.0, 128
        %7785 = vxpose.xlu0.b32.cont [10/16] 0.0, 128
        %7786 = vxpose.xlu0.b32.cont [11/16] 0.0, 128
        %7787 = vxpose.xlu0.b32.cont [12/16] 0.0, 128
        %7788 = vxpose.xlu0.b32.cont [13/16] 0.0, 128
        %7789 = vxpose.xlu0.b32.cont [14/16] 0.0, 128
        %7790 = vxpose.xlu0.b32.cont [15/16] 0.0, 128
        %7791 = vxpose.xlu0.b32.end [16/16] 0.0, 128
        %v7792 = vpop.trf.xlu0
        %v7793 = vpop.trf.xlu0
        %v7794 = vpop.trf.xlu0
        %v7795 = vpop.trf.xlu0
        %v7796 = vpop.trf.xlu0
        %v7797 = vpop.trf.xlu0
        %v7798 = vpop.trf.xlu0
        %v7799 = vpop.trf.xlu0
        %v7800 = vpop.trf.xlu0
        %v7801 = vpop.trf.xlu0
        %v7802 = vpop.trf.xlu0
        %v7803 = vpop.trf.xlu0
        %v7804 = vpop.trf.xlu0
        %v7805 = vpop.trf.xlu0
        %v7806 = vpop.trf.xlu0
        %v7807 = vpop.trf.xlu0
        %7808 = vxpose.xlu0.b32.start [1/16] %v6834, 128
        %7809 = vxpose.xlu0.b32.cont [2/16] %v6839, 128
        %7810 = vxpose.xlu0.b32.cont [3/16] %v6844, 128
        %7811 = vxpose.xlu0.b32.cont [4/16] %v6849, 128
        %7812 = vxpose.xlu0.b32.cont [5/16] 0.0, 128
        %7813 = vxpose.xlu0.b32.cont [6/16] 0.0, 128
        %7814 = vxpose.xlu0.b32.cont [7/16] 0.0, 128
        %7815 = vxpose.xlu0.b32.cont [8/16] 0.0, 128
        %7816 = vxpose.xlu0.b32.cont [9/16] 0.0, 128
        %7817 = vxpose.xlu0.b32.cont [10/16] 0.0, 128
        %7818 = vxpose.xlu0.b32.cont [11/16] 0.0, 128
        %7819 = vxpose.xlu0.b32.cont [12/16] 0.0, 128
        %7820 = vxpose.xlu0.b32.cont [13/16] 0.0, 128
        %7821 = vxpose.xlu0.b32.cont [14/16] 0.0, 128
        %7822 = vxpose.xlu0.b32.cont [15/16] 0.0, 128
        %7823 = vxpose.xlu0.b32.end [16/16] 0.0, 128
        %v7824 = vpop.trf.xlu0
        %v7825 = vpop.trf.xlu0
        %v7826 = vpop.trf.xlu0
        %v7827 = vpop.trf.xlu0
        %v7828 = vpop.trf.xlu0
        %v7829 = vpop.trf.xlu0
        %v7830 = vpop.trf.xlu0
        %v7831 = vpop.trf.xlu0
        %v7832 = vpop.trf.xlu0
        %v7833 = vpop.trf.xlu0
        %v7834 = vpop.trf.xlu0
        %v7835 = vpop.trf.xlu0
        %v7836 = vpop.trf.xlu0
        %v7837 = vpop.trf.xlu0
        %v7838 = vpop.trf.xlu0
        %v7839 = vpop.trf.xlu0
        %7840 = vxpose.xlu0.b32.start [1/16] %v6854, 128
        %7841 = vxpose.xlu0.b32.cont [2/16] %v6859, 128
        %7842 = vxpose.xlu0.b32.cont [3/16] %v6864, 128
        %7843 = vxpose.xlu0.b32.cont [4/16] %v6869, 128
        %7844 = vxpose.xlu0.b32.cont [5/16] 0.0, 128
        %7845 = vxpose.xlu0.b32.cont [6/16] 0.0, 128
        %7846 = vxpose.xlu0.b32.cont [7/16] 0.0, 128
        %7847 = vxpose.xlu0.b32.cont [8/16] 0.0, 128
        %7848 = vxpose.xlu0.b32.cont [9/16] 0.0, 128
        %7849 = vxpose.xlu0.b32.cont [10/16] 0.0, 128
        %7850 = vxpose.xlu0.b32.cont [11/16] 0.0, 128
        %7851 = vxpose.xlu0.b32.cont [12/16] 0.0, 128
        %7852 = vxpose.xlu0.b32.cont [13/16] 0.0, 128
        %7853 = vxpose.xlu0.b32.cont [14/16] 0.0, 128
        %7854 = vxpose.xlu0.b32.cont [15/16] 0.0, 128
        %7855 = vxpose.xlu0.b32.end [16/16] 0.0, 128
        %v7856 = vpop.trf.xlu0
        %v7857 = vpop.trf.xlu0
        %v7858 = vpop.trf.xlu0
        %v7859 = vpop.trf.xlu0
        %v7860 = vpop.trf.xlu0
        %v7861 = vpop.trf.xlu0
        %v7862 = vpop.trf.xlu0
        %v7863 = vpop.trf.xlu0
        %v7864 = vpop.trf.xlu0
        %v7865 = vpop.trf.xlu0
        %v7866 = vpop.trf.xlu0
        %v7867 = vpop.trf.xlu0
        %v7868 = vpop.trf.xlu0
        %v7869 = vpop.trf.xlu0
        %v7870 = vpop.trf.xlu0
        %v7871 = vpop.trf.xlu0
        %7872 = vxpose.xlu0.b32.start [1/16] %v6874, 128
        %7873 = vxpose.xlu0.b32.cont [2/16] %v6879, 128
        %7874 = vxpose.xlu0.b32.cont [3/16] %v6884, 128
        %7875 = vxpose.xlu0.b32.cont [4/16] %v6889, 128
        %7876 = vxpose.xlu0.b32.cont [5/16] 0.0, 128
        %7877 = vxpose.xlu0.b32.cont [6/16] 0.0, 128
        %7878 = vxpose.xlu0.b32.cont [7/16] 0.0, 128
        %7879 = vxpose.xlu0.b32.cont [8/16] 0.0, 128
        %7880 = vxpose.xlu0.b32.cont [9/16] 0.0, 128
        %7881 = vxpose.xlu0.b32.cont [10/16] 0.0, 128
        %7882 = vxpose.xlu0.b32.cont [11/16] 0.0, 128
        %7883 = vxpose.xlu0.b32.cont [12/16] 0.0, 128
        %7884 = vxpose.xlu0.b32.cont [13/16] 0.0, 128
        %7885 = vxpose.xlu0.b32.cont [14/16] 0.0, 128
        %7886 = vxpose.xlu0.b32.cont [15/16] 0.0, 128
        %7887 = vxpose.xlu0.b32.end [16/16] 0.0, 128
        %v7888 = vpop.trf.xlu0
        %v7889 = vpop.trf.xlu0
        %v7890 = vpop.trf.xlu0
        %v7891 = vpop.trf.xlu0
        %v7892 = vpop.trf.xlu0
        %v7893 = vpop.trf.xlu0
        %v7894 = vpop.trf.xlu0
        %v7895 = vpop.trf.xlu0
        %v7896 = vpop.trf.xlu0
        %v7897 = vpop.trf.xlu0
        %v7898 = vpop.trf.xlu0
        %v7899 = vpop.trf.xlu0
        %v7900 = vpop.trf.xlu0
        %v7901 = vpop.trf.xlu0
        %v7902 = vpop.trf.xlu0
        %v7903 = vpop.trf.xlu0
        %7904 = vxpose.xlu0.b32.start [1/16] %v6894, 128
        %7905 = vxpose.xlu0.b32.cont [2/16] %v6899, 128
        %7906 = vxpose.xlu0.b32.cont [3/16] %v6904, 128
        %7907 = vxpose.xlu0.b32.cont [4/16] %v6909, 128
        %7908 = vxpose.xlu0.b32.cont [5/16] 0.0, 128
        %7909 = vxpose.xlu0.b32.cont [6/16] 0.0, 128
        %7910 = vxpose.xlu0.b32.cont [7/16] 0.0, 128
        %7911 = vxpose.xlu0.b32.cont [8/16] 0.0, 128
        %7912 = vxpose.xlu0.b32.cont [9/16] 0.0, 128
        %7913 = vxpose.xlu0.b32.cont [10/16] 0.0, 128
        %7914 = vxpose.xlu0.b32.cont [11/16] 0.0, 128
        %7915 = vxpose.xlu0.b32.cont [12/16] 0.0, 128
        %7916 = vxpose.xlu0.b32.cont [13/16] 0.0, 128
        %7917 = vxpose.xlu0.b32.cont [14/16] 0.0, 128
        %7918 = vxpose.xlu0.b32.cont [15/16] 0.0, 128
        %7919 = vxpose.xlu0.b32.end [16/16] 0.0, 128
        %v7920 = vpop.trf.xlu0
        %v7921 = vpop.trf.xlu0
        %v7922 = vpop.trf.xlu0
        %v7923 = vpop.trf.xlu0
        %v7924 = vpop.trf.xlu0
        %v7925 = vpop.trf.xlu0
        %v7926 = vpop.trf.xlu0
        %v7927 = vpop.trf.xlu0
        %v7928 = vpop.trf.xlu0
        %v7929 = vpop.trf.xlu0
        %v7930 = vpop.trf.xlu0
        %v7931 = vpop.trf.xlu0
        %v7932 = vpop.trf.xlu0
        %v7933 = vpop.trf.xlu0
        %v7934 = vpop.trf.xlu0
        %v7935 = vpop.trf.xlu0
        %v7937 = vsel %vm373, %v6928, 0
        %v7940 = vsel %vm373, %v6929, 0
        %v7943 = vsel %vm373, %v6930, 0
        %v7946 = vsel %vm373, %v6931, 0
        %v7949 = vsel %vm373, %v6960, 0
        %v7952 = vsel %vm373, %v6961, 0
        %v7955 = vsel %vm373, %v6962, 0
        %v7958 = vsel %vm373, %v6963, 0
        %v7961 = vsel %vm373, %v6992, 0
        %v7964 = vsel %vm373, %v6993, 0
        %v7967 = vsel %vm373, %v6994, 0
        %v7970 = vsel %vm373, %v6995, 0
        %v7973 = vsel %vm373, %v7024, 0
        %v7976 = vsel %vm373, %v7025, 0
        %v7979 = vsel %vm373, %v7026, 0
        %v7982 = vsel %vm373, %v7027, 0
        %v7985 = vsel %vm373, %v7056, 0
        %v7988 = vsel %vm373, %v7057, 0
        %v7991 = vsel %vm373, %v7058, 0
        %v7994 = vsel %vm373, %v7059, 0
        %v7997 = vsel %vm373, %v7088, 0
        %v8000 = vsel %vm373, %v7089, 0
        %v8003 = vsel %vm373, %v7090, 0
        %v8006 = vsel %vm373, %v7091, 0
        %v8009 = vsel %vm373, %v7120, 0
        %v8012 = vsel %vm373, %v7121, 0
        %v8015 = vsel %vm373, %v7122, 0
        %v8018 = vsel %vm373, %v7123, 0
        %v8021 = vsel %vm373, %v7152, 0
        %v8024 = vsel %vm373, %v7153, 0
        %v8027 = vsel %vm373, %v7154, 0
        %v8030 = vsel %vm373, %v7155, 0
        %v8033 = vsel %vm373, %v7184, 0
        %v8036 = vsel %vm373, %v7185, 0
        %v8039 = vsel %vm373, %v7186, 0
        %v8042 = vsel %vm373, %v7187, 0
        %v8045 = vsel %vm373, %v7216, 0
        %v8048 = vsel %vm373, %v7217, 0
        %v8051 = vsel %vm373, %v7218, 0
        %v8054 = vsel %vm373, %v7219, 0
        %v8057 = vsel %vm373, %v7248, 0
        %v8060 = vsel %vm373, %v7249, 0
        %v8063 = vsel %vm373, %v7250, 0
        %v8066 = vsel %vm373, %v7251, 0
        %v8069 = vsel %vm373, %v7280, 0
        %v8072 = vsel %vm373, %v7281, 0
        %v8075 = vsel %vm373, %v7282, 0
        %v8078 = vsel %vm373, %v7283, 0
        %v8081 = vsel %vm373, %v7312, 0
        %v8084 = vsel %vm373, %v7313, 0
        %v8087 = vsel %vm373, %v7314, 0
        %v8090 = vsel %vm373, %v7315, 0
        %v8093 = vsel %vm373, %v7344, 0
        %v8096 = vsel %vm373, %v7345, 0
        %v8099 = vsel %vm373, %v7346, 0
        %v8102 = vsel %vm373, %v7347, 0
        %v8105 = vsel %vm373, %v7376, 0
        %v8108 = vsel %vm373, %v7377, 0
        %v8111 = vsel %vm373, %v7378, 0
        %v8114 = vsel %vm373, %v7379, 0
        %v8117 = vsel %vm373, %v7408, 0
        %v8120 = vsel %vm373, %v7409, 0
        %v8123 = vsel %vm373, %v7410, 0
        %v8126 = vsel %vm373, %v7411, 0
        %8128 = vmatprep.subr.mxu0 0.0
        %8129 = vmatpush1.msra.mxu0 %v365
        %8130 = vmatprep.subr.mxu0 0.0
        %8131 = vmatpush1.msra.mxu0 %v366
        %8132 = vmatprep.subr.mxu0 0.0
        %8133 = vmatpush1.msra.mxu0 %v367
        %8134 = vmatprep.subr.mxu0 0.0
        %8135 = vmatpush1.msra.mxu0 %v368
        %8136 = vmatprep.subr.mxu0 0.0
        %8137 = vmatpush1.msra.mxu0 0.0
        %8138 = vmatprep.subr.mxu0 0.0
        %8139 = vmatpush1.msra.mxu0 0.0
        %8140 = vmatprep.subr.mxu0 0.0
        %8141 = vmatpush1.msra.mxu0 0.0
        %8142 = vmatprep.subr.mxu0 0.0
        %8143 = vmatpush1.msra.mxu0 0.0
        %8144 = vmatprep.subr.mxu0 0.0
        %8145 = vmatpush1.msra.mxu0 0.0
        %8146 = vmatprep.subr.mxu0 0.0
        %8147 = vmatpush1.msra.mxu0 0.0
        %8148 = vmatprep.subr.mxu0 0.0
        %8149 = vmatpush1.msra.mxu0 0.0
        %8150 = vmatprep.subr.mxu0 0.0
        %8151 = vmatpush1.msra.mxu0 0.0
        %8152 = vmatprep.subr.mxu0 0.0
        %8153 = vmatpush1.msra.mxu0 0.0
        %8154 = vmatprep.subr.mxu0 0.0
        %8155 = vmatpush1.msra.mxu0 0.0
        %8156 = vmatprep.subr.mxu0 0.0
        %8157 = vmatpush1.msra.mxu0 0.0
        %8158 = vmatprep.subr.mxu0 0.0
        %8159 = vmatpush1.msra.mxu0 0.0
        %8160 = vmatprep.subr.mxu0 0.0
        %8161 = vmatpush1.msra.mxu0 0.0
        %8162 = vmatprep.subr.mxu0 0.0
        %8163 = vmatpush1.msra.mxu0 0.0
        %8164 = vmatprep.subr.mxu0 0.0
        %8165 = vmatpush1.msra.mxu0 0.0
        %8166 = vmatprep.subr.mxu0 0.0
        %8167 = vmatpush1.msra.mxu0 0.0
        %8168 = vmatprep.subr.mxu0 0.0
        %8169 = vmatpush1.msra.mxu0 0.0
        %8170 = vmatprep.subr.mxu0 0.0
        %8171 = vmatpush1.msra.mxu0 0.0
        %8172 = vmatprep.subr.mxu0 0.0
        %8173 = vmatpush1.msra.mxu0 0.0
        %8174 = vmatprep.subr.mxu0 0.0
        %8175 = vmatpush1.msra.mxu0 0.0
        %8176 = vmatprep.subr.mxu0 0.0
        %8177 = vmatpush1.msra.mxu0 0.0
        %8178 = vmatprep.subr.mxu0 0.0
        %8179 = vmatpush1.msra.mxu0 0.0
        %8180 = vmatprep.subr.mxu0 0.0
        %8181 = vmatpush1.msra.mxu0 0.0
        %8182 = vmatprep.subr.mxu0 0.0
        %8183 = vmatpush1.msra.mxu0 0.0
        %8184 = vmatprep.subr.mxu0 0.0
        %8185 = vmatpush1.msra.mxu0 0.0
        %8186 = vmatprep.subr.mxu0 0.0
        %8187 = vmatpush1.msra.mxu0 0.0
        %8188 = vmatprep.subr.mxu0 0.0
        %8189 = vmatpush1.msra.mxu0 0.0
        %8190 = vmatprep.subr.mxu0 0.0
        %8191 = vmatpush1.msra.mxu0 0.0
        %8192 = vmatprep.mubr.f32.mxu0 0.0
        %8193 = vmatmul.mubr.f32.gmra.mrb[0].mxu0 %v7937
        %v8194 = vpop.f32.mrb[0].mxu0
        %v8195 = vadd.f32 0.0, %v8194
        %v8196 = vpop.f32.mrb[0].mxu0
        %8197 = vmatprep.mubr.f32.mxu0 0.0
        %8198 = vmatmul.mubr.f32.gmra.mrb[0].mxu0 %v7940
        %v8199 = vpop.f32.mrb[0].mxu0
        %v8200 = vadd.f32 0.0, %v8199
        %v8201 = vpop.f32.mrb[0].mxu0
        %8202 = vmatprep.mubr.f32.mxu0 0.0
        %8203 = vmatmul.mubr.f32.gmra.mrb[0].mxu0 %v7943
        %v8204 = vpop.f32.mrb[0].mxu0
        %v8205 = vadd.f32 0.0, %v8204
        %v8206 = vpop.f32.mrb[0].mxu0
        %8207 = vmatprep.mubr.f32.mxu0 0.0
        %8208 = vmatmul.mubr.f32.gmra.mrb[0].mxu0 %v7946
        %v8209 = vpop.f32.mrb[0].mxu0
        %v8210 = vadd.f32 0.0, %v8209
        %v8211 = vpop.f32.mrb[0].mxu0
        %8212 = vmatprep.mubr.f32.mxu0 0.0
        %8213 = vmatmul.mubr.f32.gmra.mrb[0].mxu0 %v7949
        %v8214 = vpop.f32.mrb[0].mxu0
        %v8215 = vadd.f32 0.0, %v8214
        %v8216 = vpop.f32.mrb[0].mxu0
        %8217 = vmatprep.mubr.f32.mxu0 0.0
        %8218 = vmatmul.mubr.f32.gmra.mrb[0].mxu0 %v7952
        %v8219 = vpop.f32.mrb[0].mxu0
        %v8220 = vadd.f32 0.0, %v8219
        %v8221 = vpop.f32.mrb[0].mxu0
        %8222 = vmatprep.mubr.f32.mxu0 0.0
        %8223 = vmatmul.mubr.f32.gmra.mrb[0].mxu0 %v7955
        %v8224 = vpop.f32.mrb[0].mxu0
        %v8225 = vadd.f32 0.0, %v8224
        %v8226 = vpop.f32.mrb[0].mxu0
        %8227 = vmatprep.mubr.f32.mxu0 0.0
        %8228 = vmatmul.mubr.f32.gmra.mrb[0].mxu0 %v7958
        %v8229 = vpop.f32.mrb[0].mxu0
        %v8230 = vadd.f32 0.0, %v8229
        %v8231 = vpop.f32.mrb[0].mxu0
        %8232 = vmatprep.mubr.f32.mxu0 0.0
        %8233 = vmatmul.mubr.f32.gmra.mrb[0].mxu0 %v7961
        %v8234 = vpop.f32.mrb[0].mxu0
        %v8235 = vadd.f32 0.0, %v8234
        %v8236 = vpop.f32.mrb[0].mxu0
        %8237 = vmatprep.mubr.f32.mxu0 0.0
        %8238 = vmatmul.mubr.f32.gmra.mrb[0].mxu0 %v7964
        %v8239 = vpop.f32.mrb[0].mxu0
        %v8240 = vadd.f32 0.0, %v8239
        %v8241 = vpop.f32.mrb[0].mxu0
        %8242 = vmatprep.mubr.f32.mxu0 0.0
        %8243 = vmatmul.mubr.f32.gmra.mrb[0].mxu0 %v7967
        %v8244 = vpop.f32.mrb[0].mxu0
        %v8245 = vadd.f32 0.0, %v8244
        %v8246 = vpop.f32.mrb[0].mxu0
        %8247 = vmatprep.mubr.f32.mxu0 0.0
        %8248 = vmatmul.mubr.f32.gmra.mrb[0].mxu0 %v7970
        %v8249 = vpop.f32.mrb[0].mxu0
        %v8250 = vadd.f32 0.0, %v8249
        %v8251 = vpop.f32.mrb[0].mxu0
        %8252 = vmatprep.mubr.f32.mxu0 0.0
        %8253 = vmatmul.mubr.f32.gmra.mrb[0].mxu0 %v7973
        %v8254 = vpop.f32.mrb[0].mxu0
        %v8255 = vadd.f32 0.0, %v8254
        %v8256 = vpop.f32.mrb[0].mxu0
        %8257 = vmatprep.mubr.f32.mxu0 0.0
        %8258 = vmatmul.mubr.f32.gmra.mrb[0].mxu0 %v7976
        %v8259 = vpop.f32.mrb[0].mxu0
        %v8260 = vadd.f32 0.0, %v8259
        %v8261 = vpop.f32.mrb[0].mxu0
        %8262 = vmatprep.mubr.f32.mxu0 0.0
        %8263 = vmatmul.mubr.f32.gmra.mrb[0].mxu0 %v7979
        %v8264 = vpop.f32.mrb[0].mxu0
        %v8265 = vadd.f32 0.0, %v8264
        %v8266 = vpop.f32.mrb[0].mxu0
        %8267 = vmatprep.mubr.f32.mxu0 0.0
        %8268 = vmatmul.mubr.f32.gmra.mrb[0].mxu0 %v7982
        %v8269 = vpop.f32.mrb[0].mxu0
        %v8270 = vadd.f32 0.0, %v8269
        %v8271 = vpop.f32.mrb[0].mxu0
        %8272 = vmatprep.mubr.f32.mxu0 0.0
        %8273 = vmatmul.mubr.f32.gmra.mrb[0].mxu0 %v7985
        %v8274 = vpop.f32.mrb[0].mxu0
        %v8275 = vadd.f32 0.0, %v8274
        %v8276 = vpop.f32.mrb[0].mxu0
        %8277 = vmatprep.mubr.f32.mxu0 0.0
        %8278 = vmatmul.mubr.f32.gmra.mrb[0].mxu0 %v7988
        %v8279 = vpop.f32.mrb[0].mxu0
        %v8280 = vadd.f32 0.0, %v8279
        %v8281 = vpop.f32.mrb[0].mxu0
        %8282 = vmatprep.mubr.f32.mxu0 0.0
        %8283 = vmatmul.mubr.f32.gmra.mrb[0].mxu0 %v7991
        %v8284 = vpop.f32.mrb[0].mxu0
        %v8285 = vadd.f32 0.0, %v8284
        %v8286 = vpop.f32.mrb[0].mxu0
        %8287 = vmatprep.mubr.f32.mxu0 0.0
        %8288 = vmatmul.mubr.f32.gmra.mrb[0].mxu0 %v7994
        %v8289 = vpop.f32.mrb[0].mxu0
        %v8290 = vadd.f32 0.0, %v8289
        %v8291 = vpop.f32.mrb[0].mxu0
        %8292 = vmatprep.mubr.f32.mxu0 0.0
        %8293 = vmatmul.mubr.f32.gmra.mrb[0].mxu0 %v7997
        %v8294 = vpop.f32.mrb[0].mxu0
        %v8295 = vadd.f32 0.0, %v8294
        %v8296 = vpop.f32.mrb[0].mxu0
        %8297 = vmatprep.mubr.f32.mxu0 0.0
        %8298 = vmatmul.mubr.f32.gmra.mrb[0].mxu0 %v8000
        %v8299 = vpop.f32.mrb[0].mxu0
        %v8300 = vadd.f32 0.0, %v8299
        %v8301 = vpop.f32.mrb[0].mxu0
        %8302 = vmatprep.mubr.f32.mxu0 0.0
        %8303 = vmatmul.mubr.f32.gmra.mrb[0].mxu0 %v8003
        %v8304 = vpop.f32.mrb[0].mxu0
        %v8305 = vadd.f32 0.0, %v8304
        %v8306 = vpop.f32.mrb[0].mxu0
        %8307 = vmatprep.mubr.f32.mxu0 0.0
        %8308 = vmatmul.mubr.f32.gmra.mrb[0].mxu0 %v8006
        %v8309 = vpop.f32.mrb[0].mxu0
        %v8310 = vadd.f32 0.0, %v8309
        %v8311 = vpop.f32.mrb[0].mxu0
        %8312 = vmatprep.mubr.f32.mxu0 0.0
        %8313 = vmatmul.mubr.f32.gmra.mrb[0].mxu0 %v8009
        %v8314 = vpop.f32.mrb[0].mxu0
        %v8315 = vadd.f32 0.0, %v8314
        %v8316 = vpop.f32.mrb[0].mxu0
        %8317 = vmatprep.mubr.f32.mxu0 0.0
        %8318 = vmatmul.mubr.f32.gmra.mrb[0].mxu0 %v8012
        %v8319 = vpop.f32.mrb[0].mxu0
        %v8320 = vadd.f32 0.0, %v8319
        %v8321 = vpop.f32.mrb[0].mxu0
        %8322 = vmatprep.mubr.f32.mxu0 0.0
        %8323 = vmatmul.mubr.f32.gmra.mrb[0].mxu0 %v8015
        %v8324 = vpop.f32.mrb[0].mxu0
        %v8325 = vadd.f32 0.0, %v8324
        %v8326 = vpop.f32.mrb[0].mxu0
        %8327 = vmatprep.mubr.f32.mxu0 0.0
        %8328 = vmatmul.mubr.f32.gmra.mrb[0].mxu0 %v8018
        %v8329 = vpop.f32.mrb[0].mxu0
        %v8330 = vadd.f32 0.0, %v8329
        %v8331 = vpop.f32.mrb[0].mxu0
        %8332 = vmatprep.mubr.f32.mxu0 0.0
        %8333 = vmatmul.mubr.f32.gmra.mrb[0].mxu0 %v8021
        %v8334 = vpop.f32.mrb[0].mxu0
        %v8335 = vadd.f32 0.0, %v8334
        %v8336 = vpop.f32.mrb[0].mxu0
        %8337 = vmatprep.mubr.f32.mxu0 0.0
        %8338 = vmatmul.mubr.f32.gmra.mrb[0].mxu0 %v8024
        %v8339 = vpop.f32.mrb[0].mxu0
        %v8340 = vadd.f32 0.0, %v8339
        %v8341 = vpop.f32.mrb[0].mxu0
        %8342 = vmatprep.mubr.f32.mxu0 0.0
        %8343 = vmatmul.mubr.f32.gmra.mrb[0].mxu0 %v8027
        %v8344 = vpop.f32.mrb[0].mxu0
        %v8345 = vadd.f32 0.0, %v8344
        %v8346 = vpop.f32.mrb[0].mxu0
        %8347 = vmatprep.mubr.f32.mxu0 0.0
        %8348 = vmatmul.mubr.f32.gmra.mrb[0].mxu0 %v8030
        %v8349 = vpop.f32.mrb[0].mxu0
        %v8350 = vadd.f32 0.0, %v8349
        %v8351 = vpop.f32.mrb[0].mxu0
        %8352 = vmatprep.mubr.f32.mxu0 0.0
        %8353 = vmatmul.mubr.f32.gmra.mrb[0].mxu0 %v8033
        %v8354 = vpop.f32.mrb[0].mxu0
        %v8355 = vadd.f32 0.0, %v8354
        %v8356 = vpop.f32.mrb[0].mxu0
        %8357 = vmatprep.mubr.f32.mxu0 0.0
        %8358 = vmatmul.mubr.f32.gmra.mrb[0].mxu0 %v8036
        %v8359 = vpop.f32.mrb[0].mxu0
        %v8360 = vadd.f32 0.0, %v8359
        %v8361 = vpop.f32.mrb[0].mxu0
        %8362 = vmatprep.mubr.f32.mxu0 0.0
        %8363 = vmatmul.mubr.f32.gmra.mrb[0].mxu0 %v8039
        %v8364 = vpop.f32.mrb[0].mxu0
        %v8365 = vadd.f32 0.0, %v8364
        %v8366 = vpop.f32.mrb[0].mxu0
        %8367 = vmatprep.mubr.f32.mxu0 0.0
        %8368 = vmatmul.mubr.f32.gmra.mrb[0].mxu0 %v8042
        %v8369 = vpop.f32.mrb[0].mxu0
        %v8370 = vadd.f32 0.0, %v8369
        %v8371 = vpop.f32.mrb[0].mxu0
        %8372 = vmatprep.mubr.f32.mxu0 0.0
        %8373 = vmatmul.mubr.f32.gmra.mrb[0].mxu0 %v8045
        %v8374 = vpop.f32.mrb[0].mxu0
        %v8375 = vadd.f32 0.0, %v8374
        %v8376 = vpop.f32.mrb[0].mxu0
        %8377 = vmatprep.mubr.f32.mxu0 0.0
        %8378 = vmatmul.mubr.f32.gmra.mrb[0].mxu0 %v8048
        %v8379 = vpop.f32.mrb[0].mxu0
        %v8380 = vadd.f32 0.0, %v8379
        %v8381 = vpop.f32.mrb[0].mxu0
        %8382 = vmatprep.mubr.f32.mxu0 0.0
        %8383 = vmatmul.mubr.f32.gmra.mrb[0].mxu0 %v8051
        %v8384 = vpop.f32.mrb[0].mxu0
        %v8385 = vadd.f32 0.0, %v8384
        %v8386 = vpop.f32.mrb[0].mxu0
        %8387 = vmatprep.mubr.f32.mxu0 0.0
        %8388 = vmatmul.mubr.f32.gmra.mrb[0].mxu0 %v8054
        %v8389 = vpop.f32.mrb[0].mxu0
        %v8390 = vadd.f32 0.0, %v8389
        %v8391 = vpop.f32.mrb[0].mxu0
        %8392 = vmatprep.mubr.f32.mxu0 0.0
        %8393 = vmatmul.mubr.f32.gmra.mrb[0].mxu0 %v8057
        %v8394 = vpop.f32.mrb[0].mxu0
        %v8395 = vadd.f32 0.0, %v8394
        %v8396 = vpop.f32.mrb[0].mxu0
        %8397 = vmatprep.mubr.f32.mxu0 0.0
        %8398 = vmatmul.mubr.f32.gmra.mrb[0].mxu0 %v8060
        %v8399 = vpop.f32.mrb[0].mxu0
        %v8400 = vadd.f32 0.0, %v8399
        %v8401 = vpop.f32.mrb[0].mxu0
        %8402 = vmatprep.mubr.f32.mxu0 0.0
        %8403 = vmatmul.mubr.f32.gmra.mrb[0].mxu0 %v8063
        %v8404 = vpop.f32.mrb[0].mxu0
        %v8405 = vadd.f32 0.0, %v8404
        %v8406 = vpop.f32.mrb[0].mxu0
        %8407 = vmatprep.mubr.f32.mxu0 0.0
        %8408 = vmatmul.mubr.f32.gmra.mrb[0].mxu0 %v8066
        %v8409 = vpop.f32.mrb[0].mxu0
        %v8410 = vadd.f32 0.0, %v8409
        %v8411 = vpop.f32.mrb[0].mxu0
        %8412 = vmatprep.mubr.f32.mxu0 0.0
        %8413 = vmatmul.mubr.f32.gmra.mrb[0].mxu0 %v8069
        %v8414 = vpop.f32.mrb[0].mxu0
        %v8415 = vadd.f32 0.0, %v8414
        %v8416 = vpop.f32.mrb[0].mxu0
        %8417 = vmatprep.mubr.f32.mxu0 0.0
        %8418 = vmatmul.mubr.f32.gmra.mrb[0].mxu0 %v8072
        %v8419 = vpop.f32.mrb[0].mxu0
        %v8420 = vadd.f32 0.0, %v8419
        %v8421 = vpop.f32.mrb[0].mxu0
        %8422 = vmatprep.mubr.f32.mxu0 0.0
        %8423 = vmatmul.mubr.f32.gmra.mrb[0].mxu0 %v8075
        %v8424 = vpop.f32.mrb[0].mxu0
        %v8425 = vadd.f32 0.0, %v8424
        %v8426 = vpop.f32.mrb[0].mxu0
        %8427 = vmatprep.mubr.f32.mxu0 0.0
        %8428 = vmatmul.mubr.f32.gmra.mrb[0].mxu0 %v8078
        %v8429 = vpop.f32.mrb[0].mxu0
        %v8430 = vadd.f32 0.0, %v8429
        %v8431 = vpop.f32.mrb[0].mxu0
        %8432 = vmatprep.mubr.f32.mxu0 0.0
        %8433 = vmatmul.mubr.f32.gmra.mrb[0].mxu0 %v8081
        %v8434 = vpop.f32.mrb[0].mxu0
        %v8435 = vadd.f32 0.0, %v8434
        %v8436 = vpop.f32.mrb[0].mxu0
        %8437 = vmatprep.mubr.f32.mxu0 0.0
        %8438 = vmatmul.mubr.f32.gmra.mrb[0].mxu0 %v8084
        %v8439 = vpop.f32.mrb[0].mxu0
        %v8440 = vadd.f32 0.0, %v8439
        %v8441 = vpop.f32.mrb[0].mxu0
        %8442 = vmatprep.mubr.f32.mxu0 0.0
        %8443 = vmatmul.mubr.f32.gmra.mrb[0].mxu0 %v8087
        %v8444 = vpop.f32.mrb[0].mxu0
        %v8445 = vadd.f32 0.0, %v8444
        %v8446 = vpop.f32.mrb[0].mxu0
        %8447 = vmatprep.mubr.f32.mxu0 0.0
        %8448 = vmatmul.mubr.f32.gmra.mrb[0].mxu0 %v8090
        %v8449 = vpop.f32.mrb[0].mxu0
        %v8450 = vadd.f32 0.0, %v8449
        %v8451 = vpop.f32.mrb[0].mxu0
        %8452 = vmatprep.mubr.f32.mxu0 0.0
        %8453 = vmatmul.mubr.f32.gmra.mrb[0].mxu0 %v8093
        %v8454 = vpop.f32.mrb[0].mxu0
        %v8455 = vadd.f32 0.0, %v8454
        %v8456 = vpop.f32.mrb[0].mxu0
        %8457 = vmatprep.mubr.f32.mxu0 0.0
        %8458 = vmatmul.mubr.f32.gmra.mrb[0].mxu0 %v8096
        %v8459 = vpop.f32.mrb[0].mxu0
        %v8460 = vadd.f32 0.0, %v8459
        %v8461 = vpop.f32.mrb[0].mxu0
        %8462 = vmatprep.mubr.f32.mxu0 0.0
        %8463 = vmatmul.mubr.f32.gmra.mrb[0].mxu0 %v8099
        %v8464 = vpop.f32.mrb[0].mxu0
        %v8465 = vadd.f32 0.0, %v8464
        %v8466 = vpop.f32.mrb[0].mxu0
        %8467 = vmatprep.mubr.f32.mxu0 0.0
        %8468 = vmatmul.mubr.f32.gmra.mrb[0].mxu0 %v8102
        %v8469 = vpop.f32.mrb[0].mxu0
        %v8470 = vadd.f32 0.0, %v8469
        %v8471 = vpop.f32.mrb[0].mxu0
        %8472 = vmatprep.mubr.f32.mxu0 0.0
        %8473 = vmatmul.mubr.f32.gmra.mrb[0].mxu0 %v8105
        %v8474 = vpop.f32.mrb[0].mxu0
        %v8475 = vadd.f32 0.0, %v8474
        %v8476 = vpop.f32.mrb[0].mxu0
        %8477 = vmatprep.mubr.f32.mxu0 0.0
        %8478 = vmatmul.mubr.f32.gmra.mrb[0].mxu0 %v8108
        %v8479 = vpop.f32.mrb[0].mxu0
        %v8480 = vadd.f32 0.0, %v8479
        %v8481 = vpop.f32.mrb[0].mxu0
        %8482 = vmatprep.mubr.f32.mxu0 0.0
        %8483 = vmatmul.mubr.f32.gmra.mrb[0].mxu0 %v8111
        %v8484 = vpop.f32.mrb[0].mxu0
        %v8485 = vadd.f32 0.0, %v8484
        %v8486 = vpop.f32.mrb[0].mxu0
        %8487 = vmatprep.mubr.f32.mxu0 0.0
        %8488 = vmatmul.mubr.f32.gmra.mrb[0].mxu0 %v8114
        %v8489 = vpop.f32.mrb[0].mxu0
        %v8490 = vadd.f32 0.0, %v8489
        %v8491 = vpop.f32.mrb[0].mxu0
        %8492 = vmatprep.mubr.f32.mxu0 0.0
        %8493 = vmatmul.mubr.f32.gmra.mrb[0].mxu0 %v8117
        %v8494 = vpop.f32.mrb[0].mxu0
        %v8495 = vadd.f32 0.0, %v8494
        %v8496 = vpop.f32.mrb[0].mxu0
        %8497 = vmatprep.mubr.f32.mxu0 0.0
        %8498 = vmatmul.mubr.f32.gmra.mrb[0].mxu0 %v8120
        %v8499 = vpop.f32.mrb[0].mxu0
        %v8500 = vadd.f32 0.0, %v8499
        %v8501 = vpop.f32.mrb[0].mxu0
        %8502 = vmatprep.mubr.f32.mxu0 0.0
        %8503 = vmatmul.mubr.f32.gmra.mrb[0].mxu0 %v8123
        %v8504 = vpop.f32.mrb[0].mxu0
        %v8505 = vadd.f32 0.0, %v8504
        %v8506 = vpop.f32.mrb[0].mxu0
        %8507 = vmatprep.mubr.f32.mxu0 0.0
        %8508 = vmatmul.mubr.f32.gmra.mrb[0].mxu0 %v8126
        %v8509 = vpop.f32.mrb[0].mxu0
        %v8510 = vadd.f32 0.0, %v8509
        %v8511 = vpop.f32.mrb[0].mxu0
        %8512 = vdwg.mxu0
        %v8514 = vsel %vm373, %v7440, 0
        %v8517 = vsel %vm373, %v7441, 0
        %v8520 = vsel %vm373, %v7442, 0
        %v8523 = vsel %vm373, %v7443, 0
        %v8526 = vsel %vm373, %v7472, 0
        %v8529 = vsel %vm373, %v7473, 0
        %v8532 = vsel %vm373, %v7474, 0
        %v8535 = vsel %vm373, %v7475, 0
        %v8538 = vsel %vm373, %v7504, 0
        %v8541 = vsel %vm373, %v7505, 0
        %v8544 = vsel %vm373, %v7506, 0
        %v8547 = vsel %vm373, %v7507, 0
        %v8550 = vsel %vm373, %v7536, 0
        %v8553 = vsel %vm373, %v7537, 0
        %v8556 = vsel %vm373, %v7538, 0
        %v8559 = vsel %vm373, %v7539, 0
        %v8562 = vsel %vm373, %v7568, 0
        %v8565 = vsel %vm373, %v7569, 0
        %v8568 = vsel %vm373, %v7570, 0
        %v8571 = vsel %vm373, %v7571, 0
        %v8574 = vsel %vm373, %v7600, 0
        %v8577 = vsel %vm373, %v7601, 0
        %v8580 = vsel %vm373, %v7602, 0
        %v8583 = vsel %vm373, %v7603, 0
        %v8586 = vsel %vm373, %v7632, 0
        %v8589 = vsel %vm373, %v7633, 0
        %v8592 = vsel %vm373, %v7634, 0
        %v8595 = vsel %vm373, %v7635, 0
        %v8598 = vsel %vm373, %v7664, 0
        %v8601 = vsel %vm373, %v7665, 0
        %v8604 = vsel %vm373, %v7666, 0
        %v8607 = vsel %vm373, %v7667, 0
        %v8610 = vsel %vm373, %v7696, 0
        %v8613 = vsel %vm373, %v7697, 0
        %v8616 = vsel %vm373, %v7698, 0
        %v8619 = vsel %vm373, %v7699, 0
        %v8622 = vsel %vm373, %v7728, 0
        %v8625 = vsel %vm373, %v7729, 0
        %v8628 = vsel %vm373, %v7730, 0
        %v8631 = vsel %vm373, %v7731, 0
        %v8634 = vsel %vm373, %v7760, 0
        %v8637 = vsel %vm373, %v7761, 0
        %v8640 = vsel %vm373, %v7762, 0
        %v8643 = vsel %vm373, %v7763, 0
        %v8646 = vsel %vm373, %v7792, 0
        %v8649 = vsel %vm373, %v7793, 0
        %v8652 = vsel %vm373, %v7794, 0
        %v8655 = vsel %vm373, %v7795, 0
        %v8658 = vsel %vm373, %v7824, 0
        %v8661 = vsel %vm373, %v7825, 0
        %v8664 = vsel %vm373, %v7826, 0
        %v8667 = vsel %vm373, %v7827, 0
        %v8670 = vsel %vm373, %v7856, 0
        %v8673 = vsel %vm373, %v7857, 0
        %v8676 = vsel %vm373, %v7858, 0
        %v8679 = vsel %vm373, %v7859, 0
        %v8682 = vsel %vm373, %v7888, 0
        %v8685 = vsel %vm373, %v7889, 0
        %v8688 = vsel %vm373, %v7890, 0
        %v8691 = vsel %vm373, %v7891, 0
        %v8694 = vsel %vm373, %v7920, 0
        %v8697 = vsel %vm373, %v7921, 0
        %v8700 = vsel %vm373, %v7922, 0
        %v8703 = vsel %vm373, %v7923, 0
        %8705 = vmatprep.subr.mxu0 0.0
        %8706 = vmatpush1.msra.mxu0 %v369
        %8707 = vmatprep.subr.mxu0 0.0
        %8708 = vmatpush1.msra.mxu0 %v370
        %8709 = vmatprep.subr.mxu0 0.0
        %8710 = vmatpush1.msra.mxu0 %v371
        %8711 = vmatprep.subr.mxu0 0.0
        %8712 = vmatpush1.msra.mxu0 %v372
        %8713 = vmatprep.subr.mxu0 0.0
        %8714 = vmatpush1.msra.mxu0 0.0
        %8715 = vmatprep.subr.mxu0 0.0
        %8716 = vmatpush1.msra.mxu0 0.0
        %8717 = vmatprep.subr.mxu0 0.0
        %8718 = vmatpush1.msra.mxu0 0.0
        %8719 = vmatprep.subr.mxu0 0.0
        %8720 = vmatpush1.msra.mxu0 0.0
        %8721 = vmatprep.subr.mxu0 0.0
        %8722 = vmatpush1.msra.mxu0 0.0
        %8723 = vmatprep.subr.mxu0 0.0
        %8724 = vmatpush1.msra.mxu0 0.0
        %8725 = vmatprep.subr.mxu0 0.0
        %8726 = vmatpush1.msra.mxu0 0.0
        %8727 = vmatprep.subr.mxu0 0.0
        %8728 = vmatpush1.msra.mxu0 0.0
        %8729 = vmatprep.subr.mxu0 0.0
        %8730 = vmatpush1.msra.mxu0 0.0
        %8731 = vmatprep.subr.mxu0 0.0
        %8732 = vmatpush1.msra.mxu0 0.0
        %8733 = vmatprep.subr.mxu0 0.0
        %8734 = vmatpush1.msra.mxu0 0.0
        %8735 = vmatprep.subr.mxu0 0.0
        %8736 = vmatpush1.msra.mxu0 0.0
        %8737 = vmatprep.subr.mxu0 0.0
        %8738 = vmatpush1.msra.mxu0 0.0
        %8739 = vmatprep.subr.mxu0 0.0
        %8740 = vmatpush1.msra.mxu0 0.0
        %8741 = vmatprep.subr.mxu0 0.0
        %8742 = vmatpush1.msra.mxu0 0.0
        %8743 = vmatprep.subr.mxu0 0.0
        %8744 = vmatpush1.msra.mxu0 0.0
        %8745 = vmatprep.subr.mxu0 0.0
        %8746 = vmatpush1.msra.mxu0 0.0
        %8747 = vmatprep.subr.mxu0 0.0
        %8748 = vmatpush1.msra.mxu0 0.0
        %8749 = vmatprep.subr.mxu0 0.0
        %8750 = vmatpush1.msra.mxu0 0.0
        %8751 = vmatprep.subr.mxu0 0.0
        %8752 = vmatpush1.msra.mxu0 0.0
        %8753 = vmatprep.subr.mxu0 0.0
        %8754 = vmatpush1.msra.mxu0 0.0
        %8755 = vmatprep.subr.mxu0 0.0
        %8756 = vmatpush1.msra.mxu0 0.0
        %8757 = vmatprep.subr.mxu0 0.0
        %8758 = vmatpush1.msra.mxu0 0.0
        %8759 = vmatprep.subr.mxu0 0.0
        %8760 = vmatpush1.msra.mxu0 0.0
        %8761 = vmatprep.subr.mxu0 0.0
        %8762 = vmatpush1.msra.mxu0 0.0
        %8763 = vmatprep.subr.mxu0 0.0
        %8764 = vmatpush1.msra.mxu0 0.0
        %8765 = vmatprep.subr.mxu0 0.0
        %8766 = vmatpush1.msra.mxu0 0.0
        %8767 = vmatprep.subr.mxu0 0.0
        %8768 = vmatpush1.msra.mxu0 0.0
        %8769 = vmatprep.mubr.f32.mxu0 0.0
        %8770 = vmatmul.mubr.f32.gmra.mrb[0].mxu0 %v8514
        %v8771 = vpop.f32.mrb[0].mxu0
        %v8772 = vadd.f32 0.0, %v8771
        %v8773 = vpop.f32.mrb[0].mxu0
        %8774 = vmatprep.mubr.f32.mxu0 0.0
        %8775 = vmatmul.mubr.f32.gmra.mrb[0].mxu0 %v8517
        %v8776 = vpop.f32.mrb[0].mxu0
        %v8777 = vadd.f32 0.0, %v8776
        %v8778 = vpop.f32.mrb[0].mxu0
        %8779 = vmatprep.mubr.f32.mxu0 0.0
        %8780 = vmatmul.mubr.f32.gmra.mrb[0].mxu0 %v8520
        %v8781 = vpop.f32.mrb[0].mxu0
        %v8782 = vadd.f32 0.0, %v8781
        %v8783 = vpop.f32.mrb[0].mxu0
        %8784 = vmatprep.mubr.f32.mxu0 0.0
        %8785 = vmatmul.mubr.f32.gmra.mrb[0].mxu0 %v8523
        %v8786 = vpop.f32.mrb[0].mxu0
        %v8787 = vadd.f32 0.0, %v8786
        %v8788 = vpop.f32.mrb[0].mxu0
        %8789 = vmatprep.mubr.f32.mxu0 0.0
        %8790 = vmatmul.mubr.f32.gmra.mrb[0].mxu0 %v8526
        %v8791 = vpop.f32.mrb[0].mxu0
        %v8792 = vadd.f32 0.0, %v8791
        %v8793 = vpop.f32.mrb[0].mxu0
        %8794 = vmatprep.mubr.f32.mxu0 0.0
        %8795 = vmatmul.mubr.f32.gmra.mrb[0].mxu0 %v8529
        %v8796 = vpop.f32.mrb[0].mxu0
        %v8797 = vadd.f32 0.0, %v8796
        %v8798 = vpop.f32.mrb[0].mxu0
        %8799 = vmatprep.mubr.f32.mxu0 0.0
        %8800 = vmatmul.mubr.f32.gmra.mrb[0].mxu0 %v8532
        %v8801 = vpop.f32.mrb[0].mxu0
        %v8802 = vadd.f32 0.0, %v8801
        %v8803 = vpop.f32.mrb[0].mxu0
        %8804 = vmatprep.mubr.f32.mxu0 0.0
        %8805 = vmatmul.mubr.f32.gmra.mrb[0].mxu0 %v8535
        %v8806 = vpop.f32.mrb[0].mxu0
        %v8807 = vadd.f32 0.0, %v8806
        %v8808 = vpop.f32.mrb[0].mxu0
        %8809 = vmatprep.mubr.f32.mxu0 0.0
        %8810 = vmatmul.mubr.f32.gmra.mrb[0].mxu0 %v8538
        %v8811 = vpop.f32.mrb[0].mxu0
        %v8812 = vadd.f32 0.0, %v8811
        %v8813 = vpop.f32.mrb[0].mxu0
        %8814 = vmatprep.mubr.f32.mxu0 0.0
        %8815 = vmatmul.mubr.f32.gmra.mrb[0].mxu0 %v8541
        %v8816 = vpop.f32.mrb[0].mxu0
        %v8817 = vadd.f32 0.0, %v8816
        %v8818 = vpop.f32.mrb[0].mxu0
        %8819 = vmatprep.mubr.f32.mxu0 0.0
        %8820 = vmatmul.mubr.f32.gmra.mrb[0].mxu0 %v8544
        %v8821 = vpop.f32.mrb[0].mxu0
        %v8822 = vadd.f32 0.0, %v8821
        %v8823 = vpop.f32.mrb[0].mxu0
        %8824 = vmatprep.mubr.f32.mxu0 0.0
        %8825 = vmatmul.mubr.f32.gmra.mrb[0].mxu0 %v8547
        %v8826 = vpop.f32.mrb[0].mxu0
        %v8827 = vadd.f32 0.0, %v8826
        %v8828 = vpop.f32.mrb[0].mxu0
        %8829 = vmatprep.mubr.f32.mxu0 0.0
        %8830 = vmatmul.mubr.f32.gmra.mrb[0].mxu0 %v8550
        %v8831 = vpop.f32.mrb[0].mxu0
        %v8832 = vadd.f32 0.0, %v8831
        %v8833 = vpop.f32.mrb[0].mxu0
        %8834 = vmatprep.mubr.f32.mxu0 0.0
        %8835 = vmatmul.mubr.f32.gmra.mrb[0].mxu0 %v8553
        %v8836 = vpop.f32.mrb[0].mxu0
        %v8837 = vadd.f32 0.0, %v8836
        %v8838 = vpop.f32.mrb[0].mxu0
        %8839 = vmatprep.mubr.f32.mxu0 0.0
        %8840 = vmatmul.mubr.f32.gmra.mrb[0].mxu0 %v8556
        %v8841 = vpop.f32.mrb[0].mxu0
        %v8842 = vadd.f32 0.0, %v8841
        %v8843 = vpop.f32.mrb[0].mxu0
        %8844 = vmatprep.mubr.f32.mxu0 0.0
        %8845 = vmatmul.mubr.f32.gmra.mrb[0].mxu0 %v8559
        %v8846 = vpop.f32.mrb[0].mxu0
        %v8847 = vadd.f32 0.0, %v8846
        %v8848 = vpop.f32.mrb[0].mxu0
        %8849 = vmatprep.mubr.f32.mxu0 0.0
        %8850 = vmatmul.mubr.f32.gmra.mrb[0].mxu0 %v8562
        %v8851 = vpop.f32.mrb[0].mxu0
        %v8852 = vadd.f32 0.0, %v8851
        %v8853 = vpop.f32.mrb[0].mxu0
        %8854 = vmatprep.mubr.f32.mxu0 0.0
        %8855 = vmatmul.mubr.f32.gmra.mrb[0].mxu0 %v8565
        %v8856 = vpop.f32.mrb[0].mxu0
        %v8857 = vadd.f32 0.0, %v8856
        %v8858 = vpop.f32.mrb[0].mxu0
        %8859 = vmatprep.mubr.f32.mxu0 0.0
        %8860 = vmatmul.mubr.f32.gmra.mrb[0].mxu0 %v8568
        %v8861 = vpop.f32.mrb[0].mxu0
        %v8862 = vadd.f32 0.0, %v8861
        %v8863 = vpop.f32.mrb[0].mxu0
        %8864 = vmatprep.mubr.f32.mxu0 0.0
        %8865 = vmatmul.mubr.f32.gmra.mrb[0].mxu0 %v8571
        %v8866 = vpop.f32.mrb[0].mxu0
        %v8867 = vadd.f32 0.0, %v8866
        %v8868 = vpop.f32.mrb[0].mxu0
        %8869 = vmatprep.mubr.f32.mxu0 0.0
        %8870 = vmatmul.mubr.f32.gmra.mrb[0].mxu0 %v8574
        %v8871 = vpop.f32.mrb[0].mxu0
        %v8872 = vadd.f32 0.0, %v8871
        %v8873 = vpop.f32.mrb[0].mxu0
        %8874 = vmatprep.mubr.f32.mxu0 0.0
        %8875 = vmatmul.mubr.f32.gmra.mrb[0].mxu0 %v8577
        %v8876 = vpop.f32.mrb[0].mxu0
        %v8877 = vadd.f32 0.0, %v8876
        %v8878 = vpop.f32.mrb[0].mxu0
        %8879 = vmatprep.mubr.f32.mxu0 0.0
        %8880 = vmatmul.mubr.f32.gmra.mrb[0].mxu0 %v8580
        %v8881 = vpop.f32.mrb[0].mxu0
        %v8882 = vadd.f32 0.0, %v8881
        %v8883 = vpop.f32.mrb[0].mxu0
        %8884 = vmatprep.mubr.f32.mxu0 0.0
        %8885 = vmatmul.mubr.f32.gmra.mrb[0].mxu0 %v8583
        %v8886 = vpop.f32.mrb[0].mxu0
        %v8887 = vadd.f32 0.0, %v8886
        %v8888 = vpop.f32.mrb[0].mxu0
        %8889 = vmatprep.mubr.f32.mxu0 0.0
        %8890 = vmatmul.mubr.f32.gmra.mrb[0].mxu0 %v8586
        %v8891 = vpop.f32.mrb[0].mxu0
        %v8892 = vadd.f32 0.0, %v8891
        %v8893 = vpop.f32.mrb[0].mxu0
        %8894 = vmatprep.mubr.f32.mxu0 0.0
        %8895 = vmatmul.mubr.f32.gmra.mrb[0].mxu0 %v8589
        %v8896 = vpop.f32.mrb[0].mxu0
        %v8897 = vadd.f32 0.0, %v8896
        %v8898 = vpop.f32.mrb[0].mxu0
        %8899 = vmatprep.mubr.f32.mxu0 0.0
        %8900 = vmatmul.mubr.f32.gmra.mrb[0].mxu0 %v8592
        %v8901 = vpop.f32.mrb[0].mxu0
        %v8902 = vadd.f32 0.0, %v8901
        %v8903 = vpop.f32.mrb[0].mxu0
        %8904 = vmatprep.mubr.f32.mxu0 0.0
        %8905 = vmatmul.mubr.f32.gmra.mrb[0].mxu0 %v8595
        %v8906 = vpop.f32.mrb[0].mxu0
        %v8907 = vadd.f32 0.0, %v8906
        %v8908 = vpop.f32.mrb[0].mxu0
        %8909 = vmatprep.mubr.f32.mxu0 0.0
        %8910 = vmatmul.mubr.f32.gmra.mrb[0].mxu0 %v8598
        %v8911 = vpop.f32.mrb[0].mxu0
        %v8912 = vadd.f32 0.0, %v8911
        %v8913 = vpop.f32.mrb[0].mxu0
        %8914 = vmatprep.mubr.f32.mxu0 0.0
        %8915 = vmatmul.mubr.f32.gmra.mrb[0].mxu0 %v8601
        %v8916 = vpop.f32.mrb[0].mxu0
        %v8917 = vadd.f32 0.0, %v8916
        %v8918 = vpop.f32.mrb[0].mxu0
        %8919 = vmatprep.mubr.f32.mxu0 0.0
        %8920 = vmatmul.mubr.f32.gmra.mrb[0].mxu0 %v8604
        %v8921 = vpop.f32.mrb[0].mxu0
        %v8922 = vadd.f32 0.0, %v8921
        %v8923 = vpop.f32.mrb[0].mxu0
        %8924 = vmatprep.mubr.f32.mxu0 0.0
        %8925 = vmatmul.mubr.f32.gmra.mrb[0].mxu0 %v8607
        %v8926 = vpop.f32.mrb[0].mxu0
        %v8927 = vadd.f32 0.0, %v8926
        %v8928 = vpop.f32.mrb[0].mxu0
        %8929 = vmatprep.mubr.f32.mxu0 0.0
        %8930 = vmatmul.mubr.f32.gmra.mrb[0].mxu0 %v8610
        %v8931 = vpop.f32.mrb[0].mxu0
        %v8932 = vadd.f32 0.0, %v8931
        %v8933 = vpop.f32.mrb[0].mxu0
        %8934 = vmatprep.mubr.f32.mxu0 0.0
        %8935 = vmatmul.mubr.f32.gmra.mrb[0].mxu0 %v8613
        %v8936 = vpop.f32.mrb[0].mxu0
        %v8937 = vadd.f32 0.0, %v8936
        %v8938 = vpop.f32.mrb[0].mxu0
        %8939 = vmatprep.mubr.f32.mxu0 0.0
        %8940 = vmatmul.mubr.f32.gmra.mrb[0].mxu0 %v8616
        %v8941 = vpop.f32.mrb[0].mxu0
        %v8942 = vadd.f32 0.0, %v8941
        %v8943 = vpop.f32.mrb[0].mxu0
        %8944 = vmatprep.mubr.f32.mxu0 0.0
        %8945 = vmatmul.mubr.f32.gmra.mrb[0].mxu0 %v8619
        %v8946 = vpop.f32.mrb[0].mxu0
        %v8947 = vadd.f32 0.0, %v8946
        %v8948 = vpop.f32.mrb[0].mxu0
        %8949 = vmatprep.mubr.f32.mxu0 0.0
        %8950 = vmatmul.mubr.f32.gmra.mrb[0].mxu0 %v8622
        %v8951 = vpop.f32.mrb[0].mxu0
        %v8952 = vadd.f32 0.0, %v8951
        %v8953 = vpop.f32.mrb[0].mxu0
        %8954 = vmatprep.mubr.f32.mxu0 0.0
        %8955 = vmatmul.mubr.f32.gmra.mrb[0].mxu0 %v8625
        %v8956 = vpop.f32.mrb[0].mxu0
        %v8957 = vadd.f32 0.0, %v8956
        %v8958 = vpop.f32.mrb[0].mxu0
        %8959 = vmatprep.mubr.f32.mxu0 0.0
        %8960 = vmatmul.mubr.f32.gmra.mrb[0].mxu0 %v8628
        %v8961 = vpop.f32.mrb[0].mxu0
        %v8962 = vadd.f32 0.0, %v8961
        %v8963 = vpop.f32.mrb[0].mxu0
        %8964 = vmatprep.mubr.f32.mxu0 0.0
        %8965 = vmatmul.mubr.f32.gmra.mrb[0].mxu0 %v8631
        %v8966 = vpop.f32.mrb[0].mxu0
        %v8967 = vadd.f32 0.0, %v8966
        %v8968 = vpop.f32.mrb[0].mxu0
        %8969 = vmatprep.mubr.f32.mxu0 0.0
        %8970 = vmatmul.mubr.f32.gmra.mrb[0].mxu0 %v8634
        %v8971 = vpop.f32.mrb[0].mxu0
        %v8972 = vadd.f32 0.0, %v8971
        %v8973 = vpop.f32.mrb[0].mxu0
        %8974 = vmatprep.mubr.f32.mxu0 0.0
        %8975 = vmatmul.mubr.f32.gmra.mrb[0].mxu0 %v8637
        %v8976 = vpop.f32.mrb[0].mxu0
        %v8977 = vadd.f32 0.0, %v8976
        %v8978 = vpop.f32.mrb[0].mxu0
        %8979 = vmatprep.mubr.f32.mxu0 0.0
        %8980 = vmatmul.mubr.f32.gmra.mrb[0].mxu0 %v8640
        %v8981 = vpop.f32.mrb[0].mxu0
        %v8982 = vadd.f32 0.0, %v8981
        %v8983 = vpop.f32.mrb[0].mxu0
        %8984 = vmatprep.mubr.f32.mxu0 0.0
        %8985 = vmatmul.mubr.f32.gmra.mrb[0].mxu0 %v8643
        %v8986 = vpop.f32.mrb[0].mxu0
        %v8987 = vadd.f32 0.0, %v8986
        %v8988 = vpop.f32.mrb[0].mxu0
        %8989 = vmatprep.mubr.f32.mxu0 0.0
        %8990 = vmatmul.mubr.f32.gmra.mrb[0].mxu0 %v8646
        %v8991 = vpop.f32.mrb[0].mxu0
        %v8992 = vadd.f32 0.0, %v8991
        %v8993 = vpop.f32.mrb[0].mxu0
        %8994 = vmatprep.mubr.f32.mxu0 0.0
        %8995 = vmatmul.mubr.f32.gmra.mrb[0].mxu0 %v8649
        %v8996 = vpop.f32.mrb[0].mxu0
        %v8997 = vadd.f32 0.0, %v8996
        %v8998 = vpop.f32.mrb[0].mxu0
        %8999 = vmatprep.mubr.f32.mxu0 0.0
        %9000 = vmatmul.mubr.f32.gmra.mrb[0].mxu0 %v8652
        %v9001 = vpop.f32.mrb[0].mxu0
        %v9002 = vadd.f32 0.0, %v9001
        %v9003 = vpop.f32.mrb[0].mxu0
        %9004 = vmatprep.mubr.f32.mxu0 0.0
        %9005 = vmatmul.mubr.f32.gmra.mrb[0].mxu0 %v8655
        %v9006 = vpop.f32.mrb[0].mxu0
        %v9007 = vadd.f32 0.0, %v9006
        %v9008 = vpop.f32.mrb[0].mxu0
        %9009 = vmatprep.mubr.f32.mxu0 0.0
        %9010 = vmatmul.mubr.f32.gmra.mrb[0].mxu0 %v8658
        %v9011 = vpop.f32.mrb[0].mxu0
        %v9012 = vadd.f32 0.0, %v9011
        %v9013 = vpop.f32.mrb[0].mxu0
        %9014 = vmatprep.mubr.f32.mxu0 0.0
        %9015 = vmatmul.mubr.f32.gmra.mrb[0].mxu0 %v8661
        %v9016 = vpop.f32.mrb[0].mxu0
        %v9017 = vadd.f32 0.0, %v9016
        %v9018 = vpop.f32.mrb[0].mxu0
        %9019 = vmatprep.mubr.f32.mxu0 0.0
        %9020 = vmatmul.mubr.f32.gmra.mrb[0].mxu0 %v8664
        %v9021 = vpop.f32.mrb[0].mxu0
        %v9022 = vadd.f32 0.0, %v9021
        %v9023 = vpop.f32.mrb[0].mxu0
        %9024 = vmatprep.mubr.f32.mxu0 0.0
        %9025 = vmatmul.mubr.f32.gmra.mrb[0].mxu0 %v8667
        %v9026 = vpop.f32.mrb[0].mxu0
        %v9027 = vadd.f32 0.0, %v9026
        %v9028 = vpop.f32.mrb[0].mxu0
        %9029 = vmatprep.mubr.f32.mxu0 0.0
        %9030 = vmatmul.mubr.f32.gmra.mrb[0].mxu0 %v8670
        %v9031 = vpop.f32.mrb[0].mxu0
        %v9032 = vadd.f32 0.0, %v9031
        %v9033 = vpop.f32.mrb[0].mxu0
        %9034 = vmatprep.mubr.f32.mxu0 0.0
        %9035 = vmatmul.mubr.f32.gmra.mrb[0].mxu0 %v8673
        %v9036 = vpop.f32.mrb[0].mxu0
        %v9037 = vadd.f32 0.0, %v9036
        %v9038 = vpop.f32.mrb[0].mxu0
        %9039 = vmatprep.mubr.f32.mxu0 0.0
        %9040 = vmatmul.mubr.f32.gmra.mrb[0].mxu0 %v8676
        %v9041 = vpop.f32.mrb[0].mxu0
        %v9042 = vadd.f32 0.0, %v9041
        %v9043 = vpop.f32.mrb[0].mxu0
        %9044 = vmatprep.mubr.f32.mxu0 0.0
        %9045 = vmatmul.mubr.f32.gmra.mrb[0].mxu0 %v8679
        %v9046 = vpop.f32.mrb[0].mxu0
        %v9047 = vadd.f32 0.0, %v9046
        %v9048 = vpop.f32.mrb[0].mxu0
        %9049 = vmatprep.mubr.f32.mxu0 0.0
        %9050 = vmatmul.mubr.f32.gmra.mrb[0].mxu0 %v8682
        %v9051 = vpop.f32.mrb[0].mxu0
        %v9052 = vadd.f32 0.0, %v9051
        %v9053 = vpop.f32.mrb[0].mxu0
        %9054 = vmatprep.mubr.f32.mxu0 0.0
        %9055 = vmatmul.mubr.f32.gmra.mrb[0].mxu0 %v8685
        %v9056 = vpop.f32.mrb[0].mxu0
        %v9057 = vadd.f32 0.0, %v9056
        %v9058 = vpop.f32.mrb[0].mxu0
        %9059 = vmatprep.mubr.f32.mxu0 0.0
        %9060 = vmatmul.mubr.f32.gmra.mrb[0].mxu0 %v8688
        %v9061 = vpop.f32.mrb[0].mxu0
        %v9062 = vadd.f32 0.0, %v9061
        %v9063 = vpop.f32.mrb[0].mxu0
        %9064 = vmatprep.mubr.f32.mxu0 0.0
        %9065 = vmatmul.mubr.f32.gmra.mrb[0].mxu0 %v8691
        %v9066 = vpop.f32.mrb[0].mxu0
        %v9067 = vadd.f32 0.0, %v9066
        %v9068 = vpop.f32.mrb[0].mxu0
        %9069 = vmatprep.mubr.f32.mxu0 0.0
        %9070 = vmatmul.mubr.f32.gmra.mrb[0].mxu0 %v8694
        %v9071 = vpop.f32.mrb[0].mxu0
        %v9072 = vadd.f32 0.0, %v9071
        %v9073 = vpop.f32.mrb[0].mxu0
        %9074 = vmatprep.mubr.f32.mxu0 0.0
        %9075 = vmatmul.mubr.f32.gmra.mrb[0].mxu0 %v8697
        %v9076 = vpop.f32.mrb[0].mxu0
        %v9077 = vadd.f32 0.0, %v9076
        %v9078 = vpop.f32.mrb[0].mxu0
        %9079 = vmatprep.mubr.f32.mxu0 0.0
        %9080 = vmatmul.mubr.f32.gmra.mrb[0].mxu0 %v8700
        %v9081 = vpop.f32.mrb[0].mxu0
        %v9082 = vadd.f32 0.0, %v9081
        %v9083 = vpop.f32.mrb[0].mxu0
        %9084 = vmatprep.mubr.f32.mxu0 0.0
        %9085 = vmatmul.mubr.f32.gmra.mrb[0].mxu0 %v8703
        %v9086 = vpop.f32.mrb[0].mxu0
        %v9087 = vadd.f32 0.0, %v9086
        %v9088 = vpop.f32.mrb[0].mxu0
        %9089 = vdwg.mxu0
        %v9090 = vsub.f32 %v8195, %v8772
        %v9091 = vsub.f32 %v8200, %v8777
        %v9092 = vsub.f32 %v8205, %v8782
        %v9093 = vsub.f32 %v8210, %v8787
        %v9094 = vsub.f32 %v8215, %v8792
        %v9095 = vsub.f32 %v8220, %v8797
        %v9096 = vsub.f32 %v8225, %v8802
        %v9097 = vsub.f32 %v8230, %v8807
        %v9098 = vsub.f32 %v8235, %v8812
        %v9099 = vsub.f32 %v8240, %v8817
        %v9100 = vsub.f32 %v8245, %v8822
        %v9101 = vsub.f32 %v8250, %v8827
        %v9102 = vsub.f32 %v8255, %v8832
        %v9103 = vsub.f32 %v8260, %v8837
        %v9104 = vsub.f32 %v8265, %v8842
        %v9105 = vsub.f32 %v8270, %v8847
        %v9106 = vsub.f32 %v8275, %v8852
        %v9107 = vsub.f32 %v8280, %v8857
        %v9108 = vsub.f32 %v8285, %v8862
        %v9109 = vsub.f32 %v8290, %v8867
        %v9110 = vsub.f32 %v8295, %v8872
        %v9111 = vsub.f32 %v8300, %v8877
        %v9112 = vsub.f32 %v8305, %v8882
        %v9113 = vsub.f32 %v8310, %v8887
        %v9114 = vsub.f32 %v8315, %v8892
        %v9115 = vsub.f32 %v8320, %v8897
        %v9116 = vsub.f32 %v8325, %v8902
        %v9117 = vsub.f32 %v8330, %v8907
        %v9118 = vsub.f32 %v8335, %v8912
        %v9119 = vsub.f32 %v8340, %v8917
        %v9120 = vsub.f32 %v8345, %v8922
        %v9121 = vsub.f32 %v8350, %v8927
        %v9122 = vsub.f32 %v8355, %v8932
        %v9123 = vsub.f32 %v8360, %v8937
        %v9124 = vsub.f32 %v8365, %v8942
        %v9125 = vsub.f32 %v8370, %v8947
        %v9126 = vsub.f32 %v8375, %v8952
        %v9127 = vsub.f32 %v8380, %v8957
        %v9128 = vsub.f32 %v8385, %v8962
        %v9129 = vsub.f32 %v8390, %v8967
        %v9130 = vsub.f32 %v8395, %v8972
        %v9131 = vsub.f32 %v8400, %v8977
        %v9132 = vsub.f32 %v8405, %v8982
        %v9133 = vsub.f32 %v8410, %v8987
        %v9134 = vsub.f32 %v8415, %v8992
        %v9135 = vsub.f32 %v8420, %v8997
        %v9136 = vsub.f32 %v8425, %v9002
        %v9137 = vsub.f32 %v8430, %v9007
        %v9138 = vsub.f32 %v8435, %v9012
        %v9139 = vsub.f32 %v8440, %v9017
        %v9140 = vsub.f32 %v8445, %v9022
        %v9141 = vsub.f32 %v8450, %v9027
        %v9142 = vsub.f32 %v8455, %v9032
        %v9143 = vsub.f32 %v8460, %v9037
        %v9144 = vsub.f32 %v8465, %v9042
        %v9145 = vsub.f32 %v8470, %v9047
        %v9146 = vsub.f32 %v8475, %v9052
        %v9147 = vsub.f32 %v8480, %v9057
        %v9148 = vsub.f32 %v8485, %v9062
        %v9149 = vsub.f32 %v8490, %v9067
        %v9150 = vsub.f32 %v8495, %v9072
        %v9151 = vsub.f32 %v8500, %v9077
        %v9152 = vsub.f32 %v8505, %v9082
        %v9153 = vsub.f32 %v8510, %v9087
        %9154 = vst.msk [vmem:[%s300] sm:$0xff] %vm373, %v9090
        %9155 = vst.msk [vmem:[%s300 + $0x8] sm:$0xff] %vm373, %v9091
        %9156 = vst.msk [vmem:[%s300 + $0x10] sm:$0xff] %vm373, %v9092
        %9157 = vst.msk [vmem:[%s300 + $0x18] sm:$0xff] %vm373, %v9093
        %9158 = vst.msk [vmem:[%s300 + $0x20] sm:$0xff] %vm373, %v9094
        %9159 = vst.msk [vmem:[%s300 + $0x28] sm:$0xff] %vm373, %v9095
        %9160 = vst.msk [vmem:[%s300 + $0x30] sm:$0xff] %vm373, %v9096
        %9161 = vst.msk [vmem:[%s300 + $0x38] sm:$0xff] %vm373, %v9097
        %9162 = vst.msk [vmem:[%s300 + $0x40] sm:$0xff] %vm373, %v9098
        %9163 = vst.msk [vmem:[%s300 + $0x48] sm:$0xff] %vm373, %v9099
        %9164 = vst.msk [vmem:[%s300 + $0x50] sm:$0xff] %vm373, %v9100
        %9165 = vst.msk [vmem:[%s300 + $0x58] sm:$0xff] %vm373, %v9101
        %9166 = vst.msk [vmem:[%s300 + $0x60] sm:$0xff] %vm373, %v9102
        %9167 = vst.msk [vmem:[%s300 + $0x68] sm:$0xff] %vm373, %v9103
        %9168 = vst.msk [vmem:[%s300 + $0x70] sm:$0xff] %vm373, %v9104
        %9169 = vst.msk [vmem:[%s300 + $0x78] sm:$0xff] %vm373, %v9105
        %9170 = vst.msk [vmem:[%s300 + $0x80] sm:$0xff] %vm373, %v9106
        %9171 = vst.msk [vmem:[%s300 + $0x88] sm:$0xff] %vm373, %v9107
        %9172 = vst.msk [vmem:[%s300 + $0x90] sm:$0xff] %vm373, %v9108
        %9173 = vst.msk [vmem:[%s300 + $0x98] sm:$0xff] %vm373, %v9109
        %9174 = vst.msk [vmem:[%s300 + $0xa0] sm:$0xff] %vm373, %v9110
        %9175 = vst.msk [vmem:[%s300 + $0xa8] sm:$0xff] %vm373, %v9111
        %9176 = vst.msk [vmem:[%s300 + $0xb0] sm:$0xff] %vm373, %v9112
        %9177 = vst.msk [vmem:[%s300 + $0xb8] sm:$0xff] %vm373, %v9113
        %9178 = vst.msk [vmem:[%s300 + $0xc0] sm:$0xff] %vm373, %v9114
        %9179 = vst.msk [vmem:[%s300 + $0xc8] sm:$0xff] %vm373, %v9115
        %9180 = vst.msk [vmem:[%s300 + $0xd0] sm:$0xff] %vm373, %v9116
        %9181 = vst.msk [vmem:[%s300 + $0xd8] sm:$0xff] %vm373, %v9117
        %9182 = vst.msk [vmem:[%s300 + $0xe0] sm:$0xff] %vm373, %v9118
        %9183 = vst.msk [vmem:[%s300 + $0xe8] sm:$0xff] %vm373, %v9119
        %9184 = vst.msk [vmem:[%s300 + $0xf0] sm:$0xff] %vm373, %v9120
        %9185 = vst.msk [vmem:[%s300 + $0xf8] sm:$0xff] %vm373, %v9121
        %9186 = vst.msk [vmem:[%s300 + $0x100] sm:$0xff] %vm373, %v9122
        %9187 = vst.msk [vmem:[%s300 + $0x108] sm:$0xff] %vm373, %v9123
        %9188 = vst.msk [vmem:[%s300 + $0x110] sm:$0xff] %vm373, %v9124
        %9189 = vst.msk [vmem:[%s300 + $0x118] sm:$0xff] %vm373, %v9125
        %9190 = vst.msk [vmem:[%s300 + $0x120] sm:$0xff] %vm373, %v9126
        %9191 = vst.msk [vmem:[%s300 + $0x128] sm:$0xff] %vm373, %v9127
        %9192 = vst.msk [vmem:[%s300 + $0x130] sm:$0xff] %vm373, %v9128
        %9193 = vst.msk [vmem:[%s300 + $0x138] sm:$0xff] %vm373, %v9129
        %9194 = vst.msk [vmem:[%s300 + $0x140] sm:$0xff] %vm373, %v9130
        %9195 = vst.msk [vmem:[%s300 + $0x148] sm:$0xff] %vm373, %v9131
        %9196 = vst.msk [vmem:[%s300 + $0x150] sm:$0xff] %vm373, %v9132
        %9197 = vst.msk [vmem:[%s300 + $0x158] sm:$0xff] %vm373, %v9133
        %9198 = vst.msk [vmem:[%s300 + $0x160] sm:$0xff] %vm373, %v9134
        %9199 = vst.msk [vmem:[%s300 + $0x168] sm:$0xff] %vm373, %v9135
        %9200 = vst.msk [vmem:[%s300 + $0x170] sm:$0xff] %vm373, %v9136
        %9201 = vst.msk [vmem:[%s300 + $0x178] sm:$0xff] %vm373, %v9137
        %9202 = vst.msk [vmem:[%s300 + $0x180] sm:$0xff] %vm373, %v9138
        %9203 = vst.msk [vmem:[%s300 + $0x188] sm:$0xff] %vm373, %v9139
        %9204 = vst.msk [vmem:[%s300 + $0x190] sm:$0xff] %vm373, %v9140
        %9205 = vst.msk [vmem:[%s300 + $0x198] sm:$0xff] %vm373, %v9141
        %9206 = vst.msk [vmem:[%s300 + $0x1a0] sm:$0xff] %vm373, %v9142
        %9207 = vst.msk [vmem:[%s300 + $0x1a8] sm:$0xff] %vm373, %v9143
        %9208 = vst.msk [vmem:[%s300 + $0x1b0] sm:$0xff] %vm373, %v9144
        %9209 = vst.msk [vmem:[%s300 + $0x1b8] sm:$0xff] %vm373, %v9145
        %9210 = vst.msk [vmem:[%s300 + $0x1c0] sm:$0xff] %vm373, %v9146
        %9211 = vst.msk [vmem:[%s300 + $0x1c8] sm:$0xff] %vm373, %v9147
        %9212 = vst.msk [vmem:[%s300 + $0x1d0] sm:$0xff] %vm373, %v9148
        %9213 = vst.msk [vmem:[%s300 + $0x1d8] sm:$0xff] %vm373, %v9149
        %9214 = vst.msk [vmem:[%s300 + $0x1e0] sm:$0xff] %vm373, %v9150
        %9215 = vst.msk [vmem:[%s300 + $0x1e8] sm:$0xff] %vm373, %v9151
        %9216 = vst.msk [vmem:[%s300 + $0x1f0] sm:$0xff] %vm373, %v9152
        %9217 = vst.msk [vmem:[%s300 + $0x1f8] sm:$0xff] %vm373, %v9153
        %s9218 = sand.u32 %s142, 1
        %s9219 = scalar_lea.sflag [#allocation4], %s9218
        %s9220 = sand.u32 %s142, 1
        %s9221 = smul.addr %s9220, 512
        %s9222 = scalar_lea.vmem [#allocation11], %s9221
        // Predicated region
        $region61: #{tpu_custom_call.1} parent=39 // pred_check
          %p9223 = pneg %p152
        $region62: #{tpu_custom_call.1} parent=39 // pred_check_branch
          %9225 = sbr.rel (%p9223) target = $region64
        $region63: #{tpu_custom_call.1} parent=39 // pred_region
          %s9227 = ssub.s32 8192, 8192
          %9228 = vsyncadd %s9219, %s9227
          %s9229 = smul.addr %s24, 64
          %s9230 = smul.addr %s9229, 128
          %s9231 = scalar_lea.hbm %s5, %s9230
          %s9232 = sshll.u32 %s9222, 4
          %s9233 = int_to_ptr.vmem [resolvable:$true] %s9232
          %9238 = dma.vmem_to_hbm [thread:$0]  %s9233, 8192, %s9231, %s9219, 128, 128, 8
        $region64: #{tpu_custom_call.1} parent=39 // pred_fallthru
          _
      $region40: #{tpu_custom_call.1} parent=5 // pred_fallthru
        _
      %p9239 = scmp.le.s32.totalorder 2, %s19
      // Predicated region
      $region65: #{tpu_custom_call.1} parent=5 // pred_check
        %p9240 = pneg %p9239
      $region66: #{tpu_custom_call.1} parent=5 // pred_check_branch
        %9242 = sbr.rel (%p9240) target = $region68
      $region67: #{tpu_custom_call.1} parent=5 // pred_region
        %s9243 = ssub.s32 %s19, 2
        // Predicated region
        $region69: #{tpu_custom_call.1} parent=67 // pred_check
          %p9244 = pneg %p158
        $region70: #{tpu_custom_call.1} parent=67 // pred_check_branch
          %9246 = sbr.rel (%p9244) target = $region72
        $region71: #{tpu_custom_call.1} parent=67 // pred_region
          %s9247 = sand.u32 %s143, 1
          %s9248 = scalar_lea.sflag [#allocation4], %s9247
          %s9249 = sand.u32 %s143, 1
          %s9250 = smul.addr %s9249, 512
          %s9251 = scalar_lea.vmem [#allocation11], %s9250
          %9252 = dma.done %s9248, 8192
        $region72: #{tpu_custom_call.1} parent=67 // pred_fallthru
          _
      $region68: #{tpu_custom_call.1} parent=5 // pred_fallthru
        _
    $region6: #{tpu_custom_call.1} parent=1 // loop_footer
      %s23 = sadd.s32 1, %s19
    $region7: #{tpu_custom_call.1} parent=1 // loop_footer_branch
      %18 = sbr.rel target = $region3
    $region8: #{tpu_custom_call.1} parent=1 // loop_exit
      _
    %9253 = vsyncpa [#allocation3], 1
    %s9254 = scalar_lea.sflag [#allocation3], 1
    %9255 = vsyncpa %s9254, 1
    %9256 = vsyncpa [#allocation6], 1
    %9257 = vsyncpa [#allocation9], 1
    %9258 = vsyncpa [#allocation4], 1
    %s9259 = scalar_lea.sflag [#allocation4], 1
    %9260 = vsyncpa %s9259, 1

</llo_original>
